<compile_context>
chip_gen: v6e
topology: v6e:2x2x1
jax: 0.10.0
libtpu: 0.0.40
codegen_flags: <defaults>
</compile_context>

<pallas_src>
import jax
import jax.numpy as jnp
from jax import lax
from jax.experimental import pallas as pl
from jax.experimental.pallas import tpu as pltpu


# ----------------------------------------------------------------------------
# One-time (host-side) weight packing -- hoisted out of the forward hot path.
# ----------------------------------------------------------------------------
def _pack_deconv_weights(w_t, bias, cin_pad=None, cout_pad=None):
    """Pack a PyTorch ConvTranspose2d(k=6, s=2, p=2) weight for the kernel.

    w_t: (Cin, Cout, 6, 6) PyTorch layout, bias: (Cout,).
    Channels may be zero-padded to `cin_pad` / `cout_pad` for lane alignment.
    Returns:
      w_packed   : (9*Cin_p, 4*Cout_p) bf16.  Rows ordered (di, dj, cin) --
                   the im2col contraction of the 3x3 polyphase conv; columns
                   ordered (ph, pw, cout) -- the 4 sub-pixel output phases.
      bias_packed: (1, 4*Cout_p) f32 (bias tiled once per phase).
    """
    cin, cout = w_t.shape[0], w_t.shape[1]
    cin_p = cin if cin_pad is None else cin_pad
    cout_p = cout if cout_pad is None else cout_pad
    # Equivalent forward-conv weight: spatial flip + channel swap -> HWIO.
    wf = jnp.transpose(w_t[:, :, ::-1, ::-1], (2, 3, 0, 1))      # (6,6,Cin,Cout)
    wf = jnp.pad(wf, ((0, 0), (0, 0), (0, cin_p - cin), (0, cout_p - cout)))
    # Output parity (ph, pw) uses taps (1-ph)+2*di, (1-pw)+2*dj (3x3 each).
    phases = []
    for ph in (0, 1):
        for pw in (0, 1):
            wp = wf[(1 - ph)::2, (1 - pw)::2]                    # (3,3,Cin_p,Cout_p)
            phases.append(wp.reshape(9 * cin_p, cout_p))
    w_packed = jnp.concatenate(phases, axis=1).astype(jnp.bfloat16)
    b = jnp.pad(bias, (0, cout_p - cout))
    bias_packed = jnp.tile(b, 4).reshape(1, 4 * cout_p).astype(jnp.float32)
    return w_packed, bias_packed


def prepare_decoder2_params(params):
    """Pre-pack both deconv layers (flip, phase-split, im2col 2-D, bf16).

    The hidden channel count is padded 48 -> 64 (zero weight columns of layer
    1 / zero weight rows of layer 2), so the extra K contributes exactly 0.
    """
    w1p, b1p = _pack_deconv_weights(params["w1"], params["b1"],
                                    cin_pad=64, cout_pad=64)      # (576, 256)
    w2p, b2p = _pack_deconv_weights(params["w2"], params["b2"],
                                    cin_pad=64, cout_pad=32)      # (576, 128)
    return {"w1p": w1p, "b1p": b1p, "w2p": w2p, "b2p": b2p}


# ----------------------------------------------------------------------------
# Fused kernel: relu(deconv1(x)) -> deconv2, whole batch in one grid step.
# ----------------------------------------------------------------------------
def _decoder2_kernel(x_ref, w1_ref, b1_ref, w2_ref, b2_ref, o_ref,
                     xpad_ref, hpad_ref, p2_ref):
    """
    x_ref   : (B, H, W, 64)  unpadded NHWC input, bf16
    w1_ref  : (9*64, 4*64)   bf16 packed polyphase weight of deconv1 (padded)
    b1_ref  : (1, 4*64)      f32
    w2_ref  : (9*64, 4*32)   bf16 packed polyphase weight of deconv2
    b2_ref  : (1, 4*32)      f32
    o_ref   : (4, B, H*W, 4*32) f32 ; dim0 = layer-2 sub-pixel group (pu, pv),
              dim3 = (qh, qw, cout) -- de-interleaved in the wrapper.
    xpad_ref: (B, H+2, W+2, 64) bf16  zero-padded input scratch
    hpad_ref: (B, 2*(H+1), 2, W+1, 64) bf16  parity-split, zero-padded layer-1
              activation:  hpad[b, pi*(H+1)+hi, pj, hj, c]
                              == relu(deconv1)_padded[b, 2*hi+pi, 2*hj+pj, c]
    p2_ref  : (4*B*H*W, 9*64) bf16   stacked im2col scratch for layer 2
    """
    B, H, W, c0 = x_ref.shape
    c1p = hpad_ref.shape[-1]           # 64 (48 real + 16 zero-padded)
    nh = H + 1                         # half-rows of the padded activation
    bhw = B * H * W

    # ---------------- fused input zero-pad ----------------------------------
    xpad_ref[...] = jnp.zeros(xpad_ref.shape, xpad_ref.dtype)
    xpad_ref[:, 1:H + 1, 1:W + 1, :] = x_ref[...]

    # ---------------- layer 1: relu(deconv1(x)) -----------------------------
    # Shared im2col operand as a traced value straight into one MXU dot
    # (all 4 sub-pixel phases read the same 3x3 neighborhood of the pad-1
    #  input; the 4 phase weights are packed along the dot's N axis).
    taps = []
    for di in range(3):
        for dj in range(3):
            t = xpad_ref[:, di:di + H, dj:dj + W, :]             # (B,H,W,c0)
            taps.append(t.reshape(bhw, c0))
    p1 = jnp.concatenate(taps, axis=1)                           # (BHW, 9*c0)

    acc1 = jnp.dot(p1, w1_ref[...], preferred_element_type=jnp.float32)
    act1 = jnp.maximum(acc1 + b1_ref[...], 0.0).astype(jnp.bfloat16)
    # act1: (BHW, 4*c1p), columns ordered (ph, pw, c).

    # Scatter the 4 phases into the parity-split zero-padded scratch: one
    # contiguous slice store per phase (interior fully overwritten; the halo
    # keeps the memset zeros = conv padding).
    hpad_ref[...] = jnp.zeros(hpad_ref.shape, hpad_ref.dtype)
    for ph in range(2):
        for pw in range(2):
            blk = act1[:, (2 * ph + pw) * c1p:(2 * ph + pw + 1) * c1p]
            r0 = (1 - ph) * nh + ph
            hpad_ref[:, r0:r0 + H, 1 - pw, pw:pw + W, :] = (
                blk.reshape(B, H, W, c1p))

    # ---------------- layer 2: deconv2(act1) --------------------------------
    # All 4 output sub-pixel groups (pu, pv) are stacked along M, so a single
    # (4*BHW, 9*c1p) @ (9*c1p, 128) dot replaces four small ones.
    for pu in range(2):
        for pv in range(2):
            g = 2 * pu + pv
            for di in range(3):
                pi, oi = (pu + di) % 2, (pu + di) // 2
                for dj in range(3):
                    pj, oj = (pv + dj) % 2, (pv + dj) // 2
                    t = hpad_ref[:, pi * nh + oi:pi * nh + oi + H,
                                 pj, oj:oj + W, :]               # (B,H,W,c1p)
                    k = di * 3 + dj
                    p2_ref[g * bhw:(g + 1) * bhw,
                           k * c1p:(k + 1) * c1p] = t.reshape(bhw, c1p)

    acc2 = jnp.dot(p2_ref[...], w2_ref[...],
                   preferred_element_type=jnp.float32)           # (4*BHW, 128)
    o_ref[...] = (acc2 + b2_ref[...]).reshape(o_ref.shape)


# ----------------------------------------------------------------------------
# Public forward: NCHW in, NCHW out (matches the PyTorch module).
# ----------------------------------------------------------------------------
def decoder2_forward(x_nchw, packed):
    B, c0, H, W = x_nchw.shape
    c1p = packed["w1p"].shape[1] // 4      # 64 (padded hidden channels)
    c2 = packed["w2p"].shape[1] // 4       # 32

    x = jnp.transpose(x_nchw, (0, 2, 3, 1)).astype(jnp.bfloat16)     # NHWC

    flops = 2 * (B * H * W) * (9 * c0) * (4 * c1p) \
        + 2 * (4 * B * H * W) * (9 * c1p) * (4 * c2)
    bytes_accessed = (x.size * 2 + packed["w1p"].size * 2
                      + packed["w2p"].size * 2 + packed["b1p"].size * 4
                      + packed["b2p"].size * 4 + 4 * B * H * W * 4 * c2 * 4)

    out = pl.pallas_call(
        _decoder2_kernel,
        out_shape=jax.ShapeDtypeStruct((4, B, H * W, 4 * c2), jnp.float32),
        grid_spec=pltpu.PrefetchScalarGridSpec(
            num_scalar_prefetch=0,
            grid=(1,),                      # batch folded into the matmul M
            in_specs=[
                pl.BlockSpec((B, H, W, c0), lambda i: (0, 0, 0, 0)),
                pl.BlockSpec((9 * c0, 4 * c1p), lambda i: (0, 0)),
                pl.BlockSpec((1, 4 * c1p), lambda i: (0, 0)),
                pl.BlockSpec((9 * c1p, 4 * c2), lambda i: (0, 0)),
                pl.BlockSpec((1, 4 * c2), lambda i: (0, 0)),
            ],
            out_specs=pl.BlockSpec((4, B, H * W, 4 * c2),
                                   lambda i: (0, 0, 0, 0)),
            scratch_shapes=[
                pltpu.VMEM((B, H + 2, W + 2, c0), jnp.bfloat16),        # xpad
                pltpu.VMEM((B, 2 * (H + 1), 2, W + 1, c1p), jnp.bfloat16),
                pltpu.VMEM((4 * B * H * W, 9 * c1p), jnp.bfloat16),     # p2
            ],
        ),
        compiler_params=pltpu.CompilerParams(
            dimension_semantics=("arbitrary",)),
        cost_estimate=pl.CostEstimate(flops=int(flops), transcendentals=0,
                                      bytes_accessed=int(bytes_accessed)),
    )(x, packed["w1p"], packed["b1p"], packed["w2p"], packed["b2p"])

    # Undo the sub-pixel grouping:
    #  out[2pu+pv, b, uh*W+vh, (2qh+qw)*c2+c] == y[b, c, 4uh+2pu+qh, 4vh+2pv+qw]
    t = out.reshape(2, 2, B, H, W, 2, 2, c2)       # pu, pv, b, uh, vh, qh, qw, c
    y = jnp.transpose(t, (2, 7, 3, 0, 5, 4, 1, 6)) # b, c, uh, pu, qh, vh, pv, qw
    return y.reshape(B, c2, 4 * H, 4 * W)          # NCHW


# ----------------------------------------------------------------------------
# Pure-JAX f32 reference (lax.conv_general_dilated with lhs_dilation).
# ----------------------------------------------------------------------------
def _reference_conv_transpose(x_nhwc, w_t, bias, stride, padding):
    kh, kw = w_t.shape[2], w_t.shape[3]
    w_hwio = jnp.transpose(w_t[:, :, ::-1, ::-1], (2, 3, 0, 1))
    out = lax.conv_general_dilated(
        x_nhwc, w_hwio, window_strides=(1, 1),
        padding=[(kh - 1 - padding,) * 2, (kw - 1 - padding,) * 2],
        lhs_dilation=(stride, stride),
        dimension_numbers=("NHWC", "HWIO", "NHWC"))
    return out + bias[None, None, None, :]


if __name__ == "__main__":
    key = jax.random.PRNGKey(0)
    k_x, k_w1, k_b1, k_w2, k_b2 = jax.random.split(key, 5)

    # Deterministic synthetic parameters (shapes from Decoder2.__init__).
    params = {
        "w1": 0.05 * jax.random.normal(k_w1, (64, 48, 6, 6), jnp.float32),
        "b1": 0.05 * jax.random.normal(k_b1, (48,), jnp.float32),
        "w2": 0.05 * jax.random.normal(k_w2, (48, 32, 6, 6), jnp.float32),
        "b2": 0.05 * jax.random.normal(k_b2, (32,), jnp.float32),
    }

    # Small input consistent with the module: NCHW (B=2, C=64, H=W=8).
    x = jax.random.normal(k_x, (2, 64, 8, 8), jnp.float32)

    packed = prepare_decoder2_params(params)       # hoisted weight packing
    fwd = jax.jit(decoder2_forward)
    out = jax.block_until_ready(fwd(x, packed))
    assert out.shape == (2, 32, 32, 32), out.shape

    # Cross-check against a pure-f32 reference of the same forward pass.
    # (Tolerance loosened because the kernel uses bf16 matmul operands with
    #  f32 accumulation; the zero channel padding contributes exactly 0.)
    x_nhwc = jnp.transpose(x, (0, 2, 3, 1))
    h = jnp.maximum(
        _reference_conv_transpose(x_nhwc, params["w1"], params["b1"], 2, 2), 0.0)
    ref = _reference_conv_transpose(h, params["w2"], params["b2"], 2, 2)
    ref = jnp.transpose(ref, (0, 3, 1, 2))
    max_err = float(jnp.max(jnp.abs(out - ref)))
    assert jnp.allclose(out, ref, atol=7.5e-2, rtol=5e-2), max_err

    print("KERNEL_OK")
</pallas_src>

<mosaic_0001>
module attributes {stable_mosaic.version = 11 : i64} {
  func.func @_decoder2_kernel(%arg0: i32, %arg1: memref<2x8x8x64xbf16, #tpu.memory_space<vmem>>, %arg2: memref<576x256xbf16, #tpu.memory_space<vmem>>, %arg3: memref<1x256xf32, #tpu.memory_space<vmem>>, %arg4: memref<576x128xbf16, #tpu.memory_space<vmem>>, %arg5: memref<1x128xf32, #tpu.memory_space<vmem>>, %arg6: memref<4x2x64x128xf32, #tpu.memory_space<vmem>>, %arg7: memref<2x10x10x64xbf16, #tpu.memory_space<vmem>>, %arg8: memref<2x18x2x9x64xbf16, #tpu.memory_space<vmem>>, %arg9: memref<512x576xbf16, #tpu.memory_space<vmem>>) attributes {dimension_semantics = [#tpu.dimension_semantics<arbitrary>], iteration_bounds = array<i64: 1>, scalar_prefetch = 0 : i64, scratch_operands = 3 : i64, tpu.core_type = #tpu.core_type<tc>, window_params = [{pipeline_mode = #tpu.pipeline_mode<synchronous>, transform_indices = @transform_0, window_bounds = array<i64: 2, 8, 8, 64>}, {pipeline_mode = #tpu.pipeline_mode<synchronous>, transform_indices = @transform_1, window_bounds = array<i64: 576, 256>}, {pipeline_mode = #tpu.pipeline_mode<synchronous>, transform_indices = @transform_2, window_bounds = array<i64: 1, 256>}, {pipeline_mode = #tpu.pipeline_mode<synchronous>, transform_indices = @transform_3, window_bounds = array<i64: 576, 128>}, {pipeline_mode = #tpu.pipeline_mode<synchronous>, transform_indices = @transform_4, window_bounds = array<i64: 1, 128>}, {pipeline_mode = #tpu.pipeline_mode<synchronous>, transform_indices = @transform_5, window_bounds = array<i64: 4, 2, 64, 128>}]} {
    %cst = arith.constant 0.000000e+00 : bf16
    %0 = vector.broadcast %cst : bf16 to vector<2x10x10x64xbf16>
    %c0 = arith.constant 0 : index
    %c0_0 = arith.constant 0 : index
    %c0_1 = arith.constant 0 : index
    %c0_2 = arith.constant 0 : index
    %1 = vector.load %arg7[%c0, %c0_0, %c0_1, %c0_2] : memref<2x10x10x64xbf16, #tpu.memory_space<vmem>>, vector<2x10x10x64xbf16>
    tpu.vector_store %arg7[%c0, %c0_0, %c0_1, %c0_2], %0 {strides = array<i32>} : memref<2x10x10x64xbf16, #tpu.memory_space<vmem>>, vector<2x10x10x64xbf16>,
    %c0_3 = arith.constant 0 : index
    %c0_4 = arith.constant 0 : index
    %c0_5 = arith.constant 0 : index
    %c0_6 = arith.constant 0 : index
    %2 = vector.load %arg1[%c0_3, %c0_4, %c0_5, %c0_6] : memref<2x8x8x64xbf16, #tpu.memory_space<vmem>>, vector<2x8x8x64xbf16>
    %c0_7 = arith.constant 0 : index
    %c1 = arith.constant 1 : index
    %c1_8 = arith.constant 1 : index
    %c0_9 = arith.constant 0 : index
    %3 = vector.load %arg7[%c0_7, %c1, %c1_8, %c0_9] : memref<2x10x10x64xbf16, #tpu.memory_space<vmem>>, vector<2x8x8x64xbf16>
    tpu.vector_store %arg7[%c0_7, %c1, %c1_8, %c0_9], %2 {strides = array<i32>} : memref<2x10x10x64xbf16, #tpu.memory_space<vmem>>, vector<2x8x8x64xbf16>,
    %c0_10 = arith.constant 0 : index
    %c0_11 = arith.constant 0 : index
    %c0_12 = arith.constant 0 : index
    %c0_13 = arith.constant 0 : index
    %4 = vector.load %arg7[%c0_10, %c0_11, %c0_12, %c0_13] : memref<2x10x10x64xbf16, #tpu.memory_space<vmem>>, vector<2x8x8x64xbf16>
    %5 = vector.shape_cast %4 : vector<2x8x8x64xbf16> to vector<128x64xbf16>
    %c0_14 = arith.constant 0 : index
    %c0_15 = arith.constant 0 : index
    %c1_16 = arith.constant 1 : index
    %c0_17 = arith.constant 0 : index
    %6 = vector.load %arg7[%c0_14, %c0_15, %c1_16, %c0_17] : memref<2x10x10x64xbf16, #tpu.memory_space<vmem>>, vector<2x8x8x64xbf16>
    %7 = vector.shape_cast %6 : vector<2x8x8x64xbf16> to vector<128x64xbf16>
    %c0_18 = arith.constant 0 : index
    %c0_19 = arith.constant 0 : index
    %c2 = arith.constant 2 : index
    %c0_20 = arith.constant 0 : index
    %8 = vector.load %arg7[%c0_18, %c0_19, %c2, %c0_20] : memref<2x10x10x64xbf16, #tpu.memory_space<vmem>>, vector<2x8x8x64xbf16>
    %9 = vector.shape_cast %8 : vector<2x8x8x64xbf16> to vector<128x64xbf16>
    %c0_21 = arith.constant 0 : index
    %c1_22 = arith.constant 1 : index
    %c0_23 = arith.constant 0 : index
    %c0_24 = arith.constant 0 : index
    %10 = vector.load %arg7[%c0_21, %c1_22, %c0_23, %c0_24] : memref<2x10x10x64xbf16, #tpu.memory_space<vmem>>, vector<2x8x8x64xbf16>
    %11 = vector.shape_cast %10 : vector<2x8x8x64xbf16> to vector<128x64xbf16>
    %c0_25 = arith.constant 0 : index
    %c1_26 = arith.constant 1 : index
    %c1_27 = arith.constant 1 : index
    %c0_28 = arith.constant 0 : index
    %12 = vector.load %arg7[%c0_25, %c1_26, %c1_27, %c0_28] : memref<2x10x10x64xbf16, #tpu.memory_space<vmem>>, vector<2x8x8x64xbf16>
    %13 = vector.shape_cast %12 : vector<2x8x8x64xbf16> to vector<128x64xbf16>
    %c0_29 = arith.constant 0 : index
    %c1_30 = arith.constant 1 : index
    %c2_31 = arith.constant 2 : index
    %c0_32 = arith.constant 0 : index
    %14 = vector.load %arg7[%c0_29, %c1_30, %c2_31, %c0_32] : memref<2x10x10x64xbf16, #tpu.memory_space<vmem>>, vector<2x8x8x64xbf16>
    %15 = vector.shape_cast %14 : vector<2x8x8x64xbf16> to vector<128x64xbf16>
    %c0_33 = arith.constant 0 : index
    %c2_34 = arith.constant 2 : index
    %c0_35 = arith.constant 0 : index
    %c0_36 = arith.constant 0 : index
    %16 = vector.load %arg7[%c0_33, %c2_34, %c0_35, %c0_36] : memref<2x10x10x64xbf16, #tpu.memory_space<vmem>>, vector<2x8x8x64xbf16>
    %17 = vector.shape_cast %16 : vector<2x8x8x64xbf16> to vector<128x64xbf16>
    %c0_37 = arith.constant 0 : index
    %c2_38 = arith.constant 2 : index
    %c1_39 = arith.constant 1 : index
    %c0_40 = arith.constant 0 : index
    %18 = vector.load %arg7[%c0_37, %c2_38, %c1_39, %c0_40] : memref<2x10x10x64xbf16, #tpu.memory_space<vmem>>, vector<2x8x8x64xbf16>
    %19 = vector.shape_cast %18 : vector<2x8x8x64xbf16> to vector<128x64xbf16>
    %c0_41 = arith.constant 0 : index
    %c2_42 = arith.constant 2 : index
    %c2_43 = arith.constant 2 : index
    %c0_44 = arith.constant 0 : index
    %20 = vector.load %arg7[%c0_41, %c2_42, %c2_43, %c0_44] : memref<2x10x10x64xbf16, #tpu.memory_space<vmem>>, vector<2x8x8x64xbf16>
    %21 = vector.shape_cast %20 : vector<2x8x8x64xbf16> to vector<128x64xbf16>
    %22 = tpu.concatenate %5, %7, %9, %11, %13, %15, %17, %19, %21 in 1 : vector<128x64xbf16>, vector<128x64xbf16>, vector<128x64xbf16>, vector<128x64xbf16>, vector<128x64xbf16>, vector<128x64xbf16>, vector<128x64xbf16>, vector<128x64xbf16>, vector<128x64xbf16> -> vector<128x576xbf16>
    %c0_45 = arith.constant 0 : index
    %c0_46 = arith.constant 0 : index
    %23 = vector.load %arg2[%c0_45, %c0_46] : memref<576x256xbf16, #tpu.memory_space<vmem>>, vector<576x256xbf16>
    %cst_47 = arith.constant dense<0.000000e+00> : vector<128x256xf32>
    %24 = tpu.matmul %22, %23, %cst_47 {dimension_numbers = #tpu.dot_dimension_numbers<[1], [0], [0], [1], [0, 0, 1, 1], [], []>} : vector<128x576xbf16>, vector<576x256xbf16>, vector<128x256xf32> -> vector<128x256xf32>
    %c0_48 = arith.constant 0 : index
    %c0_49 = arith.constant 0 : index
    %25 = vector.load %arg3[%c0_48, %c0_49] : memref<1x256xf32, #tpu.memory_space<vmem>>, vector<1x256xf32>
    %26 = vector.broadcast %25 : vector<1x256xf32> to vector<128x256xf32>
    %27 = arith.addf %24, %26 : vector<128x256xf32>
    %cst_50 = arith.constant 0.000000e+00 : f32
    %28 = vector.broadcast %cst_50 : f32 to vector<128x256xf32>
    %29 = arith.maximumf %27, %28 : vector<128x256xf32>
    %30 = arith.truncf %29 : vector<128x256xf32> to vector<128x256xbf16>
    %cst_51 = arith.constant 0.000000e+00 : bf16
    %31 = vector.broadcast %cst_51 : bf16 to vector<2x18x2x9x64xbf16>
    %c0_52 = arith.constant 0 : index
    %c0_53 = arith.constant 0 : index
    %c0_54 = arith.constant 0 : index
    %c0_55 = arith.constant 0 : index
    %c0_56 = arith.constant 0 : index
    %32 = vector.load %arg8[%c0_52, %c0_53, %c0_54, %c0_55, %c0_56] : memref<2x18x2x9x64xbf16, #tpu.memory_space<vmem>>, vector<2x18x2x9x64xbf16>
    tpu.vector_store %arg8[%c0_52, %c0_53, %c0_54, %c0_55, %c0_56], %31 {strides = array<i32>} : memref<2x18x2x9x64xbf16, #tpu.memory_space<vmem>>, vector<2x18x2x9x64xbf16>,
    %33 = vector.extract_strided_slice %30 {offsets = [0, 0], sizes = [128, 64], strides = [1, 1]} : vector<128x256xbf16> to vector<128x64xbf16>
    %34 = vector.shape_cast %33 : vector<128x64xbf16> to vector<2x8x8x64xbf16>
    %c0_57 = arith.constant 0 : index
    %c9 = arith.constant 9 : index
    %c1_58 = arith.constant 1 : index
    %c0_59 = arith.constant 0 : index
    %c0_60 = arith.constant 0 : index
    %35 = vector.load %arg8[%c0_57, %c9, %c1_58, %c0_59, %c0_60] : memref<2x18x2x9x64xbf16, #tpu.memory_space<vmem>>, vector<2x8x1x8x64xbf16>
    %36 = vector.shape_cast %35 : vector<2x8x1x8x64xbf16> to vector<2x8x8x64xbf16>
    %37 = vector.shape_cast %34 : vector<2x8x8x64xbf16> to vector<2x8x1x8x64xbf16>
    tpu.vector_store %arg8[%c0_57, %c9, %c1_58, %c0_59, %c0_60], %37 {strides = array<i32>} : memref<2x18x2x9x64xbf16, #tpu.memory_space<vmem>>, vector<2x8x1x8x64xbf16>,
    %38 = vector.extract_strided_slice %30 {offsets = [0, 64], sizes = [128, 64], strides = [1, 1]} : vector<128x256xbf16> to vector<128x64xbf16>
    %39 = vector.shape_cast %38 : vector<128x64xbf16> to vector<2x8x8x64xbf16>
    %c0_61 = arith.constant 0 : index
    %c9_62 = arith.constant 9 : index
    %c0_63 = arith.constant 0 : index
    %c1_64 = arith.constant 1 : index
    %c0_65 = arith.constant 0 : index
    %40 = vector.load %arg8[%c0_61, %c9_62, %c0_63, %c1_64, %c0_65] : memref<2x18x2x9x64xbf16, #tpu.memory_space<vmem>>, vector<2x8x1x8x64xbf16>
    %41 = vector.shape_cast %40 : vector<2x8x1x8x64xbf16> to vector<2x8x8x64xbf16>
    %42 = vector.shape_cast %39 : vector<2x8x8x64xbf16> to vector<2x8x1x8x64xbf16>
    tpu.vector_store %arg8[%c0_61, %c9_62, %c0_63, %c1_64, %c0_65], %42 {strides = array<i32>} : memref<2x18x2x9x64xbf16, #tpu.memory_space<vmem>>, vector<2x8x1x8x64xbf16>,
    %43 = vector.extract_strided_slice %30 {offsets = [0, 128], sizes = [128, 64], strides = [1, 1]} : vector<128x256xbf16> to vector<128x64xbf16>
    %44 = vector.shape_cast %43 : vector<128x64xbf16> to vector<2x8x8x64xbf16>
    %c0_66 = arith.constant 0 : index
    %c1_67 = arith.constant 1 : index
    %c1_68 = arith.constant 1 : index
    %c0_69 = arith.constant 0 : index
    %c0_70 = arith.constant 0 : index
    %45 = vector.load %arg8[%c0_66, %c1_67, %c1_68, %c0_69, %c0_70] : memref<2x18x2x9x64xbf16, #tpu.memory_space<vmem>>, vector<2x8x1x8x64xbf16>
    %46 = vector.shape_cast %45 : vector<2x8x1x8x64xbf16> to vector<2x8x8x64xbf16>
    %47 = vector.shape_cast %44 : vector<2x8x8x64xbf16> to vector<2x8x1x8x64xbf16>
    tpu.vector_store %arg8[%c0_66, %c1_67, %c1_68, %c0_69, %c0_70], %47 {strides = array<i32>} : memref<2x18x2x9x64xbf16, #tpu.memory_space<vmem>>, vector<2x8x1x8x64xbf16>,
    %48 = vector.extract_strided_slice %30 {offsets = [0, 192], sizes = [128, 64], strides = [1, 1]} : vector<128x256xbf16> to vector<128x64xbf16>
    %49 = vector.shape_cast %48 : vector<128x64xbf16> to vector<2x8x8x64xbf16>
    %c0_71 = arith.constant 0 : index
    %c1_72 = arith.constant 1 : index
    %c0_73 = arith.constant 0 : index
    %c1_74 = arith.constant 1 : index
    %c0_75 = arith.constant 0 : index
    %50 = vector.load %arg8[%c0_71, %c1_72, %c0_73, %c1_74, %c0_75] : memref<2x18x2x9x64xbf16, #tpu.memory_space<vmem>>, vector<2x8x1x8x64xbf16>
    %51 = vector.shape_cast %50 : vector<2x8x1x8x64xbf16> to vector<2x8x8x64xbf16>
    %52 = vector.shape_cast %49 : vector<2x8x8x64xbf16> to vector<2x8x1x8x64xbf16>
    tpu.vector_store %arg8[%c0_71, %c1_72, %c0_73, %c1_74, %c0_75], %52 {strides = array<i32>} : memref<2x18x2x9x64xbf16, #tpu.memory_space<vmem>>, vector<2x8x1x8x64xbf16>,
    %c0_76 = arith.constant 0 : index
    %c0_77 = arith.constant 0 : index
    %c0_78 = arith.constant 0 : index
    %c0_79 = arith.constant 0 : index
    %c0_80 = arith.constant 0 : index
    %53 = vector.load %arg8[%c0_76, %c0_77, %c0_78, %c0_79, %c0_80] : memref<2x18x2x9x64xbf16, #tpu.memory_space<vmem>>, vector<2x8x1x8x64xbf16>
    %54 = vector.shape_cast %53 : vector<2x8x1x8x64xbf16> to vector<2x8x8x64xbf16>
    %55 = vector.shape_cast %54 : vector<2x8x8x64xbf16> to vector<128x64xbf16>
    %c0_81 = arith.constant 0 : index
    %c0_82 = arith.constant 0 : index
    %56 = vector.load %arg9[%c0_81, %c0_82] : memref<512x576xbf16, #tpu.memory_space<vmem>>, vector<128x64xbf16>
    tpu.vector_store %arg9[%c0_81, %c0_82], %55 {strides = array<i32>} : memref<512x576xbf16, #tpu.memory_space<vmem>>, vector<128x64xbf16>,
    %c0_83 = arith.constant 0 : index
    %c0_84 = arith.constant 0 : index
    %c1_85 = arith.constant 1 : index
    %c0_86 = arith.constant 0 : index
    %c0_87 = arith.constant 0 : index
    %57 = vector.load %arg8[%c0_83, %c0_84, %c1_85, %c0_86, %c0_87] : memref<2x18x2x9x64xbf16, #tpu.memory_space<vmem>>, vector<2x8x1x8x64xbf16>
    %58 = vector.shape_cast %57 : vector<2x8x1x8x64xbf16> to vector<2x8x8x64xbf16>
    %59 = vector.shape_cast %58 : vector<2x8x8x64xbf16> to vector<128x64xbf16>
    %c0_88 = arith.constant 0 : index
    %c64 = arith.constant 64 : index
    %60 = vector.load %arg9[%c0_88, %c64] : memref<512x576xbf16, #tpu.memory_space<vmem>>, vector<128x64xbf16>
    tpu.vector_store %arg9[%c0_88, %c64], %59 {strides = array<i32>} : memref<512x576xbf16, #tpu.memory_space<vmem>>, vector<128x64xbf16>,
    %c0_89 = arith.constant 0 : index
    %c0_90 = arith.constant 0 : index
    %c0_91 = arith.constant 0 : index
    %c1_92 = arith.constant 1 : index
    %c0_93 = arith.constant 0 : index
    %61 = vector.load %arg8[%c0_89, %c0_90, %c0_91, %c1_92, %c0_93] : memref<2x18x2x9x64xbf16, #tpu.memory_space<vmem>>, vector<2x8x1x8x64xbf16>
    %62 = vector.shape_cast %61 : vector<2x8x1x8x64xbf16> to vector<2x8x8x64xbf16>
    %63 = vector.shape_cast %62 : vector<2x8x8x64xbf16> to vector<128x64xbf16>
    %c0_94 = arith.constant 0 : index
    %c128 = arith.constant 128 : index
    %64 = vector.load %arg9[%c0_94, %c128] : memref<512x576xbf16, #tpu.memory_space<vmem>>, vector<128x64xbf16>
    tpu.vector_store %arg9[%c0_94, %c128], %63 {strides = array<i32>} : memref<512x576xbf16, #tpu.memory_space<vmem>>, vector<128x64xbf16>,
    %c0_95 = arith.constant 0 : index
    %c9_96 = arith.constant 9 : index
    %c0_97 = arith.constant 0 : index
    %c0_98 = arith.constant 0 : index
    %c0_99 = arith.constant 0 : index
    %65 = vector.load %arg8[%c0_95, %c9_96, %c0_97, %c0_98, %c0_99] : memref<2x18x2x9x64xbf16, #tpu.memory_space<vmem>>, vector<2x8x1x8x64xbf16>
    %66 = vector.shape_cast %65 : vector<2x8x1x8x64xbf16> to vector<2x8x8x64xbf16>
    %67 = vector.shape_cast %66 : vector<2x8x8x64xbf16> to vector<128x64xbf16>
    %c0_100 = arith.constant 0 : index
    %c192 = arith.constant 192 : index
    %68 = vector.load %arg9[%c0_100, %c192] : memref<512x576xbf16, #tpu.memory_space<vmem>>, vector<128x64xbf16>
    tpu.vector_store %arg9[%c0_100, %c192], %67 {strides = array<i32>} : memref<512x576xbf16, #tpu.memory_space<vmem>>, vector<128x64xbf16>,
    %c0_101 = arith.constant 0 : index
    %c9_102 = arith.constant 9 : index
    %c1_103 = arith.constant 1 : index
    %c0_104 = arith.constant 0 : index
    %c0_105 = arith.constant 0 : index
    %69 = vector.load %arg8[%c0_101, %c9_102, %c1_103, %c0_104, %c0_105] : memref<2x18x2x9x64xbf16, #tpu.memory_space<vmem>>, vector<2x8x1x8x64xbf16>
    %70 = vector.shape_cast %69 : vector<2x8x1x8x64xbf16> to vector<2x8x8x64xbf16>
    %71 = vector.shape_cast %70 : vector<2x8x8x64xbf16> to vector<128x64xbf16>
    %c0_106 = arith.constant 0 : index
    %c256 = arith.constant 256 : index
    %72 = vector.load %arg9[%c0_106, %c256] : memref<512x576xbf16, #tpu.memory_space<vmem>>, vector<128x64xbf16>
    tpu.vector_store %arg9[%c0_106, %c256], %71 {strides = array<i32>} : memref<512x576xbf16, #tpu.memory_space<vmem>>, vector<128x64xbf16>,
    %c0_107 = arith.constant 0 : index
    %c9_108 = arith.constant 9 : index
    %c0_109 = arith.constant 0 : index
    %c1_110 = arith.constant 1 : index
    %c0_111 = arith.constant 0 : index
    %73 = vector.load %arg8[%c0_107, %c9_108, %c0_109, %c1_110, %c0_111] : memref<2x18x2x9x64xbf16, #tpu.memory_space<vmem>>, vector<2x8x1x8x64xbf16>
    %74 = vector.shape_cast %73 : vector<2x8x1x8x64xbf16> to vector<2x8x8x64xbf16>
    %75 = vector.shape_cast %74 : vector<2x8x8x64xbf16> to vector<128x64xbf16>
    %c0_112 = arith.constant 0 : index
    %c320 = arith.constant 320 : index
    %76 = vector.load %arg9[%c0_112, %c320] : memref<512x576xbf16, #tpu.memory_space<vmem>>, vector<128x64xbf16>
    tpu.vector_store %arg9[%c0_112, %c320], %75 {strides = array<i32>} : memref<512x576xbf16, #tpu.memory_space<vmem>>, vector<128x64xbf16>,
    %c0_113 = arith.constant 0 : index
    %c1_114 = arith.constant 1 : index
    %c0_115 = arith.constant 0 : index
    %c0_116 = arith.constant 0 : index
    %c0_117 = arith.constant 0 : index
    %77 = vector.load %arg8[%c0_113, %c1_114, %c0_115, %c0_116, %c0_117] : memref<2x18x2x9x64xbf16, #tpu.memory_space<vmem>>, vector<2x8x1x8x64xbf16>
    %78 = vector.shape_cast %77 : vector<2x8x1x8x64xbf16> to vector<2x8x8x64xbf16>
    %79 = vector.shape_cast %78 : vector<2x8x8x64xbf16> to vector<128x64xbf16>
    %c0_118 = arith.constant 0 : index
    %c384 = arith.constant 384 : index
    %80 = vector.load %arg9[%c0_118, %c384] : memref<512x576xbf16, #tpu.memory_space<vmem>>, vector<128x64xbf16>
    tpu.vector_store %arg9[%c0_118, %c384], %79 {strides = array<i32>} : memref<512x576xbf16, #tpu.memory_space<vmem>>, vector<128x64xbf16>,
    %c0_119 = arith.constant 0 : index
    %c1_120 = arith.constant 1 : index
    %c1_121 = arith.constant 1 : index
    %c0_122 = arith.constant 0 : index
    %c0_123 = arith.constant 0 : index
    %81 = vector.load %arg8[%c0_119, %c1_120, %c1_121, %c0_122, %c0_123] : memref<2x18x2x9x64xbf16, #tpu.memory_space<vmem>>, vector<2x8x1x8x64xbf16>
    %82 = vector.shape_cast %81 : vector<2x8x1x8x64xbf16> to vector<2x8x8x64xbf16>
    %83 = vector.shape_cast %82 : vector<2x8x8x64xbf16> to vector<128x64xbf16>
    %c0_124 = arith.constant 0 : index
    %c448 = arith.constant 448 : index
    %84 = vector.load %arg9[%c0_124, %c448] : memref<512x576xbf16, #tpu.memory_space<vmem>>, vector<128x64xbf16>
    tpu.vector_store %arg9[%c0_124, %c448], %83 {strides = array<i32>} : memref<512x576xbf16, #tpu.memory_space<vmem>>, vector<128x64xbf16>,
    %c0_125 = arith.constant 0 : index
    %c1_126 = arith.constant 1 : index
    %c0_127 = arith.constant 0 : index
    %c1_128 = arith.constant 1 : index
    %c0_129 = arith.constant 0 : index
    %85 = vector.load %arg8[%c0_125, %c1_126, %c0_127, %c1_128, %c0_129] : memref<2x18x2x9x64xbf16, #tpu.memory_space<vmem>>, vector<2x8x1x8x64xbf16>
    %86 = vector.shape_cast %85 : vector<2x8x1x8x64xbf16> to vector<2x8x8x64xbf16>
    %87 = vector.shape_cast %86 : vector<2x8x8x64xbf16> to vector<128x64xbf16>
    %c0_130 = arith.constant 0 : index
    %c512 = arith.constant 512 : index
    %88 = vector.load %arg9[%c0_130, %c512] : memref<512x576xbf16, #tpu.memory_space<vmem>>, vector<128x64xbf16>
    tpu.vector_store %arg9[%c0_130, %c512], %87 {strides = array<i32>} : memref<512x576xbf16, #tpu.memory_space<vmem>>, vector<128x64xbf16>,
    %c0_131 = arith.constant 0 : index
    %c0_132 = arith.constant 0 : index
    %c1_133 = arith.constant 1 : index
    %c0_134 = arith.constant 0 : index
    %c0_135 = arith.constant 0 : index
    %89 = vector.load %arg8[%c0_131, %c0_132, %c1_133, %c0_134, %c0_135] : memref<2x18x2x9x64xbf16, #tpu.memory_space<vmem>>, vector<2x8x1x8x64xbf16>
    %90 = vector.shape_cast %89 : vector<2x8x1x8x64xbf16> to vector<2x8x8x64xbf16>
    %91 = vector.shape_cast %90 : vector<2x8x8x64xbf16> to vector<128x64xbf16>
    %c128_136 = arith.constant 128 : index
    %c0_137 = arith.constant 0 : index
    %92 = vector.load %arg9[%c128_136, %c0_137] : memref<512x576xbf16, #tpu.memory_space<vmem>>, vector<128x64xbf16>
    tpu.vector_store %arg9[%c128_136, %c0_137], %91 {strides = array<i32>} : memref<512x576xbf16, #tpu.memory_space<vmem>>, vector<128x64xbf16>,
    %c0_138 = arith.constant 0 : index
    %c0_139 = arith.constant 0 : index
    %c0_140 = arith.constant 0 : index
    %c1_141 = arith.constant 1 : index
    %c0_142 = arith.constant 0 : index
    %93 = vector.load %arg8[%c0_138, %c0_139, %c0_140, %c1_141, %c0_142] : memref<2x18x2x9x64xbf16, #tpu.memory_space<vmem>>, vector<2x8x1x8x64xbf16>
    %94 = vector.shape_cast %93 : vector<2x8x1x8x64xbf16> to vector<2x8x8x64xbf16>
    %95 = vector.shape_cast %94 : vector<2x8x8x64xbf16> to vector<128x64xbf16>
    %c128_143 = arith.constant 128 : index
    %c64_144 = arith.constant 64 : index
    %96 = vector.load %arg9[%c128_143, %c64_144] : memref<512x576xbf16, #tpu.memory_space<vmem>>, vector<128x64xbf16>
    tpu.vector_store %arg9[%c128_143, %c64_144], %95 {strides = array<i32>} : memref<512x576xbf16, #tpu.memory_space<vmem>>, vector<128x64xbf16>,
    %c0_145 = arith.constant 0 : index
    %c0_146 = arith.constant 0 : index
    %c1_147 = arith.constant 1 : index
    %c1_148 = arith.constant 1 : index
    %c0_149 = arith.constant 0 : index
    %97 = vector.load %arg8[%c0_145, %c0_146, %c1_147, %c1_148, %c0_149] : memref<2x18x2x9x64xbf16, #tpu.memory_space<vmem>>, vector<2x8x1x8x64xbf16>
    %98 = vector.shape_cast %97 : vector<2x8x1x8x64xbf16> to vector<2x8x8x64xbf16>
    %99 = vector.shape_cast %98 : vector<2x8x8x64xbf16> to vector<128x64xbf16>
    %c128_150 = arith.constant 128 : index
    %c128_151 = arith.constant 128 : index
    %100 = vector.load %arg9[%c128_150, %c128_151] : memref<512x576xbf16, #tpu.memory_space<vmem>>, vector<128x64xbf16>
    tpu.vector_store %arg9[%c128_150, %c128_151], %99 {strides = array<i32>} : memref<512x576xbf16, #tpu.memory_space<vmem>>, vector<128x64xbf16>,
    %c0_152 = arith.constant 0 : index
    %c9_153 = arith.constant 9 : index
    %c1_154 = arith.constant 1 : index
    %c0_155 = arith.constant 0 : index
    %c0_156 = arith.constant 0 : index
    %101 = vector.load %arg8[%c0_152, %c9_153, %c1_154, %c0_155, %c0_156] : memref<2x18x2x9x64xbf16, #tpu.memory_space<vmem>>, vector<2x8x1x8x64xbf16>
    %102 = vector.shape_cast %101 : vector<2x8x1x8x64xbf16> to vector<2x8x8x64xbf16>
    %103 = vector.shape_cast %102 : vector<2x8x8x64xbf16> to vector<128x64xbf16>
    %c128_157 = arith.constant 128 : index
    %c192_158 = arith.constant 192 : index
    %104 = vector.load %arg9[%c128_157, %c192_158] : memref<512x576xbf16, #tpu.memory_space<vmem>>, vector<128x64xbf16>
    tpu.vector_store %arg9[%c128_157, %c192_158], %103 {strides = array<i32>} : memref<512x576xbf16, #tpu.memory_space<vmem>>, vector<128x64xbf16>,
    %c0_159 = arith.constant 0 : index
    %c9_160 = arith.constant 9 : index
    %c0_161 = arith.constant 0 : index
    %c1_162 = arith.constant 1 : index
    %c0_163 = arith.constant 0 : index
    %105 = vector.load %arg8[%c0_159, %c9_160, %c0_161, %c1_162, %c0_163] : memref<2x18x2x9x64xbf16, #tpu.memory_space<vmem>>, vector<2x8x1x8x64xbf16>
    %106 = vector.shape_cast %105 : vector<2x8x1x8x64xbf16> to vector<2x8x8x64xbf16>
    %107 = vector.shape_cast %106 : vector<2x8x8x64xbf16> to vector<128x64xbf16>
    %c128_164 = arith.constant 128 : index
    %c256_165 = arith.constant 256 : index
    %108 = vector.load %arg9[%c128_164, %c256_165] : memref<512x576xbf16, #tpu.memory_space<vmem>>, vector<128x64xbf16>
    tpu.vector_store %arg9[%c128_164, %c256_165], %107 {strides = array<i32>} : memref<512x576xbf16, #tpu.memory_space<vmem>>, vector<128x64xbf16>,
    %c0_166 = arith.constant 0 : index
    %c9_167 = arith.constant 9 : index
    %c1_168 = arith.constant 1 : index
    %c1_169 = arith.constant 1 : index
    %c0_170 = arith.constant 0 : index
    %109 = vector.load %arg8[%c0_166, %c9_167, %c1_168, %c1_169, %c0_170] : memref<2x18x2x9x64xbf16, #tpu.memory_space<vmem>>, vector<2x8x1x8x64xbf16>
    %110 = vector.shape_cast %109 : vector<2x8x1x8x64xbf16> to vector<2x8x8x64xbf16>
    %111 = vector.shape_cast %110 : vector<2x8x8x64xbf16> to vector<128x64xbf16>
    %c128_171 = arith.constant 128 : index
    %c320_172 = arith.constant 320 : index
    %112 = vector.load %arg9[%c128_171, %c320_172] : memref<512x576xbf16, #tpu.memory_space<vmem>>, vector<128x64xbf16>
    tpu.vector_store %arg9[%c128_171, %c320_172], %111 {strides = array<i32>} : memref<512x576xbf16, #tpu.memory_space<vmem>>, vector<128x64xbf16>,
    %c0_173 = arith.constant 0 : index
    %c1_174 = arith.constant 1 : index
    %c1_175 = arith.constant 1 : index
    %c0_176 = arith.constant 0 : index
    %c0_177 = arith.constant 0 : index
    %113 = vector.load %arg8[%c0_173, %c1_174, %c1_175, %c0_176, %c0_177] : memref<2x18x2x9x64xbf16, #tpu.memory_space<vmem>>, vector<2x8x1x8x64xbf16>
    %114 = vector.shape_cast %113 : vector<2x8x1x8x64xbf16> to vector<2x8x8x64xbf16>
    %115 = vector.shape_cast %114 : vector<2x8x8x64xbf16> to vector<128x64xbf16>
    %c128_178 = arith.constant 128 : index
    %c384_179 = arith.constant 384 : index
    %116 = vector.load %arg9[%c128_178, %c384_179] : memref<512x576xbf16, #tpu.memory_space<vmem>>, vector<128x64xbf16>
    tpu.vector_store %arg9[%c128_178, %c384_179], %115 {strides = array<i32>} : memref<512x576xbf16, #tpu.memory_space<vmem>>, vector<128x64xbf16>,
    %c0_180 = arith.constant 0 : index
    %c1_181 = arith.constant 1 : index
    %c0_182 = arith.constant 0 : index
    %c1_183 = arith.constant 1 : index
    %c0_184 = arith.constant 0 : index
    %117 = vector.load %arg8[%c0_180, %c1_181, %c0_182, %c1_183, %c0_184] : memref<2x18x2x9x64xbf16, #tpu.memory_space<vmem>>, vector<2x8x1x8x64xbf16>
    %118 = vector.shape_cast %117 : vector<2x8x1x8x64xbf16> to vector<2x8x8x64xbf16>
    %119 = vector.shape_cast %118 : vector<2x8x8x64xbf16> to vector<128x64xbf16>
    %c128_185 = arith.constant 128 : index
    %c448_186 = arith.constant 448 : index
    %120 = vector.load %arg9[%c128_185, %c448_186] : memref<512x576xbf16, #tpu.memory_space<vmem>>, vector<128x64xbf16>
    tpu.vector_store %arg9[%c128_185, %c448_186], %119 {strides = array<i32>} : memref<512x576xbf16, #tpu.memory_space<vmem>>, vector<128x64xbf16>,
    %c0_187 = arith.constant 0 : index
    %c1_188 = arith.constant 1 : index
    %c1_189 = arith.constant 1 : index
    %c1_190 = arith.constant 1 : index
    %c0_191 = arith.constant 0 : index
    %121 = vector.load %arg8[%c0_187, %c1_188, %c1_189, %c1_190, %c0_191] : memref<2x18x2x9x64xbf16, #tpu.memory_space<vmem>>, vector<2x8x1x8x64xbf16>
    %122 = vector.shape_cast %121 : vector<2x8x1x8x64xbf16> to vector<2x8x8x64xbf16>
    %123 = vector.shape_cast %122 : vector<2x8x8x64xbf16> to vector<128x64xbf16>
    %c128_192 = arith.constant 128 : index
    %c512_193 = arith.constant 512 : index
    %124 = vector.load %arg9[%c128_192, %c512_193] : memref<512x576xbf16, #tpu.memory_space<vmem>>, vector<128x64xbf16>
    tpu.vector_store %arg9[%c128_192, %c512_193], %123 {strides = array<i32>} : memref<512x576xbf16, #tpu.memory_space<vmem>>, vector<128x64xbf16>,
    %c0_194 = arith.constant 0 : index
    %c9_195 = arith.constant 9 : index
    %c0_196 = arith.constant 0 : index
    %c0_197 = arith.constant 0 : index
    %c0_198 = arith.constant 0 : index
    %125 = vector.load %arg8[%c0_194, %c9_195, %c0_196, %c0_197, %c0_198] : memref<2x18x2x9x64xbf16, #tpu.memory_space<vmem>>, vector<2x8x1x8x64xbf16>
    %126 = vector.shape_cast %125 : vector<2x8x1x8x64xbf16> to vector<2x8x8x64xbf16>
    %127 = vector.shape_cast %126 : vector<2x8x8x64xbf16> to vector<128x64xbf16>
    %c256_199 = arith.constant 256 : index
    %c0_200 = arith.constant 0 : index
    %128 = vector.load %arg9[%c256_199, %c0_200] : memref<512x576xbf16, #tpu.memory_space<vmem>>, vector<128x64xbf16>
    tpu.vector_store %arg9[%c256_199, %c0_200], %127 {strides = array<i32>} : memref<512x576xbf16, #tpu.memory_space<vmem>>, vector<128x64xbf16>,
    %c0_201 = arith.constant 0 : index
    %c9_202 = arith.constant 9 : index
    %c1_203 = arith.constant 1 : index
    %c0_204 = arith.constant 0 : index
    %c0_205 = arith.constant 0 : index
    %129 = vector.load %arg8[%c0_201, %c9_202, %c1_203, %c0_204, %c0_205] : memref<2x18x2x9x64xbf16, #tpu.memory_space<vmem>>, vector<2x8x1x8x64xbf16>
    %130 = vector.shape_cast %129 : vector<2x8x1x8x64xbf16> to vector<2x8x8x64xbf16>
    %131 = vector.shape_cast %130 : vector<2x8x8x64xbf16> to vector<128x64xbf16>
    %c256_206 = arith.constant 256 : index
    %c64_207 = arith.constant 64 : index
    %132 = vector.load %arg9[%c256_206, %c64_207] : memref<512x576xbf16, #tpu.memory_space<vmem>>, vector<128x64xbf16>
    tpu.vector_store %arg9[%c256_206, %c64_207], %131 {strides = array<i32>} : memref<512x576xbf16, #tpu.memory_space<vmem>>, vector<128x64xbf16>,
    %c0_208 = arith.constant 0 : index
    %c9_209 = arith.constant 9 : index
    %c0_210 = arith.constant 0 : index
    %c1_211 = arith.constant 1 : index
    %c0_212 = arith.constant 0 : index
    %133 = vector.load %arg8[%c0_208, %c9_209, %c0_210, %c1_211, %c0_212] : memref<2x18x2x9x64xbf16, #tpu.memory_space<vmem>>, vector<2x8x1x8x64xbf16>
    %134 = vector.shape_cast %133 : vector<2x8x1x8x64xbf16> to vector<2x8x8x64xbf16>
    %135 = vector.shape_cast %134 : vector<2x8x8x64xbf16> to vector<128x64xbf16>
    %c256_213 = arith.constant 256 : index
    %c128_214 = arith.constant 128 : index
    %136 = vector.load %arg9[%c256_213, %c128_214] : memref<512x576xbf16, #tpu.memory_space<vmem>>, vector<128x64xbf16>
    tpu.vector_store %arg9[%c256_213, %c128_214], %135 {strides = array<i32>} : memref<512x576xbf16, #tpu.memory_space<vmem>>, vector<128x64xbf16>,
    %c0_215 = arith.constant 0 : index
    %c1_216 = arith.constant 1 : index
    %c0_217 = arith.constant 0 : index
    %c0_218 = arith.constant 0 : index
    %c0_219 = arith.constant 0 : index
    %137 = vector.load %arg8[%c0_215, %c1_216, %c0_217, %c0_218, %c0_219] : memref<2x18x2x9x64xbf16, #tpu.memory_space<vmem>>, vector<2x8x1x8x64xbf16>
    %138 = vector.shape_cast %137 : vector<2x8x1x8x64xbf16> to vector<2x8x8x64xbf16>
    %139 = vector.shape_cast %138 : vector<2x8x8x64xbf16> to vector<128x64xbf16>
    %c256_220 = arith.constant 256 : index
    %c192_221 = arith.constant 192 : index
    %140 = vector.load %arg9[%c256_220, %c192_221] : memref<512x576xbf16, #tpu.memory_space<vmem>>, vector<128x64xbf16>
    tpu.vector_store %arg9[%c256_220, %c192_221], %139 {strides = array<i32>} : memref<512x576xbf16, #tpu.memory_space<vmem>>, vector<128x64xbf16>,
    %c0_222 = arith.constant 0 : index
    %c1_223 = arith.constant 1 : index
    %c1_224 = arith.constant 1 : index
    %c0_225 = arith.constant 0 : index
    %c0_226 = arith.constant 0 : index
    %141 = vector.load %arg8[%c0_222, %c1_223, %c1_224, %c0_225, %c0_226] : memref<2x18x2x9x64xbf16, #tpu.memory_space<vmem>>, vector<2x8x1x8x64xbf16>
    %142 = vector.shape_cast %141 : vector<2x8x1x8x64xbf16> to vector<2x8x8x64xbf16>
    %143 = vector.shape_cast %142 : vector<2x8x8x64xbf16> to vector<128x64xbf16>
    %c256_227 = arith.constant 256 : index
    %c256_228 = arith.constant 256 : index
    %144 = vector.load %arg9[%c256_227, %c256_228] : memref<512x576xbf16, #tpu.memory_space<vmem>>, vector<128x64xbf16>
    tpu.vector_store %arg9[%c256_227, %c256_228], %143 {strides = array<i32>} : memref<512x576xbf16, #tpu.memory_space<vmem>>, vector<128x64xbf16>,
    %c0_229 = arith.constant 0 : index
    %c1_230 = arith.constant 1 : index
    %c0_231 = arith.constant 0 : index
    %c1_232 = arith.constant 1 : index
    %c0_233 = arith.constant 0 : index
    %145 = vector.load %arg8[%c0_229, %c1_230, %c0_231, %c1_232, %c0_233] : memref<2x18x2x9x64xbf16, #tpu.memory_space<vmem>>, vector<2x8x1x8x64xbf16>
    %146 = vector.shape_cast %145 : vector<2x8x1x8x64xbf16> to vector<2x8x8x64xbf16>
    %147 = vector.shape_cast %146 : vector<2x8x8x64xbf16> to vector<128x64xbf16>
    %c256_234 = arith.constant 256 : index
    %c320_235 = arith.constant 320 : index
    %148 = vector.load %arg9[%c256_234, %c320_235] : memref<512x576xbf16, #tpu.memory_space<vmem>>, vector<128x64xbf16>
    tpu.vector_store %arg9[%c256_234, %c320_235], %147 {strides = array<i32>} : memref<512x576xbf16, #tpu.memory_space<vmem>>, vector<128x64xbf16>,
    %c0_236 = arith.constant 0 : index
    %c10 = arith.constant 10 : index
    %c0_237 = arith.constant 0 : index
    %c0_238 = arith.constant 0 : index
    %c0_239 = arith.constant 0 : index
    %149 = vector.load %arg8[%c0_236, %c10, %c0_237, %c0_238, %c0_239] : memref<2x18x2x9x64xbf16, #tpu.memory_space<vmem>>, vector<2x8x1x8x64xbf16>
    %150 = vector.shape_cast %149 : vector<2x8x1x8x64xbf16> to vector<2x8x8x64xbf16>
    %151 = vector.shape_cast %150 : vector<2x8x8x64xbf16> to vector<128x64xbf16>
    %c256_240 = arith.constant 256 : index
    %c384_241 = arith.constant 384 : index
    %152 = vector.load %arg9[%c256_240, %c384_241] : memref<512x576xbf16, #tpu.memory_space<vmem>>, vector<128x64xbf16>
    tpu.vector_store %arg9[%c256_240, %c384_241], %151 {strides = array<i32>} : memref<512x576xbf16, #tpu.memory_space<vmem>>, vector<128x64xbf16>,
    %c0_242 = arith.constant 0 : index
    %c10_243 = arith.constant 10 : index
    %c1_244 = arith.constant 1 : index
    %c0_245 = arith.constant 0 : index
    %c0_246 = arith.constant 0 : index
    %153 = vector.load %arg8[%c0_242, %c10_243, %c1_244, %c0_245, %c0_246] : memref<2x18x2x9x64xbf16, #tpu.memory_space<vmem>>, vector<2x8x1x8x64xbf16>
    %154 = vector.shape_cast %153 : vector<2x8x1x8x64xbf16> to vector<2x8x8x64xbf16>
    %155 = vector.shape_cast %154 : vector<2x8x8x64xbf16> to vector<128x64xbf16>
    %c256_247 = arith.constant 256 : index
    %c448_248 = arith.constant 448 : index
    %156 = vector.load %arg9[%c256_247, %c448_248] : memref<512x576xbf16, #tpu.memory_space<vmem>>, vector<128x64xbf16>
    tpu.vector_store %arg9[%c256_247, %c448_248], %155 {strides = array<i32>} : memref<512x576xbf16, #tpu.memory_space<vmem>>, vector<128x64xbf16>,
    %c0_249 = arith.constant 0 : index
    %c10_250 = arith.constant 10 : index
    %c0_251 = arith.constant 0 : index
    %c1_252 = arith.constant 1 : index
    %c0_253 = arith.constant 0 : index
    %157 = vector.load %arg8[%c0_249, %c10_250, %c0_251, %c1_252, %c0_253] : memref<2x18x2x9x64xbf16, #tpu.memory_space<vmem>>, vector<2x8x1x8x64xbf16>
    %158 = vector.shape_cast %157 : vector<2x8x1x8x64xbf16> to vector<2x8x8x64xbf16>
    %159 = vector.shape_cast %158 : vector<2x8x8x64xbf16> to vector<128x64xbf16>
    %c256_254 = arith.constant 256 : index
    %c512_255 = arith.constant 512 : index
    %160 = vector.load %arg9[%c256_254, %c512_255] : memref<512x576xbf16, #tpu.memory_space<vmem>>, vector<128x64xbf16>
    tpu.vector_store %arg9[%c256_254, %c512_255], %159 {strides = array<i32>} : memref<512x576xbf16, #tpu.memory_space<vmem>>, vector<128x64xbf16>,
    %c0_256 = arith.constant 0 : index
    %c9_257 = arith.constant 9 : index
    %c1_258 = arith.constant 1 : index
    %c0_259 = arith.constant 0 : index
    %c0_260 = arith.constant 0 : index
    %161 = vector.load %arg8[%c0_256, %c9_257, %c1_258, %c0_259, %c0_260] : memref<2x18x2x9x64xbf16, #tpu.memory_space<vmem>>, vector<2x8x1x8x64xbf16>
    %162 = vector.shape_cast %161 : vector<2x8x1x8x64xbf16> to vector<2x8x8x64xbf16>
    %163 = vector.shape_cast %162 : vector<2x8x8x64xbf16> to vector<128x64xbf16>
    %c384_261 = arith.constant 384 : index
    %c0_262 = arith.constant 0 : index
    %164 = vector.load %arg9[%c384_261, %c0_262] : memref<512x576xbf16, #tpu.memory_space<vmem>>, vector<128x64xbf16>
    tpu.vector_store %arg9[%c384_261, %c0_262], %163 {strides = array<i32>} : memref<512x576xbf16, #tpu.memory_space<vmem>>, vector<128x64xbf16>,
    %c0_263 = arith.constant 0 : index
    %c9_264 = arith.constant 9 : index
    %c0_265 = arith.constant 0 : index
    %c1_266 = arith.constant 1 : index
    %c0_267 = arith.constant 0 : index
    %165 = vector.load %arg8[%c0_263, %c9_264, %c0_265, %c1_266, %c0_267] : memref<2x18x2x9x64xbf16, #tpu.memory_space<vmem>>, vector<2x8x1x8x64xbf16>
    %166 = vector.shape_cast %165 : vector<2x8x1x8x64xbf16> to vector<2x8x8x64xbf16>
    %167 = vector.shape_cast %166 : vector<2x8x8x64xbf16> to vector<128x64xbf16>
    %c384_268 = arith.constant 384 : index
    %c64_269 = arith.constant 64 : index
    %168 = vector.load %arg9[%c384_268, %c64_269] : memref<512x576xbf16, #tpu.memory_space<vmem>>, vector<128x64xbf16>
    tpu.vector_store %arg9[%c384_268, %c64_269], %167 {strides = array<i32>} : memref<512x576xbf16, #tpu.memory_space<vmem>>, vector<128x64xbf16>,
    %c0_270 = arith.constant 0 : index
    %c9_271 = arith.constant 9 : index
    %c1_272 = arith.constant 1 : index
    %c1_273 = arith.constant 1 : index
    %c0_274 = arith.constant 0 : index
    %169 = vector.load %arg8[%c0_270, %c9_271, %c1_272, %c1_273, %c0_274] : memref<2x18x2x9x64xbf16, #tpu.memory_space<vmem>>, vector<2x8x1x8x64xbf16>
    %170 = vector.shape_cast %169 : vector<2x8x1x8x64xbf16> to vector<2x8x8x64xbf16>
    %171 = vector.shape_cast %170 : vector<2x8x8x64xbf16> to vector<128x64xbf16>
    %c384_275 = arith.constant 384 : index
    %c128_276 = arith.constant 128 : index
    %172 = vector.load %arg9[%c384_275, %c128_276] : memref<512x576xbf16, #tpu.memory_space<vmem>>, vector<128x64xbf16>
    tpu.vector_store %arg9[%c384_275, %c128_276], %171 {strides = array<i32>} : memref<512x576xbf16, #tpu.memory_space<vmem>>, vector<128x64xbf16>,
    %c0_277 = arith.constant 0 : index
    %c1_278 = arith.constant 1 : index
    %c1_279 = arith.constant 1 : index
    %c0_280 = arith.constant 0 : index
    %c0_281 = arith.constant 0 : index
    %173 = vector.load %arg8[%c0_277, %c1_278, %c1_279, %c0_280, %c0_281] : memref<2x18x2x9x64xbf16, #tpu.memory_space<vmem>>, vector<2x8x1x8x64xbf16>
    %174 = vector.shape_cast %173 : vector<2x8x1x8x64xbf16> to vector<2x8x8x64xbf16>
    %175 = vector.shape_cast %174 : vector<2x8x8x64xbf16> to vector<128x64xbf16>
    %c384_282 = arith.constant 384 : index
    %c192_283 = arith.constant 192 : index
    %176 = vector.load %arg9[%c384_282, %c192_283] : memref<512x576xbf16, #tpu.memory_space<vmem>>, vector<128x64xbf16>
    tpu.vector_store %arg9[%c384_282, %c192_283], %175 {strides = array<i32>} : memref<512x576xbf16, #tpu.memory_space<vmem>>, vector<128x64xbf16>,
    %c0_284 = arith.constant 0 : index
    %c1_285 = arith.constant 1 : index
    %c0_286 = arith.constant 0 : index
    %c1_287 = arith.constant 1 : index
    %c0_288 = arith.constant 0 : index
    %177 = vector.load %arg8[%c0_284, %c1_285, %c0_286, %c1_287, %c0_288] : memref<2x18x2x9x64xbf16, #tpu.memory_space<vmem>>, vector<2x8x1x8x64xbf16>
    %178 = vector.shape_cast %177 : vector<2x8x1x8x64xbf16> to vector<2x8x8x64xbf16>
    %179 = vector.shape_cast %178 : vector<2x8x8x64xbf16> to vector<128x64xbf16>
    %c384_289 = arith.constant 384 : index
    %c256_290 = arith.constant 256 : index
    %180 = vector.load %arg9[%c384_289, %c256_290] : memref<512x576xbf16, #tpu.memory_space<vmem>>, vector<128x64xbf16>
    tpu.vector_store %arg9[%c384_289, %c256_290], %179 {strides = array<i32>} : memref<512x576xbf16, #tpu.memory_space<vmem>>, vector<128x64xbf16>,
    %c0_291 = arith.constant 0 : index
    %c1_292 = arith.constant 1 : index
    %c1_293 = arith.constant 1 : index
    %c1_294 = arith.constant 1 : index
    %c0_295 = arith.constant 0 : index
    %181 = vector.load %arg8[%c0_291, %c1_292, %c1_293, %c1_294, %c0_295] : memref<2x18x2x9x64xbf16, #tpu.memory_space<vmem>>, vector<2x8x1x8x64xbf16>
    %182 = vector.shape_cast %181 : vector<2x8x1x8x64xbf16> to vector<2x8x8x64xbf16>
    %183 = vector.shape_cast %182 : vector<2x8x8x64xbf16> to vector<128x64xbf16>
    %c384_296 = arith.constant 384 : index
    %c320_297 = arith.constant 320 : index
    %184 = vector.load %arg9[%c384_296, %c320_297] : memref<512x576xbf16, #tpu.memory_space<vmem>>, vector<128x64xbf16>
    tpu.vector_store %arg9[%c384_296, %c320_297], %183 {strides = array<i32>} : memref<512x576xbf16, #tpu.memory_space<vmem>>, vector<128x64xbf16>,
    %c0_298 = arith.constant 0 : index
    %c10_299 = arith.constant 10 : index
    %c1_300 = arith.constant 1 : index
    %c0_301 = arith.constant 0 : index
    %c0_302 = arith.constant 0 : index
    %185 = vector.load %arg8[%c0_298, %c10_299, %c1_300, %c0_301, %c0_302] : memref<2x18x2x9x64xbf16, #tpu.memory_space<vmem>>, vector<2x8x1x8x64xbf16>
    %186 = vector.shape_cast %185 : vector<2x8x1x8x64xbf16> to vector<2x8x8x64xbf16>
    %187 = vector.shape_cast %186 : vector<2x8x8x64xbf16> to vector<128x64xbf16>
    %c384_303 = arith.constant 384 : index
    %c384_304 = arith.constant 384 : index
    %188 = vector.load %arg9[%c384_303, %c384_304] : memref<512x576xbf16, #tpu.memory_space<vmem>>, vector<128x64xbf16>
    tpu.vector_store %arg9[%c384_303, %c384_304], %187 {strides = array<i32>} : memref<512x576xbf16, #tpu.memory_space<vmem>>, vector<128x64xbf16>,
    %c0_305 = arith.constant 0 : index
    %c10_306 = arith.constant 10 : index
    %c0_307 = arith.constant 0 : index
    %c1_308 = arith.constant 1 : index
    %c0_309 = arith.constant 0 : index
    %189 = vector.load %arg8[%c0_305, %c10_306, %c0_307, %c1_308, %c0_309] : memref<2x18x2x9x64xbf16, #tpu.memory_space<vmem>>, vector<2x8x1x8x64xbf16>
    %190 = vector.shape_cast %189 : vector<2x8x1x8x64xbf16> to vector<2x8x8x64xbf16>
    %191 = vector.shape_cast %190 : vector<2x8x8x64xbf16> to vector<128x64xbf16>
    %c384_310 = arith.constant 384 : index
    %c448_311 = arith.constant 448 : index
    %192 = vector.load %arg9[%c384_310, %c448_311] : memref<512x576xbf16, #tpu.memory_space<vmem>>, vector<128x64xbf16>
    tpu.vector_store %arg9[%c384_310, %c448_311], %191 {strides = array<i32>} : memref<512x576xbf16, #tpu.memory_space<vmem>>, vector<128x64xbf16>,
    %c0_312 = arith.constant 0 : index
    %c10_313 = arith.constant 10 : index
    %c1_314 = arith.constant 1 : index
    %c1_315 = arith.constant 1 : index
    %c0_316 = arith.constant 0 : index
    %193 = vector.load %arg8[%c0_312, %c10_313, %c1_314, %c1_315, %c0_316] : memref<2x18x2x9x64xbf16, #tpu.memory_space<vmem>>, vector<2x8x1x8x64xbf16>
    %194 = vector.shape_cast %193 : vector<2x8x1x8x64xbf16> to vector<2x8x8x64xbf16>
    %195 = vector.shape_cast %194 : vector<2x8x8x64xbf16> to vector<128x64xbf16>
    %c384_317 = arith.constant 384 : index
    %c512_318 = arith.constant 512 : index
    %196 = vector.load %arg9[%c384_317, %c512_318] : memref<512x576xbf16, #tpu.memory_space<vmem>>, vector<128x64xbf16>
    tpu.vector_store %arg9[%c384_317, %c512_318], %195 {strides = array<i32>} : memref<512x576xbf16, #tpu.memory_space<vmem>>, vector<128x64xbf16>,
    %c0_319 = arith.constant 0 : index
    %c0_320 = arith.constant 0 : index
    %197 = vector.load %arg9[%c0_319, %c0_320] : memref<512x576xbf16, #tpu.memory_space<vmem>>, vector<512x576xbf16>
    %c0_321 = arith.constant 0 : index
    %c0_322 = arith.constant 0 : index
    %198 = vector.load %arg4[%c0_321, %c0_322] : memref<576x128xbf16, #tpu.memory_space<vmem>>, vector<576x128xbf16>
    %cst_323 = arith.constant dense<0.000000e+00> : vector<512x128xf32>
    %199 = tpu.matmul %197, %198, %cst_323 {dimension_numbers = #tpu.dot_dimension_numbers<[1], [0], [0], [1], [0, 0, 1, 1], [], []>} : vector<512x576xbf16>, vector<576x128xbf16>, vector<512x128xf32> -> vector<512x128xf32>
    %c0_324 = arith.constant 0 : index
    %c0_325 = arith.constant 0 : index
    %200 = vector.load %arg5[%c0_324, %c0_325] : memref<1x128xf32, #tpu.memory_space<vmem>>, vector<1x128xf32>
    %201 = vector.broadcast %200 : vector<1x128xf32> to vector<512x128xf32>
    %202 = arith.addf %199, %201 : vector<512x128xf32>
    %203 = vector.shape_cast %202 : vector<512x128xf32> to vector<4x2x64x128xf32>
    %c0_326 = arith.constant 0 : index
    %c0_327 = arith.constant 0 : index
    %c0_328 = arith.constant 0 : index
    %c0_329 = arith.constant 0 : index
    %204 = vector.load %arg6[%c0_326, %c0_327, %c0_328, %c0_329] : memref<4x2x64x128xf32, #tpu.memory_space<vmem>>, vector<4x2x64x128xf32>
    tpu.vector_store %arg6[%c0_326, %c0_327, %c0_328, %c0_329], %203 {strides = array<i32>} : memref<4x2x64x128xf32, #tpu.memory_space<vmem>>, vector<4x2x64x128xf32>,
    return
  }
  func.func @transform_0(%arg0: i32) -> (i32, i32, i32, i32) {
    %c0_i32 = arith.constant 0 : i32
    %c0_i32_0 = arith.constant 0 : i32
    %c0_i32_1 = arith.constant 0 : i32
    %c0_i32_2 = arith.constant 0 : i32
    %c0_i32_3 = arith.constant 0 : i32
    return %c0_i32, %c0_i32_0, %c0_i32_1, %c0_i32_2 : i32, i32, i32, i32
  }
  func.func @transform_1(%arg0: i32) -> (i32, i32) {
    %c0_i32 = arith.constant 0 : i32
    %c0_i32_0 = arith.constant 0 : i32
    %c0_i32_1 = arith.constant 0 : i32
    return %c0_i32, %c0_i32_0 : i32, i32
  }
  func.func @transform_2(%arg0: i32) -> (i32, i32) {
    %c0_i32 = arith.constant 0 : i32
    %c0_i32_0 = arith.constant 0 : i32
    %c0_i32_1 = arith.constant 0 : i32
    return %c0_i32, %c0_i32_0 : i32, i32
  }
  func.func @transform_3(%arg0: i32) -> (i32, i32) {
    %c0_i32 = arith.constant 0 : i32
    %c0_i32_0 = arith.constant 0 : i32
    %c0_i32_1 = arith.constant 0 : i32
    return %c0_i32, %c0_i32_0 : i32, i32
  }
  func.func @transform_4(%arg0: i32) -> (i32, i32) {
    %c0_i32 = arith.constant 0 : i32
    %c0_i32_0 = arith.constant 0 : i32
    %c0_i32_1 = arith.constant 0 : i32
    return %c0_i32, %c0_i32_0 : i32, i32
  }
  func.func @transform_5(%arg0: i32) -> (i32, i32, i32, i32) {
    %c0_i32 = arith.constant 0 : i32
    %c0_i32_0 = arith.constant 0 : i32
    %c0_i32_1 = arith.constant 0 : i32
    %c0_i32_2 = arith.constant 0 : i32
    %c0_i32_3 = arith.constant 0 : i32
    return %c0_i32, %c0_i32_0, %c0_i32_1, %c0_i32_2 : i32, i32, i32, i32
  }
}

</mosaic_0001>

<llo_original>
// kernel: decoder2_forward.1
$region0: #{decoder2_forward.1}
  #allocation0 [shape = 'u32[]', space=smem, size = 0x4, offset = 0x4, fixed_abs, tag = 'smem constant byte address 0x4 - core index']
  #allocation1 [shape = 'u32[144,128]{1,0:T(1,128)}', space=vmem, size = 0x12000, scoped, tag = 'internal scratch']
  #allocation2 [shape = 'bf16[2,10,10,64]{3,2,1,0:T(8,128)(2,1)}', space=vmem, size = 0x14000, scoped, tag = 'scratch operand']
  #allocation3 [shape = 'bf16[2,18,2,9,64]{4,3,2,1,0:T(8,128)(2,1)}', space=vmem, size = 0x48000, scoped, tag = 'scratch operand']
  #allocation4 [shape = 'bf16[512,576]{1,0:T(8,128)(2,1)}', space=vmem, size = 0xa0000, scoped, tag = 'scratch operand']
  %s0 = inlined_call_operand.vmem [shape: bf16[2,8,8,64], index: 0, kind: input, shape index: {}]
  %s1 = inlined_call_operand.hbm [shape: bf16[576,256], index: 1, kind: input, shape index: {}]
  %s2 = inlined_call_operand.vmem [shape: f32[1,256], index: 2, kind: input, shape index: {}]
  %s3 = inlined_call_operand.hbm [shape: bf16[576,128], index: 3, kind: input, shape index: {}]
  %s4 = inlined_call_operand.vmem [shape: f32[1,128], index: 4, kind: input, shape index: {}]
  %s5 = inlined_call_operand.vmem [shape: f32[4,2,64,128], index: 5, kind: output, shape index: {}]
  %s6 = sld [smem:[#allocation0]]
  $region38: #{decoder2_forward.1} parent=0
    _
  %s8 = ssub.s32 1, %s6
  %s9 = scalar_select 0, %s8, %s6
  $region1: #{decoder2_forward.1} parent=0
    #allocation5 [shape = 'u8[294912]{0}', space=vmem, size = 0x48000, scoped, tag = 'input window, operand 1, single buffered']
    #allocation6 [shape = 's32[1]{0}', space=sflag, size = 0x4, scoped, tag = 'scoped memory for decoder2_forward.1']
    #allocation7 [shape = 'u8[147456]{0}', space=vmem, size = 0x24000, scoped, tag = 'input window, operand 3, single buffered']
    #allocation8 [shape = 's32[1]{0}', space=sflag, size = 0x4, scoped, tag = 'scoped memory for decoder2_forward.1']
    %10 = vsyncpa [#allocation6], 0
    %11 = vsyncpa [#allocation8], 0
    // Predicated region
    $region2: #{decoder2_forward.1} parent=1 // pred_check
      _
    $region3: #{decoder2_forward.1} parent=1 // pred_check_branch
      %13 = sbr.rel (0) target = $region5
    $region4: #{decoder2_forward.1} parent=1 // pred_region
      _
    $region5: #{decoder2_forward.1} parent=1 // pred_fallthru
      _
    // Predicated region
    $region6: #{decoder2_forward.1} parent=1 // pred_check
      _
    $region7: #{decoder2_forward.1} parent=1 // pred_check_branch
      %15 = sbr.rel (0) target = $region9
    $region8: #{decoder2_forward.1} parent=1 // pred_region
      %s17 = ssub.s32 9216, 9216
      %18 = vsyncadd [#allocation6], %s17
      %s19 = sshll.u32 [#allocation5], 4
      %s20 = int_to_ptr.vmem [resolvable:$true] %s19
      %25 = dma.hbm_to_vmem [thread:$0]  %s1, 9216, %s20, [#allocation6], 128, 128, 8
    $region9: #{decoder2_forward.1} parent=1 // pred_fallthru
      _
    // Predicated region
    $region10: #{decoder2_forward.1} parent=1 // pred_check
      _
    $region11: #{decoder2_forward.1} parent=1 // pred_check_branch
      %27 = sbr.rel (0) target = $region13
    $region12: #{decoder2_forward.1} parent=1 // pred_region
      _
    $region13: #{decoder2_forward.1} parent=1 // pred_fallthru
      _
    // Predicated region
    $region14: #{decoder2_forward.1} parent=1 // pred_check
      _
    $region15: #{decoder2_forward.1} parent=1 // pred_check_branch
      %29 = sbr.rel (0) target = $region17
    $region16: #{decoder2_forward.1} parent=1 // pred_region
      %s31 = ssub.s32 4608, 4608
      %32 = vsyncadd [#allocation8], %s31
      %s33 = sshll.u32 [#allocation7], 4
      %s34 = int_to_ptr.vmem [resolvable:$true] %s33
      %39 = dma.hbm_to_vmem [thread:$0]  %s3, 4608, %s34, [#allocation8], 64, 64, 4
    $region17: #{decoder2_forward.1} parent=1 // pred_fallthru
      _
    // Predicated region
    $region18: #{decoder2_forward.1} parent=1 // pred_check
      _
    $region19: #{decoder2_forward.1} parent=1 // pred_check_branch
      %41 = sbr.rel (0) target = $region21
    $region20: #{decoder2_forward.1} parent=1 // pred_region
      _
    $region21: #{decoder2_forward.1} parent=1 // pred_fallthru
      _
    // Predicated region
    $region22: #{decoder2_forward.1} parent=1 // pred_check
      _
    $region23: #{decoder2_forward.1} parent=1 // pred_check_branch
      %43 = sbr.rel (0) target = $region25
    $region24: #{decoder2_forward.1} parent=1 // pred_region
      %44 = dma.done [#allocation6], 9216
    $region25: #{decoder2_forward.1} parent=1 // pred_fallthru
      _
    // Predicated region
    $region26: #{decoder2_forward.1} parent=1 // pred_check
      _
    $region27: #{decoder2_forward.1} parent=1 // pred_check_branch
      %46 = sbr.rel (0) target = $region29
    $region28: #{decoder2_forward.1} parent=1 // pred_region
      %47 = dma.done [#allocation8], 4608
    $region29: #{decoder2_forward.1} parent=1 // pred_fallthru
      _
    %vm49 = vcmask 519168
    %50 = vst.msk [vmem:[#allocation2] sm:$0xf] %vm49, 0
    %vm51 = vcmask 516096
    %52 = vst.msk [vmem:[#allocation2 + $0x4] sm:$0x1] %vm51, 0
    %53 = vst.msk [vmem:[#allocation2 + $0x8] sm:$0xf] %vm49, 0
    %54 = vst.msk [vmem:[#allocation2 + $0xc] sm:$0x1] %vm51, 0
    %55 = vst.msk [vmem:[#allocation2 + $0x10] sm:$0xf] %vm49, 0
    %56 = vst.msk [vmem:[#allocation2 + $0x14] sm:$0x1] %vm51, 0
    %57 = vst.msk [vmem:[#allocation2 + $0x18] sm:$0xf] %vm49, 0
    %58 = vst.msk [vmem:[#allocation2 + $0x1c] sm:$0x1] %vm51, 0
    %59 = vst.msk [vmem:[#allocation2 + $0x20] sm:$0xf] %vm49, 0
    %60 = vst.msk [vmem:[#allocation2 + $0x24] sm:$0x1] %vm51, 0
    %61 = vst.msk [vmem:[#allocation2 + $0x28] sm:$0xf] %vm49, 0
    %62 = vst.msk [vmem:[#allocation2 + $0x2c] sm:$0x1] %vm51, 0
    %63 = vst.msk [vmem:[#allocation2 + $0x30] sm:$0xf] %vm49, 0
    %64 = vst.msk [vmem:[#allocation2 + $0x34] sm:$0x1] %vm51, 0
    %65 = vst.msk [vmem:[#allocation2 + $0x38] sm:$0xf] %vm49, 0
    %66 = vst.msk [vmem:[#allocation2 + $0x3c] sm:$0x1] %vm51, 0
    %67 = vst.msk [vmem:[#allocation2 + $0x40] sm:$0xf] %vm49, 0
    %68 = vst.msk [vmem:[#allocation2 + $0x44] sm:$0x1] %vm51, 0
    %69 = vst.msk [vmem:[#allocation2 + $0x48] sm:$0xf] %vm49, 0
    %70 = vst.msk [vmem:[#allocation2 + $0x4c] sm:$0x1] %vm51, 0
    %71 = vst.msk [vmem:[#allocation2 + $0x50] sm:$0xf] %vm49, 0
    %72 = vst.msk [vmem:[#allocation2 + $0x54] sm:$0x1] %vm51, 0
    %73 = vst.msk [vmem:[#allocation2 + $0x58] sm:$0xf] %vm49, 0
    %74 = vst.msk [vmem:[#allocation2 + $0x5c] sm:$0x1] %vm51, 0
    %75 = vst.msk [vmem:[#allocation2 + $0x60] sm:$0xf] %vm49, 0
    %76 = vst.msk [vmem:[#allocation2 + $0x64] sm:$0x1] %vm51, 0
    %77 = vst.msk [vmem:[#allocation2 + $0x68] sm:$0xf] %vm49, 0
    %78 = vst.msk [vmem:[#allocation2 + $0x6c] sm:$0x1] %vm51, 0
    %79 = vst.msk [vmem:[#allocation2 + $0x70] sm:$0xf] %vm49, 0
    %80 = vst.msk [vmem:[#allocation2 + $0x74] sm:$0x1] %vm51, 0
    %81 = vst.msk [vmem:[#allocation2 + $0x78] sm:$0xf] %vm49, 0
    %82 = vst.msk [vmem:[#allocation2 + $0x7c] sm:$0x1] %vm51, 0
    %83 = vst.msk [vmem:[#allocation2 + $0x80] sm:$0xf] %vm49, 0
    %84 = vst.msk [vmem:[#allocation2 + $0x84] sm:$0x1] %vm51, 0
    %85 = vst.msk [vmem:[#allocation2 + $0x88] sm:$0xf] %vm49, 0
    %86 = vst.msk [vmem:[#allocation2 + $0x8c] sm:$0x1] %vm51, 0
    %87 = vst.msk [vmem:[#allocation2 + $0x90] sm:$0xf] %vm49, 0
    %88 = vst.msk [vmem:[#allocation2 + $0x94] sm:$0x1] %vm51, 0
    %89 = vst.msk [vmem:[#allocation2 + $0x98] sm:$0xf] %vm49, 0
    %90 = vst.msk [vmem:[#allocation2 + $0x9c] sm:$0x1] %vm51, 0
    %v91 = vld [vmem:[%s0] sm:$0xf]
    %v92 = vld [vmem:[%s0 + $0x4] sm:$0xf]
    %v93 = vld [vmem:[%s0 + $0x8] sm:$0xf]
    %v94 = vld [vmem:[%s0 + $0xc] sm:$0xf]
    %v95 = vld [vmem:[%s0 + $0x10] sm:$0xf]
    %v96 = vld [vmem:[%s0 + $0x14] sm:$0xf]
    %v97 = vld [vmem:[%s0 + $0x18] sm:$0xf]
    %v98 = vld [vmem:[%s0 + $0x1c] sm:$0xf]
    %v99 = vld [vmem:[%s0 + $0x20] sm:$0xf]
    %v100 = vld [vmem:[%s0 + $0x24] sm:$0xf]
    %v101 = vld [vmem:[%s0 + $0x28] sm:$0xf]
    %v102 = vld [vmem:[%s0 + $0x2c] sm:$0xf]
    %v103 = vld [vmem:[%s0 + $0x30] sm:$0xf]
    %v104 = vld [vmem:[%s0 + $0x34] sm:$0xf]
    %v105 = vld [vmem:[%s0 + $0x38] sm:$0xf]
    %v106 = vld [vmem:[%s0 + $0x3c] sm:$0xf]
    %v108 = vshrl.u32 %v91, 16
    %v110 = vrot.slane %v108, 7
    %v111 = vshll.u32 %v91, 16
    %v113 = vor.u32 %v110, %v111
    %v114 = vrot.slane %v110, 4
    %v116 = vshrl.u32 %v92, 16
    %v118 = vrot.slane %v116, 7
    %v119 = vshll.u32 %v92, 16
    %v121 = vor.u32 %v118, %v119
    %v122 = vrot.slane %v118, 4
    %v124 = vshrl.u32 %v93, 16
    %v126 = vrot.slane %v124, 7
    %v127 = vshll.u32 %v93, 16
    %v129 = vor.u32 %v126, %v127
    %v130 = vrot.slane %v126, 4
    %v132 = vshrl.u32 %v94, 16
    %v134 = vrot.slane %v132, 7
    %v135 = vshll.u32 %v94, 16
    %v137 = vor.u32 %v134, %v135
    %v138 = vrot.slane %v134, 4
    %v140 = vshrl.u32 %v95, 16
    %v142 = vrot.slane %v140, 7
    %v143 = vshll.u32 %v95, 16
    %v145 = vor.u32 %v142, %v143
    %v146 = vrot.slane %v142, 4
    %v148 = vshrl.u32 %v96, 16
    %v150 = vrot.slane %v148, 7
    %v151 = vshll.u32 %v96, 16
    %v153 = vor.u32 %v150, %v151
    %v154 = vrot.slane %v150, 4
    %v156 = vshrl.u32 %v97, 16
    %v158 = vrot.slane %v156, 7
    %v159 = vshll.u32 %v97, 16
    %v161 = vor.u32 %v158, %v159
    %v162 = vrot.slane %v158, 4
    %v164 = vshrl.u32 %v98, 16
    %v166 = vrot.slane %v164, 7
    %v167 = vshll.u32 %v98, 16
    %v169 = vor.u32 %v166, %v167
    %v170 = vrot.slane %v166, 4
    %v172 = vshrl.u32 %v99, 16
    %v174 = vrot.slane %v172, 7
    %v175 = vshll.u32 %v99, 16
    %v177 = vor.u32 %v174, %v175
    %v178 = vrot.slane %v174, 4
    %v180 = vshrl.u32 %v100, 16
    %v182 = vrot.slane %v180, 7
    %v183 = vshll.u32 %v100, 16
    %v185 = vor.u32 %v182, %v183
    %v186 = vrot.slane %v182, 4
    %v188 = vshrl.u32 %v101, 16
    %v190 = vrot.slane %v188, 7
    %v191 = vshll.u32 %v101, 16
    %v193 = vor.u32 %v190, %v191
    %v194 = vrot.slane %v190, 4
    %v196 = vshrl.u32 %v102, 16
    %v198 = vrot.slane %v196, 7
    %v199 = vshll.u32 %v102, 16
    %v201 = vor.u32 %v198, %v199
    %v202 = vrot.slane %v198, 4
    %v204 = vshrl.u32 %v103, 16
    %v206 = vrot.slane %v204, 7
    %v207 = vshll.u32 %v103, 16
    %v209 = vor.u32 %v206, %v207
    %v210 = vrot.slane %v206, 4
    %v212 = vshrl.u32 %v104, 16
    %v214 = vrot.slane %v212, 7
    %v215 = vshll.u32 %v104, 16
    %v217 = vor.u32 %v214, %v215
    %v218 = vrot.slane %v214, 4
    %v220 = vshrl.u32 %v105, 16
    %v222 = vrot.slane %v220, 7
    %v223 = vshll.u32 %v105, 16
    %v225 = vor.u32 %v222, %v223
    %v226 = vrot.slane %v222, 4
    %v228 = vshrl.u32 %v106, 16
    %v230 = vrot.slane %v228, 7
    %v231 = vshll.u32 %v106, 16
    %v233 = vor.u32 %v230, %v231
    %v234 = vrot.slane %v230, 4
    %s267 = scalar_lea.vmem [#allocation2], 8
    %vm268 = vcmask 519168
    %vm269 = vsmask.f32 7938
    %vm270 = vmand %vm268, %vm269
    %v271 = vld [vmem:[%s267] sm:$0xf]
    %v272 = vsel %vm270, %v113, %v271
    %273 = vst [vmem:[%s267] sm:$0xf] %v272
    %vm274 = vcmask 516096
    %vm275 = vsmask.f32 256
    %vm276 = vmand %vm274, %vm275
    %v277 = vld [vmem:[%s267 + $0x4] sm:$0x1]
    %v278 = vsel %vm276, %v114, %v277
    %279 = vst [vmem:[%s267 + $0x4] sm:$0x1] %v278
    %v280 = vld [vmem:[%s267 + $0x8] sm:$0xf]
    %v281 = vsel %vm270, %v121, %v280
    %282 = vst [vmem:[%s267 + $0x8] sm:$0xf] %v281
    %v283 = vld [vmem:[%s267 + $0xc] sm:$0x1]
    %v284 = vsel %vm276, %v122, %v283
    %285 = vst [vmem:[%s267 + $0xc] sm:$0x1] %v284
    %v286 = vld [vmem:[%s267 + $0x10] sm:$0xf]
    %v287 = vsel %vm270, %v129, %v286
    %288 = vst [vmem:[%s267 + $0x10] sm:$0xf] %v287
    %v289 = vld [vmem:[%s267 + $0x14] sm:$0x1]
    %v290 = vsel %vm276, %v130, %v289
    %291 = vst [vmem:[%s267 + $0x14] sm:$0x1] %v290
    %v292 = vld [vmem:[%s267 + $0x18] sm:$0xf]
    %v293 = vsel %vm270, %v137, %v292
    %294 = vst [vmem:[%s267 + $0x18] sm:$0xf] %v293
    %v295 = vld [vmem:[%s267 + $0x1c] sm:$0x1]
    %v296 = vsel %vm276, %v138, %v295
    %297 = vst [vmem:[%s267 + $0x1c] sm:$0x1] %v296
    %v298 = vld [vmem:[%s267 + $0x20] sm:$0xf]
    %v299 = vsel %vm270, %v145, %v298
    %300 = vst [vmem:[%s267 + $0x20] sm:$0xf] %v299
    %v301 = vld [vmem:[%s267 + $0x24] sm:$0x1]
    %v302 = vsel %vm276, %v146, %v301
    %303 = vst [vmem:[%s267 + $0x24] sm:$0x1] %v302
    %v304 = vld [vmem:[%s267 + $0x28] sm:$0xf]
    %v305 = vsel %vm270, %v153, %v304
    %306 = vst [vmem:[%s267 + $0x28] sm:$0xf] %v305
    %v307 = vld [vmem:[%s267 + $0x2c] sm:$0x1]
    %v308 = vsel %vm276, %v154, %v307
    %309 = vst [vmem:[%s267 + $0x2c] sm:$0x1] %v308
    %v310 = vld [vmem:[%s267 + $0x30] sm:$0xf]
    %v311 = vsel %vm270, %v161, %v310
    %312 = vst [vmem:[%s267 + $0x30] sm:$0xf] %v311
    %v313 = vld [vmem:[%s267 + $0x34] sm:$0x1]
    %v314 = vsel %vm276, %v162, %v313
    %315 = vst [vmem:[%s267 + $0x34] sm:$0x1] %v314
    %v316 = vld [vmem:[%s267 + $0x38] sm:$0xf]
    %v317 = vsel %vm270, %v169, %v316
    %318 = vst [vmem:[%s267 + $0x38] sm:$0xf] %v317
    %v319 = vld [vmem:[%s267 + $0x3c] sm:$0x1]
    %v320 = vsel %vm276, %v170, %v319
    %321 = vst [vmem:[%s267 + $0x3c] sm:$0x1] %v320
    %v322 = vld [vmem:[%s267 + $0x50] sm:$0xf]
    %v323 = vsel %vm270, %v177, %v322
    %324 = vst [vmem:[%s267 + $0x50] sm:$0xf] %v323
    %v325 = vld [vmem:[%s267 + $0x54] sm:$0x1]
    %v326 = vsel %vm276, %v178, %v325
    %327 = vst [vmem:[%s267 + $0x54] sm:$0x1] %v326
    %v328 = vld [vmem:[%s267 + $0x58] sm:$0xf]
    %v329 = vsel %vm270, %v185, %v328
    %330 = vst [vmem:[%s267 + $0x58] sm:$0xf] %v329
    %v331 = vld [vmem:[%s267 + $0x5c] sm:$0x1]
    %v332 = vsel %vm276, %v186, %v331
    %333 = vst [vmem:[%s267 + $0x5c] sm:$0x1] %v332
    %v334 = vld [vmem:[%s267 + $0x60] sm:$0xf]
    %v335 = vsel %vm270, %v193, %v334
    %336 = vst [vmem:[%s267 + $0x60] sm:$0xf] %v335
    %v337 = vld [vmem:[%s267 + $0x64] sm:$0x1]
    %v338 = vsel %vm276, %v194, %v337
    %339 = vst [vmem:[%s267 + $0x64] sm:$0x1] %v338
    %v340 = vld [vmem:[%s267 + $0x68] sm:$0xf]
    %v341 = vsel %vm270, %v201, %v340
    %342 = vst [vmem:[%s267 + $0x68] sm:$0xf] %v341
    %v343 = vld [vmem:[%s267 + $0x6c] sm:$0x1]
    %v344 = vsel %vm276, %v202, %v343
    %345 = vst [vmem:[%s267 + $0x6c] sm:$0x1] %v344
    %v346 = vld [vmem:[%s267 + $0x70] sm:$0xf]
    %v347 = vsel %vm270, %v209, %v346
    %348 = vst [vmem:[%s267 + $0x70] sm:$0xf] %v347
    %v349 = vld [vmem:[%s267 + $0x74] sm:$0x1]
    %v350 = vsel %vm276, %v210, %v349
    %351 = vst [vmem:[%s267 + $0x74] sm:$0x1] %v350
    %v352 = vld [vmem:[%s267 + $0x78] sm:$0xf]
    %v353 = vsel %vm270, %v217, %v352
    %354 = vst [vmem:[%s267 + $0x78] sm:$0xf] %v353
    %v355 = vld [vmem:[%s267 + $0x7c] sm:$0x1]
    %v356 = vsel %vm276, %v218, %v355
    %357 = vst [vmem:[%s267 + $0x7c] sm:$0x1] %v356
    %v358 = vld [vmem:[%s267 + $0x80] sm:$0xf]
    %v359 = vsel %vm270, %v225, %v358
    %360 = vst [vmem:[%s267 + $0x80] sm:$0xf] %v359
    %v361 = vld [vmem:[%s267 + $0x84] sm:$0x1]
    %v362 = vsel %vm276, %v226, %v361
    %363 = vst [vmem:[%s267 + $0x84] sm:$0x1] %v362
    %v364 = vld [vmem:[%s267 + $0x88] sm:$0xf]
    %v365 = vsel %vm270, %v233, %v364
    %366 = vst [vmem:[%s267 + $0x88] sm:$0xf] %v365
    %v367 = vld [vmem:[%s267 + $0x8c] sm:$0x1]
    %v368 = vsel %vm276, %v234, %v367
    %369 = vst [vmem:[%s267 + $0x8c] sm:$0x1] %v368
    %v370 = vld [vmem:[#allocation2] sm:$0xf]
    %v371 = vld [vmem:[#allocation2 + $0x8] sm:$0xf]
    %v372 = vld [vmem:[#allocation2 + $0x10] sm:$0xf]
    %v373 = vld [vmem:[#allocation2 + $0x18] sm:$0xf]
    %v374 = vld [vmem:[#allocation2 + $0x20] sm:$0xf]
    %v375 = vld [vmem:[#allocation2 + $0x28] sm:$0xf]
    %v376 = vld [vmem:[#allocation2 + $0x30] sm:$0xf]
    %v377 = vld [vmem:[#allocation2 + $0x38] sm:$0xf]
    %v378 = vld [vmem:[#allocation2 + $0x50] sm:$0xf]
    %v379 = vld [vmem:[#allocation2 + $0x58] sm:$0xf]
    %v380 = vld [vmem:[#allocation2 + $0x60] sm:$0xf]
    %v381 = vld [vmem:[#allocation2 + $0x68] sm:$0xf]
    %v382 = vld [vmem:[#allocation2 + $0x70] sm:$0xf]
    %v383 = vld [vmem:[#allocation2 + $0x78] sm:$0xf]
    %v384 = vld [vmem:[#allocation2 + $0x80] sm:$0xf]
    %v385 = vld [vmem:[#allocation2 + $0x88] sm:$0xf]
    %v386 = vld [vmem:[#allocation2 + $0x4] sm:$0x1]
    %v387 = vld [vmem:[#allocation2 + $0xc] sm:$0x1]
    %v388 = vld [vmem:[#allocation2 + $0x14] sm:$0x1]
    %v389 = vld [vmem:[#allocation2 + $0x1c] sm:$0x1]
    %v390 = vld [vmem:[#allocation2 + $0x24] sm:$0x1]
    %v391 = vld [vmem:[#allocation2 + $0x2c] sm:$0x1]
    %v392 = vld [vmem:[#allocation2 + $0x34] sm:$0x1]
    %v393 = vld [vmem:[#allocation2 + $0x3c] sm:$0x1]
    %v394 = vld [vmem:[#allocation2 + $0x54] sm:$0x1]
    %v395 = vld [vmem:[#allocation2 + $0x5c] sm:$0x1]
    %v396 = vld [vmem:[#allocation2 + $0x64] sm:$0x1]
    %v397 = vld [vmem:[#allocation2 + $0x6c] sm:$0x1]
    %v398 = vld [vmem:[#allocation2 + $0x74] sm:$0x1]
    %v399 = vld [vmem:[#allocation2 + $0x7c] sm:$0x1]
    %v400 = vld [vmem:[#allocation2 + $0x84] sm:$0x1]
    %v401 = vld [vmem:[#allocation2 + $0x8c] sm:$0x1]
    %vm402 = vsmask.f32 3328
    %vm403 = vsmask.f32 7440
    %vm404 = vmor %vm402, %vm403
    %v406 = vshrl.u32 %v370, 16
    %v408 = vrot.slane %v406, 4
    %v409 = vshll.u32 %v370, 16
    %v411 = vrot.slane %v409, 5
    %v412 = vor.u32 %v408, %v411
    %v413 = vrot.slane %v412, 4
    %v415 = vshll.u32 %v386, 16
    %v417 = vrot.slane %v415, 5
    %v418 = vsel %vm404, %v413, %v417
    %v420 = vshrl.u32 %v371, 16
    %v422 = vrot.slane %v420, 4
    %v423 = vshll.u32 %v371, 16
    %v425 = vrot.slane %v423, 5
    %v426 = vor.u32 %v422, %v425
    %v427 = vrot.slane %v426, 4
    %v429 = vshll.u32 %v387, 16
    %v431 = vrot.slane %v429, 5
    %v432 = vsel %vm404, %v427, %v431
    %v434 = vshrl.u32 %v372, 16
    %v436 = vrot.slane %v434, 4
    %v437 = vshll.u32 %v372, 16
    %v439 = vrot.slane %v437, 5
    %v440 = vor.u32 %v436, %v439
    %v441 = vrot.slane %v440, 4
    %v443 = vshll.u32 %v388, 16
    %v445 = vrot.slane %v443, 5
    %v446 = vsel %vm404, %v441, %v445
    %v448 = vshrl.u32 %v373, 16
    %v450 = vrot.slane %v448, 4
    %v451 = vshll.u32 %v373, 16
    %v453 = vrot.slane %v451, 5
    %v454 = vor.u32 %v450, %v453
    %v455 = vrot.slane %v454, 4
    %v457 = vshll.u32 %v389, 16
    %v459 = vrot.slane %v457, 5
    %v460 = vsel %vm404, %v455, %v459
    %v462 = vshrl.u32 %v374, 16
    %v464 = vrot.slane %v462, 4
    %v465 = vshll.u32 %v374, 16
    %v467 = vrot.slane %v465, 5
    %v468 = vor.u32 %v464, %v467
    %v469 = vrot.slane %v468, 4
    %v471 = vshll.u32 %v390, 16
    %v473 = vrot.slane %v471, 5
    %v474 = vsel %vm404, %v469, %v473
    %v476 = vshrl.u32 %v375, 16
    %v478 = vrot.slane %v476, 4
    %v479 = vshll.u32 %v375, 16
    %v481 = vrot.slane %v479, 5
    %v482 = vor.u32 %v478, %v481
    %v483 = vrot.slane %v482, 4
    %v485 = vshll.u32 %v391, 16
    %v487 = vrot.slane %v485, 5
    %v488 = vsel %vm404, %v483, %v487
    %v490 = vshrl.u32 %v376, 16
    %v492 = vrot.slane %v490, 4
    %v493 = vshll.u32 %v376, 16
    %v495 = vrot.slane %v493, 5
    %v496 = vor.u32 %v492, %v495
    %v497 = vrot.slane %v496, 4
    %v499 = vshll.u32 %v392, 16
    %v501 = vrot.slane %v499, 5
    %v502 = vsel %vm404, %v497, %v501
    %v504 = vshrl.u32 %v377, 16
    %v506 = vrot.slane %v504, 4
    %v507 = vshll.u32 %v377, 16
    %v509 = vrot.slane %v507, 5
    %v510 = vor.u32 %v506, %v509
    %v511 = vrot.slane %v510, 4
    %v513 = vshll.u32 %v393, 16
    %v515 = vrot.slane %v513, 5
    %v516 = vsel %vm404, %v511, %v515
    %v518 = vshrl.u32 %v378, 16
    %v520 = vrot.slane %v518, 4
    %v521 = vshll.u32 %v378, 16
    %v523 = vrot.slane %v521, 5
    %v524 = vor.u32 %v520, %v523
    %v525 = vrot.slane %v524, 4
    %v527 = vshll.u32 %v394, 16
    %v529 = vrot.slane %v527, 5
    %v530 = vsel %vm404, %v525, %v529
    %v532 = vshrl.u32 %v379, 16
    %v534 = vrot.slane %v532, 4
    %v535 = vshll.u32 %v379, 16
    %v537 = vrot.slane %v535, 5
    %v538 = vor.u32 %v534, %v537
    %v539 = vrot.slane %v538, 4
    %v541 = vshll.u32 %v395, 16
    %v543 = vrot.slane %v541, 5
    %v544 = vsel %vm404, %v539, %v543
    %v546 = vshrl.u32 %v380, 16
    %v548 = vrot.slane %v546, 4
    %v549 = vshll.u32 %v380, 16
    %v551 = vrot.slane %v549, 5
    %v552 = vor.u32 %v548, %v551
    %v553 = vrot.slane %v552, 4
    %v555 = vshll.u32 %v396, 16
    %v557 = vrot.slane %v555, 5
    %v558 = vsel %vm404, %v553, %v557
    %v560 = vshrl.u32 %v381, 16
    %v562 = vrot.slane %v560, 4
    %v563 = vshll.u32 %v381, 16
    %v565 = vrot.slane %v563, 5
    %v566 = vor.u32 %v562, %v565
    %v567 = vrot.slane %v566, 4
    %v569 = vshll.u32 %v397, 16
    %v571 = vrot.slane %v569, 5
    %v572 = vsel %vm404, %v567, %v571
    %v574 = vshrl.u32 %v382, 16
    %v576 = vrot.slane %v574, 4
    %v577 = vshll.u32 %v382, 16
    %v579 = vrot.slane %v577, 5
    %v580 = vor.u32 %v576, %v579
    %v581 = vrot.slane %v580, 4
    %v583 = vshll.u32 %v398, 16
    %v585 = vrot.slane %v583, 5
    %v586 = vsel %vm404, %v581, %v585
    %v588 = vshrl.u32 %v383, 16
    %v590 = vrot.slane %v588, 4
    %v591 = vshll.u32 %v383, 16
    %v593 = vrot.slane %v591, 5
    %v594 = vor.u32 %v590, %v593
    %v595 = vrot.slane %v594, 4
    %v597 = vshll.u32 %v399, 16
    %v599 = vrot.slane %v597, 5
    %v600 = vsel %vm404, %v595, %v599
    %v602 = vshrl.u32 %v384, 16
    %v604 = vrot.slane %v602, 4
    %v605 = vshll.u32 %v384, 16
    %v607 = vrot.slane %v605, 5
    %v608 = vor.u32 %v604, %v607
    %v609 = vrot.slane %v608, 4
    %v611 = vshll.u32 %v400, 16
    %v613 = vrot.slane %v611, 5
    %v614 = vsel %vm404, %v609, %v613
    %v616 = vshrl.u32 %v385, 16
    %v618 = vrot.slane %v616, 4
    %v619 = vshll.u32 %v385, 16
    %v621 = vrot.slane %v619, 5
    %v622 = vor.u32 %v618, %v621
    %v623 = vrot.slane %v622, 4
    %v625 = vshll.u32 %v401, 16
    %v627 = vrot.slane %v625, 5
    %v628 = vsel %vm404, %v623, %v627
    %v629 = vld [vmem:[#allocation2] sm:$0xe]
    %v630 = vld [vmem:[#allocation2 + $0x8] sm:$0xe]
    %v631 = vld [vmem:[#allocation2 + $0x10] sm:$0xe]
    %v632 = vld [vmem:[#allocation2 + $0x18] sm:$0xe]
    %v633 = vld [vmem:[#allocation2 + $0x20] sm:$0xe]
    %v634 = vld [vmem:[#allocation2 + $0x28] sm:$0xe]
    %v635 = vld [vmem:[#allocation2 + $0x30] sm:$0xe]
    %v636 = vld [vmem:[#allocation2 + $0x38] sm:$0xe]
    %v637 = vld [vmem:[#allocation2 + $0x50] sm:$0xe]
    %v638 = vld [vmem:[#allocation2 + $0x58] sm:$0xe]
    %v639 = vld [vmem:[#allocation2 + $0x60] sm:$0xe]
    %v640 = vld [vmem:[#allocation2 + $0x68] sm:$0xe]
    %v641 = vld [vmem:[#allocation2 + $0x70] sm:$0xe]
    %v642 = vld [vmem:[#allocation2 + $0x78] sm:$0xe]
    %v643 = vld [vmem:[#allocation2 + $0x80] sm:$0xe]
    %v644 = vld [vmem:[#allocation2 + $0x88] sm:$0xe]
    %vm677 = vcmask 1042432
    %vm678 = vcmask 1046532
    %vm679 = vmor %vm677, %vm678
    %v680 = vrot.slane %v629, 5
    %v681 = vrot.slane %v680, 4
    %v682 = vrot.slane %v386, 5
    %v683 = vsel %vm679, %v681, %v682
    %v684 = vrot.slane %v630, 5
    %v685 = vrot.slane %v684, 4
    %v686 = vrot.slane %v387, 5
    %v687 = vsel %vm679, %v685, %v686
    %v688 = vrot.slane %v631, 5
    %v689 = vrot.slane %v688, 4
    %v690 = vrot.slane %v388, 5
    %v691 = vsel %vm679, %v689, %v690
    %v692 = vrot.slane %v632, 5
    %v693 = vrot.slane %v692, 4
    %v694 = vrot.slane %v389, 5
    %v695 = vsel %vm679, %v693, %v694
    %v696 = vrot.slane %v633, 5
    %v697 = vrot.slane %v696, 4
    %v698 = vrot.slane %v390, 5
    %v699 = vsel %vm679, %v697, %v698
    %v700 = vrot.slane %v634, 5
    %v701 = vrot.slane %v700, 4
    %v702 = vrot.slane %v391, 5
    %v703 = vsel %vm679, %v701, %v702
    %v704 = vrot.slane %v635, 5
    %v705 = vrot.slane %v704, 4
    %v706 = vrot.slane %v392, 5
    %v707 = vsel %vm679, %v705, %v706
    %v708 = vrot.slane %v636, 5
    %v709 = vrot.slane %v708, 4
    %v710 = vrot.slane %v393, 5
    %v711 = vsel %vm679, %v709, %v710
    %v712 = vrot.slane %v637, 5
    %v713 = vrot.slane %v712, 4
    %v714 = vrot.slane %v394, 5
    %v715 = vsel %vm679, %v713, %v714
    %v716 = vrot.slane %v638, 5
    %v717 = vrot.slane %v716, 4
    %v718 = vrot.slane %v395, 5
    %v719 = vsel %vm679, %v717, %v718
    %v720 = vrot.slane %v639, 5
    %v721 = vrot.slane %v720, 4
    %v722 = vrot.slane %v396, 5
    %v723 = vsel %vm679, %v721, %v722
    %v724 = vrot.slane %v640, 5
    %v725 = vrot.slane %v724, 4
    %v726 = vrot.slane %v397, 5
    %v727 = vsel %vm679, %v725, %v726
    %v728 = vrot.slane %v641, 5
    %v729 = vrot.slane %v728, 4
    %v730 = vrot.slane %v398, 5
    %v731 = vsel %vm679, %v729, %v730
    %v732 = vrot.slane %v642, 5
    %v733 = vrot.slane %v732, 4
    %v734 = vrot.slane %v399, 5
    %v735 = vsel %vm679, %v733, %v734
    %v736 = vrot.slane %v643, 5
    %v737 = vrot.slane %v736, 4
    %v738 = vrot.slane %v400, 5
    %v739 = vsel %vm679, %v737, %v738
    %v740 = vrot.slane %v644, 5
    %v741 = vrot.slane %v740, 4
    %v742 = vrot.slane %v401, 5
    %v743 = vsel %vm679, %v741, %v742
    %v744 = vld [vmem:[%s267] sm:$0xf]
    %v745 = vld [vmem:[%s267 + $0x8] sm:$0xf]
    %v746 = vld [vmem:[%s267 + $0x10] sm:$0xf]
    %v747 = vld [vmem:[%s267 + $0x18] sm:$0xf]
    %v748 = vld [vmem:[%s267 + $0x20] sm:$0xf]
    %v749 = vld [vmem:[%s267 + $0x28] sm:$0xf]
    %v750 = vld [vmem:[%s267 + $0x30] sm:$0xf]
    %v751 = vld [vmem:[%s267 + $0x38] sm:$0xf]
    %v752 = vld [vmem:[%s267 + $0x50] sm:$0xf]
    %v753 = vld [vmem:[%s267 + $0x58] sm:$0xf]
    %v754 = vld [vmem:[%s267 + $0x60] sm:$0xf]
    %v755 = vld [vmem:[%s267 + $0x68] sm:$0xf]
    %v756 = vld [vmem:[%s267 + $0x70] sm:$0xf]
    %v757 = vld [vmem:[%s267 + $0x78] sm:$0xf]
    %v758 = vld [vmem:[%s267 + $0x80] sm:$0xf]
    %v759 = vld [vmem:[%s267 + $0x88] sm:$0xf]
    %v760 = vld [vmem:[%s267 + $0x4] sm:$0x1]
    %v761 = vld [vmem:[%s267 + $0xc] sm:$0x1]
    %v762 = vld [vmem:[%s267 + $0x14] sm:$0x1]
    %v763 = vld [vmem:[%s267 + $0x1c] sm:$0x1]
    %v764 = vld [vmem:[%s267 + $0x24] sm:$0x1]
    %v765 = vld [vmem:[%s267 + $0x2c] sm:$0x1]
    %v766 = vld [vmem:[%s267 + $0x34] sm:$0x1]
    %v767 = vld [vmem:[%s267 + $0x3c] sm:$0x1]
    %v768 = vld [vmem:[%s267 + $0x54] sm:$0x1]
    %v769 = vld [vmem:[%s267 + $0x5c] sm:$0x1]
    %v770 = vld [vmem:[%s267 + $0x64] sm:$0x1]
    %v771 = vld [vmem:[%s267 + $0x6c] sm:$0x1]
    %v772 = vld [vmem:[%s267 + $0x74] sm:$0x1]
    %v773 = vld [vmem:[%s267 + $0x7c] sm:$0x1]
    %v774 = vld [vmem:[%s267 + $0x84] sm:$0x1]
    %v775 = vld [vmem:[%s267 + $0x8c] sm:$0x1]
    %v777 = vshrl.u32 %v744, 16
    %v779 = vrot.slane %v777, 4
    %v780 = vshll.u32 %v744, 16
    %v782 = vrot.slane %v780, 5
    %v783 = vor.u32 %v779, %v782
    %v784 = vrot.slane %v783, 4
    %v786 = vshll.u32 %v760, 16
    %v788 = vrot.slane %v786, 5
    %v789 = vsel %vm404, %v784, %v788
    %v791 = vshrl.u32 %v745, 16
    %v793 = vrot.slane %v791, 4
    %v794 = vshll.u32 %v745, 16
    %v796 = vrot.slane %v794, 5
    %v797 = vor.u32 %v793, %v796
    %v798 = vrot.slane %v797, 4
    %v800 = vshll.u32 %v761, 16
    %v802 = vrot.slane %v800, 5
    %v803 = vsel %vm404, %v798, %v802
    %v805 = vshrl.u32 %v746, 16
    %v807 = vrot.slane %v805, 4
    %v808 = vshll.u32 %v746, 16
    %v810 = vrot.slane %v808, 5
    %v811 = vor.u32 %v807, %v810
    %v812 = vrot.slane %v811, 4
    %v814 = vshll.u32 %v762, 16
    %v816 = vrot.slane %v814, 5
    %v817 = vsel %vm404, %v812, %v816
    %v819 = vshrl.u32 %v747, 16
    %v821 = vrot.slane %v819, 4
    %v822 = vshll.u32 %v747, 16
    %v824 = vrot.slane %v822, 5
    %v825 = vor.u32 %v821, %v824
    %v826 = vrot.slane %v825, 4
    %v828 = vshll.u32 %v763, 16
    %v830 = vrot.slane %v828, 5
    %v831 = vsel %vm404, %v826, %v830
    %v833 = vshrl.u32 %v748, 16
    %v835 = vrot.slane %v833, 4
    %v836 = vshll.u32 %v748, 16
    %v838 = vrot.slane %v836, 5
    %v839 = vor.u32 %v835, %v838
    %v840 = vrot.slane %v839, 4
    %v842 = vshll.u32 %v764, 16
    %v844 = vrot.slane %v842, 5
    %v845 = vsel %vm404, %v840, %v844
    %v847 = vshrl.u32 %v749, 16
    %v849 = vrot.slane %v847, 4
    %v850 = vshll.u32 %v749, 16
    %v852 = vrot.slane %v850, 5
    %v853 = vor.u32 %v849, %v852
    %v854 = vrot.slane %v853, 4
    %v856 = vshll.u32 %v765, 16
    %v858 = vrot.slane %v856, 5
    %v859 = vsel %vm404, %v854, %v858
    %v861 = vshrl.u32 %v750, 16
    %v863 = vrot.slane %v861, 4
    %v864 = vshll.u32 %v750, 16
    %v866 = vrot.slane %v864, 5
    %v867 = vor.u32 %v863, %v866
    %v868 = vrot.slane %v867, 4
    %v870 = vshll.u32 %v766, 16
    %v872 = vrot.slane %v870, 5
    %v873 = vsel %vm404, %v868, %v872
    %v875 = vshrl.u32 %v751, 16
    %v877 = vrot.slane %v875, 4
    %v878 = vshll.u32 %v751, 16
    %v880 = vrot.slane %v878, 5
    %v881 = vor.u32 %v877, %v880
    %v882 = vrot.slane %v881, 4
    %v884 = vshll.u32 %v767, 16
    %v886 = vrot.slane %v884, 5
    %v887 = vsel %vm404, %v882, %v886
    %v889 = vshrl.u32 %v752, 16
    %v891 = vrot.slane %v889, 4
    %v892 = vshll.u32 %v752, 16
    %v894 = vrot.slane %v892, 5
    %v895 = vor.u32 %v891, %v894
    %v896 = vrot.slane %v895, 4
    %v898 = vshll.u32 %v768, 16
    %v900 = vrot.slane %v898, 5
    %v901 = vsel %vm404, %v896, %v900
    %v903 = vshrl.u32 %v753, 16
    %v905 = vrot.slane %v903, 4
    %v906 = vshll.u32 %v753, 16
    %v908 = vrot.slane %v906, 5
    %v909 = vor.u32 %v905, %v908
    %v910 = vrot.slane %v909, 4
    %v912 = vshll.u32 %v769, 16
    %v914 = vrot.slane %v912, 5
    %v915 = vsel %vm404, %v910, %v914
    %v917 = vshrl.u32 %v754, 16
    %v919 = vrot.slane %v917, 4
    %v920 = vshll.u32 %v754, 16
    %v922 = vrot.slane %v920, 5
    %v923 = vor.u32 %v919, %v922
    %v924 = vrot.slane %v923, 4
    %v926 = vshll.u32 %v770, 16
    %v928 = vrot.slane %v926, 5
    %v929 = vsel %vm404, %v924, %v928
    %v931 = vshrl.u32 %v755, 16
    %v933 = vrot.slane %v931, 4
    %v934 = vshll.u32 %v755, 16
    %v936 = vrot.slane %v934, 5
    %v937 = vor.u32 %v933, %v936
    %v938 = vrot.slane %v937, 4
    %v940 = vshll.u32 %v771, 16
    %v942 = vrot.slane %v940, 5
    %v943 = vsel %vm404, %v938, %v942
    %v945 = vshrl.u32 %v756, 16
    %v947 = vrot.slane %v945, 4
    %v948 = vshll.u32 %v756, 16
    %v950 = vrot.slane %v948, 5
    %v951 = vor.u32 %v947, %v950
    %v952 = vrot.slane %v951, 4
    %v954 = vshll.u32 %v772, 16
    %v956 = vrot.slane %v954, 5
    %v957 = vsel %vm404, %v952, %v956
    %v959 = vshrl.u32 %v757, 16
    %v961 = vrot.slane %v959, 4
    %v962 = vshll.u32 %v757, 16
    %v964 = vrot.slane %v962, 5
    %v965 = vor.u32 %v961, %v964
    %v966 = vrot.slane %v965, 4
    %v968 = vshll.u32 %v773, 16
    %v970 = vrot.slane %v968, 5
    %v971 = vsel %vm404, %v966, %v970
    %v973 = vshrl.u32 %v758, 16
    %v975 = vrot.slane %v973, 4
    %v976 = vshll.u32 %v758, 16
    %v978 = vrot.slane %v976, 5
    %v979 = vor.u32 %v975, %v978
    %v980 = vrot.slane %v979, 4
    %v982 = vshll.u32 %v774, 16
    %v984 = vrot.slane %v982, 5
    %v985 = vsel %vm404, %v980, %v984
    %v987 = vshrl.u32 %v759, 16
    %v989 = vrot.slane %v987, 4
    %v990 = vshll.u32 %v759, 16
    %v992 = vrot.slane %v990, 5
    %v993 = vor.u32 %v989, %v992
    %v994 = vrot.slane %v993, 4
    %v996 = vshll.u32 %v775, 16
    %v998 = vrot.slane %v996, 5
    %v999 = vsel %vm404, %v994, %v998
    %v1000 = vld [vmem:[%s267] sm:$0xe]
    %v1001 = vld [vmem:[%s267 + $0x8] sm:$0xe]
    %v1002 = vld [vmem:[%s267 + $0x10] sm:$0xe]
    %v1003 = vld [vmem:[%s267 + $0x18] sm:$0xe]
    %v1004 = vld [vmem:[%s267 + $0x20] sm:$0xe]
    %v1005 = vld [vmem:[%s267 + $0x28] sm:$0xe]
    %v1006 = vld [vmem:[%s267 + $0x30] sm:$0xe]
    %v1007 = vld [vmem:[%s267 + $0x38] sm:$0xe]
    %v1008 = vld [vmem:[%s267 + $0x50] sm:$0xe]
    %v1009 = vld [vmem:[%s267 + $0x58] sm:$0xe]
    %v1010 = vld [vmem:[%s267 + $0x60] sm:$0xe]
    %v1011 = vld [vmem:[%s267 + $0x68] sm:$0xe]
    %v1012 = vld [vmem:[%s267 + $0x70] sm:$0xe]
    %v1013 = vld [vmem:[%s267 + $0x78] sm:$0xe]
    %v1014 = vld [vmem:[%s267 + $0x80] sm:$0xe]
    %v1015 = vld [vmem:[%s267 + $0x88] sm:$0xe]
    %v1048 = vrot.slane %v1000, 5
    %v1049 = vrot.slane %v1048, 4
    %v1050 = vrot.slane %v760, 5
    %v1051 = vsel %vm679, %v1049, %v1050
    %v1052 = vrot.slane %v1001, 5
    %v1053 = vrot.slane %v1052, 4
    %v1054 = vrot.slane %v761, 5
    %v1055 = vsel %vm679, %v1053, %v1054
    %v1056 = vrot.slane %v1002, 5
    %v1057 = vrot.slane %v1056, 4
    %v1058 = vrot.slane %v762, 5
    %v1059 = vsel %vm679, %v1057, %v1058
    %v1060 = vrot.slane %v1003, 5
    %v1061 = vrot.slane %v1060, 4
    %v1062 = vrot.slane %v763, 5
    %v1063 = vsel %vm679, %v1061, %v1062
    %v1064 = vrot.slane %v1004, 5
    %v1065 = vrot.slane %v1064, 4
    %v1066 = vrot.slane %v764, 5
    %v1067 = vsel %vm679, %v1065, %v1066
    %v1068 = vrot.slane %v1005, 5
    %v1069 = vrot.slane %v1068, 4
    %v1070 = vrot.slane %v765, 5
    %v1071 = vsel %vm679, %v1069, %v1070
    %v1072 = vrot.slane %v1006, 5
    %v1073 = vrot.slane %v1072, 4
    %v1074 = vrot.slane %v766, 5
    %v1075 = vsel %vm679, %v1073, %v1074
    %v1076 = vrot.slane %v1007, 5
    %v1077 = vrot.slane %v1076, 4
    %v1078 = vrot.slane %v767, 5
    %v1079 = vsel %vm679, %v1077, %v1078
    %v1080 = vrot.slane %v1008, 5
    %v1081 = vrot.slane %v1080, 4
    %v1082 = vrot.slane %v768, 5
    %v1083 = vsel %vm679, %v1081, %v1082
    %v1084 = vrot.slane %v1009, 5
    %v1085 = vrot.slane %v1084, 4
    %v1086 = vrot.slane %v769, 5
    %v1087 = vsel %vm679, %v1085, %v1086
    %v1088 = vrot.slane %v1010, 5
    %v1089 = vrot.slane %v1088, 4
    %v1090 = vrot.slane %v770, 5
    %v1091 = vsel %vm679, %v1089, %v1090
    %v1092 = vrot.slane %v1011, 5
    %v1093 = vrot.slane %v1092, 4
    %v1094 = vrot.slane %v771, 5
    %v1095 = vsel %vm679, %v1093, %v1094
    %v1096 = vrot.slane %v1012, 5
    %v1097 = vrot.slane %v1096, 4
    %v1098 = vrot.slane %v772, 5
    %v1099 = vsel %vm679, %v1097, %v1098
    %v1100 = vrot.slane %v1013, 5
    %v1101 = vrot.slane %v1100, 4
    %v1102 = vrot.slane %v773, 5
    %v1103 = vsel %vm679, %v1101, %v1102
    %v1104 = vrot.slane %v1014, 5
    %v1105 = vrot.slane %v1104, 4
    %v1106 = vrot.slane %v774, 5
    %v1107 = vsel %vm679, %v1105, %v1106
    %v1108 = vrot.slane %v1015, 5
    %v1109 = vrot.slane %v1108, 4
    %v1110 = vrot.slane %v775, 5
    %v1111 = vsel %vm679, %v1109, %v1110
    %s1112 = scalar_lea.vmem [#allocation2], 16
    %v1113 = vld [vmem:[%s1112] sm:$0xf]
    %v1114 = vld [vmem:[%s1112 + $0x8] sm:$0xf]
    %v1115 = vld [vmem:[%s1112 + $0x10] sm:$0xf]
    %v1116 = vld [vmem:[%s1112 + $0x18] sm:$0xf]
    %v1117 = vld [vmem:[%s1112 + $0x20] sm:$0xf]
    %v1118 = vld [vmem:[%s1112 + $0x28] sm:$0xf]
    %v1119 = vld [vmem:[%s1112 + $0x30] sm:$0xf]
    %v1120 = vld [vmem:[%s1112 + $0x38] sm:$0xf]
    %v1121 = vld [vmem:[%s1112 + $0x50] sm:$0xf]
    %v1122 = vld [vmem:[%s1112 + $0x58] sm:$0xf]
    %v1123 = vld [vmem:[%s1112 + $0x60] sm:$0xf]
    %v1124 = vld [vmem:[%s1112 + $0x68] sm:$0xf]
    %v1125 = vld [vmem:[%s1112 + $0x70] sm:$0xf]
    %v1126 = vld [vmem:[%s1112 + $0x78] sm:$0xf]
    %v1127 = vld [vmem:[%s1112 + $0x80] sm:$0xf]
    %v1128 = vld [vmem:[%s1112 + $0x88] sm:$0xf]
    %v1129 = vld [vmem:[%s1112 + $0x4] sm:$0x1]
    %v1130 = vld [vmem:[%s1112 + $0xc] sm:$0x1]
    %v1131 = vld [vmem:[%s1112 + $0x14] sm:$0x1]
    %v1132 = vld [vmem:[%s1112 + $0x1c] sm:$0x1]
    %v1133 = vld [vmem:[%s1112 + $0x24] sm:$0x1]
    %v1134 = vld [vmem:[%s1112 + $0x2c] sm:$0x1]
    %v1135 = vld [vmem:[%s1112 + $0x34] sm:$0x1]
    %v1136 = vld [vmem:[%s1112 + $0x3c] sm:$0x1]
    %v1137 = vld [vmem:[%s1112 + $0x54] sm:$0x1]
    %v1138 = vld [vmem:[%s1112 + $0x5c] sm:$0x1]
    %v1139 = vld [vmem:[%s1112 + $0x64] sm:$0x1]
    %v1140 = vld [vmem:[%s1112 + $0x6c] sm:$0x1]
    %v1141 = vld [vmem:[%s1112 + $0x74] sm:$0x1]
    %v1142 = vld [vmem:[%s1112 + $0x7c] sm:$0x1]
    %v1143 = vld [vmem:[%s1112 + $0x84] sm:$0x1]
    %v1144 = vld [vmem:[%s1112 + $0x8c] sm:$0x1]
    %v1146 = vshrl.u32 %v1113, 16
    %v1148 = vrot.slane %v1146, 4
    %v1149 = vshll.u32 %v1113, 16
    %v1151 = vrot.slane %v1149, 5
    %v1152 = vor.u32 %v1148, %v1151
    %v1153 = vrot.slane %v1152, 4
    %v1155 = vshll.u32 %v1129, 16
    %v1157 = vrot.slane %v1155, 5
    %v1158 = vsel %vm404, %v1153, %v1157
    %v1160 = vshrl.u32 %v1114, 16
    %v1162 = vrot.slane %v1160, 4
    %v1163 = vshll.u32 %v1114, 16
    %v1165 = vrot.slane %v1163, 5
    %v1166 = vor.u32 %v1162, %v1165
    %v1167 = vrot.slane %v1166, 4
    %v1169 = vshll.u32 %v1130, 16
    %v1171 = vrot.slane %v1169, 5
    %v1172 = vsel %vm404, %v1167, %v1171
    %v1174 = vshrl.u32 %v1115, 16
    %v1176 = vrot.slane %v1174, 4
    %v1177 = vshll.u32 %v1115, 16
    %v1179 = vrot.slane %v1177, 5
    %v1180 = vor.u32 %v1176, %v1179
    %v1181 = vrot.slane %v1180, 4
    %v1183 = vshll.u32 %v1131, 16
    %v1185 = vrot.slane %v1183, 5
    %v1186 = vsel %vm404, %v1181, %v1185
    %v1188 = vshrl.u32 %v1116, 16
    %v1190 = vrot.slane %v1188, 4
    %v1191 = vshll.u32 %v1116, 16
    %v1193 = vrot.slane %v1191, 5
    %v1194 = vor.u32 %v1190, %v1193
    %v1195 = vrot.slane %v1194, 4
    %v1197 = vshll.u32 %v1132, 16
    %v1199 = vrot.slane %v1197, 5
    %v1200 = vsel %vm404, %v1195, %v1199
    %v1202 = vshrl.u32 %v1117, 16
    %v1204 = vrot.slane %v1202, 4
    %v1205 = vshll.u32 %v1117, 16
    %v1207 = vrot.slane %v1205, 5
    %v1208 = vor.u32 %v1204, %v1207
    %v1209 = vrot.slane %v1208, 4
    %v1211 = vshll.u32 %v1133, 16
    %v1213 = vrot.slane %v1211, 5
    %v1214 = vsel %vm404, %v1209, %v1213
    %v1216 = vshrl.u32 %v1118, 16
    %v1218 = vrot.slane %v1216, 4
    %v1219 = vshll.u32 %v1118, 16
    %v1221 = vrot.slane %v1219, 5
    %v1222 = vor.u32 %v1218, %v1221
    %v1223 = vrot.slane %v1222, 4
    %v1225 = vshll.u32 %v1134, 16
    %v1227 = vrot.slane %v1225, 5
    %v1228 = vsel %vm404, %v1223, %v1227
    %v1230 = vshrl.u32 %v1119, 16
    %v1232 = vrot.slane %v1230, 4
    %v1233 = vshll.u32 %v1119, 16
    %v1235 = vrot.slane %v1233, 5
    %v1236 = vor.u32 %v1232, %v1235
    %v1237 = vrot.slane %v1236, 4
    %v1239 = vshll.u32 %v1135, 16
    %v1241 = vrot.slane %v1239, 5
    %v1242 = vsel %vm404, %v1237, %v1241
    %v1244 = vshrl.u32 %v1120, 16
    %v1246 = vrot.slane %v1244, 4
    %v1247 = vshll.u32 %v1120, 16
    %v1249 = vrot.slane %v1247, 5
    %v1250 = vor.u32 %v1246, %v1249
    %v1251 = vrot.slane %v1250, 4
    %v1253 = vshll.u32 %v1136, 16
    %v1255 = vrot.slane %v1253, 5
    %v1256 = vsel %vm404, %v1251, %v1255
    %v1258 = vshrl.u32 %v1121, 16
    %v1260 = vrot.slane %v1258, 4
    %v1261 = vshll.u32 %v1121, 16
    %v1263 = vrot.slane %v1261, 5
    %v1264 = vor.u32 %v1260, %v1263
    %v1265 = vrot.slane %v1264, 4
    %v1267 = vshll.u32 %v1137, 16
    %v1269 = vrot.slane %v1267, 5
    %v1270 = vsel %vm404, %v1265, %v1269
    %v1272 = vshrl.u32 %v1122, 16
    %v1274 = vrot.slane %v1272, 4
    %v1275 = vshll.u32 %v1122, 16
    %v1277 = vrot.slane %v1275, 5
    %v1278 = vor.u32 %v1274, %v1277
    %v1279 = vrot.slane %v1278, 4
    %v1281 = vshll.u32 %v1138, 16
    %v1283 = vrot.slane %v1281, 5
    %v1284 = vsel %vm404, %v1279, %v1283
    %v1286 = vshrl.u32 %v1123, 16
    %v1288 = vrot.slane %v1286, 4
    %v1289 = vshll.u32 %v1123, 16
    %v1291 = vrot.slane %v1289, 5
    %v1292 = vor.u32 %v1288, %v1291
    %v1293 = vrot.slane %v1292, 4
    %v1295 = vshll.u32 %v1139, 16
    %v1297 = vrot.slane %v1295, 5
    %v1298 = vsel %vm404, %v1293, %v1297
    %v1300 = vshrl.u32 %v1124, 16
    %v1302 = vrot.slane %v1300, 4
    %v1303 = vshll.u32 %v1124, 16
    %v1305 = vrot.slane %v1303, 5
    %v1306 = vor.u32 %v1302, %v1305
    %v1307 = vrot.slane %v1306, 4
    %v1309 = vshll.u32 %v1140, 16
    %v1311 = vrot.slane %v1309, 5
    %v1312 = vsel %vm404, %v1307, %v1311
    %v1314 = vshrl.u32 %v1125, 16
    %v1316 = vrot.slane %v1314, 4
    %v1317 = vshll.u32 %v1125, 16
    %v1319 = vrot.slane %v1317, 5
    %v1320 = vor.u32 %v1316, %v1319
    %v1321 = vrot.slane %v1320, 4
    %v1323 = vshll.u32 %v1141, 16
    %v1325 = vrot.slane %v1323, 5
    %v1326 = vsel %vm404, %v1321, %v1325
    %v1328 = vshrl.u32 %v1126, 16
    %v1330 = vrot.slane %v1328, 4
    %v1331 = vshll.u32 %v1126, 16
    %v1333 = vrot.slane %v1331, 5
    %v1334 = vor.u32 %v1330, %v1333
    %v1335 = vrot.slane %v1334, 4
    %v1337 = vshll.u32 %v1142, 16
    %v1339 = vrot.slane %v1337, 5
    %v1340 = vsel %vm404, %v1335, %v1339
    %v1342 = vshrl.u32 %v1127, 16
    %v1344 = vrot.slane %v1342, 4
    %v1345 = vshll.u32 %v1127, 16
    %v1347 = vrot.slane %v1345, 5
    %v1348 = vor.u32 %v1344, %v1347
    %v1349 = vrot.slane %v1348, 4
    %v1351 = vshll.u32 %v1143, 16
    %v1353 = vrot.slane %v1351, 5
    %v1354 = vsel %vm404, %v1349, %v1353
    %v1356 = vshrl.u32 %v1128, 16
    %v1358 = vrot.slane %v1356, 4
    %v1359 = vshll.u32 %v1128, 16
    %v1361 = vrot.slane %v1359, 5
    %v1362 = vor.u32 %v1358, %v1361
    %v1363 = vrot.slane %v1362, 4
    %v1365 = vshll.u32 %v1144, 16
    %v1367 = vrot.slane %v1365, 5
    %v1368 = vsel %vm404, %v1363, %v1367
    %v1369 = vld [vmem:[%s1112] sm:$0xe]
    %v1370 = vld [vmem:[%s1112 + $0x8] sm:$0xe]
    %v1371 = vld [vmem:[%s1112 + $0x10] sm:$0xe]
    %v1372 = vld [vmem:[%s1112 + $0x18] sm:$0xe]
    %v1373 = vld [vmem:[%s1112 + $0x20] sm:$0xe]
    %v1374 = vld [vmem:[%s1112 + $0x28] sm:$0xe]
    %v1375 = vld [vmem:[%s1112 + $0x30] sm:$0xe]
    %v1376 = vld [vmem:[%s1112 + $0x38] sm:$0xe]
    %v1377 = vld [vmem:[%s1112 + $0x50] sm:$0xe]
    %v1378 = vld [vmem:[%s1112 + $0x58] sm:$0xe]
    %v1379 = vld [vmem:[%s1112 + $0x60] sm:$0xe]
    %v1380 = vld [vmem:[%s1112 + $0x68] sm:$0xe]
    %v1381 = vld [vmem:[%s1112 + $0x70] sm:$0xe]
    %v1382 = vld [vmem:[%s1112 + $0x78] sm:$0xe]
    %v1383 = vld [vmem:[%s1112 + $0x80] sm:$0xe]
    %v1384 = vld [vmem:[%s1112 + $0x88] sm:$0xe]
    %v1417 = vrot.slane %v1369, 5
    %v1418 = vrot.slane %v1417, 4
    %v1419 = vrot.slane %v1129, 5
    %v1420 = vsel %vm679, %v1418, %v1419
    %v1421 = vrot.slane %v1370, 5
    %v1422 = vrot.slane %v1421, 4
    %v1423 = vrot.slane %v1130, 5
    %v1424 = vsel %vm679, %v1422, %v1423
    %v1425 = vrot.slane %v1371, 5
    %v1426 = vrot.slane %v1425, 4
    %v1427 = vrot.slane %v1131, 5
    %v1428 = vsel %vm679, %v1426, %v1427
    %v1429 = vrot.slane %v1372, 5
    %v1430 = vrot.slane %v1429, 4
    %v1431 = vrot.slane %v1132, 5
    %v1432 = vsel %vm679, %v1430, %v1431
    %v1433 = vrot.slane %v1373, 5
    %v1434 = vrot.slane %v1433, 4
    %v1435 = vrot.slane %v1133, 5
    %v1436 = vsel %vm679, %v1434, %v1435
    %v1437 = vrot.slane %v1374, 5
    %v1438 = vrot.slane %v1437, 4
    %v1439 = vrot.slane %v1134, 5
    %v1440 = vsel %vm679, %v1438, %v1439
    %v1441 = vrot.slane %v1375, 5
    %v1442 = vrot.slane %v1441, 4
    %v1443 = vrot.slane %v1135, 5
    %v1444 = vsel %vm679, %v1442, %v1443
    %v1445 = vrot.slane %v1376, 5
    %v1446 = vrot.slane %v1445, 4
    %v1447 = vrot.slane %v1136, 5
    %v1448 = vsel %vm679, %v1446, %v1447
    %v1449 = vrot.slane %v1377, 5
    %v1450 = vrot.slane %v1449, 4
    %v1451 = vrot.slane %v1137, 5
    %v1452 = vsel %vm679, %v1450, %v1451
    %v1453 = vrot.slane %v1378, 5
    %v1454 = vrot.slane %v1453, 4
    %v1455 = vrot.slane %v1138, 5
    %v1456 = vsel %vm679, %v1454, %v1455
    %v1457 = vrot.slane %v1379, 5
    %v1458 = vrot.slane %v1457, 4
    %v1459 = vrot.slane %v1139, 5
    %v1460 = vsel %vm679, %v1458, %v1459
    %v1461 = vrot.slane %v1380, 5
    %v1462 = vrot.slane %v1461, 4
    %v1463 = vrot.slane %v1140, 5
    %v1464 = vsel %vm679, %v1462, %v1463
    %v1465 = vrot.slane %v1381, 5
    %v1466 = vrot.slane %v1465, 4
    %v1467 = vrot.slane %v1141, 5
    %v1468 = vsel %vm679, %v1466, %v1467
    %v1469 = vrot.slane %v1382, 5
    %v1470 = vrot.slane %v1469, 4
    %v1471 = vrot.slane %v1142, 5
    %v1472 = vsel %vm679, %v1470, %v1471
    %v1473 = vrot.slane %v1383, 5
    %v1474 = vrot.slane %v1473, 4
    %v1475 = vrot.slane %v1143, 5
    %v1476 = vsel %vm679, %v1474, %v1475
    %v1477 = vrot.slane %v1384, 5
    %v1478 = vrot.slane %v1477, 4
    %v1479 = vrot.slane %v1144, 5
    %v1480 = vsel %vm679, %v1478, %v1479
    %v1497 = vunpack.c.l.b16 %v370
    %v1498 = vunpack.c.l.b16 %v371
    %v1499 = vunpack.c.l.b16 %v372
    %v1500 = vunpack.c.l.b16 %v373
    %v1501 = vunpack.c.l.b16 %v374
    %v1502 = vunpack.c.l.b16 %v375
    %v1503 = vunpack.c.l.b16 %v376
    %v1504 = vunpack.c.l.b16 %v377
    %v1505 = vunpack.c.l.b16 %v378
    %v1506 = vunpack.c.l.b16 %v379
    %v1507 = vunpack.c.l.b16 %v380
    %v1508 = vunpack.c.l.b16 %v381
    %v1509 = vunpack.c.l.b16 %v382
    %v1510 = vunpack.c.l.b16 %v383
    %v1511 = vunpack.c.l.b16 %v384
    %v1512 = vunpack.c.l.b16 %v385
    %v1513 = vpack.c.b16 %v1498, %v1497
    %v1514 = vpack.c.b16 %v1500, %v1499
    %v1515 = vpack.c.b16 %v1502, %v1501
    %v1516 = vpack.c.b16 %v1504, %v1503
    %v1517 = vpack.c.b16 %v1506, %v1505
    %v1518 = vpack.c.b16 %v1508, %v1507
    %v1519 = vpack.c.b16 %v1510, %v1509
    %v1520 = vpack.c.b16 %v1512, %v1511
    %v1521 = vunpack.c.l.b16 %v418
    %v1522 = vunpack.c.l.b16 %v432
    %v1523 = vunpack.c.l.b16 %v446
    %v1524 = vunpack.c.l.b16 %v460
    %v1525 = vunpack.c.l.b16 %v474
    %v1526 = vunpack.c.l.b16 %v488
    %v1527 = vunpack.c.l.b16 %v502
    %v1528 = vunpack.c.l.b16 %v516
    %v1529 = vunpack.c.l.b16 %v530
    %v1530 = vunpack.c.l.b16 %v544
    %v1531 = vunpack.c.l.b16 %v558
    %v1532 = vunpack.c.l.b16 %v572
    %v1533 = vunpack.c.l.b16 %v586
    %v1534 = vunpack.c.l.b16 %v600
    %v1535 = vunpack.c.l.b16 %v614
    %v1536 = vunpack.c.l.b16 %v628
    %v1537 = vpack.c.b16 %v1522, %v1521
    %v1538 = vpack.c.b16 %v1524, %v1523
    %v1539 = vpack.c.b16 %v1526, %v1525
    %v1540 = vpack.c.b16 %v1528, %v1527
    %v1541 = vpack.c.b16 %v1530, %v1529
    %v1542 = vpack.c.b16 %v1532, %v1531
    %v1543 = vpack.c.b16 %v1534, %v1533
    %v1544 = vpack.c.b16 %v1536, %v1535
    %1545 = vrot.lane.b32.xlu0 %v1537, 64
    %v1546 = vpop.permute.xlu0 %1545
    %1547 = vrot.lane.b32.xlu0 %v1538, 64
    %v1548 = vpop.permute.xlu0 %1547
    %1549 = vrot.lane.b32.xlu0 %v1539, 64
    %v1550 = vpop.permute.xlu0 %1549
    %1551 = vrot.lane.b32.xlu0 %v1540, 64
    %v1552 = vpop.permute.xlu0 %1551
    %1553 = vrot.lane.b32.xlu0 %v1541, 64
    %v1554 = vpop.permute.xlu0 %1553
    %1555 = vrot.lane.b32.xlu0 %v1542, 64
    %v1556 = vpop.permute.xlu0 %1555
    %1557 = vrot.lane.b32.xlu0 %v1543, 64
    %v1558 = vpop.permute.xlu0 %1557
    %1559 = vrot.lane.b32.xlu0 %v1544, 64
    %v1560 = vpop.permute.xlu0 %1559
    %v1561 = vunpack.c.l.b16 %v683
    %v1562 = vunpack.c.l.b16 %v687
    %v1563 = vunpack.c.l.b16 %v691
    %v1564 = vunpack.c.l.b16 %v695
    %v1565 = vunpack.c.l.b16 %v699
    %v1566 = vunpack.c.l.b16 %v703
    %v1567 = vunpack.c.l.b16 %v707
    %v1568 = vunpack.c.l.b16 %v711
    %v1569 = vunpack.c.l.b16 %v715
    %v1570 = vunpack.c.l.b16 %v719
    %v1571 = vunpack.c.l.b16 %v723
    %v1572 = vunpack.c.l.b16 %v727
    %v1573 = vunpack.c.l.b16 %v731
    %v1574 = vunpack.c.l.b16 %v735
    %v1575 = vunpack.c.l.b16 %v739
    %v1576 = vunpack.c.l.b16 %v743
    %v1577 = vpack.c.b16 %v1562, %v1561
    %v1578 = vpack.c.b16 %v1564, %v1563
    %v1579 = vpack.c.b16 %v1566, %v1565
    %v1580 = vpack.c.b16 %v1568, %v1567
    %v1581 = vpack.c.b16 %v1570, %v1569
    %v1582 = vpack.c.b16 %v1572, %v1571
    %v1583 = vpack.c.b16 %v1574, %v1573
    %v1584 = vpack.c.b16 %v1576, %v1575
    %v1601 = vunpack.c.l.b16 %v744
    %v1602 = vunpack.c.l.b16 %v745
    %v1603 = vunpack.c.l.b16 %v746
    %v1604 = vunpack.c.l.b16 %v747
    %v1605 = vunpack.c.l.b16 %v748
    %v1606 = vunpack.c.l.b16 %v749
    %v1607 = vunpack.c.l.b16 %v750
    %v1608 = vunpack.c.l.b16 %v751
    %v1609 = vunpack.c.l.b16 %v752
    %v1610 = vunpack.c.l.b16 %v753
    %v1611 = vunpack.c.l.b16 %v754
    %v1612 = vunpack.c.l.b16 %v755
    %v1613 = vunpack.c.l.b16 %v756
    %v1614 = vunpack.c.l.b16 %v757
    %v1615 = vunpack.c.l.b16 %v758
    %v1616 = vunpack.c.l.b16 %v759
    %v1617 = vpack.c.b16 %v1602, %v1601
    %v1618 = vpack.c.b16 %v1604, %v1603
    %v1619 = vpack.c.b16 %v1606, %v1605
    %v1620 = vpack.c.b16 %v1608, %v1607
    %v1621 = vpack.c.b16 %v1610, %v1609
    %v1622 = vpack.c.b16 %v1612, %v1611
    %v1623 = vpack.c.b16 %v1614, %v1613
    %v1624 = vpack.c.b16 %v1616, %v1615
    %1625 = vrot.lane.b32.xlu0 %v1617, 64
    %v1626 = vpop.permute.xlu0 %1625
    %1627 = vrot.lane.b32.xlu0 %v1618, 64
    %v1628 = vpop.permute.xlu0 %1627
    %1629 = vrot.lane.b32.xlu0 %v1619, 64
    %v1630 = vpop.permute.xlu0 %1629
    %1631 = vrot.lane.b32.xlu0 %v1620, 64
    %v1632 = vpop.permute.xlu0 %1631
    %1633 = vrot.lane.b32.xlu0 %v1621, 64
    %v1634 = vpop.permute.xlu0 %1633
    %1635 = vrot.lane.b32.xlu0 %v1622, 64
    %v1636 = vpop.permute.xlu0 %1635
    %1637 = vrot.lane.b32.xlu0 %v1623, 64
    %v1638 = vpop.permute.xlu0 %1637
    %1639 = vrot.lane.b32.xlu0 %v1624, 64
    %v1640 = vpop.permute.xlu0 %1639
    %v1641 = vunpack.c.l.b16 %v789
    %v1642 = vunpack.c.l.b16 %v803
    %v1643 = vunpack.c.l.b16 %v817
    %v1644 = vunpack.c.l.b16 %v831
    %v1645 = vunpack.c.l.b16 %v845
    %v1646 = vunpack.c.l.b16 %v859
    %v1647 = vunpack.c.l.b16 %v873
    %v1648 = vunpack.c.l.b16 %v887
    %v1649 = vunpack.c.l.b16 %v901
    %v1650 = vunpack.c.l.b16 %v915
    %v1651 = vunpack.c.l.b16 %v929
    %v1652 = vunpack.c.l.b16 %v943
    %v1653 = vunpack.c.l.b16 %v957
    %v1654 = vunpack.c.l.b16 %v971
    %v1655 = vunpack.c.l.b16 %v985
    %v1656 = vunpack.c.l.b16 %v999
    %v1657 = vpack.c.b16 %v1642, %v1641
    %v1658 = vpack.c.b16 %v1644, %v1643
    %v1659 = vpack.c.b16 %v1646, %v1645
    %v1660 = vpack.c.b16 %v1648, %v1647
    %v1661 = vpack.c.b16 %v1650, %v1649
    %v1662 = vpack.c.b16 %v1652, %v1651
    %v1663 = vpack.c.b16 %v1654, %v1653
    %v1664 = vpack.c.b16 %v1656, %v1655
    %v1665 = vunpack.c.l.b16 %v1051
    %v1666 = vunpack.c.l.b16 %v1055
    %v1667 = vunpack.c.l.b16 %v1059
    %v1668 = vunpack.c.l.b16 %v1063
    %v1669 = vunpack.c.l.b16 %v1067
    %v1670 = vunpack.c.l.b16 %v1071
    %v1671 = vunpack.c.l.b16 %v1075
    %v1672 = vunpack.c.l.b16 %v1079
    %v1673 = vunpack.c.l.b16 %v1083
    %v1674 = vunpack.c.l.b16 %v1087
    %v1675 = vunpack.c.l.b16 %v1091
    %v1676 = vunpack.c.l.b16 %v1095
    %v1677 = vunpack.c.l.b16 %v1099
    %v1678 = vunpack.c.l.b16 %v1103
    %v1679 = vunpack.c.l.b16 %v1107
    %v1680 = vunpack.c.l.b16 %v1111
    %v1681 = vpack.c.b16 %v1666, %v1665
    %v1682 = vpack.c.b16 %v1668, %v1667
    %v1683 = vpack.c.b16 %v1670, %v1669
    %v1684 = vpack.c.b16 %v1672, %v1671
    %v1685 = vpack.c.b16 %v1674, %v1673
    %v1686 = vpack.c.b16 %v1676, %v1675
    %v1687 = vpack.c.b16 %v1678, %v1677
    %v1688 = vpack.c.b16 %v1680, %v1679
    %1689 = vrot.lane.b32.xlu0 %v1681, 64
    %v1690 = vpop.permute.xlu0 %1689
    %1691 = vrot.lane.b32.xlu0 %v1682, 64
    %v1692 = vpop.permute.xlu0 %1691
    %1693 = vrot.lane.b32.xlu0 %v1683, 64
    %v1694 = vpop.permute.xlu0 %1693
    %1695 = vrot.lane.b32.xlu0 %v1684, 64
    %v1696 = vpop.permute.xlu0 %1695
    %1697 = vrot.lane.b32.xlu0 %v1685, 64
    %v1698 = vpop.permute.xlu0 %1697
    %1699 = vrot.lane.b32.xlu0 %v1686, 64
    %v1700 = vpop.permute.xlu0 %1699
    %1701 = vrot.lane.b32.xlu0 %v1687, 64
    %v1702 = vpop.permute.xlu0 %1701
    %1703 = vrot.lane.b32.xlu0 %v1688, 64
    %v1704 = vpop.permute.xlu0 %1703
    %v1721 = vunpack.c.l.b16 %v1113
    %v1722 = vunpack.c.l.b16 %v1114
    %v1723 = vunpack.c.l.b16 %v1115
    %v1724 = vunpack.c.l.b16 %v1116
    %v1725 = vunpack.c.l.b16 %v1117
    %v1726 = vunpack.c.l.b16 %v1118
    %v1727 = vunpack.c.l.b16 %v1119
    %v1728 = vunpack.c.l.b16 %v1120
    %v1729 = vunpack.c.l.b16 %v1121
    %v1730 = vunpack.c.l.b16 %v1122
    %v1731 = vunpack.c.l.b16 %v1123
    %v1732 = vunpack.c.l.b16 %v1124
    %v1733 = vunpack.c.l.b16 %v1125
    %v1734 = vunpack.c.l.b16 %v1126
    %v1735 = vunpack.c.l.b16 %v1127
    %v1736 = vunpack.c.l.b16 %v1128
    %v1737 = vpack.c.b16 %v1722, %v1721
    %v1738 = vpack.c.b16 %v1724, %v1723
    %v1739 = vpack.c.b16 %v1726, %v1725
    %v1740 = vpack.c.b16 %v1728, %v1727
    %v1741 = vpack.c.b16 %v1730, %v1729
    %v1742 = vpack.c.b16 %v1732, %v1731
    %v1743 = vpack.c.b16 %v1734, %v1733
    %v1744 = vpack.c.b16 %v1736, %v1735
    %v1745 = vunpack.c.l.b16 %v1158
    %v1746 = vunpack.c.l.b16 %v1172
    %v1747 = vunpack.c.l.b16 %v1186
    %v1748 = vunpack.c.l.b16 %v1200
    %v1749 = vunpack.c.l.b16 %v1214
    %v1750 = vunpack.c.l.b16 %v1228
    %v1751 = vunpack.c.l.b16 %v1242
    %v1752 = vunpack.c.l.b16 %v1256
    %v1753 = vunpack.c.l.b16 %v1270
    %v1754 = vunpack.c.l.b16 %v1284
    %v1755 = vunpack.c.l.b16 %v1298
    %v1756 = vunpack.c.l.b16 %v1312
    %v1757 = vunpack.c.l.b16 %v1326
    %v1758 = vunpack.c.l.b16 %v1340
    %v1759 = vunpack.c.l.b16 %v1354
    %v1760 = vunpack.c.l.b16 %v1368
    %v1761 = vpack.c.b16 %v1746, %v1745
    %v1762 = vpack.c.b16 %v1748, %v1747
    %v1763 = vpack.c.b16 %v1750, %v1749
    %v1764 = vpack.c.b16 %v1752, %v1751
    %v1765 = vpack.c.b16 %v1754, %v1753
    %v1766 = vpack.c.b16 %v1756, %v1755
    %v1767 = vpack.c.b16 %v1758, %v1757
    %v1768 = vpack.c.b16 %v1760, %v1759
    %1769 = vrot.lane.b32.xlu0 %v1761, 64
    %v1770 = vpop.permute.xlu0 %1769
    %1771 = vrot.lane.b32.xlu0 %v1762, 64
    %v1772 = vpop.permute.xlu0 %1771
    %1773 = vrot.lane.b32.xlu0 %v1763, 64
    %v1774 = vpop.permute.xlu0 %1773
    %1775 = vrot.lane.b32.xlu0 %v1764, 64
    %v1776 = vpop.permute.xlu0 %1775
    %1777 = vrot.lane.b32.xlu0 %v1765, 64
    %v1778 = vpop.permute.xlu0 %1777
    %1779 = vrot.lane.b32.xlu0 %v1766, 64
    %v1780 = vpop.permute.xlu0 %1779
    %1781 = vrot.lane.b32.xlu0 %v1767, 64
    %v1782 = vpop.permute.xlu0 %1781
    %1783 = vrot.lane.b32.xlu0 %v1768, 64
    %v1784 = vpop.permute.xlu0 %1783
    %v1785 = vunpack.c.l.b16 %v1420
    %v1786 = vunpack.c.l.b16 %v1424
    %v1787 = vunpack.c.l.b16 %v1428
    %v1788 = vunpack.c.l.b16 %v1432
    %v1789 = vunpack.c.l.b16 %v1436
    %v1790 = vunpack.c.l.b16 %v1440
    %v1791 = vunpack.c.l.b16 %v1444
    %v1792 = vunpack.c.l.b16 %v1448
    %v1793 = vunpack.c.l.b16 %v1452
    %v1794 = vunpack.c.l.b16 %v1456
    %v1795 = vunpack.c.l.b16 %v1460
    %v1796 = vunpack.c.l.b16 %v1464
    %v1797 = vunpack.c.l.b16 %v1468
    %v1798 = vunpack.c.l.b16 %v1472
    %v1799 = vunpack.c.l.b16 %v1476
    %v1800 = vunpack.c.l.b16 %v1480
    %v1801 = vpack.c.b16 %v1786, %v1785
    %v1802 = vpack.c.b16 %v1788, %v1787
    %v1803 = vpack.c.b16 %v1790, %v1789
    %v1804 = vpack.c.b16 %v1792, %v1791
    %v1805 = vpack.c.b16 %v1794, %v1793
    %v1806 = vpack.c.b16 %v1796, %v1795
    %v1807 = vpack.c.b16 %v1798, %v1797
    %v1808 = vpack.c.b16 %v1800, %v1799
    %vm1809 = vcmask 523264
    %v1812 = vsel %vm1809, %v1513, %v1546
    %v1816 = vsel %vm1809, %v1514, %v1548
    %v1820 = vsel %vm1809, %v1515, %v1550
    %v1824 = vsel %vm1809, %v1516, %v1552
    %v1828 = vsel %vm1809, %v1517, %v1554
    %v1832 = vsel %vm1809, %v1518, %v1556
    %v1836 = vsel %vm1809, %v1519, %v1558
    %v1840 = vsel %vm1809, %v1520, %v1560
    %v1844 = vsel %vm1809, %v1577, %v1626
    %v1848 = vsel %vm1809, %v1578, %v1628
    %v1852 = vsel %vm1809, %v1579, %v1630
    %v1856 = vsel %vm1809, %v1580, %v1632
    %v1860 = vsel %vm1809, %v1581, %v1634
    %v1864 = vsel %vm1809, %v1582, %v1636
    %v1868 = vsel %vm1809, %v1583, %v1638
    %v1872 = vsel %vm1809, %v1584, %v1640
    %v1876 = vsel %vm1809, %v1657, %v1690
    %v1880 = vsel %vm1809, %v1658, %v1692
    %v1884 = vsel %vm1809, %v1659, %v1694
    %v1888 = vsel %vm1809, %v1660, %v1696
    %v1892 = vsel %vm1809, %v1661, %v1698
    %v1896 = vsel %vm1809, %v1662, %v1700
    %v1900 = vsel %vm1809, %v1663, %v1702
    %v1904 = vsel %vm1809, %v1664, %v1704
    %v1908 = vsel %vm1809, %v1737, %v1770
    %v1912 = vsel %vm1809, %v1738, %v1772
    %v1916 = vsel %vm1809, %v1739, %v1774
    %v1920 = vsel %vm1809, %v1740, %v1776
    %v1924 = vsel %vm1809, %v1741, %v1778
    %v1928 = vsel %vm1809, %v1742, %v1780
    %v1932 = vsel %vm1809, %v1743, %v1782
    %v1936 = vsel %vm1809, %v1744, %v1784
    %v1938 = vld [vmem:[#allocation5] sm:$0xff]
    %v1939 = vld [vmem:[#allocation5 + $0x8] sm:$0xff]
    %v1940 = vld [vmem:[#allocation5 + $0x10] sm:$0xff]
    %v1941 = vld [vmem:[#allocation5 + $0x18] sm:$0xff]
    %v1942 = vld [vmem:[#allocation5 + $0x20] sm:$0xff]
    %v1943 = vld [vmem:[#allocation5 + $0x28] sm:$0xff]
    %v1944 = vld [vmem:[#allocation5 + $0x30] sm:$0xff]
    %v1945 = vld [vmem:[#allocation5 + $0x38] sm:$0xff]
    %v1946 = vld [vmem:[#allocation5 + $0x40] sm:$0xff]
    %v1947 = vld [vmem:[#allocation5 + $0x48] sm:$0xff]
    %v1948 = vld [vmem:[#allocation5 + $0x50] sm:$0xff]
    %v1949 = vld [vmem:[#allocation5 + $0x58] sm:$0xff]
    %v1950 = vld [vmem:[#allocation5 + $0x60] sm:$0xff]
    %v1951 = vld [vmem:[#allocation5 + $0x68] sm:$0xff]
    %v1952 = vld [vmem:[#allocation5 + $0x70] sm:$0xff]
    %v1953 = vld [vmem:[#allocation5 + $0x78] sm:$0xff]
    %v1954 = vld [vmem:[#allocation5 + $0x80] sm:$0xff]
    %v1955 = vld [vmem:[#allocation5 + $0x88] sm:$0xff]
    %v1956 = vld [vmem:[#allocation5 + $0x90] sm:$0xff]
    %v1957 = vld [vmem:[#allocation5 + $0x98] sm:$0xff]
    %v1958 = vld [vmem:[#allocation5 + $0xa0] sm:$0xff]
    %v1959 = vld [vmem:[#allocation5 + $0xa8] sm:$0xff]
    %v1960 = vld [vmem:[#allocation5 + $0xb0] sm:$0xff]
    %v1961 = vld [vmem:[#allocation5 + $0xb8] sm:$0xff]
    %v1962 = vld [vmem:[#allocation5 + $0xc0] sm:$0xff]
    %v1963 = vld [vmem:[#allocation5 + $0xc8] sm:$0xff]
    %v1964 = vld [vmem:[#allocation5 + $0xd0] sm:$0xff]
    %v1965 = vld [vmem:[#allocation5 + $0xd8] sm:$0xff]
    %v1966 = vld [vmem:[#allocation5 + $0xe0] sm:$0xff]
    %v1967 = vld [vmem:[#allocation5 + $0xe8] sm:$0xff]
    %v1968 = vld [vmem:[#allocation5 + $0xf0] sm:$0xff]
    %v1969 = vld [vmem:[#allocation5 + $0xf8] sm:$0xff]
    %v1970 = vld [vmem:[#allocation5 + $0x100] sm:$0xff]
    %v1971 = vld [vmem:[#allocation5 + $0x108] sm:$0xff]
    %v1972 = vld [vmem:[#allocation5 + $0x110] sm:$0xff]
    %v1973 = vld [vmem:[#allocation5 + $0x118] sm:$0xff]
    %v1974 = vld [vmem:[#allocation5 + $0x120] sm:$0xff]
    %v1975 = vld [vmem:[#allocation5 + $0x128] sm:$0xff]
    %v1976 = vld [vmem:[#allocation5 + $0x130] sm:$0xff]
    %v1977 = vld [vmem:[#allocation5 + $0x138] sm:$0xff]
    %v1978 = vld [vmem:[#allocation5 + $0x140] sm:$0xff]
    %v1979 = vld [vmem:[#allocation5 + $0x148] sm:$0xff]
    %v1980 = vld [vmem:[#allocation5 + $0x150] sm:$0xff]
    %v1981 = vld [vmem:[#allocation5 + $0x158] sm:$0xff]
    %v1982 = vld [vmem:[#allocation5 + $0x160] sm:$0xff]
    %v1983 = vld [vmem:[#allocation5 + $0x168] sm:$0xff]
    %v1984 = vld [vmem:[#allocation5 + $0x170] sm:$0xff]
    %v1985 = vld [vmem:[#allocation5 + $0x178] sm:$0xff]
    %v1986 = vld [vmem:[#allocation5 + $0x180] sm:$0xff]
    %v1987 = vld [vmem:[#allocation5 + $0x188] sm:$0xff]
    %v1988 = vld [vmem:[#allocation5 + $0x190] sm:$0xff]
    %v1989 = vld [vmem:[#allocation5 + $0x198] sm:$0xff]
    %v1990 = vld [vmem:[#allocation5 + $0x1a0] sm:$0xff]
    %v1991 = vld [vmem:[#allocation5 + $0x1a8] sm:$0xff]
    %v1992 = vld [vmem:[#allocation5 + $0x1b0] sm:$0xff]
    %v1993 = vld [vmem:[#allocation5 + $0x1b8] sm:$0xff]
    %v1994 = vld [vmem:[#allocation5 + $0x1c0] sm:$0xff]
    %v1995 = vld [vmem:[#allocation5 + $0x1c8] sm:$0xff]
    %v1996 = vld [vmem:[#allocation5 + $0x1d0] sm:$0xff]
    %v1997 = vld [vmem:[#allocation5 + $0x1d8] sm:$0xff]
    %v1998 = vld [vmem:[#allocation5 + $0x1e0] sm:$0xff]
    %v1999 = vld [vmem:[#allocation5 + $0x1e8] sm:$0xff]
    %v2000 = vld [vmem:[#allocation5 + $0x1f0] sm:$0xff]
    %v2001 = vld [vmem:[#allocation5 + $0x1f8] sm:$0xff]
    %v2002 = vld [vmem:[#allocation5 + $0x200] sm:$0xff]
    %v2003 = vld [vmem:[#allocation5 + $0x208] sm:$0xff]
    %v2004 = vld [vmem:[#allocation5 + $0x210] sm:$0xff]
    %v2005 = vld [vmem:[#allocation5 + $0x218] sm:$0xff]
    %v2006 = vld [vmem:[#allocation5 + $0x220] sm:$0xff]
    %v2007 = vld [vmem:[#allocation5 + $0x228] sm:$0xff]
    %v2008 = vld [vmem:[#allocation5 + $0x230] sm:$0xff]
    %v2009 = vld [vmem:[#allocation5 + $0x238] sm:$0xff]
    %v2010 = vld [vmem:[%s2] sm:$0x3]
    %v2012 = vlaneseq
    %v2013 = vshrl.u32 %v2012, 7
    %v2014 = vsub.s32 0, %v2013
    %v2015 = vrot.slane %v2010, %v2014
    %v2016 = vlaneseq
    %v2017 = vshrl.u32 %v2016, 7
    %v2018 = vsub.s32 1, %v2017
    %v2019 = vrot.slane %v2010, %v2018
    %v2094 = vunpack.c.l.b16 %v1938
    %v2095 = vunpack.c.h.b16 %v1938
    %v2096 = vunpack.c.l.b16 %v1939
    %v2097 = vunpack.c.h.b16 %v1939
    %v2098 = vunpack.c.l.b16 %v1940
    %v2099 = vunpack.c.h.b16 %v1940
    %v2100 = vunpack.c.l.b16 %v1941
    %v2101 = vunpack.c.h.b16 %v1941
    %v2102 = vunpack.c.l.b16 %v1942
    %v2103 = vunpack.c.h.b16 %v1942
    %v2104 = vunpack.c.l.b16 %v1943
    %v2105 = vunpack.c.h.b16 %v1943
    %v2106 = vunpack.c.l.b16 %v1944
    %v2107 = vunpack.c.h.b16 %v1944
    %v2108 = vunpack.c.l.b16 %v1945
    %v2109 = vunpack.c.h.b16 %v1945
    %v2110 = vunpack.c.l.b16 %v1946
    %v2111 = vunpack.c.h.b16 %v1946
    %v2112 = vunpack.c.l.b16 %v1947
    %v2113 = vunpack.c.h.b16 %v1947
    %v2114 = vunpack.c.l.b16 %v1948
    %v2115 = vunpack.c.h.b16 %v1948
    %v2116 = vunpack.c.l.b16 %v1949
    %v2117 = vunpack.c.h.b16 %v1949
    %v2118 = vunpack.c.l.b16 %v1950
    %v2119 = vunpack.c.h.b16 %v1950
    %v2120 = vunpack.c.l.b16 %v1951
    %v2121 = vunpack.c.h.b16 %v1951
    %v2122 = vunpack.c.l.b16 %v1952
    %v2123 = vunpack.c.h.b16 %v1952
    %v2124 = vunpack.c.l.b16 %v1953
    %v2125 = vunpack.c.h.b16 %v1953
    %v2126 = vunpack.c.l.b16 %v1954
    %v2127 = vunpack.c.h.b16 %v1954
    %v2128 = vunpack.c.l.b16 %v1955
    %v2129 = vunpack.c.h.b16 %v1955
    %v2130 = vunpack.c.l.b16 %v1956
    %v2131 = vunpack.c.h.b16 %v1956
    %v2132 = vunpack.c.l.b16 %v1957
    %v2133 = vunpack.c.h.b16 %v1957
    %v2134 = vunpack.c.l.b16 %v1958
    %v2135 = vunpack.c.h.b16 %v1958
    %v2136 = vunpack.c.l.b16 %v1959
    %v2137 = vunpack.c.h.b16 %v1959
    %v2138 = vunpack.c.l.b16 %v1960
    %v2139 = vunpack.c.h.b16 %v1960
    %v2140 = vunpack.c.l.b16 %v1961
    %v2141 = vunpack.c.h.b16 %v1961
    %v2142 = vunpack.c.l.b16 %v1962
    %v2143 = vunpack.c.h.b16 %v1962
    %v2144 = vunpack.c.l.b16 %v1963
    %v2145 = vunpack.c.h.b16 %v1963
    %v2146 = vunpack.c.l.b16 %v1964
    %v2147 = vunpack.c.h.b16 %v1964
    %v2148 = vunpack.c.l.b16 %v1965
    %v2149 = vunpack.c.h.b16 %v1965
    %v2150 = vunpack.c.l.b16 %v1966
    %v2151 = vunpack.c.h.b16 %v1966
    %v2152 = vunpack.c.l.b16 %v1967
    %v2153 = vunpack.c.h.b16 %v1967
    %v2154 = vunpack.c.l.b16 %v1968
    %v2155 = vunpack.c.h.b16 %v1968
    %v2156 = vunpack.c.l.b16 %v1969
    %v2157 = vunpack.c.h.b16 %v1969
    %v2158 = vunpack.c.l.b16 %v1970
    %v2159 = vunpack.c.h.b16 %v1970
    %v2160 = vunpack.c.l.b16 %v1971
    %v2161 = vunpack.c.h.b16 %v1971
    %v2162 = vunpack.c.l.b16 %v1972
    %v2163 = vunpack.c.h.b16 %v1972
    %v2164 = vunpack.c.l.b16 %v1973
    %v2165 = vunpack.c.h.b16 %v1973
    %v2166 = vunpack.c.l.b16 %v1974
    %v2167 = vunpack.c.h.b16 %v1974
    %v2168 = vunpack.c.l.b16 %v1975
    %v2169 = vunpack.c.h.b16 %v1975
    %v2170 = vunpack.c.l.b16 %v1976
    %v2171 = vunpack.c.h.b16 %v1976
    %v2172 = vunpack.c.l.b16 %v1977
    %v2173 = vunpack.c.h.b16 %v1977
    %v2174 = vunpack.c.l.b16 %v1978
    %v2175 = vunpack.c.h.b16 %v1978
    %v2176 = vunpack.c.l.b16 %v1979
    %v2177 = vunpack.c.h.b16 %v1979
    %v2178 = vunpack.c.l.b16 %v1980
    %v2179 = vunpack.c.h.b16 %v1980
    %v2180 = vunpack.c.l.b16 %v1981
    %v2181 = vunpack.c.h.b16 %v1981
    %v2182 = vunpack.c.l.b16 %v1982
    %v2183 = vunpack.c.h.b16 %v1982
    %v2184 = vunpack.c.l.b16 %v1983
    %v2185 = vunpack.c.h.b16 %v1983
    %v2186 = vunpack.c.l.b16 %v1984
    %v2187 = vunpack.c.h.b16 %v1984
    %v2188 = vunpack.c.l.b16 %v1985
    %v2189 = vunpack.c.h.b16 %v1985
    %v2190 = vunpack.c.l.b16 %v1986
    %v2191 = vunpack.c.h.b16 %v1986
    %v2192 = vunpack.c.l.b16 %v1987
    %v2193 = vunpack.c.h.b16 %v1987
    %v2194 = vunpack.c.l.b16 %v1988
    %v2195 = vunpack.c.h.b16 %v1988
    %v2196 = vunpack.c.l.b16 %v1989
    %v2197 = vunpack.c.h.b16 %v1989
    %v2198 = vunpack.c.l.b16 %v1990
    %v2199 = vunpack.c.h.b16 %v1990
    %v2200 = vunpack.c.l.b16 %v1991
    %v2201 = vunpack.c.h.b16 %v1991
    %v2202 = vunpack.c.l.b16 %v1992
    %v2203 = vunpack.c.h.b16 %v1992
    %v2204 = vunpack.c.l.b16 %v1993
    %v2205 = vunpack.c.h.b16 %v1993
    %v2206 = vunpack.c.l.b16 %v1994
    %v2207 = vunpack.c.h.b16 %v1994
    %v2208 = vunpack.c.l.b16 %v1995
    %v2209 = vunpack.c.h.b16 %v1995
    %v2210 = vunpack.c.l.b16 %v1996
    %v2211 = vunpack.c.h.b16 %v1996
    %v2212 = vunpack.c.l.b16 %v1997
    %v2213 = vunpack.c.h.b16 %v1997
    %v2214 = vunpack.c.l.b16 %v1998
    %v2215 = vunpack.c.h.b16 %v1998
    %v2216 = vunpack.c.l.b16 %v1999
    %v2217 = vunpack.c.h.b16 %v1999
    %v2218 = vunpack.c.l.b16 %v2000
    %v2219 = vunpack.c.h.b16 %v2000
    %v2220 = vunpack.c.l.b16 %v2001
    %v2221 = vunpack.c.h.b16 %v2001
    %v2222 = vunpack.c.l.b16 %v2002
    %v2223 = vunpack.c.h.b16 %v2002
    %v2224 = vunpack.c.l.b16 %v2003
    %v2225 = vunpack.c.h.b16 %v2003
    %v2226 = vunpack.c.l.b16 %v2004
    %v2227 = vunpack.c.h.b16 %v2004
    %v2228 = vunpack.c.l.b16 %v2005
    %v2229 = vunpack.c.h.b16 %v2005
    %v2230 = vunpack.c.l.b16 %v2006
    %v2231 = vunpack.c.h.b16 %v2006
    %v2232 = vunpack.c.l.b16 %v2007
    %v2233 = vunpack.c.h.b16 %v2007
    %v2234 = vunpack.c.l.b16 %v2008
    %v2235 = vunpack.c.h.b16 %v2008
    %v2236 = vunpack.c.l.b16 %v2009
    %v2237 = vunpack.c.h.b16 %v2009
    %v2238 = vpack.c.b16 %v2096, %v2094
    %v2239 = vpack.c.b16 %v2097, %v2095
    %v2240 = vpack.c.b16 %v2100, %v2098
    %v2241 = vpack.c.b16 %v2101, %v2099
    %v2242 = vpack.c.b16 %v2104, %v2102
    %v2243 = vpack.c.b16 %v2105, %v2103
    %v2244 = vpack.c.b16 %v2108, %v2106
    %v2245 = vpack.c.b16 %v2109, %v2107
    %v2246 = vpack.c.b16 %v2112, %v2110
    %v2247 = vpack.c.b16 %v2113, %v2111
    %v2248 = vpack.c.b16 %v2116, %v2114
    %v2249 = vpack.c.b16 %v2117, %v2115
    %v2250 = vpack.c.b16 %v2120, %v2118
    %v2251 = vpack.c.b16 %v2121, %v2119
    %v2252 = vpack.c.b16 %v2124, %v2122
    %v2253 = vpack.c.b16 %v2125, %v2123
    %v2254 = vpack.c.b16 %v2128, %v2126
    %v2255 = vpack.c.b16 %v2129, %v2127
    %v2256 = vpack.c.b16 %v2132, %v2130
    %v2257 = vpack.c.b16 %v2133, %v2131
    %v2258 = vpack.c.b16 %v2136, %v2134
    %v2259 = vpack.c.b16 %v2137, %v2135
    %v2260 = vpack.c.b16 %v2140, %v2138
    %v2261 = vpack.c.b16 %v2141, %v2139
    %v2262 = vpack.c.b16 %v2144, %v2142
    %v2263 = vpack.c.b16 %v2145, %v2143
    %v2264 = vpack.c.b16 %v2148, %v2146
    %v2265 = vpack.c.b16 %v2149, %v2147
    %v2266 = vpack.c.b16 %v2152, %v2150
    %v2267 = vpack.c.b16 %v2153, %v2151
    %v2268 = vpack.c.b16 %v2156, %v2154
    %v2269 = vpack.c.b16 %v2157, %v2155
    %v2270 = vpack.c.b16 %v2160, %v2158
    %v2271 = vpack.c.b16 %v2161, %v2159
    %v2272 = vpack.c.b16 %v2164, %v2162
    %v2273 = vpack.c.b16 %v2165, %v2163
    %v2274 = vpack.c.b16 %v2168, %v2166
    %v2275 = vpack.c.b16 %v2169, %v2167
    %v2276 = vpack.c.b16 %v2172, %v2170
    %v2277 = vpack.c.b16 %v2173, %v2171
    %v2278 = vpack.c.b16 %v2176, %v2174
    %v2279 = vpack.c.b16 %v2177, %v2175
    %v2280 = vpack.c.b16 %v2180, %v2178
    %v2281 = vpack.c.b16 %v2181, %v2179
    %v2282 = vpack.c.b16 %v2184, %v2182
    %v2283 = vpack.c.b16 %v2185, %v2183
    %v2284 = vpack.c.b16 %v2188, %v2186
    %v2285 = vpack.c.b16 %v2189, %v2187
    %v2286 = vpack.c.b16 %v2192, %v2190
    %v2287 = vpack.c.b16 %v2193, %v2191
    %v2288 = vpack.c.b16 %v2196, %v2194
    %v2289 = vpack.c.b16 %v2197, %v2195
    %v2290 = vpack.c.b16 %v2200, %v2198
    %v2291 = vpack.c.b16 %v2201, %v2199
    %v2292 = vpack.c.b16 %v2204, %v2202
    %v2293 = vpack.c.b16 %v2205, %v2203
    %v2294 = vpack.c.b16 %v2208, %v2206
    %v2295 = vpack.c.b16 %v2209, %v2207
    %v2296 = vpack.c.b16 %v2212, %v2210
    %v2297 = vpack.c.b16 %v2213, %v2211
    %v2298 = vpack.c.b16 %v2216, %v2214
    %v2299 = vpack.c.b16 %v2217, %v2215
    %v2300 = vpack.c.b16 %v2220, %v2218
    %v2301 = vpack.c.b16 %v2221, %v2219
    %v2302 = vpack.c.b16 %v2224, %v2222
    %v2303 = vpack.c.b16 %v2225, %v2223
    %v2304 = vpack.c.b16 %v2228, %v2226
    %v2305 = vpack.c.b16 %v2229, %v2227
    %v2306 = vpack.c.b16 %v2232, %v2230
    %v2307 = vpack.c.b16 %v2233, %v2231
    %v2308 = vpack.c.b16 %v2236, %v2234
    %v2309 = vpack.c.b16 %v2237, %v2235
    %v2383 = vsel %vm1809, %v1801, 0
    %v2386 = vsel %vm1809, %v1802, 0
    %v2389 = vsel %vm1809, %v1803, 0
    %v2392 = vsel %vm1809, %v1804, 0
    %v2395 = vsel %vm1809, %v1805, 0
    %v2398 = vsel %vm1809, %v1806, 0
    %v2401 = vsel %vm1809, %v1807, 0
    %v2404 = vsel %vm1809, %v1808, 0
    %2406 = vmatprep.subr.bf16.mxu0 %v2253
    %2407 = vmatpush1.bf16.msra.mxu0 %v2252
    %2408 = vmatprep.subr.bf16.mxu0 %v2251
    %2409 = vmatpush1.bf16.msra.mxu0 %v2250
    %2410 = vmatprep.subr.bf16.mxu0 %v2249
    %2411 = vmatpush1.bf16.msra.mxu0 %v2248
    %2412 = vmatprep.subr.bf16.mxu0 %v2247
    %2413 = vmatpush1.bf16.msra.mxu0 %v2246
    %2414 = vmatprep.subr.bf16.mxu0 %v2245
    %2415 = vmatpush1.bf16.msra.mxu0 %v2244
    %2416 = vmatprep.subr.bf16.mxu0 %v2243
    %2417 = vmatpush1.bf16.msra.mxu0 %v2242
    %2418 = vmatprep.subr.bf16.mxu0 %v2241
    %2419 = vmatpush1.bf16.msra.mxu0 %v2240
    %2420 = vmatprep.subr.bf16.mxu0 %v2239
    %2421 = vmatpush1.bf16.msra.mxu0 %v2238
    %2422 = vmatprep.subr.bf16.mxu0 %v2269
    %2423 = vmatpush2.bf16.msra.mxu0 %v2268
    %2424 = vmatprep.subr.bf16.mxu0 %v2267
    %2425 = vmatpush2.bf16.msra.mxu0 %v2266
    %2426 = vmatprep.subr.bf16.mxu0 %v2265
    %2427 = vmatpush2.bf16.msra.mxu0 %v2264
    %2428 = vmatprep.subr.bf16.mxu0 %v2263
    %2429 = vmatpush2.bf16.msra.mxu0 %v2262
    %2430 = vmatprep.subr.bf16.mxu0 %v2261
    %2431 = vmatpush2.bf16.msra.mxu0 %v2260
    %2432 = vmatprep.subr.bf16.mxu0 %v2259
    %2433 = vmatpush2.bf16.msra.mxu0 %v2258
    %2434 = vmatprep.subr.bf16.mxu0 %v2257
    %2435 = vmatpush2.bf16.msra.mxu0 %v2256
    %2436 = vmatprep.subr.bf16.mxu0 %v2255
    %2437 = vmatpush2.bf16.msra.mxu0 %v2254
    %2438 = vmatprep.mubr.bf16.mxu0 %v1844
    %2439 = vmatmul.mubr.bf16.gmra.mxu0 %v1812
    %v2440 = vpop.f32.mrf.mxu0
    %v2441 = vadd.f32 %v2015, %v2440
    %v2442 = vpop.f32.mrf.mxu0
    %v2443 = vadd.f32 %v2019, %v2442
    %v2444 = vpop.f32.mrf.mxu0
    %v2445 = vadd.f32 %v2015, %v2444
    %v2446 = vpop.f32.mrf.mxu0
    %v2447 = vadd.f32 %v2019, %v2446
    %2448 = vmatprep.mubr.bf16.mxu0 %v1848
    %2449 = vmatmul.mubr.bf16.gmra.mxu0 %v1816
    %v2450 = vpop.f32.mrf.mxu0
    %v2451 = vadd.f32 %v2015, %v2450
    %v2452 = vpop.f32.mrf.mxu0
    %v2453 = vadd.f32 %v2019, %v2452
    %v2454 = vpop.f32.mrf.mxu0
    %v2455 = vadd.f32 %v2015, %v2454
    %v2456 = vpop.f32.mrf.mxu0
    %v2457 = vadd.f32 %v2019, %v2456
    %2458 = vmatprep.mubr.bf16.mxu0 %v1852
    %2459 = vmatmul.mubr.bf16.gmra.mxu0 %v1820
    %v2460 = vpop.f32.mrf.mxu0
    %v2461 = vadd.f32 %v2015, %v2460
    %v2462 = vpop.f32.mrf.mxu0
    %v2463 = vadd.f32 %v2019, %v2462
    %v2464 = vpop.f32.mrf.mxu0
    %v2465 = vadd.f32 %v2015, %v2464
    %v2466 = vpop.f32.mrf.mxu0
    %v2467 = vadd.f32 %v2019, %v2466
    %2468 = vmatprep.mubr.bf16.mxu0 %v1856
    %2469 = vmatmul.mubr.bf16.gmra.mxu0 %v1824
    %v2470 = vpop.f32.mrf.mxu0
    %v2471 = vadd.f32 %v2015, %v2470
    %v2472 = vpop.f32.mrf.mxu0
    %v2473 = vadd.f32 %v2019, %v2472
    %v2474 = vpop.f32.mrf.mxu0
    %v2475 = vadd.f32 %v2015, %v2474
    %v2476 = vpop.f32.mrf.mxu0
    %v2477 = vadd.f32 %v2019, %v2476
    %2478 = vmatprep.mubr.bf16.mxu0 %v1860
    %2479 = vmatmul.mubr.bf16.gmra.mxu0 %v1828
    %v2480 = vpop.f32.mrf.mxu0
    %v2481 = vadd.f32 %v2015, %v2480
    %v2482 = vpop.f32.mrf.mxu0
    %v2483 = vadd.f32 %v2019, %v2482
    %v2484 = vpop.f32.mrf.mxu0
    %v2485 = vadd.f32 %v2015, %v2484
    %v2486 = vpop.f32.mrf.mxu0
    %v2487 = vadd.f32 %v2019, %v2486
    %2488 = vmatprep.mubr.bf16.mxu0 %v1864
    %2489 = vmatmul.mubr.bf16.gmra.mxu0 %v1832
    %v2490 = vpop.f32.mrf.mxu0
    %v2491 = vadd.f32 %v2015, %v2490
    %v2492 = vpop.f32.mrf.mxu0
    %v2493 = vadd.f32 %v2019, %v2492
    %v2494 = vpop.f32.mrf.mxu0
    %v2495 = vadd.f32 %v2015, %v2494
    %v2496 = vpop.f32.mrf.mxu0
    %v2497 = vadd.f32 %v2019, %v2496
    %2498 = vmatprep.mubr.bf16.mxu0 %v1868
    %2499 = vmatmul.mubr.bf16.gmra.mxu0 %v1836
    %v2500 = vpop.f32.mrf.mxu0
    %v2501 = vadd.f32 %v2015, %v2500
    %v2502 = vpop.f32.mrf.mxu0
    %v2503 = vadd.f32 %v2019, %v2502
    %v2504 = vpop.f32.mrf.mxu0
    %v2505 = vadd.f32 %v2015, %v2504
    %v2506 = vpop.f32.mrf.mxu0
    %v2507 = vadd.f32 %v2019, %v2506
    %2508 = vmatprep.mubr.bf16.mxu0 %v1872
    %2509 = vmatmul.mubr.bf16.gmra.mxu0 %v1840
    %v2510 = vpop.f32.mrf.mxu0
    %v2511 = vadd.f32 %v2015, %v2510
    %v2512 = vpop.f32.mrf.mxu0
    %v2513 = vadd.f32 %v2019, %v2512
    %v2514 = vpop.f32.mrf.mxu0
    %v2515 = vadd.f32 %v2015, %v2514
    %v2516 = vpop.f32.mrf.mxu0
    %v2517 = vadd.f32 %v2019, %v2516
    %2518 = vdwg.mxu0
    %2519 = vmatprep.subr.bf16.mxu0 %v2285
    %2520 = vmatpush1.bf16.msra.mxu0 %v2284
    %2521 = vmatprep.subr.bf16.mxu0 %v2283
    %2522 = vmatpush1.bf16.msra.mxu0 %v2282
    %2523 = vmatprep.subr.bf16.mxu0 %v2281
    %2524 = vmatpush1.bf16.msra.mxu0 %v2280
    %2525 = vmatprep.subr.bf16.mxu0 %v2279
    %2526 = vmatpush1.bf16.msra.mxu0 %v2278
    %2527 = vmatprep.subr.bf16.mxu0 %v2277
    %2528 = vmatpush1.bf16.msra.mxu0 %v2276
    %2529 = vmatprep.subr.bf16.mxu0 %v2275
    %2530 = vmatpush1.bf16.msra.mxu0 %v2274
    %2531 = vmatprep.subr.bf16.mxu0 %v2273
    %2532 = vmatpush1.bf16.msra.mxu0 %v2272
    %2533 = vmatprep.subr.bf16.mxu0 %v2271
    %2534 = vmatpush1.bf16.msra.mxu0 %v2270
    %2535 = vmatprep.subr.bf16.mxu0 %v2301
    %2536 = vmatpush2.bf16.msra.mxu0 %v2300
    %2537 = vmatprep.subr.bf16.mxu0 %v2299
    %2538 = vmatpush2.bf16.msra.mxu0 %v2298
    %2539 = vmatprep.subr.bf16.mxu0 %v2297
    %2540 = vmatpush2.bf16.msra.mxu0 %v2296
    %2541 = vmatprep.subr.bf16.mxu0 %v2295
    %2542 = vmatpush2.bf16.msra.mxu0 %v2294
    %2543 = vmatprep.subr.bf16.mxu0 %v2293
    %2544 = vmatpush2.bf16.msra.mxu0 %v2292
    %2545 = vmatprep.subr.bf16.mxu0 %v2291
    %2546 = vmatpush2.bf16.msra.mxu0 %v2290
    %2547 = vmatprep.subr.bf16.mxu0 %v2289
    %2548 = vmatpush2.bf16.msra.mxu0 %v2288
    %2549 = vmatprep.subr.bf16.mxu0 %v2287
    %2550 = vmatpush2.bf16.msra.mxu0 %v2286
    %2551 = vmatprep.mubr.bf16.mxu0 %v1908
    %2552 = vmatmul.mubr.bf16.gmra.mxu0 %v1876
    %v2553 = vpop.f32.mrf.mxu0
    %v2554 = vadd.f32 %v2441, %v2553
    %v2555 = vpop.f32.mrf.mxu0
    %v2556 = vadd.f32 %v2443, %v2555
    %v2557 = vpop.f32.mrf.mxu0
    %v2558 = vadd.f32 %v2445, %v2557
    %v2559 = vpop.f32.mrf.mxu0
    %v2560 = vadd.f32 %v2447, %v2559
    %2561 = vmatprep.mubr.bf16.mxu0 %v1912
    %2562 = vmatmul.mubr.bf16.gmra.mxu0 %v1880
    %v2563 = vpop.f32.mrf.mxu0
    %v2564 = vadd.f32 %v2451, %v2563
    %v2565 = vpop.f32.mrf.mxu0
    %v2566 = vadd.f32 %v2453, %v2565
    %v2567 = vpop.f32.mrf.mxu0
    %v2568 = vadd.f32 %v2455, %v2567
    %v2569 = vpop.f32.mrf.mxu0
    %v2570 = vadd.f32 %v2457, %v2569
    %2571 = vmatprep.mubr.bf16.mxu0 %v1916
    %2572 = vmatmul.mubr.bf16.gmra.mxu0 %v1884
    %v2573 = vpop.f32.mrf.mxu0
    %v2574 = vadd.f32 %v2461, %v2573
    %v2575 = vpop.f32.mrf.mxu0
    %v2576 = vadd.f32 %v2463, %v2575
    %v2577 = vpop.f32.mrf.mxu0
    %v2578 = vadd.f32 %v2465, %v2577
    %v2579 = vpop.f32.mrf.mxu0
    %v2580 = vadd.f32 %v2467, %v2579
    %2581 = vmatprep.mubr.bf16.mxu0 %v1920
    %2582 = vmatmul.mubr.bf16.gmra.mxu0 %v1888
    %v2583 = vpop.f32.mrf.mxu0
    %v2584 = vadd.f32 %v2471, %v2583
    %v2585 = vpop.f32.mrf.mxu0
    %v2586 = vadd.f32 %v2473, %v2585
    %v2587 = vpop.f32.mrf.mxu0
    %v2588 = vadd.f32 %v2475, %v2587
    %v2589 = vpop.f32.mrf.mxu0
    %v2590 = vadd.f32 %v2477, %v2589
    %2591 = vmatprep.mubr.bf16.mxu0 %v1924
    %2592 = vmatmul.mubr.bf16.gmra.mxu0 %v1892
    %v2593 = vpop.f32.mrf.mxu0
    %v2594 = vadd.f32 %v2481, %v2593
    %v2595 = vpop.f32.mrf.mxu0
    %v2596 = vadd.f32 %v2483, %v2595
    %v2597 = vpop.f32.mrf.mxu0
    %v2598 = vadd.f32 %v2485, %v2597
    %v2599 = vpop.f32.mrf.mxu0
    %v2600 = vadd.f32 %v2487, %v2599
    %2601 = vmatprep.mubr.bf16.mxu0 %v1928
    %2602 = vmatmul.mubr.bf16.gmra.mxu0 %v1896
    %v2603 = vpop.f32.mrf.mxu0
    %v2604 = vadd.f32 %v2491, %v2603
    %v2605 = vpop.f32.mrf.mxu0
    %v2606 = vadd.f32 %v2493, %v2605
    %v2607 = vpop.f32.mrf.mxu0
    %v2608 = vadd.f32 %v2495, %v2607
    %v2609 = vpop.f32.mrf.mxu0
    %v2610 = vadd.f32 %v2497, %v2609
    %2611 = vmatprep.mubr.bf16.mxu0 %v1932
    %2612 = vmatmul.mubr.bf16.gmra.mxu0 %v1900
    %v2613 = vpop.f32.mrf.mxu0
    %v2614 = vadd.f32 %v2501, %v2613
    %v2615 = vpop.f32.mrf.mxu0
    %v2616 = vadd.f32 %v2503, %v2615
    %v2617 = vpop.f32.mrf.mxu0
    %v2618 = vadd.f32 %v2505, %v2617
    %v2619 = vpop.f32.mrf.mxu0
    %v2620 = vadd.f32 %v2507, %v2619
    %2621 = vmatprep.mubr.bf16.mxu0 %v1936
    %2622 = vmatmul.mubr.bf16.gmra.mxu0 %v1904
    %v2623 = vpop.f32.mrf.mxu0
    %v2624 = vadd.f32 %v2511, %v2623
    %v2625 = vpop.f32.mrf.mxu0
    %v2626 = vadd.f32 %v2513, %v2625
    %v2627 = vpop.f32.mrf.mxu0
    %v2628 = vadd.f32 %v2515, %v2627
    %v2629 = vpop.f32.mrf.mxu0
    %v2630 = vadd.f32 %v2517, %v2629
    %2631 = vdwg.mxu0
    %2632 = vmatprep.subr.bf16.mxu0 0
    %2633 = vmatpush1.bf16.msra.mxu0 0
    %2634 = vmatprep.subr.bf16.mxu0 0
    %2635 = vmatpush1.bf16.msra.mxu0 0
    %2636 = vmatprep.subr.bf16.mxu0 0
    %2637 = vmatpush1.bf16.msra.mxu0 0
    %2638 = vmatprep.subr.bf16.mxu0 0
    %2639 = vmatpush1.bf16.msra.mxu0 0
    %2640 = vmatprep.subr.bf16.mxu0 %v2309
    %2641 = vmatpush1.bf16.msra.mxu0 %v2308
    %2642 = vmatprep.subr.bf16.mxu0 %v2307
    %2643 = vmatpush1.bf16.msra.mxu0 %v2306
    %2644 = vmatprep.subr.bf16.mxu0 %v2305
    %2645 = vmatpush1.bf16.msra.mxu0 %v2304
    %2646 = vmatprep.subr.bf16.mxu0 %v2303
    %2647 = vmatpush1.bf16.msra.mxu0 %v2302
    %2648 = vmatprep.subr.bf16.mxu0 0
    %2649 = vmatpush2.bf16.msra.mxu0 0
    %2650 = vmatprep.subr.bf16.mxu0 0
    %2651 = vmatpush2.bf16.msra.mxu0 0
    %2652 = vmatprep.subr.bf16.mxu0 0
    %2653 = vmatpush2.bf16.msra.mxu0 0
    %2654 = vmatprep.subr.bf16.mxu0 0
    %2655 = vmatpush2.bf16.msra.mxu0 0
    %2656 = vmatprep.subr.bf16.mxu0 0
    %2657 = vmatpush2.bf16.msra.mxu0 0
    %2658 = vmatprep.subr.bf16.mxu0 0
    %2659 = vmatpush2.bf16.msra.mxu0 0
    %2660 = vmatprep.subr.bf16.mxu0 0
    %2661 = vmatpush2.bf16.msra.mxu0 0
    %2662 = vmatprep.subr.bf16.mxu0 0
    %2663 = vmatpush2.bf16.msra.mxu0 0
    %2664 = vmatprep.mubr.bf16.mxu0 0
    %2665 = vmatmul.mubr.bf16.gmra.mxu0 %v2383
    %v2666 = vpop.f32.mrf.mxu0
    %v2667 = vadd.f32 %v2554, %v2666
    %v2668 = vpop.f32.mrf.mxu0
    %v2669 = vadd.f32 %v2556, %v2668
    %v2670 = vpop.f32.mrf.mxu0
    %v2671 = vadd.f32 %v2558, %v2670
    %v2672 = vpop.f32.mrf.mxu0
    %v2673 = vadd.f32 %v2560, %v2672
    %2674 = vmatprep.mubr.bf16.mxu0 0
    %2675 = vmatmul.mubr.bf16.gmra.mxu0 %v2386
    %v2676 = vpop.f32.mrf.mxu0
    %v2677 = vadd.f32 %v2564, %v2676
    %v2678 = vpop.f32.mrf.mxu0
    %v2679 = vadd.f32 %v2566, %v2678
    %v2680 = vpop.f32.mrf.mxu0
    %v2681 = vadd.f32 %v2568, %v2680
    %v2682 = vpop.f32.mrf.mxu0
    %v2683 = vadd.f32 %v2570, %v2682
    %2684 = vmatprep.mubr.bf16.mxu0 0
    %2685 = vmatmul.mubr.bf16.gmra.mxu0 %v2389
    %v2686 = vpop.f32.mrf.mxu0
    %v2687 = vadd.f32 %v2574, %v2686
    %v2688 = vpop.f32.mrf.mxu0
    %v2689 = vadd.f32 %v2576, %v2688
    %v2690 = vpop.f32.mrf.mxu0
    %v2691 = vadd.f32 %v2578, %v2690
    %v2692 = vpop.f32.mrf.mxu0
    %v2693 = vadd.f32 %v2580, %v2692
    %2694 = vmatprep.mubr.bf16.mxu0 0
    %2695 = vmatmul.mubr.bf16.gmra.mxu0 %v2392
    %v2696 = vpop.f32.mrf.mxu0
    %v2697 = vadd.f32 %v2584, %v2696
    %v2698 = vpop.f32.mrf.mxu0
    %v2699 = vadd.f32 %v2586, %v2698
    %v2700 = vpop.f32.mrf.mxu0
    %v2701 = vadd.f32 %v2588, %v2700
    %v2702 = vpop.f32.mrf.mxu0
    %v2703 = vadd.f32 %v2590, %v2702
    %2704 = vmatprep.mubr.bf16.mxu0 0
    %2705 = vmatmul.mubr.bf16.gmra.mxu0 %v2395
    %v2706 = vpop.f32.mrf.mxu0
    %v2707 = vadd.f32 %v2594, %v2706
    %v2708 = vpop.f32.mrf.mxu0
    %v2709 = vadd.f32 %v2596, %v2708
    %v2710 = vpop.f32.mrf.mxu0
    %v2711 = vadd.f32 %v2598, %v2710
    %v2712 = vpop.f32.mrf.mxu0
    %v2713 = vadd.f32 %v2600, %v2712
    %2714 = vmatprep.mubr.bf16.mxu0 0
    %2715 = vmatmul.mubr.bf16.gmra.mxu0 %v2398
    %v2716 = vpop.f32.mrf.mxu0
    %v2717 = vadd.f32 %v2604, %v2716
    %v2718 = vpop.f32.mrf.mxu0
    %v2719 = vadd.f32 %v2606, %v2718
    %v2720 = vpop.f32.mrf.mxu0
    %v2721 = vadd.f32 %v2608, %v2720
    %v2722 = vpop.f32.mrf.mxu0
    %v2723 = vadd.f32 %v2610, %v2722
    %2724 = vmatprep.mubr.bf16.mxu0 0
    %2725 = vmatmul.mubr.bf16.gmra.mxu0 %v2401
    %v2726 = vpop.f32.mrf.mxu0
    %v2727 = vadd.f32 %v2614, %v2726
    %v2728 = vpop.f32.mrf.mxu0
    %v2729 = vadd.f32 %v2616, %v2728
    %v2730 = vpop.f32.mrf.mxu0
    %v2731 = vadd.f32 %v2618, %v2730
    %v2732 = vpop.f32.mrf.mxu0
    %v2733 = vadd.f32 %v2620, %v2732
    %2734 = vmatprep.mubr.bf16.mxu0 0
    %2735 = vmatmul.mubr.bf16.gmra.mxu0 %v2404
    %v2736 = vpop.f32.mrf.mxu0
    %v2737 = vadd.f32 %v2624, %v2736
    %v2738 = vpop.f32.mrf.mxu0
    %v2739 = vadd.f32 %v2626, %v2738
    %v2740 = vpop.f32.mrf.mxu0
    %v2741 = vadd.f32 %v2628, %v2740
    %v2742 = vpop.f32.mrf.mxu0
    %v2743 = vadd.f32 %v2630, %v2742
    %2744 = vdwg.mxu0
    %v2745 = vmax.f32 %v2667, 0.0
    %v2746 = vmax.f32 %v2669, 0.0
    %v2747 = vmax.f32 %v2671, 0.0
    %v2748 = vmax.f32 %v2673, 0.0
    %v2749 = vmax.f32 %v2677, 0.0
    %v2750 = vmax.f32 %v2679, 0.0
    %v2751 = vmax.f32 %v2681, 0.0
    %v2752 = vmax.f32 %v2683, 0.0
    %v2753 = vmax.f32 %v2687, 0.0
    %v2754 = vmax.f32 %v2689, 0.0
    %v2755 = vmax.f32 %v2691, 0.0
    %v2756 = vmax.f32 %v2693, 0.0
    %v2757 = vmax.f32 %v2697, 0.0
    %v2758 = vmax.f32 %v2699, 0.0
    %v2759 = vmax.f32 %v2701, 0.0
    %v2760 = vmax.f32 %v2703, 0.0
    %v2761 = vmax.f32 %v2707, 0.0
    %v2762 = vmax.f32 %v2709, 0.0
    %v2763 = vmax.f32 %v2711, 0.0
    %v2764 = vmax.f32 %v2713, 0.0
    %v2765 = vmax.f32 %v2717, 0.0
    %v2766 = vmax.f32 %v2719, 0.0
    %v2767 = vmax.f32 %v2721, 0.0
    %v2768 = vmax.f32 %v2723, 0.0
    %v2769 = vmax.f32 %v2727, 0.0
    %v2770 = vmax.f32 %v2729, 0.0
    %v2771 = vmax.f32 %v2731, 0.0
    %v2772 = vmax.f32 %v2733, 0.0
    %v2773 = vmax.f32 %v2737, 0.0
    %v2774 = vmax.f32 %v2739, 0.0
    %v2775 = vmax.f32 %v2741, 0.0
    %v2776 = vmax.f32 %v2743, 0.0
    %v2777 = vpack.c.bf16 %v2747, %v2745
    %v2778 = vpack.c.bf16 %v2748, %v2746
    %v2779 = vpack.c.bf16 %v2751, %v2749
    %v2780 = vpack.c.bf16 %v2752, %v2750
    %v2781 = vpack.c.bf16 %v2755, %v2753
    %v2782 = vpack.c.bf16 %v2756, %v2754
    %v2783 = vpack.c.bf16 %v2759, %v2757
    %v2784 = vpack.c.bf16 %v2760, %v2758
    %v2785 = vpack.c.bf16 %v2763, %v2761
    %v2786 = vpack.c.bf16 %v2764, %v2762
    %v2787 = vpack.c.bf16 %v2767, %v2765
    %v2788 = vpack.c.bf16 %v2768, %v2766
    %v2789 = vpack.c.bf16 %v2771, %v2769
    %v2790 = vpack.c.bf16 %v2772, %v2770
    %v2791 = vpack.c.bf16 %v2775, %v2773
    %v2792 = vpack.c.bf16 %v2776, %v2774
    %2793 = vst.msk [vmem:[#allocation3] sm:$0xf] %vm49, 0
    %v2794 = vld [vmem:[#allocation3 + $0x4] sm:$0x1]
    %v2795 = vsel %vm276, 0, %v2794
    %2796 = vst [vmem:[#allocation3 + $0x4] sm:$0x1] %v2795
    %2797 = vst.msk [vmem:[#allocation3 + $0x8] sm:$0xf] %vm49, 0
    %v2798 = vld [vmem:[#allocation3 + $0xc] sm:$0x1]
    %v2799 = vsel %vm276, 0, %v2798
    %2800 = vst [vmem:[#allocation3 + $0xc] sm:$0x1] %v2799
    %2801 = vst.msk [vmem:[#allocation3 + $0x10] sm:$0xf] %vm49, 0
    %v2802 = vld [vmem:[#allocation3 + $0x14] sm:$0x1]
    %v2803 = vsel %vm276, 0, %v2802
    %2804 = vst [vmem:[#allocation3 + $0x14] sm:$0x1] %v2803
    %2805 = vst.msk [vmem:[#allocation3 + $0x18] sm:$0xf] %vm49, 0
    %v2806 = vld [vmem:[#allocation3 + $0x1c] sm:$0x1]
    %v2807 = vsel %vm276, 0, %v2806
    %2808 = vst [vmem:[#allocation3 + $0x1c] sm:$0x1] %v2807
    %2809 = vst.msk [vmem:[#allocation3 + $0x20] sm:$0xf] %vm49, 0
    %v2810 = vld [vmem:[#allocation3 + $0x24] sm:$0x1]
    %v2811 = vsel %vm276, 0, %v2810
    %2812 = vst [vmem:[#allocation3 + $0x24] sm:$0x1] %v2811
    %2813 = vst.msk [vmem:[#allocation3 + $0x28] sm:$0xf] %vm49, 0
    %v2814 = vld [vmem:[#allocation3 + $0x2c] sm:$0x1]
    %v2815 = vsel %vm276, 0, %v2814
    %2816 = vst [vmem:[#allocation3 + $0x2c] sm:$0x1] %v2815
    %2817 = vst.msk [vmem:[#allocation3 + $0x30] sm:$0xf] %vm49, 0
    %v2818 = vld [vmem:[#allocation3 + $0x34] sm:$0x1]
    %v2819 = vsel %vm276, 0, %v2818
    %2820 = vst [vmem:[#allocation3 + $0x34] sm:$0x1] %v2819
    %2821 = vst.msk [vmem:[#allocation3 + $0x38] sm:$0xf] %vm49, 0
    %v2822 = vld [vmem:[#allocation3 + $0x3c] sm:$0x1]
    %v2823 = vsel %vm276, 0, %v2822
    %2824 = vst [vmem:[#allocation3 + $0x3c] sm:$0x1] %v2823
    %2825 = vst.msk [vmem:[#allocation3 + $0x40] sm:$0xf] %vm49, 0
    %v2826 = vld [vmem:[#allocation3 + $0x44] sm:$0x1]
    %v2827 = vsel %vm276, 0, %v2826
    %2828 = vst [vmem:[#allocation3 + $0x44] sm:$0x1] %v2827
    %2829 = vst.msk [vmem:[#allocation3 + $0x48] sm:$0xf] %vm49, 0
    %v2830 = vld [vmem:[#allocation3 + $0x4c] sm:$0x1]
    %v2831 = vsel %vm276, 0, %v2830
    %2832 = vst [vmem:[#allocation3 + $0x4c] sm:$0x1] %v2831
    %2833 = vst.msk [vmem:[#allocation3 + $0x50] sm:$0xf] %vm49, 0
    %v2834 = vld [vmem:[#allocation3 + $0x54] sm:$0x1]
    %v2835 = vsel %vm276, 0, %v2834
    %2836 = vst [vmem:[#allocation3 + $0x54] sm:$0x1] %v2835
    %2837 = vst.msk [vmem:[#allocation3 + $0x58] sm:$0xf] %vm49, 0
    %v2838 = vld [vmem:[#allocation3 + $0x5c] sm:$0x1]
    %v2839 = vsel %vm276, 0, %v2838
    %2840 = vst [vmem:[#allocation3 + $0x5c] sm:$0x1] %v2839
    %2841 = vst.msk [vmem:[#allocation3 + $0x60] sm:$0xf] %vm49, 0
    %v2842 = vld [vmem:[#allocation3 + $0x64] sm:$0x1]
    %v2843 = vsel %vm276, 0, %v2842
    %2844 = vst [vmem:[#allocation3 + $0x64] sm:$0x1] %v2843
    %2845 = vst.msk [vmem:[#allocation3 + $0x68] sm:$0xf] %vm49, 0
    %v2846 = vld [vmem:[#allocation3 + $0x6c] sm:$0x1]
    %v2847 = vsel %vm276, 0, %v2846
    %2848 = vst [vmem:[#allocation3 + $0x6c] sm:$0x1] %v2847
    %2849 = vst.msk [vmem:[#allocation3 + $0x70] sm:$0xf] %vm49, 0
    %v2850 = vld [vmem:[#allocation3 + $0x74] sm:$0x1]
    %v2851 = vsel %vm276, 0, %v2850
    %2852 = vst [vmem:[#allocation3 + $0x74] sm:$0x1] %v2851
    %2853 = vst.msk [vmem:[#allocation3 + $0x78] sm:$0xf] %vm49, 0
    %v2854 = vld [vmem:[#allocation3 + $0x7c] sm:$0x1]
    %v2855 = vsel %vm276, 0, %v2854
    %2856 = vst [vmem:[#allocation3 + $0x7c] sm:$0x1] %v2855
    %2857 = vst.msk [vmem:[#allocation3 + $0x80] sm:$0xf] %vm49, 0
    %v2858 = vld [vmem:[#allocation3 + $0x84] sm:$0x1]
    %v2859 = vsel %vm276, 0, %v2858
    %2860 = vst [vmem:[#allocation3 + $0x84] sm:$0x1] %v2859
    %2861 = vst.msk [vmem:[#allocation3 + $0x88] sm:$0xf] %vm49, 0
    %v2862 = vld [vmem:[#allocation3 + $0x8c] sm:$0x1]
    %v2863 = vsel %vm276, 0, %v2862
    %2864 = vst [vmem:[#allocation3 + $0x8c] sm:$0x1] %v2863
    %2865 = vst.msk [vmem:[#allocation3 + $0x90] sm:$0xf] %vm49, 0
    %v2866 = vld [vmem:[#allocation3 + $0x94] sm:$0x1]
    %v2867 = vsel %vm276, 0, %v2866
    %2868 = vst [vmem:[#allocation3 + $0x94] sm:$0x1] %v2867
    %2869 = vst.msk [vmem:[#allocation3 + $0x98] sm:$0xf] %vm49, 0
    %v2870 = vld [vmem:[#allocation3 + $0x9c] sm:$0x1]
    %v2871 = vsel %vm276, 0, %v2870
    %2872 = vst [vmem:[#allocation3 + $0x9c] sm:$0x1] %v2871
    %2873 = vst.msk [vmem:[#allocation3 + $0xa0] sm:$0xf] %vm49, 0
    %v2874 = vld [vmem:[#allocation3 + $0xa4] sm:$0x1]
    %v2875 = vsel %vm276, 0, %v2874
    %2876 = vst [vmem:[#allocation3 + $0xa4] sm:$0x1] %v2875
    %2877 = vst.msk [vmem:[#allocation3 + $0xa8] sm:$0xf] %vm49, 0
    %v2878 = vld [vmem:[#allocation3 + $0xac] sm:$0x1]
    %v2879 = vsel %vm276, 0, %v2878
    %2880 = vst [vmem:[#allocation3 + $0xac] sm:$0x1] %v2879
    %2881 = vst.msk [vmem:[#allocation3 + $0xb0] sm:$0xf] %vm49, 0
    %v2882 = vld [vmem:[#allocation3 + $0xb4] sm:$0x1]
    %v2883 = vsel %vm276, 0, %v2882
    %2884 = vst [vmem:[#allocation3 + $0xb4] sm:$0x1] %v2883
    %2885 = vst.msk [vmem:[#allocation3 + $0xb8] sm:$0xf] %vm49, 0
    %v2886 = vld [vmem:[#allocation3 + $0xbc] sm:$0x1]
    %v2887 = vsel %vm276, 0, %v2886
    %2888 = vst [vmem:[#allocation3 + $0xbc] sm:$0x1] %v2887
    %2889 = vst.msk [vmem:[#allocation3 + $0xc0] sm:$0xf] %vm49, 0
    %v2890 = vld [vmem:[#allocation3 + $0xc4] sm:$0x1]
    %v2891 = vsel %vm276, 0, %v2890
    %2892 = vst [vmem:[#allocation3 + $0xc4] sm:$0x1] %v2891
    %2893 = vst.msk [vmem:[#allocation3 + $0xc8] sm:$0xf] %vm49, 0
    %v2894 = vld [vmem:[#allocation3 + $0xcc] sm:$0x1]
    %v2895 = vsel %vm276, 0, %v2894
    %2896 = vst [vmem:[#allocation3 + $0xcc] sm:$0x1] %v2895
    %2897 = vst.msk [vmem:[#allocation3 + $0xd0] sm:$0xf] %vm49, 0
    %v2898 = vld [vmem:[#allocation3 + $0xd4] sm:$0x1]
    %v2899 = vsel %vm276, 0, %v2898
    %2900 = vst [vmem:[#allocation3 + $0xd4] sm:$0x1] %v2899
    %2901 = vst.msk [vmem:[#allocation3 + $0xd8] sm:$0xf] %vm49, 0
    %v2902 = vld [vmem:[#allocation3 + $0xdc] sm:$0x1]
    %v2903 = vsel %vm276, 0, %v2902
    %2904 = vst [vmem:[#allocation3 + $0xdc] sm:$0x1] %v2903
    %2905 = vst.msk [vmem:[#allocation3 + $0xe0] sm:$0xf] %vm49, 0
    %v2906 = vld [vmem:[#allocation3 + $0xe4] sm:$0x1]
    %v2907 = vsel %vm276, 0, %v2906
    %2908 = vst [vmem:[#allocation3 + $0xe4] sm:$0x1] %v2907
    %2909 = vst.msk [vmem:[#allocation3 + $0xe8] sm:$0xf] %vm49, 0
    %v2910 = vld [vmem:[#allocation3 + $0xec] sm:$0x1]
    %v2911 = vsel %vm276, 0, %v2910
    %2912 = vst [vmem:[#allocation3 + $0xec] sm:$0x1] %v2911
    %2913 = vst.msk [vmem:[#allocation3 + $0xf0] sm:$0xf] %vm49, 0
    %v2914 = vld [vmem:[#allocation3 + $0xf4] sm:$0x1]
    %v2915 = vsel %vm276, 0, %v2914
    %2916 = vst [vmem:[#allocation3 + $0xf4] sm:$0x1] %v2915
    %2917 = vst.msk [vmem:[#allocation3 + $0xf8] sm:$0xf] %vm49, 0
    %v2918 = vld [vmem:[#allocation3 + $0xfc] sm:$0x1]
    %v2919 = vsel %vm276, 0, %v2918
    %2920 = vst [vmem:[#allocation3 + $0xfc] sm:$0x1] %v2919
    %2921 = vst.msk [vmem:[#allocation3 + $0x100] sm:$0xf] %vm49, 0
    %v2922 = vld [vmem:[#allocation3 + $0x104] sm:$0x1]
    %v2923 = vsel %vm276, 0, %v2922
    %2924 = vst [vmem:[#allocation3 + $0x104] sm:$0x1] %v2923
    %2925 = vst.msk [vmem:[#allocation3 + $0x108] sm:$0xf] %vm49, 0
    %v2926 = vld [vmem:[#allocation3 + $0x10c] sm:$0x1]
    %v2927 = vsel %vm276, 0, %v2926
    %2928 = vst [vmem:[#allocation3 + $0x10c] sm:$0x1] %v2927
    %2929 = vst.msk [vmem:[#allocation3 + $0x110] sm:$0xf] %vm49, 0
    %v2930 = vld [vmem:[#allocation3 + $0x114] sm:$0x1]
    %v2931 = vsel %vm276, 0, %v2930
    %2932 = vst [vmem:[#allocation3 + $0x114] sm:$0x1] %v2931
    %2933 = vst.msk [vmem:[#allocation3 + $0x118] sm:$0xf] %vm49, 0
    %v2934 = vld [vmem:[#allocation3 + $0x11c] sm:$0x1]
    %v2935 = vsel %vm276, 0, %v2934
    %2936 = vst [vmem:[#allocation3 + $0x11c] sm:$0x1] %v2935
    %2937 = vst.msk [vmem:[#allocation3 + $0x120] sm:$0xf] %vm49, 0
    %v2938 = vld [vmem:[#allocation3 + $0x124] sm:$0x1]
    %v2939 = vsel %vm276, 0, %v2938
    %2940 = vst [vmem:[#allocation3 + $0x124] sm:$0x1] %v2939
    %2941 = vst.msk [vmem:[#allocation3 + $0x128] sm:$0xf] %vm49, 0
    %v2942 = vld [vmem:[#allocation3 + $0x12c] sm:$0x1]
    %v2943 = vsel %vm276, 0, %v2942
    %2944 = vst [vmem:[#allocation3 + $0x12c] sm:$0x1] %v2943
    %2945 = vst.msk [vmem:[#allocation3 + $0x130] sm:$0xf] %vm49, 0
    %v2946 = vld [vmem:[#allocation3 + $0x134] sm:$0x1]
    %v2947 = vsel %vm276, 0, %v2946
    %2948 = vst [vmem:[#allocation3 + $0x134] sm:$0x1] %v2947
    %2949 = vst.msk [vmem:[#allocation3 + $0x138] sm:$0xf] %vm49, 0
    %v2950 = vld [vmem:[#allocation3 + $0x13c] sm:$0x1]
    %v2951 = vsel %vm276, 0, %v2950
    %2952 = vst [vmem:[#allocation3 + $0x13c] sm:$0x1] %v2951
    %2953 = vst.msk [vmem:[#allocation3 + $0x140] sm:$0xf] %vm49, 0
    %v2954 = vld [vmem:[#allocation3 + $0x144] sm:$0x1]
    %v2955 = vsel %vm276, 0, %v2954
    %2956 = vst [vmem:[#allocation3 + $0x144] sm:$0x1] %v2955
    %2957 = vst.msk [vmem:[#allocation3 + $0x148] sm:$0xf] %vm49, 0
    %v2958 = vld [vmem:[#allocation3 + $0x14c] sm:$0x1]
    %v2959 = vsel %vm276, 0, %v2958
    %2960 = vst [vmem:[#allocation3 + $0x14c] sm:$0x1] %v2959
    %2961 = vst.msk [vmem:[#allocation3 + $0x150] sm:$0xf] %vm49, 0
    %v2962 = vld [vmem:[#allocation3 + $0x154] sm:$0x1]
    %v2963 = vsel %vm276, 0, %v2962
    %2964 = vst [vmem:[#allocation3 + $0x154] sm:$0x1] %v2963
    %2965 = vst.msk [vmem:[#allocation3 + $0x158] sm:$0xf] %vm49, 0
    %v2966 = vld [vmem:[#allocation3 + $0x15c] sm:$0x1]
    %v2967 = vsel %vm276, 0, %v2966
    %2968 = vst [vmem:[#allocation3 + $0x15c] sm:$0x1] %v2967
    %2969 = vst.msk [vmem:[#allocation3 + $0x160] sm:$0xf] %vm49, 0
    %v2970 = vld [vmem:[#allocation3 + $0x164] sm:$0x1]
    %v2971 = vsel %vm276, 0, %v2970
    %2972 = vst [vmem:[#allocation3 + $0x164] sm:$0x1] %v2971
    %2973 = vst.msk [vmem:[#allocation3 + $0x168] sm:$0xf] %vm49, 0
    %v2974 = vld [vmem:[#allocation3 + $0x16c] sm:$0x1]
    %v2975 = vsel %vm276, 0, %v2974
    %2976 = vst [vmem:[#allocation3 + $0x16c] sm:$0x1] %v2975
    %2977 = vst.msk [vmem:[#allocation3 + $0x170] sm:$0xf] %vm49, 0
    %v2978 = vld [vmem:[#allocation3 + $0x174] sm:$0x1]
    %v2979 = vsel %vm276, 0, %v2978
    %2980 = vst [vmem:[#allocation3 + $0x174] sm:$0x1] %v2979
    %2981 = vst.msk [vmem:[#allocation3 + $0x178] sm:$0xf] %vm49, 0
    %v2982 = vld [vmem:[#allocation3 + $0x17c] sm:$0x1]
    %v2983 = vsel %vm276, 0, %v2982
    %2984 = vst [vmem:[#allocation3 + $0x17c] sm:$0x1] %v2983
    %2985 = vst.msk [vmem:[#allocation3 + $0x180] sm:$0xf] %vm49, 0
    %v2986 = vld [vmem:[#allocation3 + $0x184] sm:$0x1]
    %v2987 = vsel %vm276, 0, %v2986
    %2988 = vst [vmem:[#allocation3 + $0x184] sm:$0x1] %v2987
    %2989 = vst.msk [vmem:[#allocation3 + $0x188] sm:$0xf] %vm49, 0
    %v2990 = vld [vmem:[#allocation3 + $0x18c] sm:$0x1]
    %v2991 = vsel %vm276, 0, %v2990
    %2992 = vst [vmem:[#allocation3 + $0x18c] sm:$0x1] %v2991
    %2993 = vst.msk [vmem:[#allocation3 + $0x190] sm:$0xf] %vm49, 0
    %v2994 = vld [vmem:[#allocation3 + $0x194] sm:$0x1]
    %v2995 = vsel %vm276, 0, %v2994
    %2996 = vst [vmem:[#allocation3 + $0x194] sm:$0x1] %v2995
    %2997 = vst.msk [vmem:[#allocation3 + $0x198] sm:$0xf] %vm49, 0
    %v2998 = vld [vmem:[#allocation3 + $0x19c] sm:$0x1]
    %v2999 = vsel %vm276, 0, %v2998
    %3000 = vst [vmem:[#allocation3 + $0x19c] sm:$0x1] %v2999
    %3001 = vst.msk [vmem:[#allocation3 + $0x1a0] sm:$0xf] %vm49, 0
    %v3002 = vld [vmem:[#allocation3 + $0x1a4] sm:$0x1]
    %v3003 = vsel %vm276, 0, %v3002
    %3004 = vst [vmem:[#allocation3 + $0x1a4] sm:$0x1] %v3003
    %3005 = vst.msk [vmem:[#allocation3 + $0x1a8] sm:$0xf] %vm49, 0
    %v3006 = vld [vmem:[#allocation3 + $0x1ac] sm:$0x1]
    %v3007 = vsel %vm276, 0, %v3006
    %3008 = vst [vmem:[#allocation3 + $0x1ac] sm:$0x1] %v3007
    %3009 = vst.msk [vmem:[#allocation3 + $0x1b0] sm:$0xf] %vm49, 0
    %v3010 = vld [vmem:[#allocation3 + $0x1b4] sm:$0x1]
    %v3011 = vsel %vm276, 0, %v3010
    %3012 = vst [vmem:[#allocation3 + $0x1b4] sm:$0x1] %v3011
    %3013 = vst.msk [vmem:[#allocation3 + $0x1b8] sm:$0xf] %vm49, 0
    %v3014 = vld [vmem:[#allocation3 + $0x1bc] sm:$0x1]
    %v3015 = vsel %vm276, 0, %v3014
    %3016 = vst [vmem:[#allocation3 + $0x1bc] sm:$0x1] %v3015
    %3017 = vst.msk [vmem:[#allocation3 + $0x1c0] sm:$0xf] %vm49, 0
    %v3018 = vld [vmem:[#allocation3 + $0x1c4] sm:$0x1]
    %v3019 = vsel %vm276, 0, %v3018
    %3020 = vst [vmem:[#allocation3 + $0x1c4] sm:$0x1] %v3019
    %3021 = vst.msk [vmem:[#allocation3 + $0x1c8] sm:$0xf] %vm49, 0
    %v3022 = vld [vmem:[#allocation3 + $0x1cc] sm:$0x1]
    %v3023 = vsel %vm276, 0, %v3022
    %3024 = vst [vmem:[#allocation3 + $0x1cc] sm:$0x1] %v3023
    %3025 = vst.msk [vmem:[#allocation3 + $0x1d0] sm:$0xf] %vm49, 0
    %v3026 = vld [vmem:[#allocation3 + $0x1d4] sm:$0x1]
    %v3027 = vsel %vm276, 0, %v3026
    %3028 = vst [vmem:[#allocation3 + $0x1d4] sm:$0x1] %v3027
    %3029 = vst.msk [vmem:[#allocation3 + $0x1d8] sm:$0xf] %vm49, 0
    %v3030 = vld [vmem:[#allocation3 + $0x1dc] sm:$0x1]
    %v3031 = vsel %vm276, 0, %v3030
    %3032 = vst [vmem:[#allocation3 + $0x1dc] sm:$0x1] %v3031
    %3033 = vst.msk [vmem:[#allocation3 + $0x1e0] sm:$0xf] %vm49, 0
    %v3034 = vld [vmem:[#allocation3 + $0x1e4] sm:$0x1]
    %v3035 = vsel %vm276, 0, %v3034
    %3036 = vst [vmem:[#allocation3 + $0x1e4] sm:$0x1] %v3035
    %3037 = vst.msk [vmem:[#allocation3 + $0x1e8] sm:$0xf] %vm49, 0
    %v3038 = vld [vmem:[#allocation3 + $0x1ec] sm:$0x1]
    %v3039 = vsel %vm276, 0, %v3038
    %3040 = vst [vmem:[#allocation3 + $0x1ec] sm:$0x1] %v3039
    %3041 = vst.msk [vmem:[#allocation3 + $0x1f0] sm:$0xf] %vm49, 0
    %v3042 = vld [vmem:[#allocation3 + $0x1f4] sm:$0x1]
    %v3043 = vsel %vm276, 0, %v3042
    %3044 = vst [vmem:[#allocation3 + $0x1f4] sm:$0x1] %v3043
    %3045 = vst.msk [vmem:[#allocation3 + $0x1f8] sm:$0xf] %vm49, 0
    %v3046 = vld [vmem:[#allocation3 + $0x1fc] sm:$0x1]
    %v3047 = vsel %vm276, 0, %v3046
    %3048 = vst [vmem:[#allocation3 + $0x1fc] sm:$0x1] %v3047
    %3049 = vst.msk [vmem:[#allocation3 + $0x200] sm:$0xf] %vm49, 0
    %v3050 = vld [vmem:[#allocation3 + $0x204] sm:$0x1]
    %v3051 = vsel %vm276, 0, %v3050
    %3052 = vst [vmem:[#allocation3 + $0x204] sm:$0x1] %v3051
    %3053 = vst.msk [vmem:[#allocation3 + $0x208] sm:$0xf] %vm49, 0
    %v3054 = vld [vmem:[#allocation3 + $0x20c] sm:$0x1]
    %v3055 = vsel %vm276, 0, %v3054
    %3056 = vst [vmem:[#allocation3 + $0x20c] sm:$0x1] %v3055
    %3057 = vst.msk [vmem:[#allocation3 + $0x210] sm:$0xf] %vm49, 0
    %v3058 = vld [vmem:[#allocation3 + $0x214] sm:$0x1]
    %v3059 = vsel %vm276, 0, %v3058
    %3060 = vst [vmem:[#allocation3 + $0x214] sm:$0x1] %v3059
    %3061 = vst.msk [vmem:[#allocation3 + $0x218] sm:$0xf] %vm49, 0
    %v3062 = vld [vmem:[#allocation3 + $0x21c] sm:$0x1]
    %v3063 = vsel %vm276, 0, %v3062
    %3064 = vst [vmem:[#allocation3 + $0x21c] sm:$0x1] %v3063
    %3065 = vst.msk [vmem:[#allocation3 + $0x220] sm:$0xf] %vm49, 0
    %v3066 = vld [vmem:[#allocation3 + $0x224] sm:$0x1]
    %v3067 = vsel %vm276, 0, %v3066
    %3068 = vst [vmem:[#allocation3 + $0x224] sm:$0x1] %v3067
    %3069 = vst.msk [vmem:[#allocation3 + $0x228] sm:$0xf] %vm49, 0
    %v3070 = vld [vmem:[#allocation3 + $0x22c] sm:$0x1]
    %v3071 = vsel %vm276, 0, %v3070
    %3072 = vst [vmem:[#allocation3 + $0x22c] sm:$0x1] %v3071
    %3073 = vst.msk [vmem:[#allocation3 + $0x230] sm:$0xf] %vm49, 0
    %v3074 = vld [vmem:[#allocation3 + $0x234] sm:$0x1]
    %v3075 = vsel %vm276, 0, %v3074
    %3076 = vst [vmem:[#allocation3 + $0x234] sm:$0x1] %v3075
    %3077 = vst.msk [vmem:[#allocation3 + $0x238] sm:$0xf] %vm49, 0
    %v3078 = vld [vmem:[#allocation3 + $0x23c] sm:$0x1]
    %v3079 = vsel %vm276, 0, %v3078
    %3080 = vst [vmem:[#allocation3 + $0x23c] sm:$0x1] %v3079
    %v3089 = vunpack.c.l.b16 %v2777
    %v3090 = vunpack.c.h.b16 %v2777
    %v3091 = vunpack.c.l.b16 %v2779
    %v3092 = vunpack.c.h.b16 %v2779
    %v3093 = vunpack.c.l.b16 %v2781
    %v3094 = vunpack.c.h.b16 %v2781
    %v3095 = vunpack.c.l.b16 %v2783
    %v3096 = vunpack.c.h.b16 %v2783
    %v3097 = vunpack.c.l.b16 %v2785
    %v3098 = vunpack.c.h.b16 %v2785
    %v3099 = vunpack.c.l.b16 %v2787
    %v3100 = vunpack.c.h.b16 %v2787
    %v3101 = vunpack.c.l.b16 %v2789
    %v3102 = vunpack.c.h.b16 %v2789
    %v3103 = vunpack.c.l.b16 %v2791
    %v3104 = vunpack.c.h.b16 %v2791
    %v3105 = vpack.c.b16 %v3089, %v3089
    %v3106 = vpack.c.b16 %v3090, %v3090
    %v3107 = vpack.c.b16 %v3091, %v3091
    %v3108 = vpack.c.b16 %v3092, %v3092
    %v3109 = vpack.c.b16 %v3093, %v3093
    %v3110 = vpack.c.b16 %v3094, %v3094
    %v3111 = vpack.c.b16 %v3095, %v3095
    %v3112 = vpack.c.b16 %v3096, %v3096
    %v3113 = vpack.c.b16 %v3097, %v3097
    %v3114 = vpack.c.b16 %v3098, %v3098
    %v3115 = vpack.c.b16 %v3099, %v3099
    %v3116 = vpack.c.b16 %v3100, %v3100
    %v3117 = vpack.c.b16 %v3101, %v3101
    %v3118 = vpack.c.b16 %v3102, %v3102
    %v3119 = vpack.c.b16 %v3103, %v3103
    %v3120 = vpack.c.b16 %v3104, %v3104
    %s3137 = scalar_lea.vmem [#allocation3], 152
    %3138 = vst.msk [vmem:[%s3137] sm:$0xf] %vm49, %v3105
    %3139 = vst.msk [vmem:[%s3137 + $0x10] sm:$0xf] %vm49, %v3106
    %3140 = vst.msk [vmem:[%s3137 + $0x20] sm:$0xf] %vm49, %v3107
    %3141 = vst.msk [vmem:[%s3137 + $0x30] sm:$0xf] %vm49, %v3108
    %3142 = vst.msk [vmem:[%s3137 + $0x40] sm:$0xf] %vm49, %v3109
    %3143 = vst.msk [vmem:[%s3137 + $0x50] sm:$0xf] %vm49, %v3110
    %3144 = vst.msk [vmem:[%s3137 + $0x60] sm:$0xf] %vm49, %v3111
    %3145 = vst.msk [vmem:[%s3137 + $0x70] sm:$0xf] %vm49, %v3112
    %3146 = vst.msk [vmem:[%s3137 + $0x120] sm:$0xf] %vm49, %v3113
    %3147 = vst.msk [vmem:[%s3137 + $0x130] sm:$0xf] %vm49, %v3114
    %3148 = vst.msk [vmem:[%s3137 + $0x140] sm:$0xf] %vm49, %v3115
    %3149 = vst.msk [vmem:[%s3137 + $0x150] sm:$0xf] %vm49, %v3116
    %3150 = vst.msk [vmem:[%s3137 + $0x160] sm:$0xf] %vm49, %v3117
    %3151 = vst.msk [vmem:[%s3137 + $0x170] sm:$0xf] %vm49, %v3118
    %3152 = vst.msk [vmem:[%s3137 + $0x180] sm:$0xf] %vm49, %v3119
    %3153 = vst.msk [vmem:[%s3137 + $0x190] sm:$0xf] %vm49, %v3120
    %v3155 = vshrl.u32 %v3105, 16
    %v3157 = vrot.slane %v3155, 7
    %v3158 = vshll.u32 %v3105, 16
    %v3160 = vor.u32 %v3157, %v3158
    %v3161 = vrot.slane %v3157, 4
    %v3163 = vshrl.u32 %v3106, 16
    %v3165 = vrot.slane %v3163, 7
    %v3166 = vshll.u32 %v3106, 16
    %v3168 = vor.u32 %v3165, %v3166
    %v3169 = vrot.slane %v3165, 4
    %v3171 = vshrl.u32 %v3107, 16
    %v3173 = vrot.slane %v3171, 7
    %v3174 = vshll.u32 %v3107, 16
    %v3176 = vor.u32 %v3173, %v3174
    %v3177 = vrot.slane %v3173, 4
    %v3179 = vshrl.u32 %v3108, 16
    %v3181 = vrot.slane %v3179, 7
    %v3182 = vshll.u32 %v3108, 16
    %v3184 = vor.u32 %v3181, %v3182
    %v3185 = vrot.slane %v3181, 4
    %v3187 = vshrl.u32 %v3109, 16
    %v3189 = vrot.slane %v3187, 7
    %v3190 = vshll.u32 %v3109, 16
    %v3192 = vor.u32 %v3189, %v3190
    %v3193 = vrot.slane %v3189, 4
    %v3195 = vshrl.u32 %v3110, 16
    %v3197 = vrot.slane %v3195, 7
    %v3198 = vshll.u32 %v3110, 16
    %v3200 = vor.u32 %v3197, %v3198
    %v3201 = vrot.slane %v3197, 4
    %v3203 = vshrl.u32 %v3111, 16
    %v3205 = vrot.slane %v3203, 7
    %v3206 = vshll.u32 %v3111, 16
    %v3208 = vor.u32 %v3205, %v3206
    %v3209 = vrot.slane %v3205, 4
    %v3211 = vshrl.u32 %v3112, 16
    %v3213 = vrot.slane %v3211, 7
    %v3214 = vshll.u32 %v3112, 16
    %v3216 = vor.u32 %v3213, %v3214
    %v3217 = vrot.slane %v3213, 4
    %v3219 = vshrl.u32 %v3113, 16
    %v3221 = vrot.slane %v3219, 7
    %v3222 = vshll.u32 %v3113, 16
    %v3224 = vor.u32 %v3221, %v3222
    %v3225 = vrot.slane %v3221, 4
    %v3227 = vshrl.u32 %v3114, 16
    %v3229 = vrot.slane %v3227, 7
    %v3230 = vshll.u32 %v3114, 16
    %v3232 = vor.u32 %v3229, %v3230
    %v3233 = vrot.slane %v3229, 4
    %v3235 = vshrl.u32 %v3115, 16
    %v3237 = vrot.slane %v3235, 7
    %v3238 = vshll.u32 %v3115, 16
    %v3240 = vor.u32 %v3237, %v3238
    %v3241 = vrot.slane %v3237, 4
    %v3243 = vshrl.u32 %v3116, 16
    %v3245 = vrot.slane %v3243, 7
    %v3246 = vshll.u32 %v3116, 16
    %v3248 = vor.u32 %v3245, %v3246
    %v3249 = vrot.slane %v3245, 4
    %v3251 = vshrl.u32 %v3117, 16
    %v3253 = vrot.slane %v3251, 7
    %v3254 = vshll.u32 %v3117, 16
    %v3256 = vor.u32 %v3253, %v3254
    %v3257 = vrot.slane %v3253, 4
    %v3259 = vshrl.u32 %v3118, 16
    %v3261 = vrot.slane %v3259, 7
    %v3262 = vshll.u32 %v3118, 16
    %v3264 = vor.u32 %v3261, %v3262
    %v3265 = vrot.slane %v3261, 4
    %v3267 = vshrl.u32 %v3119, 16
    %v3269 = vrot.slane %v3267, 7
    %v3270 = vshll.u32 %v3119, 16
    %v3272 = vor.u32 %v3269, %v3270
    %v3273 = vrot.slane %v3269, 4
    %v3275 = vshrl.u32 %v3120, 16
    %v3277 = vrot.slane %v3275, 7
    %v3278 = vshll.u32 %v3120, 16
    %v3280 = vor.u32 %v3277, %v3278
    %v3281 = vrot.slane %v3277, 4
    %3282 = vrot.lane.b32.xlu0 %v3160, 64
    %v3283 = vpop.permute.xlu0 %3282
    %3284 = vrot.lane.b32.xlu0 %v3161, 64
    %v3285 = vpop.permute.xlu0 %3284
    %3286 = vrot.lane.b32.xlu0 %v3168, 64
    %v3287 = vpop.permute.xlu0 %3286
    %3288 = vrot.lane.b32.xlu0 %v3169, 64
    %v3289 = vpop.permute.xlu0 %3288
    %3290 = vrot.lane.b32.xlu0 %v3176, 64
    %v3291 = vpop.permute.xlu0 %3290
    %3292 = vrot.lane.b32.xlu0 %v3177, 64
    %v3293 = vpop.permute.xlu0 %3292
    %3294 = vrot.lane.b32.xlu0 %v3184, 64
    %v3295 = vpop.permute.xlu0 %3294
    %3296 = vrot.lane.b32.xlu0 %v3185, 64
    %v3297 = vpop.permute.xlu0 %3296
    %3298 = vrot.lane.b32.xlu0 %v3192, 64
    %v3299 = vpop.permute.xlu0 %3298
    %3300 = vrot.lane.b32.xlu0 %v3193, 64
    %v3301 = vpop.permute.xlu0 %3300
    %3302 = vrot.lane.b32.xlu0 %v3200, 64
    %v3303 = vpop.permute.xlu0 %3302
    %3304 = vrot.lane.b32.xlu0 %v3201, 64
    %v3305 = vpop.permute.xlu0 %3304
    %3306 = vrot.lane.b32.xlu0 %v3208, 64
    %v3307 = vpop.permute.xlu0 %3306
    %3308 = vrot.lane.b32.xlu0 %v3209, 64
    %v3309 = vpop.permute.xlu0 %3308
    %3310 = vrot.lane.b32.xlu0 %v3216, 64
    %v3311 = vpop.permute.xlu0 %3310
    %3312 = vrot.lane.b32.xlu0 %v3217, 64
    %v3313 = vpop.permute.xlu0 %3312
    %3314 = vrot.lane.b32.xlu0 %v3224, 64
    %v3315 = vpop.permute.xlu0 %3314
    %3316 = vrot.lane.b32.xlu0 %v3225, 64
    %v3317 = vpop.permute.xlu0 %3316
    %3318 = vrot.lane.b32.xlu0 %v3232, 64
    %v3319 = vpop.permute.xlu0 %3318
    %3320 = vrot.lane.b32.xlu0 %v3233, 64
    %v3321 = vpop.permute.xlu0 %3320
    %3322 = vrot.lane.b32.xlu0 %v3240, 64
    %v3323 = vpop.permute.xlu0 %3322
    %3324 = vrot.lane.b32.xlu0 %v3241, 64
    %v3325 = vpop.permute.xlu0 %3324
    %3326 = vrot.lane.b32.xlu0 %v3248, 64
    %v3327 = vpop.permute.xlu0 %3326
    %3328 = vrot.lane.b32.xlu0 %v3249, 64
    %v3329 = vpop.permute.xlu0 %3328
    %3330 = vrot.lane.b32.xlu0 %v3256, 64
    %v3331 = vpop.permute.xlu0 %3330
    %3332 = vrot.lane.b32.xlu0 %v3257, 64
    %v3333 = vpop.permute.xlu0 %3332
    %3334 = vrot.lane.b32.xlu0 %v3264, 64
    %v3335 = vpop.permute.xlu0 %3334
    %3336 = vrot.lane.b32.xlu0 %v3265, 64
    %v3337 = vpop.permute.xlu0 %3336
    %3338 = vrot.lane.b32.xlu0 %v3272, 64
    %v3339 = vpop.permute.xlu0 %3338
    %3340 = vrot.lane.b32.xlu0 %v3273, 64
    %v3341 = vpop.permute.xlu0 %3340
    %3342 = vrot.lane.b32.xlu0 %v3280, 64
    %v3343 = vpop.permute.xlu0 %3342
    %3344 = vrot.lane.b32.xlu0 %v3281, 64
    %v3345 = vpop.permute.xlu0 %3344
    %s3378 = scalar_lea.vmem [#allocation3], 144
    %v3379 = vld [vmem:[%s3378] sm:$0xf]
    %v3380 = vsel %vm270, %v3283, %v3379
    %3381 = vst [vmem:[%s3378] sm:$0xf] %v3380
    %v3382 = vld [vmem:[%s3378 + $0x4] sm:$0x1]
    %v3383 = vsel %vm276, %v3285, %v3382
    %3384 = vst [vmem:[%s3378 + $0x4] sm:$0x1] %v3383
    %v3385 = vld [vmem:[%s3378 + $0x10] sm:$0xf]
    %v3386 = vsel %vm270, %v3287, %v3385
    %3387 = vst [vmem:[%s3378 + $0x10] sm:$0xf] %v3386
    %v3388 = vld [vmem:[%s3378 + $0x14] sm:$0x1]
    %v3389 = vsel %vm276, %v3289, %v3388
    %3390 = vst [vmem:[%s3378 + $0x14] sm:$0x1] %v3389
    %v3391 = vld [vmem:[%s3378 + $0x20] sm:$0xf]
    %v3392 = vsel %vm270, %v3291, %v3391
    %3393 = vst [vmem:[%s3378 + $0x20] sm:$0xf] %v3392
    %v3394 = vld [vmem:[%s3378 + $0x24] sm:$0x1]
    %v3395 = vsel %vm276, %v3293, %v3394
    %3396 = vst [vmem:[%s3378 + $0x24] sm:$0x1] %v3395
    %v3397 = vld [vmem:[%s3378 + $0x30] sm:$0xf]
    %v3398 = vsel %vm270, %v3295, %v3397
    %3399 = vst [vmem:[%s3378 + $0x30] sm:$0xf] %v3398
    %v3400 = vld [vmem:[%s3378 + $0x34] sm:$0x1]
    %v3401 = vsel %vm276, %v3297, %v3400
    %3402 = vst [vmem:[%s3378 + $0x34] sm:$0x1] %v3401
    %v3403 = vld [vmem:[%s3378 + $0x40] sm:$0xf]
    %v3404 = vsel %vm270, %v3299, %v3403
    %3405 = vst [vmem:[%s3378 + $0x40] sm:$0xf] %v3404
    %v3406 = vld [vmem:[%s3378 + $0x44] sm:$0x1]
    %v3407 = vsel %vm276, %v3301, %v3406
    %3408 = vst [vmem:[%s3378 + $0x44] sm:$0x1] %v3407
    %v3409 = vld [vmem:[%s3378 + $0x50] sm:$0xf]
    %v3410 = vsel %vm270, %v3303, %v3409
    %3411 = vst [vmem:[%s3378 + $0x50] sm:$0xf] %v3410
    %v3412 = vld [vmem:[%s3378 + $0x54] sm:$0x1]
    %v3413 = vsel %vm276, %v3305, %v3412
    %3414 = vst [vmem:[%s3378 + $0x54] sm:$0x1] %v3413
    %v3415 = vld [vmem:[%s3378 + $0x60] sm:$0xf]
    %v3416 = vsel %vm270, %v3307, %v3415
    %3417 = vst [vmem:[%s3378 + $0x60] sm:$0xf] %v3416
    %v3418 = vld [vmem:[%s3378 + $0x64] sm:$0x1]
    %v3419 = vsel %vm276, %v3309, %v3418
    %3420 = vst [vmem:[%s3378 + $0x64] sm:$0x1] %v3419
    %v3421 = vld [vmem:[%s3378 + $0x70] sm:$0xf]
    %v3422 = vsel %vm270, %v3311, %v3421
    %3423 = vst [vmem:[%s3378 + $0x70] sm:$0xf] %v3422
    %v3424 = vld [vmem:[%s3378 + $0x74] sm:$0x1]
    %v3425 = vsel %vm276, %v3313, %v3424
    %3426 = vst [vmem:[%s3378 + $0x74] sm:$0x1] %v3425
    %v3427 = vld [vmem:[%s3378 + $0x120] sm:$0xf]
    %v3428 = vsel %vm270, %v3315, %v3427
    %3429 = vst [vmem:[%s3378 + $0x120] sm:$0xf] %v3428
    %v3430 = vld [vmem:[%s3378 + $0x124] sm:$0x1]
    %v3431 = vsel %vm276, %v3317, %v3430
    %3432 = vst [vmem:[%s3378 + $0x124] sm:$0x1] %v3431
    %v3433 = vld [vmem:[%s3378 + $0x130] sm:$0xf]
    %v3434 = vsel %vm270, %v3319, %v3433
    %3435 = vst [vmem:[%s3378 + $0x130] sm:$0xf] %v3434
    %v3436 = vld [vmem:[%s3378 + $0x134] sm:$0x1]
    %v3437 = vsel %vm276, %v3321, %v3436
    %3438 = vst [vmem:[%s3378 + $0x134] sm:$0x1] %v3437
    %v3439 = vld [vmem:[%s3378 + $0x140] sm:$0xf]
    %v3440 = vsel %vm270, %v3323, %v3439
    %3441 = vst [vmem:[%s3378 + $0x140] sm:$0xf] %v3440
    %v3442 = vld [vmem:[%s3378 + $0x144] sm:$0x1]
    %v3443 = vsel %vm276, %v3325, %v3442
    %3444 = vst [vmem:[%s3378 + $0x144] sm:$0x1] %v3443
    %v3445 = vld [vmem:[%s3378 + $0x150] sm:$0xf]
    %v3446 = vsel %vm270, %v3327, %v3445
    %3447 = vst [vmem:[%s3378 + $0x150] sm:$0xf] %v3446
    %v3448 = vld [vmem:[%s3378 + $0x154] sm:$0x1]
    %v3449 = vsel %vm276, %v3329, %v3448
    %3450 = vst [vmem:[%s3378 + $0x154] sm:$0x1] %v3449
    %v3451 = vld [vmem:[%s3378 + $0x160] sm:$0xf]
    %v3452 = vsel %vm270, %v3331, %v3451
    %3453 = vst [vmem:[%s3378 + $0x160] sm:$0xf] %v3452
    %v3454 = vld [vmem:[%s3378 + $0x164] sm:$0x1]
    %v3455 = vsel %vm276, %v3333, %v3454
    %3456 = vst [vmem:[%s3378 + $0x164] sm:$0x1] %v3455
    %v3457 = vld [vmem:[%s3378 + $0x170] sm:$0xf]
    %v3458 = vsel %vm270, %v3335, %v3457
    %3459 = vst [vmem:[%s3378 + $0x170] sm:$0xf] %v3458
    %v3460 = vld [vmem:[%s3378 + $0x174] sm:$0x1]
    %v3461 = vsel %vm276, %v3337, %v3460
    %3462 = vst [vmem:[%s3378 + $0x174] sm:$0x1] %v3461
    %v3463 = vld [vmem:[%s3378 + $0x180] sm:$0xf]
    %v3464 = vsel %vm270, %v3339, %v3463
    %3465 = vst [vmem:[%s3378 + $0x180] sm:$0xf] %v3464
    %v3466 = vld [vmem:[%s3378 + $0x184] sm:$0x1]
    %v3467 = vsel %vm276, %v3341, %v3466
    %3468 = vst [vmem:[%s3378 + $0x184] sm:$0x1] %v3467
    %v3469 = vld [vmem:[%s3378 + $0x190] sm:$0xf]
    %v3470 = vsel %vm270, %v3343, %v3469
    %3471 = vst [vmem:[%s3378 + $0x190] sm:$0xf] %v3470
    %v3472 = vld [vmem:[%s3378 + $0x194] sm:$0x1]
    %v3473 = vsel %vm276, %v3345, %v3472
    %3474 = vst [vmem:[%s3378 + $0x194] sm:$0x1] %v3473
    %v3483 = vunpack.c.l.b16 %v2778
    %v3484 = vunpack.c.h.b16 %v2778
    %v3485 = vunpack.c.l.b16 %v2780
    %v3486 = vunpack.c.h.b16 %v2780
    %v3487 = vunpack.c.l.b16 %v2782
    %v3488 = vunpack.c.h.b16 %v2782
    %v3489 = vunpack.c.l.b16 %v2784
    %v3490 = vunpack.c.h.b16 %v2784
    %v3491 = vunpack.c.l.b16 %v2786
    %v3492 = vunpack.c.h.b16 %v2786
    %v3493 = vunpack.c.l.b16 %v2788
    %v3494 = vunpack.c.h.b16 %v2788
    %v3495 = vunpack.c.l.b16 %v2790
    %v3496 = vunpack.c.h.b16 %v2790
    %v3497 = vunpack.c.l.b16 %v2792
    %v3498 = vunpack.c.h.b16 %v2792
    %v3499 = vpack.c.b16 %v3483, %v3483
    %v3500 = vpack.c.b16 %v3484, %v3484
    %v3501 = vpack.c.b16 %v3485, %v3485
    %v3502 = vpack.c.b16 %v3486, %v3486
    %v3503 = vpack.c.b16 %v3487, %v3487
    %v3504 = vpack.c.b16 %v3488, %v3488
    %v3505 = vpack.c.b16 %v3489, %v3489
    %v3506 = vpack.c.b16 %v3490, %v3490
    %v3507 = vpack.c.b16 %v3491, %v3491
    %v3508 = vpack.c.b16 %v3492, %v3492
    %v3509 = vpack.c.b16 %v3493, %v3493
    %v3510 = vpack.c.b16 %v3494, %v3494
    %v3511 = vpack.c.b16 %v3495, %v3495
    %v3512 = vpack.c.b16 %v3496, %v3496
    %v3513 = vpack.c.b16 %v3497, %v3497
    %v3514 = vpack.c.b16 %v3498, %v3498
    %s3531 = scalar_lea.vmem [#allocation3], 24
    %3532 = vst.msk [vmem:[%s3531] sm:$0xf] %vm49, %v3499
    %3533 = vst.msk [vmem:[%s3531 + $0x10] sm:$0xf] %vm49, %v3500
    %3534 = vst.msk [vmem:[%s3531 + $0x20] sm:$0xf] %vm49, %v3501
    %3535 = vst.msk [vmem:[%s3531 + $0x30] sm:$0xf] %vm49, %v3502
    %3536 = vst.msk [vmem:[%s3531 + $0x40] sm:$0xf] %vm49, %v3503
    %3537 = vst.msk [vmem:[%s3531 + $0x50] sm:$0xf] %vm49, %v3504
    %3538 = vst.msk [vmem:[%s3531 + $0x60] sm:$0xf] %vm49, %v3505
    %3539 = vst.msk [vmem:[%s3531 + $0x70] sm:$0xf] %vm49, %v3506
    %3540 = vst.msk [vmem:[%s3531 + $0x120] sm:$0xf] %vm49, %v3507
    %3541 = vst.msk [vmem:[%s3531 + $0x130] sm:$0xf] %vm49, %v3508
    %3542 = vst.msk [vmem:[%s3531 + $0x140] sm:$0xf] %vm49, %v3509
    %3543 = vst.msk [vmem:[%s3531 + $0x150] sm:$0xf] %vm49, %v3510
    %3544 = vst.msk [vmem:[%s3531 + $0x160] sm:$0xf] %vm49, %v3511
    %3545 = vst.msk [vmem:[%s3531 + $0x170] sm:$0xf] %vm49, %v3512
    %3546 = vst.msk [vmem:[%s3531 + $0x180] sm:$0xf] %vm49, %v3513
    %3547 = vst.msk [vmem:[%s3531 + $0x190] sm:$0xf] %vm49, %v3514
    %v3549 = vshrl.u32 %v3499, 16
    %v3551 = vrot.slane %v3549, 7
    %v3552 = vshll.u32 %v3499, 16
    %v3554 = vor.u32 %v3551, %v3552
    %v3555 = vrot.slane %v3551, 4
    %v3557 = vshrl.u32 %v3500, 16
    %v3559 = vrot.slane %v3557, 7
    %v3560 = vshll.u32 %v3500, 16
    %v3562 = vor.u32 %v3559, %v3560
    %v3563 = vrot.slane %v3559, 4
    %v3565 = vshrl.u32 %v3501, 16
    %v3567 = vrot.slane %v3565, 7
    %v3568 = vshll.u32 %v3501, 16
    %v3570 = vor.u32 %v3567, %v3568
    %v3571 = vrot.slane %v3567, 4
    %v3573 = vshrl.u32 %v3502, 16
    %v3575 = vrot.slane %v3573, 7
    %v3576 = vshll.u32 %v3502, 16
    %v3578 = vor.u32 %v3575, %v3576
    %v3579 = vrot.slane %v3575, 4
    %v3581 = vshrl.u32 %v3503, 16
    %v3583 = vrot.slane %v3581, 7
    %v3584 = vshll.u32 %v3503, 16
    %v3586 = vor.u32 %v3583, %v3584
    %v3587 = vrot.slane %v3583, 4
    %v3589 = vshrl.u32 %v3504, 16
    %v3591 = vrot.slane %v3589, 7
    %v3592 = vshll.u32 %v3504, 16
    %v3594 = vor.u32 %v3591, %v3592
    %v3595 = vrot.slane %v3591, 4
    %v3597 = vshrl.u32 %v3505, 16
    %v3599 = vrot.slane %v3597, 7
    %v3600 = vshll.u32 %v3505, 16
    %v3602 = vor.u32 %v3599, %v3600
    %v3603 = vrot.slane %v3599, 4
    %v3605 = vshrl.u32 %v3506, 16
    %v3607 = vrot.slane %v3605, 7
    %v3608 = vshll.u32 %v3506, 16
    %v3610 = vor.u32 %v3607, %v3608
    %v3611 = vrot.slane %v3607, 4
    %v3613 = vshrl.u32 %v3507, 16
    %v3615 = vrot.slane %v3613, 7
    %v3616 = vshll.u32 %v3507, 16
    %v3618 = vor.u32 %v3615, %v3616
    %v3619 = vrot.slane %v3615, 4
    %v3621 = vshrl.u32 %v3508, 16
    %v3623 = vrot.slane %v3621, 7
    %v3624 = vshll.u32 %v3508, 16
    %v3626 = vor.u32 %v3623, %v3624
    %v3627 = vrot.slane %v3623, 4
    %v3629 = vshrl.u32 %v3509, 16
    %v3631 = vrot.slane %v3629, 7
    %v3632 = vshll.u32 %v3509, 16
    %v3634 = vor.u32 %v3631, %v3632
    %v3635 = vrot.slane %v3631, 4
    %v3637 = vshrl.u32 %v3510, 16
    %v3639 = vrot.slane %v3637, 7
    %v3640 = vshll.u32 %v3510, 16
    %v3642 = vor.u32 %v3639, %v3640
    %v3643 = vrot.slane %v3639, 4
    %v3645 = vshrl.u32 %v3511, 16
    %v3647 = vrot.slane %v3645, 7
    %v3648 = vshll.u32 %v3511, 16
    %v3650 = vor.u32 %v3647, %v3648
    %v3651 = vrot.slane %v3647, 4
    %v3653 = vshrl.u32 %v3512, 16
    %v3655 = vrot.slane %v3653, 7
    %v3656 = vshll.u32 %v3512, 16
    %v3658 = vor.u32 %v3655, %v3656
    %v3659 = vrot.slane %v3655, 4
    %v3661 = vshrl.u32 %v3513, 16
    %v3663 = vrot.slane %v3661, 7
    %v3664 = vshll.u32 %v3513, 16
    %v3666 = vor.u32 %v3663, %v3664
    %v3667 = vrot.slane %v3663, 4
    %v3669 = vshrl.u32 %v3514, 16
    %v3671 = vrot.slane %v3669, 7
    %v3672 = vshll.u32 %v3514, 16
    %v3674 = vor.u32 %v3671, %v3672
    %v3675 = vrot.slane %v3671, 4
    %3676 = vrot.lane.b32.xlu0 %v3554, 64
    %v3677 = vpop.permute.xlu0 %3676
    %3678 = vrot.lane.b32.xlu0 %v3555, 64
    %v3679 = vpop.permute.xlu0 %3678
    %3680 = vrot.lane.b32.xlu0 %v3562, 64
    %v3681 = vpop.permute.xlu0 %3680
    %3682 = vrot.lane.b32.xlu0 %v3563, 64
    %v3683 = vpop.permute.xlu0 %3682
    %3684 = vrot.lane.b32.xlu0 %v3570, 64
    %v3685 = vpop.permute.xlu0 %3684
    %3686 = vrot.lane.b32.xlu0 %v3571, 64
    %v3687 = vpop.permute.xlu0 %3686
    %3688 = vrot.lane.b32.xlu0 %v3578, 64
    %v3689 = vpop.permute.xlu0 %3688
    %3690 = vrot.lane.b32.xlu0 %v3579, 64
    %v3691 = vpop.permute.xlu0 %3690
    %3692 = vrot.lane.b32.xlu0 %v3586, 64
    %v3693 = vpop.permute.xlu0 %3692
    %3694 = vrot.lane.b32.xlu0 %v3587, 64
    %v3695 = vpop.permute.xlu0 %3694
    %3696 = vrot.lane.b32.xlu0 %v3594, 64
    %v3697 = vpop.permute.xlu0 %3696
    %3698 = vrot.lane.b32.xlu0 %v3595, 64
    %v3699 = vpop.permute.xlu0 %3698
    %3700 = vrot.lane.b32.xlu0 %v3602, 64
    %v3701 = vpop.permute.xlu0 %3700
    %3702 = vrot.lane.b32.xlu0 %v3603, 64
    %v3703 = vpop.permute.xlu0 %3702
    %3704 = vrot.lane.b32.xlu0 %v3610, 64
    %v3705 = vpop.permute.xlu0 %3704
    %3706 = vrot.lane.b32.xlu0 %v3611, 64
    %v3707 = vpop.permute.xlu0 %3706
    %3708 = vrot.lane.b32.xlu0 %v3618, 64
    %v3709 = vpop.permute.xlu0 %3708
    %3710 = vrot.lane.b32.xlu0 %v3619, 64
    %v3711 = vpop.permute.xlu0 %3710
    %3712 = vrot.lane.b32.xlu0 %v3626, 64
    %v3713 = vpop.permute.xlu0 %3712
    %3714 = vrot.lane.b32.xlu0 %v3627, 64
    %v3715 = vpop.permute.xlu0 %3714
    %3716 = vrot.lane.b32.xlu0 %v3634, 64
    %v3717 = vpop.permute.xlu0 %3716
    %3718 = vrot.lane.b32.xlu0 %v3635, 64
    %v3719 = vpop.permute.xlu0 %3718
    %3720 = vrot.lane.b32.xlu0 %v3642, 64
    %v3721 = vpop.permute.xlu0 %3720
    %3722 = vrot.lane.b32.xlu0 %v3643, 64
    %v3723 = vpop.permute.xlu0 %3722
    %3724 = vrot.lane.b32.xlu0 %v3650, 64
    %v3725 = vpop.permute.xlu0 %3724
    %3726 = vrot.lane.b32.xlu0 %v3651, 64
    %v3727 = vpop.permute.xlu0 %3726
    %3728 = vrot.lane.b32.xlu0 %v3658, 64
    %v3729 = vpop.permute.xlu0 %3728
    %3730 = vrot.lane.b32.xlu0 %v3659, 64
    %v3731 = vpop.permute.xlu0 %3730
    %3732 = vrot.lane.b32.xlu0 %v3666, 64
    %v3733 = vpop.permute.xlu0 %3732
    %3734 = vrot.lane.b32.xlu0 %v3667, 64
    %v3735 = vpop.permute.xlu0 %3734
    %3736 = vrot.lane.b32.xlu0 %v3674, 64
    %v3737 = vpop.permute.xlu0 %3736
    %3738 = vrot.lane.b32.xlu0 %v3675, 64
    %v3739 = vpop.permute.xlu0 %3738
    %s3772 = scalar_lea.vmem [#allocation3], 16
    %v3773 = vld [vmem:[%s3772] sm:$0xf]
    %v3774 = vsel %vm270, %v3677, %v3773
    %3775 = vst [vmem:[%s3772] sm:$0xf] %v3774
    %v3776 = vld [vmem:[%s3772 + $0x4] sm:$0x1]
    %v3777 = vsel %vm276, %v3679, %v3776
    %3778 = vst [vmem:[%s3772 + $0x4] sm:$0x1] %v3777
    %v3779 = vld [vmem:[%s3772 + $0x10] sm:$0xf]
    %v3780 = vsel %vm270, %v3681, %v3779
    %3781 = vst [vmem:[%s3772 + $0x10] sm:$0xf] %v3780
    %v3782 = vld [vmem:[%s3772 + $0x14] sm:$0x1]
    %v3783 = vsel %vm276, %v3683, %v3782
    %3784 = vst [vmem:[%s3772 + $0x14] sm:$0x1] %v3783
    %v3785 = vld [vmem:[%s3772 + $0x20] sm:$0xf]
    %v3786 = vsel %vm270, %v3685, %v3785
    %3787 = vst [vmem:[%s3772 + $0x20] sm:$0xf] %v3786
    %v3788 = vld [vmem:[%s3772 + $0x24] sm:$0x1]
    %v3789 = vsel %vm276, %v3687, %v3788
    %3790 = vst [vmem:[%s3772 + $0x24] sm:$0x1] %v3789
    %v3791 = vld [vmem:[%s3772 + $0x30] sm:$0xf]
    %v3792 = vsel %vm270, %v3689, %v3791
    %3793 = vst [vmem:[%s3772 + $0x30] sm:$0xf] %v3792
    %v3794 = vld [vmem:[%s3772 + $0x34] sm:$0x1]
    %v3795 = vsel %vm276, %v3691, %v3794
    %3796 = vst [vmem:[%s3772 + $0x34] sm:$0x1] %v3795
    %v3797 = vld [vmem:[%s3772 + $0x40] sm:$0xf]
    %v3798 = vsel %vm270, %v3693, %v3797
    %3799 = vst [vmem:[%s3772 + $0x40] sm:$0xf] %v3798
    %v3800 = vld [vmem:[%s3772 + $0x44] sm:$0x1]
    %v3801 = vsel %vm276, %v3695, %v3800
    %3802 = vst [vmem:[%s3772 + $0x44] sm:$0x1] %v3801
    %v3803 = vld [vmem:[%s3772 + $0x50] sm:$0xf]
    %v3804 = vsel %vm270, %v3697, %v3803
    %3805 = vst [vmem:[%s3772 + $0x50] sm:$0xf] %v3804
    %v3806 = vld [vmem:[%s3772 + $0x54] sm:$0x1]
    %v3807 = vsel %vm276, %v3699, %v3806
    %3808 = vst [vmem:[%s3772 + $0x54] sm:$0x1] %v3807
    %v3809 = vld [vmem:[%s3772 + $0x60] sm:$0xf]
    %v3810 = vsel %vm270, %v3701, %v3809
    %3811 = vst [vmem:[%s3772 + $0x60] sm:$0xf] %v3810
    %v3812 = vld [vmem:[%s3772 + $0x64] sm:$0x1]
    %v3813 = vsel %vm276, %v3703, %v3812
    %3814 = vst [vmem:[%s3772 + $0x64] sm:$0x1] %v3813
    %v3815 = vld [vmem:[%s3772 + $0x70] sm:$0xf]
    %v3816 = vsel %vm270, %v3705, %v3815
    %3817 = vst [vmem:[%s3772 + $0x70] sm:$0xf] %v3816
    %v3818 = vld [vmem:[%s3772 + $0x74] sm:$0x1]
    %v3819 = vsel %vm276, %v3707, %v3818
    %3820 = vst [vmem:[%s3772 + $0x74] sm:$0x1] %v3819
    %v3821 = vld [vmem:[%s3772 + $0x120] sm:$0xf]
    %v3822 = vsel %vm270, %v3709, %v3821
    %3823 = vst [vmem:[%s3772 + $0x120] sm:$0xf] %v3822
    %v3824 = vld [vmem:[%s3772 + $0x124] sm:$0x1]
    %v3825 = vsel %vm276, %v3711, %v3824
    %3826 = vst [vmem:[%s3772 + $0x124] sm:$0x1] %v3825
    %v3827 = vld [vmem:[%s3772 + $0x130] sm:$0xf]
    %v3828 = vsel %vm270, %v3713, %v3827
    %3829 = vst [vmem:[%s3772 + $0x130] sm:$0xf] %v3828
    %v3830 = vld [vmem:[%s3772 + $0x134] sm:$0x1]
    %v3831 = vsel %vm276, %v3715, %v3830
    %3832 = vst [vmem:[%s3772 + $0x134] sm:$0x1] %v3831
    %v3833 = vld [vmem:[%s3772 + $0x140] sm:$0xf]
    %v3834 = vsel %vm270, %v3717, %v3833
    %3835 = vst [vmem:[%s3772 + $0x140] sm:$0xf] %v3834
    %v3836 = vld [vmem:[%s3772 + $0x144] sm:$0x1]
    %v3837 = vsel %vm276, %v3719, %v3836
    %3838 = vst [vmem:[%s3772 + $0x144] sm:$0x1] %v3837
    %v3839 = vld [vmem:[%s3772 + $0x150] sm:$0xf]
    %v3840 = vsel %vm270, %v3721, %v3839
    %3841 = vst [vmem:[%s3772 + $0x150] sm:$0xf] %v3840
    %v3842 = vld [vmem:[%s3772 + $0x154] sm:$0x1]
    %v3843 = vsel %vm276, %v3723, %v3842
    %3844 = vst [vmem:[%s3772 + $0x154] sm:$0x1] %v3843
    %v3845 = vld [vmem:[%s3772 + $0x160] sm:$0xf]
    %v3846 = vsel %vm270, %v3725, %v3845
    %3847 = vst [vmem:[%s3772 + $0x160] sm:$0xf] %v3846
    %v3848 = vld [vmem:[%s3772 + $0x164] sm:$0x1]
    %v3849 = vsel %vm276, %v3727, %v3848
    %3850 = vst [vmem:[%s3772 + $0x164] sm:$0x1] %v3849
    %v3851 = vld [vmem:[%s3772 + $0x170] sm:$0xf]
    %v3852 = vsel %vm270, %v3729, %v3851
    %3853 = vst [vmem:[%s3772 + $0x170] sm:$0xf] %v3852
    %v3854 = vld [vmem:[%s3772 + $0x174] sm:$0x1]
    %v3855 = vsel %vm276, %v3731, %v3854
    %3856 = vst [vmem:[%s3772 + $0x174] sm:$0x1] %v3855
    %v3857 = vld [vmem:[%s3772 + $0x180] sm:$0xf]
    %v3858 = vsel %vm270, %v3733, %v3857
    %3859 = vst [vmem:[%s3772 + $0x180] sm:$0xf] %v3858
    %v3860 = vld [vmem:[%s3772 + $0x184] sm:$0x1]
    %v3861 = vsel %vm276, %v3735, %v3860
    %3862 = vst [vmem:[%s3772 + $0x184] sm:$0x1] %v3861
    %v3863 = vld [vmem:[%s3772 + $0x190] sm:$0xf]
    %v3864 = vsel %vm270, %v3737, %v3863
    %3865 = vst [vmem:[%s3772 + $0x190] sm:$0xf] %v3864
    %v3866 = vld [vmem:[%s3772 + $0x194] sm:$0x1]
    %v3867 = vsel %vm276, %v3739, %v3866
    %3868 = vst [vmem:[%s3772 + $0x194] sm:$0x1] %v3867
    %v3869 = vld [vmem:[#allocation3] sm:$0xf]
    %v3870 = vld [vmem:[#allocation3 + $0x10] sm:$0xf]
    %v3871 = vld [vmem:[#allocation3 + $0x20] sm:$0xf]
    %v3872 = vld [vmem:[#allocation3 + $0x30] sm:$0xf]
    %v3873 = vld [vmem:[#allocation3 + $0x40] sm:$0xf]
    %v3874 = vld [vmem:[#allocation3 + $0x50] sm:$0xf]
    %v3875 = vld [vmem:[#allocation3 + $0x60] sm:$0xf]
    %v3876 = vld [vmem:[#allocation3 + $0x70] sm:$0xf]
    %v3877 = vld [vmem:[#allocation3 + $0x120] sm:$0xf]
    %v3878 = vld [vmem:[#allocation3 + $0x130] sm:$0xf]
    %v3879 = vld [vmem:[#allocation3 + $0x140] sm:$0xf]
    %v3880 = vld [vmem:[#allocation3 + $0x150] sm:$0xf]
    %v3881 = vld [vmem:[#allocation3 + $0x160] sm:$0xf]
    %v3882 = vld [vmem:[#allocation3 + $0x170] sm:$0xf]
    %v3883 = vld [vmem:[#allocation3 + $0x180] sm:$0xf]
    %v3884 = vld [vmem:[#allocation3 + $0x190] sm:$0xf]
    %3885 = vst.msk [vmem:[#allocation4] sm:$0xf] %vm49, %v3869
    %3886 = vst.msk [vmem:[#allocation4 + $0x14] sm:$0xf] %vm49, %v3870
    %3887 = vst.msk [vmem:[#allocation4 + $0x28] sm:$0xf] %vm49, %v3871
    %3888 = vst.msk [vmem:[#allocation4 + $0x3c] sm:$0xf] %vm49, %v3872
    %3889 = vst.msk [vmem:[#allocation4 + $0x50] sm:$0xf] %vm49, %v3873
    %3890 = vst.msk [vmem:[#allocation4 + $0x64] sm:$0xf] %vm49, %v3874
    %3891 = vst.msk [vmem:[#allocation4 + $0x78] sm:$0xf] %vm49, %v3875
    %3892 = vst.msk [vmem:[#allocation4 + $0x8c] sm:$0xf] %vm49, %v3876
    %3893 = vst.msk [vmem:[#allocation4 + $0xa0] sm:$0xf] %vm49, %v3877
    %3894 = vst.msk [vmem:[#allocation4 + $0xb4] sm:$0xf] %vm49, %v3878
    %3895 = vst.msk [vmem:[#allocation4 + $0xc8] sm:$0xf] %vm49, %v3879
    %3896 = vst.msk [vmem:[#allocation4 + $0xdc] sm:$0xf] %vm49, %v3880
    %3897 = vst.msk [vmem:[#allocation4 + $0xf0] sm:$0xf] %vm49, %v3881
    %3898 = vst.msk [vmem:[#allocation4 + $0x104] sm:$0xf] %vm49, %v3882
    %3899 = vst.msk [vmem:[#allocation4 + $0x118] sm:$0xf] %vm49, %v3883
    %3900 = vst.msk [vmem:[#allocation4 + $0x12c] sm:$0xf] %vm49, %v3884
    %s3901 = scalar_lea.vmem [#allocation3], 8
    %v3902 = vld [vmem:[%s3901] sm:$0xf]
    %v3903 = vld [vmem:[%s3901 + $0x10] sm:$0xf]
    %v3904 = vld [vmem:[%s3901 + $0x20] sm:$0xf]
    %v3905 = vld [vmem:[%s3901 + $0x30] sm:$0xf]
    %v3906 = vld [vmem:[%s3901 + $0x40] sm:$0xf]
    %v3907 = vld [vmem:[%s3901 + $0x50] sm:$0xf]
    %v3908 = vld [vmem:[%s3901 + $0x60] sm:$0xf]
    %v3909 = vld [vmem:[%s3901 + $0x70] sm:$0xf]
    %v3910 = vld [vmem:[%s3901 + $0x120] sm:$0xf]
    %v3911 = vld [vmem:[%s3901 + $0x130] sm:$0xf]
    %v3912 = vld [vmem:[%s3901 + $0x140] sm:$0xf]
    %v3913 = vld [vmem:[%s3901 + $0x150] sm:$0xf]
    %v3914 = vld [vmem:[%s3901 + $0x160] sm:$0xf]
    %v3915 = vld [vmem:[%s3901 + $0x170] sm:$0xf]
    %v3916 = vld [vmem:[%s3901 + $0x180] sm:$0xf]
    %v3917 = vld [vmem:[%s3901 + $0x190] sm:$0xf]
    %3934 = vrot.lane.b32.xlu0 %v3902, 64
    %v3935 = vpop.permute.xlu0 %3934
    %3936 = vrot.lane.b32.xlu0 %v3903, 64
    %v3937 = vpop.permute.xlu0 %3936
    %3938 = vrot.lane.b32.xlu0 %v3904, 64
    %v3939 = vpop.permute.xlu0 %3938
    %3940 = vrot.lane.b32.xlu0 %v3905, 64
    %v3941 = vpop.permute.xlu0 %3940
    %3942 = vrot.lane.b32.xlu0 %v3906, 64
    %v3943 = vpop.permute.xlu0 %3942
    %3944 = vrot.lane.b32.xlu0 %v3907, 64
    %v3945 = vpop.permute.xlu0 %3944
    %3946 = vrot.lane.b32.xlu0 %v3908, 64
    %v3947 = vpop.permute.xlu0 %3946
    %3948 = vrot.lane.b32.xlu0 %v3909, 64
    %v3949 = vpop.permute.xlu0 %3948
    %3950 = vrot.lane.b32.xlu0 %v3910, 64
    %v3951 = vpop.permute.xlu0 %3950
    %3952 = vrot.lane.b32.xlu0 %v3911, 64
    %v3953 = vpop.permute.xlu0 %3952
    %3954 = vrot.lane.b32.xlu0 %v3912, 64
    %v3955 = vpop.permute.xlu0 %3954
    %3956 = vrot.lane.b32.xlu0 %v3913, 64
    %v3957 = vpop.permute.xlu0 %3956
    %3958 = vrot.lane.b32.xlu0 %v3914, 64
    %v3959 = vpop.permute.xlu0 %3958
    %3960 = vrot.lane.b32.xlu0 %v3915, 64
    %v3961 = vpop.permute.xlu0 %3960
    %3962 = vrot.lane.b32.xlu0 %v3916, 64
    %v3963 = vpop.permute.xlu0 %3962
    %3964 = vrot.lane.b32.xlu0 %v3917, 64
    %v3965 = vpop.permute.xlu0 %3964
    %vm3982 = vcmask 1043968
    %3983 = vst.msk [vmem:[#allocation4] sm:$0xf] %vm3982, %v3935
    %3984 = vst.msk [vmem:[#allocation4 + $0x14] sm:$0xf] %vm3982, %v3937
    %3985 = vst.msk [vmem:[#allocation4 + $0x28] sm:$0xf] %vm3982, %v3939
    %3986 = vst.msk [vmem:[#allocation4 + $0x3c] sm:$0xf] %vm3982, %v3941
    %3987 = vst.msk [vmem:[#allocation4 + $0x50] sm:$0xf] %vm3982, %v3943
    %3988 = vst.msk [vmem:[#allocation4 + $0x64] sm:$0xf] %vm3982, %v3945
    %3989 = vst.msk [vmem:[#allocation4 + $0x78] sm:$0xf] %vm3982, %v3947
    %3990 = vst.msk [vmem:[#allocation4 + $0x8c] sm:$0xf] %vm3982, %v3949
    %3991 = vst.msk [vmem:[#allocation4 + $0xa0] sm:$0xf] %vm3982, %v3951
    %3992 = vst.msk [vmem:[#allocation4 + $0xb4] sm:$0xf] %vm3982, %v3953
    %3993 = vst.msk [vmem:[#allocation4 + $0xc8] sm:$0xf] %vm3982, %v3955
    %3994 = vst.msk [vmem:[#allocation4 + $0xdc] sm:$0xf] %vm3982, %v3957
    %3995 = vst.msk [vmem:[#allocation4 + $0xf0] sm:$0xf] %vm3982, %v3959
    %3996 = vst.msk [vmem:[#allocation4 + $0x104] sm:$0xf] %vm3982, %v3961
    %3997 = vst.msk [vmem:[#allocation4 + $0x118] sm:$0xf] %vm3982, %v3963
    %3998 = vst.msk [vmem:[#allocation4 + $0x12c] sm:$0xf] %vm3982, %v3965
    %v3999 = vld [vmem:[#allocation3] sm:$0xf]
    %v4000 = vld [vmem:[#allocation3 + $0x4] sm:$0x1]
    %v4001 = vld [vmem:[#allocation3 + $0x10] sm:$0xf]
    %v4002 = vld [vmem:[#allocation3 + $0x14] sm:$0x1]
    %v4003 = vld [vmem:[#allocation3 + $0x20] sm:$0xf]
    %v4004 = vld [vmem:[#allocation3 + $0x24] sm:$0x1]
    %v4005 = vld [vmem:[#allocation3 + $0x30] sm:$0xf]
    %v4006 = vld [vmem:[#allocation3 + $0x34] sm:$0x1]
    %v4007 = vld [vmem:[#allocation3 + $0x40] sm:$0xf]
    %v4008 = vld [vmem:[#allocation3 + $0x44] sm:$0x1]
    %v4009 = vld [vmem:[#allocation3 + $0x50] sm:$0xf]
    %v4010 = vld [vmem:[#allocation3 + $0x54] sm:$0x1]
    %v4011 = vld [vmem:[#allocation3 + $0x60] sm:$0xf]
    %v4012 = vld [vmem:[#allocation3 + $0x64] sm:$0x1]
    %v4013 = vld [vmem:[#allocation3 + $0x70] sm:$0xf]
    %v4014 = vld [vmem:[#allocation3 + $0x74] sm:$0x1]
    %v4015 = vld [vmem:[#allocation3 + $0x120] sm:$0xf]
    %v4016 = vld [vmem:[#allocation3 + $0x124] sm:$0x1]
    %v4017 = vld [vmem:[#allocation3 + $0x130] sm:$0xf]
    %v4018 = vld [vmem:[#allocation3 + $0x134] sm:$0x1]
    %v4019 = vld [vmem:[#allocation3 + $0x140] sm:$0xf]
    %v4020 = vld [vmem:[#allocation3 + $0x144] sm:$0x1]
    %v4021 = vld [vmem:[#allocation3 + $0x150] sm:$0xf]
    %v4022 = vld [vmem:[#allocation3 + $0x154] sm:$0x1]
    %v4023 = vld [vmem:[#allocation3 + $0x160] sm:$0xf]
    %v4024 = vld [vmem:[#allocation3 + $0x164] sm:$0x1]
    %v4025 = vld [vmem:[#allocation3 + $0x170] sm:$0xf]
    %v4026 = vld [vmem:[#allocation3 + $0x174] sm:$0x1]
    %v4027 = vld [vmem:[#allocation3 + $0x180] sm:$0xf]
    %v4028 = vld [vmem:[#allocation3 + $0x184] sm:$0x1]
    %v4029 = vld [vmem:[#allocation3 + $0x190] sm:$0xf]
    %v4030 = vld [vmem:[#allocation3 + $0x194] sm:$0x1]
    %v4032 = vshrl.u32 %v3999, 16
    %v4034 = vrot.slane %v4032, 4
    %v4035 = vshll.u32 %v3999, 16
    %v4037 = vrot.slane %v4035, 5
    %v4038 = vor.u32 %v4034, %v4037
    %v4039 = vrot.slane %v4038, 4
    %v4041 = vshll.u32 %v4000, 16
    %v4043 = vrot.slane %v4041, 5
    %v4044 = vsel %vm404, %v4039, %v4043
    %v4046 = vshrl.u32 %v4001, 16
    %v4048 = vrot.slane %v4046, 4
    %v4049 = vshll.u32 %v4001, 16
    %v4051 = vrot.slane %v4049, 5
    %v4052 = vor.u32 %v4048, %v4051
    %v4053 = vrot.slane %v4052, 4
    %v4055 = vshll.u32 %v4002, 16
    %v4057 = vrot.slane %v4055, 5
    %v4058 = vsel %vm404, %v4053, %v4057
    %v4060 = vshrl.u32 %v4003, 16
    %v4062 = vrot.slane %v4060, 4
    %v4063 = vshll.u32 %v4003, 16
    %v4065 = vrot.slane %v4063, 5
    %v4066 = vor.u32 %v4062, %v4065
    %v4067 = vrot.slane %v4066, 4
    %v4069 = vshll.u32 %v4004, 16
    %v4071 = vrot.slane %v4069, 5
    %v4072 = vsel %vm404, %v4067, %v4071
    %v4074 = vshrl.u32 %v4005, 16
    %v4076 = vrot.slane %v4074, 4
    %v4077 = vshll.u32 %v4005, 16
    %v4079 = vrot.slane %v4077, 5
    %v4080 = vor.u32 %v4076, %v4079
    %v4081 = vrot.slane %v4080, 4
    %v4083 = vshll.u32 %v4006, 16
    %v4085 = vrot.slane %v4083, 5
    %v4086 = vsel %vm404, %v4081, %v4085
    %v4088 = vshrl.u32 %v4007, 16
    %v4090 = vrot.slane %v4088, 4
    %v4091 = vshll.u32 %v4007, 16
    %v4093 = vrot.slane %v4091, 5
    %v4094 = vor.u32 %v4090, %v4093
    %v4095 = vrot.slane %v4094, 4
    %v4097 = vshll.u32 %v4008, 16
    %v4099 = vrot.slane %v4097, 5
    %v4100 = vsel %vm404, %v4095, %v4099
    %v4102 = vshrl.u32 %v4009, 16
    %v4104 = vrot.slane %v4102, 4
    %v4105 = vshll.u32 %v4009, 16
    %v4107 = vrot.slane %v4105, 5
    %v4108 = vor.u32 %v4104, %v4107
    %v4109 = vrot.slane %v4108, 4
    %v4111 = vshll.u32 %v4010, 16
    %v4113 = vrot.slane %v4111, 5
    %v4114 = vsel %vm404, %v4109, %v4113
    %v4116 = vshrl.u32 %v4011, 16
    %v4118 = vrot.slane %v4116, 4
    %v4119 = vshll.u32 %v4011, 16
    %v4121 = vrot.slane %v4119, 5
    %v4122 = vor.u32 %v4118, %v4121
    %v4123 = vrot.slane %v4122, 4
    %v4125 = vshll.u32 %v4012, 16
    %v4127 = vrot.slane %v4125, 5
    %v4128 = vsel %vm404, %v4123, %v4127
    %v4130 = vshrl.u32 %v4013, 16
    %v4132 = vrot.slane %v4130, 4
    %v4133 = vshll.u32 %v4013, 16
    %v4135 = vrot.slane %v4133, 5
    %v4136 = vor.u32 %v4132, %v4135
    %v4137 = vrot.slane %v4136, 4
    %v4139 = vshll.u32 %v4014, 16
    %v4141 = vrot.slane %v4139, 5
    %v4142 = vsel %vm404, %v4137, %v4141
    %v4144 = vshrl.u32 %v4015, 16
    %v4146 = vrot.slane %v4144, 4
    %v4147 = vshll.u32 %v4015, 16
    %v4149 = vrot.slane %v4147, 5
    %v4150 = vor.u32 %v4146, %v4149
    %v4151 = vrot.slane %v4150, 4
    %v4153 = vshll.u32 %v4016, 16
    %v4155 = vrot.slane %v4153, 5
    %v4156 = vsel %vm404, %v4151, %v4155
    %v4158 = vshrl.u32 %v4017, 16
    %v4160 = vrot.slane %v4158, 4
    %v4161 = vshll.u32 %v4017, 16
    %v4163 = vrot.slane %v4161, 5
    %v4164 = vor.u32 %v4160, %v4163
    %v4165 = vrot.slane %v4164, 4
    %v4167 = vshll.u32 %v4018, 16
    %v4169 = vrot.slane %v4167, 5
    %v4170 = vsel %vm404, %v4165, %v4169
    %v4172 = vshrl.u32 %v4019, 16
    %v4174 = vrot.slane %v4172, 4
    %v4175 = vshll.u32 %v4019, 16
    %v4177 = vrot.slane %v4175, 5
    %v4178 = vor.u32 %v4174, %v4177
    %v4179 = vrot.slane %v4178, 4
    %v4181 = vshll.u32 %v4020, 16
    %v4183 = vrot.slane %v4181, 5
    %v4184 = vsel %vm404, %v4179, %v4183
    %v4186 = vshrl.u32 %v4021, 16
    %v4188 = vrot.slane %v4186, 4
    %v4189 = vshll.u32 %v4021, 16
    %v4191 = vrot.slane %v4189, 5
    %v4192 = vor.u32 %v4188, %v4191
    %v4193 = vrot.slane %v4192, 4
    %v4195 = vshll.u32 %v4022, 16
    %v4197 = vrot.slane %v4195, 5
    %v4198 = vsel %vm404, %v4193, %v4197
    %v4200 = vshrl.u32 %v4023, 16
    %v4202 = vrot.slane %v4200, 4
    %v4203 = vshll.u32 %v4023, 16
    %v4205 = vrot.slane %v4203, 5
    %v4206 = vor.u32 %v4202, %v4205
    %v4207 = vrot.slane %v4206, 4
    %v4209 = vshll.u32 %v4024, 16
    %v4211 = vrot.slane %v4209, 5
    %v4212 = vsel %vm404, %v4207, %v4211
    %v4214 = vshrl.u32 %v4025, 16
    %v4216 = vrot.slane %v4214, 4
    %v4217 = vshll.u32 %v4025, 16
    %v4219 = vrot.slane %v4217, 5
    %v4220 = vor.u32 %v4216, %v4219
    %v4221 = vrot.slane %v4220, 4
    %v4223 = vshll.u32 %v4026, 16
    %v4225 = vrot.slane %v4223, 5
    %v4226 = vsel %vm404, %v4221, %v4225
    %v4228 = vshrl.u32 %v4027, 16
    %v4230 = vrot.slane %v4228, 4
    %v4231 = vshll.u32 %v4027, 16
    %v4233 = vrot.slane %v4231, 5
    %v4234 = vor.u32 %v4230, %v4233
    %v4235 = vrot.slane %v4234, 4
    %v4237 = vshll.u32 %v4028, 16
    %v4239 = vrot.slane %v4237, 5
    %v4240 = vsel %vm404, %v4235, %v4239
    %v4242 = vshrl.u32 %v4029, 16
    %v4244 = vrot.slane %v4242, 4
    %v4245 = vshll.u32 %v4029, 16
    %v4247 = vrot.slane %v4245, 5
    %v4248 = vor.u32 %v4244, %v4247
    %v4249 = vrot.slane %v4248, 4
    %v4251 = vshll.u32 %v4030, 16
    %v4253 = vrot.slane %v4251, 5
    %v4254 = vsel %vm404, %v4249, %v4253
    %4271 = vst.msk [vmem:[#allocation4 + $0x4] sm:$0xf] %vm49, %v4044
    %4272 = vst.msk [vmem:[#allocation4 + $0x18] sm:$0xf] %vm49, %v4058
    %4273 = vst.msk [vmem:[#allocation4 + $0x2c] sm:$0xf] %vm49, %v4072
    %4274 = vst.msk [vmem:[#allocation4 + $0x40] sm:$0xf] %vm49, %v4086
    %4275 = vst.msk [vmem:[#allocation4 + $0x54] sm:$0xf] %vm49, %v4100
    %4276 = vst.msk [vmem:[#allocation4 + $0x68] sm:$0xf] %vm49, %v4114
    %4277 = vst.msk [vmem:[#allocation4 + $0x7c] sm:$0xf] %vm49, %v4128
    %4278 = vst.msk [vmem:[#allocation4 + $0x90] sm:$0xf] %vm49, %v4142
    %4279 = vst.msk [vmem:[#allocation4 + $0xa4] sm:$0xf] %vm49, %v4156
    %4280 = vst.msk [vmem:[#allocation4 + $0xb8] sm:$0xf] %vm49, %v4170
    %4281 = vst.msk [vmem:[#allocation4 + $0xcc] sm:$0xf] %vm49, %v4184
    %4282 = vst.msk [vmem:[#allocation4 + $0xe0] sm:$0xf] %vm49, %v4198
    %4283 = vst.msk [vmem:[#allocation4 + $0xf4] sm:$0xf] %vm49, %v4212
    %4284 = vst.msk [vmem:[#allocation4 + $0x108] sm:$0xf] %vm49, %v4226
    %4285 = vst.msk [vmem:[#allocation4 + $0x11c] sm:$0xf] %vm49, %v4240
    %4286 = vst.msk [vmem:[#allocation4 + $0x130] sm:$0xf] %vm49, %v4254
    %v4287 = vld [vmem:[%s3378] sm:$0xf]
    %v4288 = vld [vmem:[%s3378 + $0x10] sm:$0xf]
    %v4289 = vld [vmem:[%s3378 + $0x20] sm:$0xf]
    %v4290 = vld [vmem:[%s3378 + $0x30] sm:$0xf]
    %v4291 = vld [vmem:[%s3378 + $0x40] sm:$0xf]
    %v4292 = vld [vmem:[%s3378 + $0x50] sm:$0xf]
    %v4293 = vld [vmem:[%s3378 + $0x60] sm:$0xf]
    %v4294 = vld [vmem:[%s3378 + $0x70] sm:$0xf]
    %v4295 = vld [vmem:[%s3378 + $0x120] sm:$0xf]
    %v4296 = vld [vmem:[%s3378 + $0x130] sm:$0xf]
    %v4297 = vld [vmem:[%s3378 + $0x140] sm:$0xf]
    %v4298 = vld [vmem:[%s3378 + $0x150] sm:$0xf]
    %v4299 = vld [vmem:[%s3378 + $0x160] sm:$0xf]
    %v4300 = vld [vmem:[%s3378 + $0x170] sm:$0xf]
    %v4301 = vld [vmem:[%s3378 + $0x180] sm:$0xf]
    %v4302 = vld [vmem:[%s3378 + $0x190] sm:$0xf]
    %4319 = vrot.lane.b32.xlu0 %v4287, 64
    %v4320 = vpop.permute.xlu0 %4319
    %4321 = vrot.lane.b32.xlu0 %v4288, 64
    %v4322 = vpop.permute.xlu0 %4321
    %4323 = vrot.lane.b32.xlu0 %v4289, 64
    %v4324 = vpop.permute.xlu0 %4323
    %4325 = vrot.lane.b32.xlu0 %v4290, 64
    %v4326 = vpop.permute.xlu0 %4325
    %4327 = vrot.lane.b32.xlu0 %v4291, 64
    %v4328 = vpop.permute.xlu0 %4327
    %4329 = vrot.lane.b32.xlu0 %v4292, 64
    %v4330 = vpop.permute.xlu0 %4329
    %4331 = vrot.lane.b32.xlu0 %v4293, 64
    %v4332 = vpop.permute.xlu0 %4331
    %4333 = vrot.lane.b32.xlu0 %v4294, 64
    %v4334 = vpop.permute.xlu0 %4333
    %4335 = vrot.lane.b32.xlu0 %v4295, 64
    %v4336 = vpop.permute.xlu0 %4335
    %4337 = vrot.lane.b32.xlu0 %v4296, 64
    %v4338 = vpop.permute.xlu0 %4337
    %4339 = vrot.lane.b32.xlu0 %v4297, 64
    %v4340 = vpop.permute.xlu0 %4339
    %4341 = vrot.lane.b32.xlu0 %v4298, 64
    %v4342 = vpop.permute.xlu0 %4341
    %4343 = vrot.lane.b32.xlu0 %v4299, 64
    %v4344 = vpop.permute.xlu0 %4343
    %4345 = vrot.lane.b32.xlu0 %v4300, 64
    %v4346 = vpop.permute.xlu0 %4345
    %4347 = vrot.lane.b32.xlu0 %v4301, 64
    %v4348 = vpop.permute.xlu0 %4347
    %4349 = vrot.lane.b32.xlu0 %v4302, 64
    %v4350 = vpop.permute.xlu0 %4349
    %4367 = vst.msk [vmem:[#allocation4 + $0x4] sm:$0xf] %vm3982, %v4320
    %4368 = vst.msk [vmem:[#allocation4 + $0x18] sm:$0xf] %vm3982, %v4322
    %4369 = vst.msk [vmem:[#allocation4 + $0x2c] sm:$0xf] %vm3982, %v4324
    %4370 = vst.msk [vmem:[#allocation4 + $0x40] sm:$0xf] %vm3982, %v4326
    %4371 = vst.msk [vmem:[#allocation4 + $0x54] sm:$0xf] %vm3982, %v4328
    %4372 = vst.msk [vmem:[#allocation4 + $0x68] sm:$0xf] %vm3982, %v4330
    %4373 = vst.msk [vmem:[#allocation4 + $0x7c] sm:$0xf] %vm3982, %v4332
    %4374 = vst.msk [vmem:[#allocation4 + $0x90] sm:$0xf] %vm3982, %v4334
    %4375 = vst.msk [vmem:[#allocation4 + $0xa4] sm:$0xf] %vm3982, %v4336
    %4376 = vst.msk [vmem:[#allocation4 + $0xb8] sm:$0xf] %vm3982, %v4338
    %4377 = vst.msk [vmem:[#allocation4 + $0xcc] sm:$0xf] %vm3982, %v4340
    %4378 = vst.msk [vmem:[#allocation4 + $0xe0] sm:$0xf] %vm3982, %v4342
    %4379 = vst.msk [vmem:[#allocation4 + $0xf4] sm:$0xf] %vm3982, %v4344
    %4380 = vst.msk [vmem:[#allocation4 + $0x108] sm:$0xf] %vm3982, %v4346
    %4381 = vst.msk [vmem:[#allocation4 + $0x11c] sm:$0xf] %vm3982, %v4348
    %4382 = vst.msk [vmem:[#allocation4 + $0x130] sm:$0xf] %vm3982, %v4350
    %v4383 = vld [vmem:[%s3137] sm:$0xf]
    %v4384 = vld [vmem:[%s3137 + $0x10] sm:$0xf]
    %v4385 = vld [vmem:[%s3137 + $0x20] sm:$0xf]
    %v4386 = vld [vmem:[%s3137 + $0x30] sm:$0xf]
    %v4387 = vld [vmem:[%s3137 + $0x40] sm:$0xf]
    %v4388 = vld [vmem:[%s3137 + $0x50] sm:$0xf]
    %v4389 = vld [vmem:[%s3137 + $0x60] sm:$0xf]
    %v4390 = vld [vmem:[%s3137 + $0x70] sm:$0xf]
    %v4391 = vld [vmem:[%s3137 + $0x120] sm:$0xf]
    %v4392 = vld [vmem:[%s3137 + $0x130] sm:$0xf]
    %v4393 = vld [vmem:[%s3137 + $0x140] sm:$0xf]
    %v4394 = vld [vmem:[%s3137 + $0x150] sm:$0xf]
    %v4395 = vld [vmem:[%s3137 + $0x160] sm:$0xf]
    %v4396 = vld [vmem:[%s3137 + $0x170] sm:$0xf]
    %v4397 = vld [vmem:[%s3137 + $0x180] sm:$0xf]
    %v4398 = vld [vmem:[%s3137 + $0x190] sm:$0xf]
    %4399 = vst.msk [vmem:[#allocation4 + $0x8] sm:$0xf] %vm49, %v4383
    %4400 = vst.msk [vmem:[#allocation4 + $0x1c] sm:$0xf] %vm49, %v4384
    %4401 = vst.msk [vmem:[#allocation4 + $0x30] sm:$0xf] %vm49, %v4385
    %4402 = vst.msk [vmem:[#allocation4 + $0x44] sm:$0xf] %vm49, %v4386
    %4403 = vst.msk [vmem:[#allocation4 + $0x58] sm:$0xf] %vm49, %v4387
    %4404 = vst.msk [vmem:[#allocation4 + $0x6c] sm:$0xf] %vm49, %v4388
    %4405 = vst.msk [vmem:[#allocation4 + $0x80] sm:$0xf] %vm49, %v4389
    %4406 = vst.msk [vmem:[#allocation4 + $0x94] sm:$0xf] %vm49, %v4390
    %4407 = vst.msk [vmem:[#allocation4 + $0xa8] sm:$0xf] %vm49, %v4391
    %4408 = vst.msk [vmem:[#allocation4 + $0xbc] sm:$0xf] %vm49, %v4392
    %4409 = vst.msk [vmem:[#allocation4 + $0xd0] sm:$0xf] %vm49, %v4393
    %4410 = vst.msk [vmem:[#allocation4 + $0xe4] sm:$0xf] %vm49, %v4394
    %4411 = vst.msk [vmem:[#allocation4 + $0xf8] sm:$0xf] %vm49, %v4395
    %4412 = vst.msk [vmem:[#allocation4 + $0x10c] sm:$0xf] %vm49, %v4396
    %4413 = vst.msk [vmem:[#allocation4 + $0x120] sm:$0xf] %vm49, %v4397
    %4414 = vst.msk [vmem:[#allocation4 + $0x134] sm:$0xf] %vm49, %v4398
    %v4415 = vld [vmem:[%s3378] sm:$0xf]
    %v4416 = vld [vmem:[%s3378 + $0x4] sm:$0x1]
    %v4417 = vld [vmem:[%s3378 + $0x10] sm:$0xf]
    %v4418 = vld [vmem:[%s3378 + $0x14] sm:$0x1]
    %v4419 = vld [vmem:[%s3378 + $0x20] sm:$0xf]
    %v4420 = vld [vmem:[%s3378 + $0x24] sm:$0x1]
    %v4421 = vld [vmem:[%s3378 + $0x30] sm:$0xf]
    %v4422 = vld [vmem:[%s3378 + $0x34] sm:$0x1]
    %v4423 = vld [vmem:[%s3378 + $0x40] sm:$0xf]
    %v4424 = vld [vmem:[%s3378 + $0x44] sm:$0x1]
    %v4425 = vld [vmem:[%s3378 + $0x50] sm:$0xf]
    %v4426 = vld [vmem:[%s3378 + $0x54] sm:$0x1]
    %v4427 = vld [vmem:[%s3378 + $0x60] sm:$0xf]
    %v4428 = vld [vmem:[%s3378 + $0x64] sm:$0x1]
    %v4429 = vld [vmem:[%s3378 + $0x70] sm:$0xf]
    %v4430 = vld [vmem:[%s3378 + $0x74] sm:$0x1]
    %v4431 = vld [vmem:[%s3378 + $0x120] sm:$0xf]
    %v4432 = vld [vmem:[%s3378 + $0x124] sm:$0x1]
    %v4433 = vld [vmem:[%s3378 + $0x130] sm:$0xf]
    %v4434 = vld [vmem:[%s3378 + $0x134] sm:$0x1]
    %v4435 = vld [vmem:[%s3378 + $0x140] sm:$0xf]
    %v4436 = vld [vmem:[%s3378 + $0x144] sm:$0x1]
    %v4437 = vld [vmem:[%s3378 + $0x150] sm:$0xf]
    %v4438 = vld [vmem:[%s3378 + $0x154] sm:$0x1]
    %v4439 = vld [vmem:[%s3378 + $0x160] sm:$0xf]
    %v4440 = vld [vmem:[%s3378 + $0x164] sm:$0x1]
    %v4441 = vld [vmem:[%s3378 + $0x170] sm:$0xf]
    %v4442 = vld [vmem:[%s3378 + $0x174] sm:$0x1]
    %v4443 = vld [vmem:[%s3378 + $0x180] sm:$0xf]
    %v4444 = vld [vmem:[%s3378 + $0x184] sm:$0x1]
    %v4445 = vld [vmem:[%s3378 + $0x190] sm:$0xf]
    %v4446 = vld [vmem:[%s3378 + $0x194] sm:$0x1]
    %v4448 = vshrl.u32 %v4415, 16
    %v4450 = vrot.slane %v4448, 4
    %v4451 = vshll.u32 %v4415, 16
    %v4453 = vrot.slane %v4451, 5
    %v4454 = vor.u32 %v4450, %v4453
    %v4455 = vrot.slane %v4454, 4
    %v4457 = vshll.u32 %v4416, 16
    %v4459 = vrot.slane %v4457, 5
    %v4460 = vsel %vm404, %v4455, %v4459
    %v4462 = vshrl.u32 %v4417, 16
    %v4464 = vrot.slane %v4462, 4
    %v4465 = vshll.u32 %v4417, 16
    %v4467 = vrot.slane %v4465, 5
    %v4468 = vor.u32 %v4464, %v4467
    %v4469 = vrot.slane %v4468, 4
    %v4471 = vshll.u32 %v4418, 16
    %v4473 = vrot.slane %v4471, 5
    %v4474 = vsel %vm404, %v4469, %v4473
    %v4476 = vshrl.u32 %v4419, 16
    %v4478 = vrot.slane %v4476, 4
    %v4479 = vshll.u32 %v4419, 16
    %v4481 = vrot.slane %v4479, 5
    %v4482 = vor.u32 %v4478, %v4481
    %v4483 = vrot.slane %v4482, 4
    %v4485 = vshll.u32 %v4420, 16
    %v4487 = vrot.slane %v4485, 5
    %v4488 = vsel %vm404, %v4483, %v4487
    %v4490 = vshrl.u32 %v4421, 16
    %v4492 = vrot.slane %v4490, 4
    %v4493 = vshll.u32 %v4421, 16
    %v4495 = vrot.slane %v4493, 5
    %v4496 = vor.u32 %v4492, %v4495
    %v4497 = vrot.slane %v4496, 4
    %v4499 = vshll.u32 %v4422, 16
    %v4501 = vrot.slane %v4499, 5
    %v4502 = vsel %vm404, %v4497, %v4501
    %v4504 = vshrl.u32 %v4423, 16
    %v4506 = vrot.slane %v4504, 4
    %v4507 = vshll.u32 %v4423, 16
    %v4509 = vrot.slane %v4507, 5
    %v4510 = vor.u32 %v4506, %v4509
    %v4511 = vrot.slane %v4510, 4
    %v4513 = vshll.u32 %v4424, 16
    %v4515 = vrot.slane %v4513, 5
    %v4516 = vsel %vm404, %v4511, %v4515
    %v4518 = vshrl.u32 %v4425, 16
    %v4520 = vrot.slane %v4518, 4
    %v4521 = vshll.u32 %v4425, 16
    %v4523 = vrot.slane %v4521, 5
    %v4524 = vor.u32 %v4520, %v4523
    %v4525 = vrot.slane %v4524, 4
    %v4527 = vshll.u32 %v4426, 16
    %v4529 = vrot.slane %v4527, 5
    %v4530 = vsel %vm404, %v4525, %v4529
    %v4532 = vshrl.u32 %v4427, 16
    %v4534 = vrot.slane %v4532, 4
    %v4535 = vshll.u32 %v4427, 16
    %v4537 = vrot.slane %v4535, 5
    %v4538 = vor.u32 %v4534, %v4537
    %v4539 = vrot.slane %v4538, 4
    %v4541 = vshll.u32 %v4428, 16
    %v4543 = vrot.slane %v4541, 5
    %v4544 = vsel %vm404, %v4539, %v4543
    %v4546 = vshrl.u32 %v4429, 16
    %v4548 = vrot.slane %v4546, 4
    %v4549 = vshll.u32 %v4429, 16
    %v4551 = vrot.slane %v4549, 5
    %v4552 = vor.u32 %v4548, %v4551
    %v4553 = vrot.slane %v4552, 4
    %v4555 = vshll.u32 %v4430, 16
    %v4557 = vrot.slane %v4555, 5
    %v4558 = vsel %vm404, %v4553, %v4557
    %v4560 = vshrl.u32 %v4431, 16
    %v4562 = vrot.slane %v4560, 4
    %v4563 = vshll.u32 %v4431, 16
    %v4565 = vrot.slane %v4563, 5
    %v4566 = vor.u32 %v4562, %v4565
    %v4567 = vrot.slane %v4566, 4
    %v4569 = vshll.u32 %v4432, 16
    %v4571 = vrot.slane %v4569, 5
    %v4572 = vsel %vm404, %v4567, %v4571
    %v4574 = vshrl.u32 %v4433, 16
    %v4576 = vrot.slane %v4574, 4
    %v4577 = vshll.u32 %v4433, 16
    %v4579 = vrot.slane %v4577, 5
    %v4580 = vor.u32 %v4576, %v4579
    %v4581 = vrot.slane %v4580, 4
    %v4583 = vshll.u32 %v4434, 16
    %v4585 = vrot.slane %v4583, 5
    %v4586 = vsel %vm404, %v4581, %v4585
    %v4588 = vshrl.u32 %v4435, 16
    %v4590 = vrot.slane %v4588, 4
    %v4591 = vshll.u32 %v4435, 16
    %v4593 = vrot.slane %v4591, 5
    %v4594 = vor.u32 %v4590, %v4593
    %v4595 = vrot.slane %v4594, 4
    %v4597 = vshll.u32 %v4436, 16
    %v4599 = vrot.slane %v4597, 5
    %v4600 = vsel %vm404, %v4595, %v4599
    %v4602 = vshrl.u32 %v4437, 16
    %v4604 = vrot.slane %v4602, 4
    %v4605 = vshll.u32 %v4437, 16
    %v4607 = vrot.slane %v4605, 5
    %v4608 = vor.u32 %v4604, %v4607
    %v4609 = vrot.slane %v4608, 4
    %v4611 = vshll.u32 %v4438, 16
    %v4613 = vrot.slane %v4611, 5
    %v4614 = vsel %vm404, %v4609, %v4613
    %v4616 = vshrl.u32 %v4439, 16
    %v4618 = vrot.slane %v4616, 4
    %v4619 = vshll.u32 %v4439, 16
    %v4621 = vrot.slane %v4619, 5
    %v4622 = vor.u32 %v4618, %v4621
    %v4623 = vrot.slane %v4622, 4
    %v4625 = vshll.u32 %v4440, 16
    %v4627 = vrot.slane %v4625, 5
    %v4628 = vsel %vm404, %v4623, %v4627
    %v4630 = vshrl.u32 %v4441, 16
    %v4632 = vrot.slane %v4630, 4
    %v4633 = vshll.u32 %v4441, 16
    %v4635 = vrot.slane %v4633, 5
    %v4636 = vor.u32 %v4632, %v4635
    %v4637 = vrot.slane %v4636, 4
    %v4639 = vshll.u32 %v4442, 16
    %v4641 = vrot.slane %v4639, 5
    %v4642 = vsel %vm404, %v4637, %v4641
    %v4644 = vshrl.u32 %v4443, 16
    %v4646 = vrot.slane %v4644, 4
    %v4647 = vshll.u32 %v4443, 16
    %v4649 = vrot.slane %v4647, 5
    %v4650 = vor.u32 %v4646, %v4649
    %v4651 = vrot.slane %v4650, 4
    %v4653 = vshll.u32 %v4444, 16
    %v4655 = vrot.slane %v4653, 5
    %v4656 = vsel %vm404, %v4651, %v4655
    %v4658 = vshrl.u32 %v4445, 16
    %v4660 = vrot.slane %v4658, 4
    %v4661 = vshll.u32 %v4445, 16
    %v4663 = vrot.slane %v4661, 5
    %v4664 = vor.u32 %v4660, %v4663
    %v4665 = vrot.slane %v4664, 4
    %v4667 = vshll.u32 %v4446, 16
    %v4669 = vrot.slane %v4667, 5
    %v4670 = vsel %vm404, %v4665, %v4669
    %4671 = vrot.lane.b32.xlu0 %v4460, 64
    %v4672 = vpop.permute.xlu0 %4671
    %4673 = vrot.lane.b32.xlu0 %v4474, 64
    %v4674 = vpop.permute.xlu0 %4673
    %4675 = vrot.lane.b32.xlu0 %v4488, 64
    %v4676 = vpop.permute.xlu0 %4675
    %4677 = vrot.lane.b32.xlu0 %v4502, 64
    %v4678 = vpop.permute.xlu0 %4677
    %4679 = vrot.lane.b32.xlu0 %v4516, 64
    %v4680 = vpop.permute.xlu0 %4679
    %4681 = vrot.lane.b32.xlu0 %v4530, 64
    %v4682 = vpop.permute.xlu0 %4681
    %4683 = vrot.lane.b32.xlu0 %v4544, 64
    %v4684 = vpop.permute.xlu0 %4683
    %4685 = vrot.lane.b32.xlu0 %v4558, 64
    %v4686 = vpop.permute.xlu0 %4685
    %4687 = vrot.lane.b32.xlu0 %v4572, 64
    %v4688 = vpop.permute.xlu0 %4687
    %4689 = vrot.lane.b32.xlu0 %v4586, 64
    %v4690 = vpop.permute.xlu0 %4689
    %4691 = vrot.lane.b32.xlu0 %v4600, 64
    %v4692 = vpop.permute.xlu0 %4691
    %4693 = vrot.lane.b32.xlu0 %v4614, 64
    %v4694 = vpop.permute.xlu0 %4693
    %4695 = vrot.lane.b32.xlu0 %v4628, 64
    %v4696 = vpop.permute.xlu0 %4695
    %4697 = vrot.lane.b32.xlu0 %v4642, 64
    %v4698 = vpop.permute.xlu0 %4697
    %4699 = vrot.lane.b32.xlu0 %v4656, 64
    %v4700 = vpop.permute.xlu0 %4699
    %4701 = vrot.lane.b32.xlu0 %v4670, 64
    %v4702 = vpop.permute.xlu0 %4701
    %4719 = vst.msk [vmem:[#allocation4 + $0x8] sm:$0xf] %vm3982, %v4672
    %4720 = vst.msk [vmem:[#allocation4 + $0x1c] sm:$0xf] %vm3982, %v4674
    %4721 = vst.msk [vmem:[#allocation4 + $0x30] sm:$0xf] %vm3982, %v4676
    %4722 = vst.msk [vmem:[#allocation4 + $0x44] sm:$0xf] %vm3982, %v4678
    %4723 = vst.msk [vmem:[#allocation4 + $0x58] sm:$0xf] %vm3982, %v4680
    %4724 = vst.msk [vmem:[#allocation4 + $0x6c] sm:$0xf] %vm3982, %v4682
    %4725 = vst.msk [vmem:[#allocation4 + $0x80] sm:$0xf] %vm3982, %v4684
    %4726 = vst.msk [vmem:[#allocation4 + $0x94] sm:$0xf] %vm3982, %v4686
    %4727 = vst.msk [vmem:[#allocation4 + $0xa8] sm:$0xf] %vm3982, %v4688
    %4728 = vst.msk [vmem:[#allocation4 + $0xbc] sm:$0xf] %vm3982, %v4690
    %4729 = vst.msk [vmem:[#allocation4 + $0xd0] sm:$0xf] %vm3982, %v4692
    %4730 = vst.msk [vmem:[#allocation4 + $0xe4] sm:$0xf] %vm3982, %v4694
    %4731 = vst.msk [vmem:[#allocation4 + $0xf8] sm:$0xf] %vm3982, %v4696
    %4732 = vst.msk [vmem:[#allocation4 + $0x10c] sm:$0xf] %vm3982, %v4698
    %4733 = vst.msk [vmem:[#allocation4 + $0x120] sm:$0xf] %vm3982, %v4700
    %4734 = vst.msk [vmem:[#allocation4 + $0x134] sm:$0xf] %vm3982, %v4702
    %v4735 = vld [vmem:[%s3772] sm:$0xf]
    %v4736 = vld [vmem:[%s3772 + $0x10] sm:$0xf]
    %v4737 = vld [vmem:[%s3772 + $0x20] sm:$0xf]
    %v4738 = vld [vmem:[%s3772 + $0x30] sm:$0xf]
    %v4739 = vld [vmem:[%s3772 + $0x40] sm:$0xf]
    %v4740 = vld [vmem:[%s3772 + $0x50] sm:$0xf]
    %v4741 = vld [vmem:[%s3772 + $0x60] sm:$0xf]
    %v4742 = vld [vmem:[%s3772 + $0x70] sm:$0xf]
    %v4743 = vld [vmem:[%s3772 + $0x120] sm:$0xf]
    %v4744 = vld [vmem:[%s3772 + $0x130] sm:$0xf]
    %v4745 = vld [vmem:[%s3772 + $0x140] sm:$0xf]
    %v4746 = vld [vmem:[%s3772 + $0x150] sm:$0xf]
    %v4747 = vld [vmem:[%s3772 + $0x160] sm:$0xf]
    %v4748 = vld [vmem:[%s3772 + $0x170] sm:$0xf]
    %v4749 = vld [vmem:[%s3772 + $0x180] sm:$0xf]
    %v4750 = vld [vmem:[%s3772 + $0x190] sm:$0xf]
    %4751 = vst.msk [vmem:[#allocation4 + $0xc] sm:$0xf] %vm49, %v4735
    %4752 = vst.msk [vmem:[#allocation4 + $0x20] sm:$0xf] %vm49, %v4736
    %4753 = vst.msk [vmem:[#allocation4 + $0x34] sm:$0xf] %vm49, %v4737
    %4754 = vst.msk [vmem:[#allocation4 + $0x48] sm:$0xf] %vm49, %v4738
    %4755 = vst.msk [vmem:[#allocation4 + $0x5c] sm:$0xf] %vm49, %v4739
    %4756 = vst.msk [vmem:[#allocation4 + $0x70] sm:$0xf] %vm49, %v4740
    %4757 = vst.msk [vmem:[#allocation4 + $0x84] sm:$0xf] %vm49, %v4741
    %4758 = vst.msk [vmem:[#allocation4 + $0x98] sm:$0xf] %vm49, %v4742
    %4759 = vst.msk [vmem:[#allocation4 + $0xac] sm:$0xf] %vm49, %v4743
    %4760 = vst.msk [vmem:[#allocation4 + $0xc0] sm:$0xf] %vm49, %v4744
    %4761 = vst.msk [vmem:[#allocation4 + $0xd4] sm:$0xf] %vm49, %v4745
    %4762 = vst.msk [vmem:[#allocation4 + $0xe8] sm:$0xf] %vm49, %v4746
    %4763 = vst.msk [vmem:[#allocation4 + $0xfc] sm:$0xf] %vm49, %v4747
    %4764 = vst.msk [vmem:[#allocation4 + $0x110] sm:$0xf] %vm49, %v4748
    %4765 = vst.msk [vmem:[#allocation4 + $0x124] sm:$0xf] %vm49, %v4749
    %4766 = vst.msk [vmem:[#allocation4 + $0x138] sm:$0xf] %vm49, %v4750
    %v4767 = vld [vmem:[%s3531] sm:$0xf]
    %v4768 = vld [vmem:[%s3531 + $0x10] sm:$0xf]
    %v4769 = vld [vmem:[%s3531 + $0x20] sm:$0xf]
    %v4770 = vld [vmem:[%s3531 + $0x30] sm:$0xf]
    %v4771 = vld [vmem:[%s3531 + $0x40] sm:$0xf]
    %v4772 = vld [vmem:[%s3531 + $0x50] sm:$0xf]
    %v4773 = vld [vmem:[%s3531 + $0x60] sm:$0xf]
    %v4774 = vld [vmem:[%s3531 + $0x70] sm:$0xf]
    %v4775 = vld [vmem:[%s3531 + $0x120] sm:$0xf]
    %v4776 = vld [vmem:[%s3531 + $0x130] sm:$0xf]
    %v4777 = vld [vmem:[%s3531 + $0x140] sm:$0xf]
    %v4778 = vld [vmem:[%s3531 + $0x150] sm:$0xf]
    %v4779 = vld [vmem:[%s3531 + $0x160] sm:$0xf]
    %v4780 = vld [vmem:[%s3531 + $0x170] sm:$0xf]
    %v4781 = vld [vmem:[%s3531 + $0x180] sm:$0xf]
    %v4782 = vld [vmem:[%s3531 + $0x190] sm:$0xf]
    %4799 = vrot.lane.b32.xlu0 %v4767, 64
    %v4800 = vpop.permute.xlu0 %4799
    %4801 = vrot.lane.b32.xlu0 %v4768, 64
    %v4802 = vpop.permute.xlu0 %4801
    %4803 = vrot.lane.b32.xlu0 %v4769, 64
    %v4804 = vpop.permute.xlu0 %4803
    %4805 = vrot.lane.b32.xlu0 %v4770, 64
    %v4806 = vpop.permute.xlu0 %4805
    %4807 = vrot.lane.b32.xlu0 %v4771, 64
    %v4808 = vpop.permute.xlu0 %4807
    %4809 = vrot.lane.b32.xlu0 %v4772, 64
    %v4810 = vpop.permute.xlu0 %4809
    %4811 = vrot.lane.b32.xlu0 %v4773, 64
    %v4812 = vpop.permute.xlu0 %4811
    %4813 = vrot.lane.b32.xlu0 %v4774, 64
    %v4814 = vpop.permute.xlu0 %4813
    %4815 = vrot.lane.b32.xlu0 %v4775, 64
    %v4816 = vpop.permute.xlu0 %4815
    %4817 = vrot.lane.b32.xlu0 %v4776, 64
    %v4818 = vpop.permute.xlu0 %4817
    %4819 = vrot.lane.b32.xlu0 %v4777, 64
    %v4820 = vpop.permute.xlu0 %4819
    %4821 = vrot.lane.b32.xlu0 %v4778, 64
    %v4822 = vpop.permute.xlu0 %4821
    %4823 = vrot.lane.b32.xlu0 %v4779, 64
    %v4824 = vpop.permute.xlu0 %4823
    %4825 = vrot.lane.b32.xlu0 %v4780, 64
    %v4826 = vpop.permute.xlu0 %4825
    %4827 = vrot.lane.b32.xlu0 %v4781, 64
    %v4828 = vpop.permute.xlu0 %4827
    %4829 = vrot.lane.b32.xlu0 %v4782, 64
    %v4830 = vpop.permute.xlu0 %4829
    %4847 = vst.msk [vmem:[#allocation4 + $0xc] sm:$0xf] %vm3982, %v4800
    %4848 = vst.msk [vmem:[#allocation4 + $0x20] sm:$0xf] %vm3982, %v4802
    %4849 = vst.msk [vmem:[#allocation4 + $0x34] sm:$0xf] %vm3982, %v4804
    %4850 = vst.msk [vmem:[#allocation4 + $0x48] sm:$0xf] %vm3982, %v4806
    %4851 = vst.msk [vmem:[#allocation4 + $0x5c] sm:$0xf] %vm3982, %v4808
    %4852 = vst.msk [vmem:[#allocation4 + $0x70] sm:$0xf] %vm3982, %v4810
    %4853 = vst.msk [vmem:[#allocation4 + $0x84] sm:$0xf] %vm3982, %v4812
    %4854 = vst.msk [vmem:[#allocation4 + $0x98] sm:$0xf] %vm3982, %v4814
    %4855 = vst.msk [vmem:[#allocation4 + $0xac] sm:$0xf] %vm3982, %v4816
    %4856 = vst.msk [vmem:[#allocation4 + $0xc0] sm:$0xf] %vm3982, %v4818
    %4857 = vst.msk [vmem:[#allocation4 + $0xd4] sm:$0xf] %vm3982, %v4820
    %4858 = vst.msk [vmem:[#allocation4 + $0xe8] sm:$0xf] %vm3982, %v4822
    %4859 = vst.msk [vmem:[#allocation4 + $0xfc] sm:$0xf] %vm3982, %v4824
    %4860 = vst.msk [vmem:[#allocation4 + $0x110] sm:$0xf] %vm3982, %v4826
    %4861 = vst.msk [vmem:[#allocation4 + $0x124] sm:$0xf] %vm3982, %v4828
    %4862 = vst.msk [vmem:[#allocation4 + $0x138] sm:$0xf] %vm3982, %v4830
    %v4863 = vld [vmem:[%s3772] sm:$0xf]
    %v4864 = vld [vmem:[%s3772 + $0x4] sm:$0x1]
    %v4865 = vld [vmem:[%s3772 + $0x10] sm:$0xf]
    %v4866 = vld [vmem:[%s3772 + $0x14] sm:$0x1]
    %v4867 = vld [vmem:[%s3772 + $0x20] sm:$0xf]
    %v4868 = vld [vmem:[%s3772 + $0x24] sm:$0x1]
    %v4869 = vld [vmem:[%s3772 + $0x30] sm:$0xf]
    %v4870 = vld [vmem:[%s3772 + $0x34] sm:$0x1]
    %v4871 = vld [vmem:[%s3772 + $0x40] sm:$0xf]
    %v4872 = vld [vmem:[%s3772 + $0x44] sm:$0x1]
    %v4873 = vld [vmem:[%s3772 + $0x50] sm:$0xf]
    %v4874 = vld [vmem:[%s3772 + $0x54] sm:$0x1]
    %v4875 = vld [vmem:[%s3772 + $0x60] sm:$0xf]
    %v4876 = vld [vmem:[%s3772 + $0x64] sm:$0x1]
    %v4877 = vld [vmem:[%s3772 + $0x70] sm:$0xf]
    %v4878 = vld [vmem:[%s3772 + $0x74] sm:$0x1]
    %v4879 = vld [vmem:[%s3772 + $0x120] sm:$0xf]
    %v4880 = vld [vmem:[%s3772 + $0x124] sm:$0x1]
    %v4881 = vld [vmem:[%s3772 + $0x130] sm:$0xf]
    %v4882 = vld [vmem:[%s3772 + $0x134] sm:$0x1]
    %v4883 = vld [vmem:[%s3772 + $0x140] sm:$0xf]
    %v4884 = vld [vmem:[%s3772 + $0x144] sm:$0x1]
    %v4885 = vld [vmem:[%s3772 + $0x150] sm:$0xf]
    %v4886 = vld [vmem:[%s3772 + $0x154] sm:$0x1]
    %v4887 = vld [vmem:[%s3772 + $0x160] sm:$0xf]
    %v4888 = vld [vmem:[%s3772 + $0x164] sm:$0x1]
    %v4889 = vld [vmem:[%s3772 + $0x170] sm:$0xf]
    %v4890 = vld [vmem:[%s3772 + $0x174] sm:$0x1]
    %v4891 = vld [vmem:[%s3772 + $0x180] sm:$0xf]
    %v4892 = vld [vmem:[%s3772 + $0x184] sm:$0x1]
    %v4893 = vld [vmem:[%s3772 + $0x190] sm:$0xf]
    %v4894 = vld [vmem:[%s3772 + $0x194] sm:$0x1]
    %v4896 = vshrl.u32 %v4863, 16
    %v4898 = vrot.slane %v4896, 4
    %v4899 = vshll.u32 %v4863, 16
    %v4901 = vrot.slane %v4899, 5
    %v4902 = vor.u32 %v4898, %v4901
    %v4903 = vrot.slane %v4902, 4
    %v4905 = vshll.u32 %v4864, 16
    %v4907 = vrot.slane %v4905, 5
    %v4908 = vsel %vm404, %v4903, %v4907
    %v4910 = vshrl.u32 %v4865, 16
    %v4912 = vrot.slane %v4910, 4
    %v4913 = vshll.u32 %v4865, 16
    %v4915 = vrot.slane %v4913, 5
    %v4916 = vor.u32 %v4912, %v4915
    %v4917 = vrot.slane %v4916, 4
    %v4919 = vshll.u32 %v4866, 16
    %v4921 = vrot.slane %v4919, 5
    %v4922 = vsel %vm404, %v4917, %v4921
    %v4924 = vshrl.u32 %v4867, 16
    %v4926 = vrot.slane %v4924, 4
    %v4927 = vshll.u32 %v4867, 16
    %v4929 = vrot.slane %v4927, 5
    %v4930 = vor.u32 %v4926, %v4929
    %v4931 = vrot.slane %v4930, 4
    %v4933 = vshll.u32 %v4868, 16
    %v4935 = vrot.slane %v4933, 5
    %v4936 = vsel %vm404, %v4931, %v4935
    %v4938 = vshrl.u32 %v4869, 16
    %v4940 = vrot.slane %v4938, 4
    %v4941 = vshll.u32 %v4869, 16
    %v4943 = vrot.slane %v4941, 5
    %v4944 = vor.u32 %v4940, %v4943
    %v4945 = vrot.slane %v4944, 4
    %v4947 = vshll.u32 %v4870, 16
    %v4949 = vrot.slane %v4947, 5
    %v4950 = vsel %vm404, %v4945, %v4949
    %v4952 = vshrl.u32 %v4871, 16
    %v4954 = vrot.slane %v4952, 4
    %v4955 = vshll.u32 %v4871, 16
    %v4957 = vrot.slane %v4955, 5
    %v4958 = vor.u32 %v4954, %v4957
    %v4959 = vrot.slane %v4958, 4
    %v4961 = vshll.u32 %v4872, 16
    %v4963 = vrot.slane %v4961, 5
    %v4964 = vsel %vm404, %v4959, %v4963
    %v4966 = vshrl.u32 %v4873, 16
    %v4968 = vrot.slane %v4966, 4
    %v4969 = vshll.u32 %v4873, 16
    %v4971 = vrot.slane %v4969, 5
    %v4972 = vor.u32 %v4968, %v4971
    %v4973 = vrot.slane %v4972, 4
    %v4975 = vshll.u32 %v4874, 16
    %v4977 = vrot.slane %v4975, 5
    %v4978 = vsel %vm404, %v4973, %v4977
    %v4980 = vshrl.u32 %v4875, 16
    %v4982 = vrot.slane %v4980, 4
    %v4983 = vshll.u32 %v4875, 16
    %v4985 = vrot.slane %v4983, 5
    %v4986 = vor.u32 %v4982, %v4985
    %v4987 = vrot.slane %v4986, 4
    %v4989 = vshll.u32 %v4876, 16
    %v4991 = vrot.slane %v4989, 5
    %v4992 = vsel %vm404, %v4987, %v4991
    %v4994 = vshrl.u32 %v4877, 16
    %v4996 = vrot.slane %v4994, 4
    %v4997 = vshll.u32 %v4877, 16
    %v4999 = vrot.slane %v4997, 5
    %v5000 = vor.u32 %v4996, %v4999
    %v5001 = vrot.slane %v5000, 4
    %v5003 = vshll.u32 %v4878, 16
    %v5005 = vrot.slane %v5003, 5
    %v5006 = vsel %vm404, %v5001, %v5005
    %v5008 = vshrl.u32 %v4879, 16
    %v5010 = vrot.slane %v5008, 4
    %v5011 = vshll.u32 %v4879, 16
    %v5013 = vrot.slane %v5011, 5
    %v5014 = vor.u32 %v5010, %v5013
    %v5015 = vrot.slane %v5014, 4
    %v5017 = vshll.u32 %v4880, 16
    %v5019 = vrot.slane %v5017, 5
    %v5020 = vsel %vm404, %v5015, %v5019
    %v5022 = vshrl.u32 %v4881, 16
    %v5024 = vrot.slane %v5022, 4
    %v5025 = vshll.u32 %v4881, 16
    %v5027 = vrot.slane %v5025, 5
    %v5028 = vor.u32 %v5024, %v5027
    %v5029 = vrot.slane %v5028, 4
    %v5031 = vshll.u32 %v4882, 16
    %v5033 = vrot.slane %v5031, 5
    %v5034 = vsel %vm404, %v5029, %v5033
    %v5036 = vshrl.u32 %v4883, 16
    %v5038 = vrot.slane %v5036, 4
    %v5039 = vshll.u32 %v4883, 16
    %v5041 = vrot.slane %v5039, 5
    %v5042 = vor.u32 %v5038, %v5041
    %v5043 = vrot.slane %v5042, 4
    %v5045 = vshll.u32 %v4884, 16
    %v5047 = vrot.slane %v5045, 5
    %v5048 = vsel %vm404, %v5043, %v5047
    %v5050 = vshrl.u32 %v4885, 16
    %v5052 = vrot.slane %v5050, 4
    %v5053 = vshll.u32 %v4885, 16
    %v5055 = vrot.slane %v5053, 5
    %v5056 = vor.u32 %v5052, %v5055
    %v5057 = vrot.slane %v5056, 4
    %v5059 = vshll.u32 %v4886, 16
    %v5061 = vrot.slane %v5059, 5
    %v5062 = vsel %vm404, %v5057, %v5061
    %v5064 = vshrl.u32 %v4887, 16
    %v5066 = vrot.slane %v5064, 4
    %v5067 = vshll.u32 %v4887, 16
    %v5069 = vrot.slane %v5067, 5
    %v5070 = vor.u32 %v5066, %v5069
    %v5071 = vrot.slane %v5070, 4
    %v5073 = vshll.u32 %v4888, 16
    %v5075 = vrot.slane %v5073, 5
    %v5076 = vsel %vm404, %v5071, %v5075
    %v5078 = vshrl.u32 %v4889, 16
    %v5080 = vrot.slane %v5078, 4
    %v5081 = vshll.u32 %v4889, 16
    %v5083 = vrot.slane %v5081, 5
    %v5084 = vor.u32 %v5080, %v5083
    %v5085 = vrot.slane %v5084, 4
    %v5087 = vshll.u32 %v4890, 16
    %v5089 = vrot.slane %v5087, 5
    %v5090 = vsel %vm404, %v5085, %v5089
    %v5092 = vshrl.u32 %v4891, 16
    %v5094 = vrot.slane %v5092, 4
    %v5095 = vshll.u32 %v4891, 16
    %v5097 = vrot.slane %v5095, 5
    %v5098 = vor.u32 %v5094, %v5097
    %v5099 = vrot.slane %v5098, 4
    %v5101 = vshll.u32 %v4892, 16
    %v5103 = vrot.slane %v5101, 5
    %v5104 = vsel %vm404, %v5099, %v5103
    %v5106 = vshrl.u32 %v4893, 16
    %v5108 = vrot.slane %v5106, 4
    %v5109 = vshll.u32 %v4893, 16
    %v5111 = vrot.slane %v5109, 5
    %v5112 = vor.u32 %v5108, %v5111
    %v5113 = vrot.slane %v5112, 4
    %v5115 = vshll.u32 %v4894, 16
    %v5117 = vrot.slane %v5115, 5
    %v5118 = vsel %vm404, %v5113, %v5117
    %5135 = vst.msk [vmem:[#allocation4 + $0x10] sm:$0xf] %vm49, %v4908
    %5136 = vst.msk [vmem:[#allocation4 + $0x24] sm:$0xf] %vm49, %v4922
    %5137 = vst.msk [vmem:[#allocation4 + $0x38] sm:$0xf] %vm49, %v4936
    %5138 = vst.msk [vmem:[#allocation4 + $0x4c] sm:$0xf] %vm49, %v4950
    %5139 = vst.msk [vmem:[#allocation4 + $0x60] sm:$0xf] %vm49, %v4964
    %5140 = vst.msk [vmem:[#allocation4 + $0x74] sm:$0xf] %vm49, %v4978
    %5141 = vst.msk [vmem:[#allocation4 + $0x88] sm:$0xf] %vm49, %v4992
    %5142 = vst.msk [vmem:[#allocation4 + $0x9c] sm:$0xf] %vm49, %v5006
    %5143 = vst.msk [vmem:[#allocation4 + $0xb0] sm:$0xf] %vm49, %v5020
    %5144 = vst.msk [vmem:[#allocation4 + $0xc4] sm:$0xf] %vm49, %v5034
    %5145 = vst.msk [vmem:[#allocation4 + $0xd8] sm:$0xf] %vm49, %v5048
    %5146 = vst.msk [vmem:[#allocation4 + $0xec] sm:$0xf] %vm49, %v5062
    %5147 = vst.msk [vmem:[#allocation4 + $0x100] sm:$0xf] %vm49, %v5076
    %5148 = vst.msk [vmem:[#allocation4 + $0x114] sm:$0xf] %vm49, %v5090
    %5149 = vst.msk [vmem:[#allocation4 + $0x128] sm:$0xf] %vm49, %v5104
    %5150 = vst.msk [vmem:[#allocation4 + $0x13c] sm:$0xf] %vm49, %v5118
    %v5151 = vld [vmem:[%s3901] sm:$0xf]
    %v5152 = vld [vmem:[%s3901 + $0x10] sm:$0xf]
    %v5153 = vld [vmem:[%s3901 + $0x20] sm:$0xf]
    %v5154 = vld [vmem:[%s3901 + $0x30] sm:$0xf]
    %v5155 = vld [vmem:[%s3901 + $0x40] sm:$0xf]
    %v5156 = vld [vmem:[%s3901 + $0x50] sm:$0xf]
    %v5157 = vld [vmem:[%s3901 + $0x60] sm:$0xf]
    %v5158 = vld [vmem:[%s3901 + $0x70] sm:$0xf]
    %v5159 = vld [vmem:[%s3901 + $0x120] sm:$0xf]
    %v5160 = vld [vmem:[%s3901 + $0x130] sm:$0xf]
    %v5161 = vld [vmem:[%s3901 + $0x140] sm:$0xf]
    %v5162 = vld [vmem:[%s3901 + $0x150] sm:$0xf]
    %v5163 = vld [vmem:[%s3901 + $0x160] sm:$0xf]
    %v5164 = vld [vmem:[%s3901 + $0x170] sm:$0xf]
    %v5165 = vld [vmem:[%s3901 + $0x180] sm:$0xf]
    %v5166 = vld [vmem:[%s3901 + $0x190] sm:$0xf]
    %5167 = vst.msk [vmem:[#allocation4 + $0x140] sm:$0xf] %vm49, %v5151
    %5168 = vst.msk [vmem:[#allocation4 + $0x154] sm:$0xf] %vm49, %v5152
    %5169 = vst.msk [vmem:[#allocation4 + $0x168] sm:$0xf] %vm49, %v5153
    %5170 = vst.msk [vmem:[#allocation4 + $0x17c] sm:$0xf] %vm49, %v5154
    %5171 = vst.msk [vmem:[#allocation4 + $0x190] sm:$0xf] %vm49, %v5155
    %5172 = vst.msk [vmem:[#allocation4 + $0x1a4] sm:$0xf] %vm49, %v5156
    %5173 = vst.msk [vmem:[#allocation4 + $0x1b8] sm:$0xf] %vm49, %v5157
    %5174 = vst.msk [vmem:[#allocation4 + $0x1cc] sm:$0xf] %vm49, %v5158
    %5175 = vst.msk [vmem:[#allocation4 + $0x1e0] sm:$0xf] %vm49, %v5159
    %5176 = vst.msk [vmem:[#allocation4 + $0x1f4] sm:$0xf] %vm49, %v5160
    %5177 = vst.msk [vmem:[#allocation4 + $0x208] sm:$0xf] %vm49, %v5161
    %5178 = vst.msk [vmem:[#allocation4 + $0x21c] sm:$0xf] %vm49, %v5162
    %5179 = vst.msk [vmem:[#allocation4 + $0x230] sm:$0xf] %vm49, %v5163
    %5180 = vst.msk [vmem:[#allocation4 + $0x244] sm:$0xf] %vm49, %v5164
    %5181 = vst.msk [vmem:[#allocation4 + $0x258] sm:$0xf] %vm49, %v5165
    %5182 = vst.msk [vmem:[#allocation4 + $0x26c] sm:$0xf] %vm49, %v5166
    %v5183 = vld [vmem:[#allocation3] sm:$0xf]
    %v5184 = vld [vmem:[#allocation3 + $0x4] sm:$0x1]
    %v5185 = vld [vmem:[#allocation3 + $0x10] sm:$0xf]
    %v5186 = vld [vmem:[#allocation3 + $0x14] sm:$0x1]
    %v5187 = vld [vmem:[#allocation3 + $0x20] sm:$0xf]
    %v5188 = vld [vmem:[#allocation3 + $0x24] sm:$0x1]
    %v5189 = vld [vmem:[#allocation3 + $0x30] sm:$0xf]
    %v5190 = vld [vmem:[#allocation3 + $0x34] sm:$0x1]
    %v5191 = vld [vmem:[#allocation3 + $0x40] sm:$0xf]
    %v5192 = vld [vmem:[#allocation3 + $0x44] sm:$0x1]
    %v5193 = vld [vmem:[#allocation3 + $0x50] sm:$0xf]
    %v5194 = vld [vmem:[#allocation3 + $0x54] sm:$0x1]
    %v5195 = vld [vmem:[#allocation3 + $0x60] sm:$0xf]
    %v5196 = vld [vmem:[#allocation3 + $0x64] sm:$0x1]
    %v5197 = vld [vmem:[#allocation3 + $0x70] sm:$0xf]
    %v5198 = vld [vmem:[#allocation3 + $0x74] sm:$0x1]
    %v5199 = vld [vmem:[#allocation3 + $0x120] sm:$0xf]
    %v5200 = vld [vmem:[#allocation3 + $0x124] sm:$0x1]
    %v5201 = vld [vmem:[#allocation3 + $0x130] sm:$0xf]
    %v5202 = vld [vmem:[#allocation3 + $0x134] sm:$0x1]
    %v5203 = vld [vmem:[#allocation3 + $0x140] sm:$0xf]
    %v5204 = vld [vmem:[#allocation3 + $0x144] sm:$0x1]
    %v5205 = vld [vmem:[#allocation3 + $0x150] sm:$0xf]
    %v5206 = vld [vmem:[#allocation3 + $0x154] sm:$0x1]
    %v5207 = vld [vmem:[#allocation3 + $0x160] sm:$0xf]
    %v5208 = vld [vmem:[#allocation3 + $0x164] sm:$0x1]
    %v5209 = vld [vmem:[#allocation3 + $0x170] sm:$0xf]
    %v5210 = vld [vmem:[#allocation3 + $0x174] sm:$0x1]
    %v5211 = vld [vmem:[#allocation3 + $0x180] sm:$0xf]
    %v5212 = vld [vmem:[#allocation3 + $0x184] sm:$0x1]
    %v5213 = vld [vmem:[#allocation3 + $0x190] sm:$0xf]
    %v5214 = vld [vmem:[#allocation3 + $0x194] sm:$0x1]
    %v5216 = vshrl.u32 %v5183, 16
    %v5218 = vrot.slane %v5216, 4
    %v5219 = vshll.u32 %v5183, 16
    %v5221 = vrot.slane %v5219, 5
    %v5222 = vor.u32 %v5218, %v5221
    %v5223 = vrot.slane %v5222, 4
    %v5225 = vshll.u32 %v5184, 16
    %v5227 = vrot.slane %v5225, 5
    %v5228 = vsel %vm404, %v5223, %v5227
    %v5230 = vshrl.u32 %v5185, 16
    %v5232 = vrot.slane %v5230, 4
    %v5233 = vshll.u32 %v5185, 16
    %v5235 = vrot.slane %v5233, 5
    %v5236 = vor.u32 %v5232, %v5235
    %v5237 = vrot.slane %v5236, 4
    %v5239 = vshll.u32 %v5186, 16
    %v5241 = vrot.slane %v5239, 5
    %v5242 = vsel %vm404, %v5237, %v5241
    %v5244 = vshrl.u32 %v5187, 16
    %v5246 = vrot.slane %v5244, 4
    %v5247 = vshll.u32 %v5187, 16
    %v5249 = vrot.slane %v5247, 5
    %v5250 = vor.u32 %v5246, %v5249
    %v5251 = vrot.slane %v5250, 4
    %v5253 = vshll.u32 %v5188, 16
    %v5255 = vrot.slane %v5253, 5
    %v5256 = vsel %vm404, %v5251, %v5255
    %v5258 = vshrl.u32 %v5189, 16
    %v5260 = vrot.slane %v5258, 4
    %v5261 = vshll.u32 %v5189, 16
    %v5263 = vrot.slane %v5261, 5
    %v5264 = vor.u32 %v5260, %v5263
    %v5265 = vrot.slane %v5264, 4
    %v5267 = vshll.u32 %v5190, 16
    %v5269 = vrot.slane %v5267, 5
    %v5270 = vsel %vm404, %v5265, %v5269
    %v5272 = vshrl.u32 %v5191, 16
    %v5274 = vrot.slane %v5272, 4
    %v5275 = vshll.u32 %v5191, 16
    %v5277 = vrot.slane %v5275, 5
    %v5278 = vor.u32 %v5274, %v5277
    %v5279 = vrot.slane %v5278, 4
    %v5281 = vshll.u32 %v5192, 16
    %v5283 = vrot.slane %v5281, 5
    %v5284 = vsel %vm404, %v5279, %v5283
    %v5286 = vshrl.u32 %v5193, 16
    %v5288 = vrot.slane %v5286, 4
    %v5289 = vshll.u32 %v5193, 16
    %v5291 = vrot.slane %v5289, 5
    %v5292 = vor.u32 %v5288, %v5291
    %v5293 = vrot.slane %v5292, 4
    %v5295 = vshll.u32 %v5194, 16
    %v5297 = vrot.slane %v5295, 5
    %v5298 = vsel %vm404, %v5293, %v5297
    %v5300 = vshrl.u32 %v5195, 16
    %v5302 = vrot.slane %v5300, 4
    %v5303 = vshll.u32 %v5195, 16
    %v5305 = vrot.slane %v5303, 5
    %v5306 = vor.u32 %v5302, %v5305
    %v5307 = vrot.slane %v5306, 4
    %v5309 = vshll.u32 %v5196, 16
    %v5311 = vrot.slane %v5309, 5
    %v5312 = vsel %vm404, %v5307, %v5311
    %v5314 = vshrl.u32 %v5197, 16
    %v5316 = vrot.slane %v5314, 4
    %v5317 = vshll.u32 %v5197, 16
    %v5319 = vrot.slane %v5317, 5
    %v5320 = vor.u32 %v5316, %v5319
    %v5321 = vrot.slane %v5320, 4
    %v5323 = vshll.u32 %v5198, 16
    %v5325 = vrot.slane %v5323, 5
    %v5326 = vsel %vm404, %v5321, %v5325
    %v5328 = vshrl.u32 %v5199, 16
    %v5330 = vrot.slane %v5328, 4
    %v5331 = vshll.u32 %v5199, 16
    %v5333 = vrot.slane %v5331, 5
    %v5334 = vor.u32 %v5330, %v5333
    %v5335 = vrot.slane %v5334, 4
    %v5337 = vshll.u32 %v5200, 16
    %v5339 = vrot.slane %v5337, 5
    %v5340 = vsel %vm404, %v5335, %v5339
    %v5342 = vshrl.u32 %v5201, 16
    %v5344 = vrot.slane %v5342, 4
    %v5345 = vshll.u32 %v5201, 16
    %v5347 = vrot.slane %v5345, 5
    %v5348 = vor.u32 %v5344, %v5347
    %v5349 = vrot.slane %v5348, 4
    %v5351 = vshll.u32 %v5202, 16
    %v5353 = vrot.slane %v5351, 5
    %v5354 = vsel %vm404, %v5349, %v5353
    %v5356 = vshrl.u32 %v5203, 16
    %v5358 = vrot.slane %v5356, 4
    %v5359 = vshll.u32 %v5203, 16
    %v5361 = vrot.slane %v5359, 5
    %v5362 = vor.u32 %v5358, %v5361
    %v5363 = vrot.slane %v5362, 4
    %v5365 = vshll.u32 %v5204, 16
    %v5367 = vrot.slane %v5365, 5
    %v5368 = vsel %vm404, %v5363, %v5367
    %v5370 = vshrl.u32 %v5205, 16
    %v5372 = vrot.slane %v5370, 4
    %v5373 = vshll.u32 %v5205, 16
    %v5375 = vrot.slane %v5373, 5
    %v5376 = vor.u32 %v5372, %v5375
    %v5377 = vrot.slane %v5376, 4
    %v5379 = vshll.u32 %v5206, 16
    %v5381 = vrot.slane %v5379, 5
    %v5382 = vsel %vm404, %v5377, %v5381
    %v5384 = vshrl.u32 %v5207, 16
    %v5386 = vrot.slane %v5384, 4
    %v5387 = vshll.u32 %v5207, 16
    %v5389 = vrot.slane %v5387, 5
    %v5390 = vor.u32 %v5386, %v5389
    %v5391 = vrot.slane %v5390, 4
    %v5393 = vshll.u32 %v5208, 16
    %v5395 = vrot.slane %v5393, 5
    %v5396 = vsel %vm404, %v5391, %v5395
    %v5398 = vshrl.u32 %v5209, 16
    %v5400 = vrot.slane %v5398, 4
    %v5401 = vshll.u32 %v5209, 16
    %v5403 = vrot.slane %v5401, 5
    %v5404 = vor.u32 %v5400, %v5403
    %v5405 = vrot.slane %v5404, 4
    %v5407 = vshll.u32 %v5210, 16
    %v5409 = vrot.slane %v5407, 5
    %v5410 = vsel %vm404, %v5405, %v5409
    %v5412 = vshrl.u32 %v5211, 16
    %v5414 = vrot.slane %v5412, 4
    %v5415 = vshll.u32 %v5211, 16
    %v5417 = vrot.slane %v5415, 5
    %v5418 = vor.u32 %v5414, %v5417
    %v5419 = vrot.slane %v5418, 4
    %v5421 = vshll.u32 %v5212, 16
    %v5423 = vrot.slane %v5421, 5
    %v5424 = vsel %vm404, %v5419, %v5423
    %v5426 = vshrl.u32 %v5213, 16
    %v5428 = vrot.slane %v5426, 4
    %v5429 = vshll.u32 %v5213, 16
    %v5431 = vrot.slane %v5429, 5
    %v5432 = vor.u32 %v5428, %v5431
    %v5433 = vrot.slane %v5432, 4
    %v5435 = vshll.u32 %v5214, 16
    %v5437 = vrot.slane %v5435, 5
    %v5438 = vsel %vm404, %v5433, %v5437
    %5439 = vrot.lane.b32.xlu0 %v5228, 64
    %v5440 = vpop.permute.xlu0 %5439
    %5441 = vrot.lane.b32.xlu0 %v5242, 64
    %v5442 = vpop.permute.xlu0 %5441
    %5443 = vrot.lane.b32.xlu0 %v5256, 64
    %v5444 = vpop.permute.xlu0 %5443
    %5445 = vrot.lane.b32.xlu0 %v5270, 64
    %v5446 = vpop.permute.xlu0 %5445
    %5447 = vrot.lane.b32.xlu0 %v5284, 64
    %v5448 = vpop.permute.xlu0 %5447
    %5449 = vrot.lane.b32.xlu0 %v5298, 64
    %v5450 = vpop.permute.xlu0 %5449
    %5451 = vrot.lane.b32.xlu0 %v5312, 64
    %v5452 = vpop.permute.xlu0 %5451
    %5453 = vrot.lane.b32.xlu0 %v5326, 64
    %v5454 = vpop.permute.xlu0 %5453
    %5455 = vrot.lane.b32.xlu0 %v5340, 64
    %v5456 = vpop.permute.xlu0 %5455
    %5457 = vrot.lane.b32.xlu0 %v5354, 64
    %v5458 = vpop.permute.xlu0 %5457
    %5459 = vrot.lane.b32.xlu0 %v5368, 64
    %v5460 = vpop.permute.xlu0 %5459
    %5461 = vrot.lane.b32.xlu0 %v5382, 64
    %v5462 = vpop.permute.xlu0 %5461
    %5463 = vrot.lane.b32.xlu0 %v5396, 64
    %v5464 = vpop.permute.xlu0 %5463
    %5465 = vrot.lane.b32.xlu0 %v5410, 64
    %v5466 = vpop.permute.xlu0 %5465
    %5467 = vrot.lane.b32.xlu0 %v5424, 64
    %v5468 = vpop.permute.xlu0 %5467
    %5469 = vrot.lane.b32.xlu0 %v5438, 64
    %v5470 = vpop.permute.xlu0 %5469
    %5487 = vst.msk [vmem:[#allocation4 + $0x140] sm:$0xf] %vm3982, %v5440
    %5488 = vst.msk [vmem:[#allocation4 + $0x154] sm:$0xf] %vm3982, %v5442
    %5489 = vst.msk [vmem:[#allocation4 + $0x168] sm:$0xf] %vm3982, %v5444
    %5490 = vst.msk [vmem:[#allocation4 + $0x17c] sm:$0xf] %vm3982, %v5446
    %5491 = vst.msk [vmem:[#allocation4 + $0x190] sm:$0xf] %vm3982, %v5448
    %5492 = vst.msk [vmem:[#allocation4 + $0x1a4] sm:$0xf] %vm3982, %v5450
    %5493 = vst.msk [vmem:[#allocation4 + $0x1b8] sm:$0xf] %vm3982, %v5452
    %5494 = vst.msk [vmem:[#allocation4 + $0x1cc] sm:$0xf] %vm3982, %v5454
    %5495 = vst.msk [vmem:[#allocation4 + $0x1e0] sm:$0xf] %vm3982, %v5456
    %5496 = vst.msk [vmem:[#allocation4 + $0x1f4] sm:$0xf] %vm3982, %v5458
    %5497 = vst.msk [vmem:[#allocation4 + $0x208] sm:$0xf] %vm3982, %v5460
    %5498 = vst.msk [vmem:[#allocation4 + $0x21c] sm:$0xf] %vm3982, %v5462
    %5499 = vst.msk [vmem:[#allocation4 + $0x230] sm:$0xf] %vm3982, %v5464
    %5500 = vst.msk [vmem:[#allocation4 + $0x244] sm:$0xf] %vm3982, %v5466
    %5501 = vst.msk [vmem:[#allocation4 + $0x258] sm:$0xf] %vm3982, %v5468
    %5502 = vst.msk [vmem:[#allocation4 + $0x26c] sm:$0xf] %vm3982, %v5470
    %v5503 = vld [vmem:[%s3901] sm:$0xf]
    %v5504 = vld [vmem:[%s3901 + $0x4] sm:$0x1]
    %v5505 = vld [vmem:[%s3901 + $0x10] sm:$0xf]
    %v5506 = vld [vmem:[%s3901 + $0x14] sm:$0x1]
    %v5507 = vld [vmem:[%s3901 + $0x20] sm:$0xf]
    %v5508 = vld [vmem:[%s3901 + $0x24] sm:$0x1]
    %v5509 = vld [vmem:[%s3901 + $0x30] sm:$0xf]
    %v5510 = vld [vmem:[%s3901 + $0x34] sm:$0x1]
    %v5511 = vld [vmem:[%s3901 + $0x40] sm:$0xf]
    %v5512 = vld [vmem:[%s3901 + $0x44] sm:$0x1]
    %v5513 = vld [vmem:[%s3901 + $0x50] sm:$0xf]
    %v5514 = vld [vmem:[%s3901 + $0x54] sm:$0x1]
    %v5515 = vld [vmem:[%s3901 + $0x60] sm:$0xf]
    %v5516 = vld [vmem:[%s3901 + $0x64] sm:$0x1]
    %v5517 = vld [vmem:[%s3901 + $0x70] sm:$0xf]
    %v5518 = vld [vmem:[%s3901 + $0x74] sm:$0x1]
    %v5519 = vld [vmem:[%s3901 + $0x120] sm:$0xf]
    %v5520 = vld [vmem:[%s3901 + $0x124] sm:$0x1]
    %v5521 = vld [vmem:[%s3901 + $0x130] sm:$0xf]
    %v5522 = vld [vmem:[%s3901 + $0x134] sm:$0x1]
    %v5523 = vld [vmem:[%s3901 + $0x140] sm:$0xf]
    %v5524 = vld [vmem:[%s3901 + $0x144] sm:$0x1]
    %v5525 = vld [vmem:[%s3901 + $0x150] sm:$0xf]
    %v5526 = vld [vmem:[%s3901 + $0x154] sm:$0x1]
    %v5527 = vld [vmem:[%s3901 + $0x160] sm:$0xf]
    %v5528 = vld [vmem:[%s3901 + $0x164] sm:$0x1]
    %v5529 = vld [vmem:[%s3901 + $0x170] sm:$0xf]
    %v5530 = vld [vmem:[%s3901 + $0x174] sm:$0x1]
    %v5531 = vld [vmem:[%s3901 + $0x180] sm:$0xf]
    %v5532 = vld [vmem:[%s3901 + $0x184] sm:$0x1]
    %v5533 = vld [vmem:[%s3901 + $0x190] sm:$0xf]
    %v5534 = vld [vmem:[%s3901 + $0x194] sm:$0x1]
    %v5536 = vshrl.u32 %v5503, 16
    %v5538 = vrot.slane %v5536, 4
    %v5539 = vshll.u32 %v5503, 16
    %v5541 = vrot.slane %v5539, 5
    %v5542 = vor.u32 %v5538, %v5541
    %v5543 = vrot.slane %v5542, 4
    %v5545 = vshll.u32 %v5504, 16
    %v5547 = vrot.slane %v5545, 5
    %v5548 = vsel %vm404, %v5543, %v5547
    %v5550 = vshrl.u32 %v5505, 16
    %v5552 = vrot.slane %v5550, 4
    %v5553 = vshll.u32 %v5505, 16
    %v5555 = vrot.slane %v5553, 5
    %v5556 = vor.u32 %v5552, %v5555
    %v5557 = vrot.slane %v5556, 4
    %v5559 = vshll.u32 %v5506, 16
    %v5561 = vrot.slane %v5559, 5
    %v5562 = vsel %vm404, %v5557, %v5561
    %v5564 = vshrl.u32 %v5507, 16
    %v5566 = vrot.slane %v5564, 4
    %v5567 = vshll.u32 %v5507, 16
    %v5569 = vrot.slane %v5567, 5
    %v5570 = vor.u32 %v5566, %v5569
    %v5571 = vrot.slane %v5570, 4
    %v5573 = vshll.u32 %v5508, 16
    %v5575 = vrot.slane %v5573, 5
    %v5576 = vsel %vm404, %v5571, %v5575
    %v5578 = vshrl.u32 %v5509, 16
    %v5580 = vrot.slane %v5578, 4
    %v5581 = vshll.u32 %v5509, 16
    %v5583 = vrot.slane %v5581, 5
    %v5584 = vor.u32 %v5580, %v5583
    %v5585 = vrot.slane %v5584, 4
    %v5587 = vshll.u32 %v5510, 16
    %v5589 = vrot.slane %v5587, 5
    %v5590 = vsel %vm404, %v5585, %v5589
    %v5592 = vshrl.u32 %v5511, 16
    %v5594 = vrot.slane %v5592, 4
    %v5595 = vshll.u32 %v5511, 16
    %v5597 = vrot.slane %v5595, 5
    %v5598 = vor.u32 %v5594, %v5597
    %v5599 = vrot.slane %v5598, 4
    %v5601 = vshll.u32 %v5512, 16
    %v5603 = vrot.slane %v5601, 5
    %v5604 = vsel %vm404, %v5599, %v5603
    %v5606 = vshrl.u32 %v5513, 16
    %v5608 = vrot.slane %v5606, 4
    %v5609 = vshll.u32 %v5513, 16
    %v5611 = vrot.slane %v5609, 5
    %v5612 = vor.u32 %v5608, %v5611
    %v5613 = vrot.slane %v5612, 4
    %v5615 = vshll.u32 %v5514, 16
    %v5617 = vrot.slane %v5615, 5
    %v5618 = vsel %vm404, %v5613, %v5617
    %v5620 = vshrl.u32 %v5515, 16
    %v5622 = vrot.slane %v5620, 4
    %v5623 = vshll.u32 %v5515, 16
    %v5625 = vrot.slane %v5623, 5
    %v5626 = vor.u32 %v5622, %v5625
    %v5627 = vrot.slane %v5626, 4
    %v5629 = vshll.u32 %v5516, 16
    %v5631 = vrot.slane %v5629, 5
    %v5632 = vsel %vm404, %v5627, %v5631
    %v5634 = vshrl.u32 %v5517, 16
    %v5636 = vrot.slane %v5634, 4
    %v5637 = vshll.u32 %v5517, 16
    %v5639 = vrot.slane %v5637, 5
    %v5640 = vor.u32 %v5636, %v5639
    %v5641 = vrot.slane %v5640, 4
    %v5643 = vshll.u32 %v5518, 16
    %v5645 = vrot.slane %v5643, 5
    %v5646 = vsel %vm404, %v5641, %v5645
    %v5648 = vshrl.u32 %v5519, 16
    %v5650 = vrot.slane %v5648, 4
    %v5651 = vshll.u32 %v5519, 16
    %v5653 = vrot.slane %v5651, 5
    %v5654 = vor.u32 %v5650, %v5653
    %v5655 = vrot.slane %v5654, 4
    %v5657 = vshll.u32 %v5520, 16
    %v5659 = vrot.slane %v5657, 5
    %v5660 = vsel %vm404, %v5655, %v5659
    %v5662 = vshrl.u32 %v5521, 16
    %v5664 = vrot.slane %v5662, 4
    %v5665 = vshll.u32 %v5521, 16
    %v5667 = vrot.slane %v5665, 5
    %v5668 = vor.u32 %v5664, %v5667
    %v5669 = vrot.slane %v5668, 4
    %v5671 = vshll.u32 %v5522, 16
    %v5673 = vrot.slane %v5671, 5
    %v5674 = vsel %vm404, %v5669, %v5673
    %v5676 = vshrl.u32 %v5523, 16
    %v5678 = vrot.slane %v5676, 4
    %v5679 = vshll.u32 %v5523, 16
    %v5681 = vrot.slane %v5679, 5
    %v5682 = vor.u32 %v5678, %v5681
    %v5683 = vrot.slane %v5682, 4
    %v5685 = vshll.u32 %v5524, 16
    %v5687 = vrot.slane %v5685, 5
    %v5688 = vsel %vm404, %v5683, %v5687
    %v5690 = vshrl.u32 %v5525, 16
    %v5692 = vrot.slane %v5690, 4
    %v5693 = vshll.u32 %v5525, 16
    %v5695 = vrot.slane %v5693, 5
    %v5696 = vor.u32 %v5692, %v5695
    %v5697 = vrot.slane %v5696, 4
    %v5699 = vshll.u32 %v5526, 16
    %v5701 = vrot.slane %v5699, 5
    %v5702 = vsel %vm404, %v5697, %v5701
    %v5704 = vshrl.u32 %v5527, 16
    %v5706 = vrot.slane %v5704, 4
    %v5707 = vshll.u32 %v5527, 16
    %v5709 = vrot.slane %v5707, 5
    %v5710 = vor.u32 %v5706, %v5709
    %v5711 = vrot.slane %v5710, 4
    %v5713 = vshll.u32 %v5528, 16
    %v5715 = vrot.slane %v5713, 5
    %v5716 = vsel %vm404, %v5711, %v5715
    %v5718 = vshrl.u32 %v5529, 16
    %v5720 = vrot.slane %v5718, 4
    %v5721 = vshll.u32 %v5529, 16
    %v5723 = vrot.slane %v5721, 5
    %v5724 = vor.u32 %v5720, %v5723
    %v5725 = vrot.slane %v5724, 4
    %v5727 = vshll.u32 %v5530, 16
    %v5729 = vrot.slane %v5727, 5
    %v5730 = vsel %vm404, %v5725, %v5729
    %v5732 = vshrl.u32 %v5531, 16
    %v5734 = vrot.slane %v5732, 4
    %v5735 = vshll.u32 %v5531, 16
    %v5737 = vrot.slane %v5735, 5
    %v5738 = vor.u32 %v5734, %v5737
    %v5739 = vrot.slane %v5738, 4
    %v5741 = vshll.u32 %v5532, 16
    %v5743 = vrot.slane %v5741, 5
    %v5744 = vsel %vm404, %v5739, %v5743
    %v5746 = vshrl.u32 %v5533, 16
    %v5748 = vrot.slane %v5746, 4
    %v5749 = vshll.u32 %v5533, 16
    %v5751 = vrot.slane %v5749, 5
    %v5752 = vor.u32 %v5748, %v5751
    %v5753 = vrot.slane %v5752, 4
    %v5755 = vshll.u32 %v5534, 16
    %v5757 = vrot.slane %v5755, 5
    %v5758 = vsel %vm404, %v5753, %v5757
    %5775 = vst.msk [vmem:[#allocation4 + $0x144] sm:$0xf] %vm49, %v5548
    %5776 = vst.msk [vmem:[#allocation4 + $0x158] sm:$0xf] %vm49, %v5562
    %5777 = vst.msk [vmem:[#allocation4 + $0x16c] sm:$0xf] %vm49, %v5576
    %5778 = vst.msk [vmem:[#allocation4 + $0x180] sm:$0xf] %vm49, %v5590
    %5779 = vst.msk [vmem:[#allocation4 + $0x194] sm:$0xf] %vm49, %v5604
    %5780 = vst.msk [vmem:[#allocation4 + $0x1a8] sm:$0xf] %vm49, %v5618
    %5781 = vst.msk [vmem:[#allocation4 + $0x1bc] sm:$0xf] %vm49, %v5632
    %5782 = vst.msk [vmem:[#allocation4 + $0x1d0] sm:$0xf] %vm49, %v5646
    %5783 = vst.msk [vmem:[#allocation4 + $0x1e4] sm:$0xf] %vm49, %v5660
    %5784 = vst.msk [vmem:[#allocation4 + $0x1f8] sm:$0xf] %vm49, %v5674
    %5785 = vst.msk [vmem:[#allocation4 + $0x20c] sm:$0xf] %vm49, %v5688
    %5786 = vst.msk [vmem:[#allocation4 + $0x220] sm:$0xf] %vm49, %v5702
    %5787 = vst.msk [vmem:[#allocation4 + $0x234] sm:$0xf] %vm49, %v5716
    %5788 = vst.msk [vmem:[#allocation4 + $0x248] sm:$0xf] %vm49, %v5730
    %5789 = vst.msk [vmem:[#allocation4 + $0x25c] sm:$0xf] %vm49, %v5744
    %5790 = vst.msk [vmem:[#allocation4 + $0x270] sm:$0xf] %vm49, %v5758
    %v5791 = vld [vmem:[%s3137] sm:$0xf]
    %v5792 = vld [vmem:[%s3137 + $0x10] sm:$0xf]
    %v5793 = vld [vmem:[%s3137 + $0x20] sm:$0xf]
    %v5794 = vld [vmem:[%s3137 + $0x30] sm:$0xf]
    %v5795 = vld [vmem:[%s3137 + $0x40] sm:$0xf]
    %v5796 = vld [vmem:[%s3137 + $0x50] sm:$0xf]
    %v5797 = vld [vmem:[%s3137 + $0x60] sm:$0xf]
    %v5798 = vld [vmem:[%s3137 + $0x70] sm:$0xf]
    %v5799 = vld [vmem:[%s3137 + $0x120] sm:$0xf]
    %v5800 = vld [vmem:[%s3137 + $0x130] sm:$0xf]
    %v5801 = vld [vmem:[%s3137 + $0x140] sm:$0xf]
    %v5802 = vld [vmem:[%s3137 + $0x150] sm:$0xf]
    %v5803 = vld [vmem:[%s3137 + $0x160] sm:$0xf]
    %v5804 = vld [vmem:[%s3137 + $0x170] sm:$0xf]
    %v5805 = vld [vmem:[%s3137 + $0x180] sm:$0xf]
    %v5806 = vld [vmem:[%s3137 + $0x190] sm:$0xf]
    %5823 = vrot.lane.b32.xlu0 %v5791, 64
    %v5824 = vpop.permute.xlu0 %5823
    %5825 = vrot.lane.b32.xlu0 %v5792, 64
    %v5826 = vpop.permute.xlu0 %5825
    %5827 = vrot.lane.b32.xlu0 %v5793, 64
    %v5828 = vpop.permute.xlu0 %5827
    %5829 = vrot.lane.b32.xlu0 %v5794, 64
    %v5830 = vpop.permute.xlu0 %5829
    %5831 = vrot.lane.b32.xlu0 %v5795, 64
    %v5832 = vpop.permute.xlu0 %5831
    %5833 = vrot.lane.b32.xlu0 %v5796, 64
    %v5834 = vpop.permute.xlu0 %5833
    %5835 = vrot.lane.b32.xlu0 %v5797, 64
    %v5836 = vpop.permute.xlu0 %5835
    %5837 = vrot.lane.b32.xlu0 %v5798, 64
    %v5838 = vpop.permute.xlu0 %5837
    %5839 = vrot.lane.b32.xlu0 %v5799, 64
    %v5840 = vpop.permute.xlu0 %5839
    %5841 = vrot.lane.b32.xlu0 %v5800, 64
    %v5842 = vpop.permute.xlu0 %5841
    %5843 = vrot.lane.b32.xlu0 %v5801, 64
    %v5844 = vpop.permute.xlu0 %5843
    %5845 = vrot.lane.b32.xlu0 %v5802, 64
    %v5846 = vpop.permute.xlu0 %5845
    %5847 = vrot.lane.b32.xlu0 %v5803, 64
    %v5848 = vpop.permute.xlu0 %5847
    %5849 = vrot.lane.b32.xlu0 %v5804, 64
    %v5850 = vpop.permute.xlu0 %5849
    %5851 = vrot.lane.b32.xlu0 %v5805, 64
    %v5852 = vpop.permute.xlu0 %5851
    %5853 = vrot.lane.b32.xlu0 %v5806, 64
    %v5854 = vpop.permute.xlu0 %5853
    %5871 = vst.msk [vmem:[#allocation4 + $0x144] sm:$0xf] %vm3982, %v5824
    %5872 = vst.msk [vmem:[#allocation4 + $0x158] sm:$0xf] %vm3982, %v5826
    %5873 = vst.msk [vmem:[#allocation4 + $0x16c] sm:$0xf] %vm3982, %v5828
    %5874 = vst.msk [vmem:[#allocation4 + $0x180] sm:$0xf] %vm3982, %v5830
    %5875 = vst.msk [vmem:[#allocation4 + $0x194] sm:$0xf] %vm3982, %v5832
    %5876 = vst.msk [vmem:[#allocation4 + $0x1a8] sm:$0xf] %vm3982, %v5834
    %5877 = vst.msk [vmem:[#allocation4 + $0x1bc] sm:$0xf] %vm3982, %v5836
    %5878 = vst.msk [vmem:[#allocation4 + $0x1d0] sm:$0xf] %vm3982, %v5838
    %5879 = vst.msk [vmem:[#allocation4 + $0x1e4] sm:$0xf] %vm3982, %v5840
    %5880 = vst.msk [vmem:[#allocation4 + $0x1f8] sm:$0xf] %vm3982, %v5842
    %5881 = vst.msk [vmem:[#allocation4 + $0x20c] sm:$0xf] %vm3982, %v5844
    %5882 = vst.msk [vmem:[#allocation4 + $0x220] sm:$0xf] %vm3982, %v5846
    %5883 = vst.msk [vmem:[#allocation4 + $0x234] sm:$0xf] %vm3982, %v5848
    %5884 = vst.msk [vmem:[#allocation4 + $0x248] sm:$0xf] %vm3982, %v5850
    %5885 = vst.msk [vmem:[#allocation4 + $0x25c] sm:$0xf] %vm3982, %v5852
    %5886 = vst.msk [vmem:[#allocation4 + $0x270] sm:$0xf] %vm3982, %v5854
    %v5887 = vld [vmem:[%s3378] sm:$0xf]
    %v5888 = vld [vmem:[%s3378 + $0x4] sm:$0x1]
    %v5889 = vld [vmem:[%s3378 + $0x10] sm:$0xf]
    %v5890 = vld [vmem:[%s3378 + $0x14] sm:$0x1]
    %v5891 = vld [vmem:[%s3378 + $0x20] sm:$0xf]
    %v5892 = vld [vmem:[%s3378 + $0x24] sm:$0x1]
    %v5893 = vld [vmem:[%s3378 + $0x30] sm:$0xf]
    %v5894 = vld [vmem:[%s3378 + $0x34] sm:$0x1]
    %v5895 = vld [vmem:[%s3378 + $0x40] sm:$0xf]
    %v5896 = vld [vmem:[%s3378 + $0x44] sm:$0x1]
    %v5897 = vld [vmem:[%s3378 + $0x50] sm:$0xf]
    %v5898 = vld [vmem:[%s3378 + $0x54] sm:$0x1]
    %v5899 = vld [vmem:[%s3378 + $0x60] sm:$0xf]
    %v5900 = vld [vmem:[%s3378 + $0x64] sm:$0x1]
    %v5901 = vld [vmem:[%s3378 + $0x70] sm:$0xf]
    %v5902 = vld [vmem:[%s3378 + $0x74] sm:$0x1]
    %v5903 = vld [vmem:[%s3378 + $0x120] sm:$0xf]
    %v5904 = vld [vmem:[%s3378 + $0x124] sm:$0x1]
    %v5905 = vld [vmem:[%s3378 + $0x130] sm:$0xf]
    %v5906 = vld [vmem:[%s3378 + $0x134] sm:$0x1]
    %v5907 = vld [vmem:[%s3378 + $0x140] sm:$0xf]
    %v5908 = vld [vmem:[%s3378 + $0x144] sm:$0x1]
    %v5909 = vld [vmem:[%s3378 + $0x150] sm:$0xf]
    %v5910 = vld [vmem:[%s3378 + $0x154] sm:$0x1]
    %v5911 = vld [vmem:[%s3378 + $0x160] sm:$0xf]
    %v5912 = vld [vmem:[%s3378 + $0x164] sm:$0x1]
    %v5913 = vld [vmem:[%s3378 + $0x170] sm:$0xf]
    %v5914 = vld [vmem:[%s3378 + $0x174] sm:$0x1]
    %v5915 = vld [vmem:[%s3378 + $0x180] sm:$0xf]
    %v5916 = vld [vmem:[%s3378 + $0x184] sm:$0x1]
    %v5917 = vld [vmem:[%s3378 + $0x190] sm:$0xf]
    %v5918 = vld [vmem:[%s3378 + $0x194] sm:$0x1]
    %v5920 = vshrl.u32 %v5887, 16
    %v5922 = vrot.slane %v5920, 4
    %v5923 = vshll.u32 %v5887, 16
    %v5925 = vrot.slane %v5923, 5
    %v5926 = vor.u32 %v5922, %v5925
    %v5927 = vrot.slane %v5926, 4
    %v5929 = vshll.u32 %v5888, 16
    %v5931 = vrot.slane %v5929, 5
    %v5932 = vsel %vm404, %v5927, %v5931
    %v5934 = vshrl.u32 %v5889, 16
    %v5936 = vrot.slane %v5934, 4
    %v5937 = vshll.u32 %v5889, 16
    %v5939 = vrot.slane %v5937, 5
    %v5940 = vor.u32 %v5936, %v5939
    %v5941 = vrot.slane %v5940, 4
    %v5943 = vshll.u32 %v5890, 16
    %v5945 = vrot.slane %v5943, 5
    %v5946 = vsel %vm404, %v5941, %v5945
    %v5948 = vshrl.u32 %v5891, 16
    %v5950 = vrot.slane %v5948, 4
    %v5951 = vshll.u32 %v5891, 16
    %v5953 = vrot.slane %v5951, 5
    %v5954 = vor.u32 %v5950, %v5953
    %v5955 = vrot.slane %v5954, 4
    %v5957 = vshll.u32 %v5892, 16
    %v5959 = vrot.slane %v5957, 5
    %v5960 = vsel %vm404, %v5955, %v5959
    %v5962 = vshrl.u32 %v5893, 16
    %v5964 = vrot.slane %v5962, 4
    %v5965 = vshll.u32 %v5893, 16
    %v5967 = vrot.slane %v5965, 5
    %v5968 = vor.u32 %v5964, %v5967
    %v5969 = vrot.slane %v5968, 4
    %v5971 = vshll.u32 %v5894, 16
    %v5973 = vrot.slane %v5971, 5
    %v5974 = vsel %vm404, %v5969, %v5973
    %v5976 = vshrl.u32 %v5895, 16
    %v5978 = vrot.slane %v5976, 4
    %v5979 = vshll.u32 %v5895, 16
    %v5981 = vrot.slane %v5979, 5
    %v5982 = vor.u32 %v5978, %v5981
    %v5983 = vrot.slane %v5982, 4
    %v5985 = vshll.u32 %v5896, 16
    %v5987 = vrot.slane %v5985, 5
    %v5988 = vsel %vm404, %v5983, %v5987
    %v5990 = vshrl.u32 %v5897, 16
    %v5992 = vrot.slane %v5990, 4
    %v5993 = vshll.u32 %v5897, 16
    %v5995 = vrot.slane %v5993, 5
    %v5996 = vor.u32 %v5992, %v5995
    %v5997 = vrot.slane %v5996, 4
    %v5999 = vshll.u32 %v5898, 16
    %v6001 = vrot.slane %v5999, 5
    %v6002 = vsel %vm404, %v5997, %v6001
    %v6004 = vshrl.u32 %v5899, 16
    %v6006 = vrot.slane %v6004, 4
    %v6007 = vshll.u32 %v5899, 16
    %v6009 = vrot.slane %v6007, 5
    %v6010 = vor.u32 %v6006, %v6009
    %v6011 = vrot.slane %v6010, 4
    %v6013 = vshll.u32 %v5900, 16
    %v6015 = vrot.slane %v6013, 5
    %v6016 = vsel %vm404, %v6011, %v6015
    %v6018 = vshrl.u32 %v5901, 16
    %v6020 = vrot.slane %v6018, 4
    %v6021 = vshll.u32 %v5901, 16
    %v6023 = vrot.slane %v6021, 5
    %v6024 = vor.u32 %v6020, %v6023
    %v6025 = vrot.slane %v6024, 4
    %v6027 = vshll.u32 %v5902, 16
    %v6029 = vrot.slane %v6027, 5
    %v6030 = vsel %vm404, %v6025, %v6029
    %v6032 = vshrl.u32 %v5903, 16
    %v6034 = vrot.slane %v6032, 4
    %v6035 = vshll.u32 %v5903, 16
    %v6037 = vrot.slane %v6035, 5
    %v6038 = vor.u32 %v6034, %v6037
    %v6039 = vrot.slane %v6038, 4
    %v6041 = vshll.u32 %v5904, 16
    %v6043 = vrot.slane %v6041, 5
    %v6044 = vsel %vm404, %v6039, %v6043
    %v6046 = vshrl.u32 %v5905, 16
    %v6048 = vrot.slane %v6046, 4
    %v6049 = vshll.u32 %v5905, 16
    %v6051 = vrot.slane %v6049, 5
    %v6052 = vor.u32 %v6048, %v6051
    %v6053 = vrot.slane %v6052, 4
    %v6055 = vshll.u32 %v5906, 16
    %v6057 = vrot.slane %v6055, 5
    %v6058 = vsel %vm404, %v6053, %v6057
    %v6060 = vshrl.u32 %v5907, 16
    %v6062 = vrot.slane %v6060, 4
    %v6063 = vshll.u32 %v5907, 16
    %v6065 = vrot.slane %v6063, 5
    %v6066 = vor.u32 %v6062, %v6065
    %v6067 = vrot.slane %v6066, 4
    %v6069 = vshll.u32 %v5908, 16
    %v6071 = vrot.slane %v6069, 5
    %v6072 = vsel %vm404, %v6067, %v6071
    %v6074 = vshrl.u32 %v5909, 16
    %v6076 = vrot.slane %v6074, 4
    %v6077 = vshll.u32 %v5909, 16
    %v6079 = vrot.slane %v6077, 5
    %v6080 = vor.u32 %v6076, %v6079
    %v6081 = vrot.slane %v6080, 4
    %v6083 = vshll.u32 %v5910, 16
    %v6085 = vrot.slane %v6083, 5
    %v6086 = vsel %vm404, %v6081, %v6085
    %v6088 = vshrl.u32 %v5911, 16
    %v6090 = vrot.slane %v6088, 4
    %v6091 = vshll.u32 %v5911, 16
    %v6093 = vrot.slane %v6091, 5
    %v6094 = vor.u32 %v6090, %v6093
    %v6095 = vrot.slane %v6094, 4
    %v6097 = vshll.u32 %v5912, 16
    %v6099 = vrot.slane %v6097, 5
    %v6100 = vsel %vm404, %v6095, %v6099
    %v6102 = vshrl.u32 %v5913, 16
    %v6104 = vrot.slane %v6102, 4
    %v6105 = vshll.u32 %v5913, 16
    %v6107 = vrot.slane %v6105, 5
    %v6108 = vor.u32 %v6104, %v6107
    %v6109 = vrot.slane %v6108, 4
    %v6111 = vshll.u32 %v5914, 16
    %v6113 = vrot.slane %v6111, 5
    %v6114 = vsel %vm404, %v6109, %v6113
    %v6116 = vshrl.u32 %v5915, 16
    %v6118 = vrot.slane %v6116, 4
    %v6119 = vshll.u32 %v5915, 16
    %v6121 = vrot.slane %v6119, 5
    %v6122 = vor.u32 %v6118, %v6121
    %v6123 = vrot.slane %v6122, 4
    %v6125 = vshll.u32 %v5916, 16
    %v6127 = vrot.slane %v6125, 5
    %v6128 = vsel %vm404, %v6123, %v6127
    %v6130 = vshrl.u32 %v5917, 16
    %v6132 = vrot.slane %v6130, 4
    %v6133 = vshll.u32 %v5917, 16
    %v6135 = vrot.slane %v6133, 5
    %v6136 = vor.u32 %v6132, %v6135
    %v6137 = vrot.slane %v6136, 4
    %v6139 = vshll.u32 %v5918, 16
    %v6141 = vrot.slane %v6139, 5
    %v6142 = vsel %vm404, %v6137, %v6141
    %6159 = vst.msk [vmem:[#allocation4 + $0x148] sm:$0xf] %vm49, %v5932
    %6160 = vst.msk [vmem:[#allocation4 + $0x15c] sm:$0xf] %vm49, %v5946
    %6161 = vst.msk [vmem:[#allocation4 + $0x170] sm:$0xf] %vm49, %v5960
    %6162 = vst.msk [vmem:[#allocation4 + $0x184] sm:$0xf] %vm49, %v5974
    %6163 = vst.msk [vmem:[#allocation4 + $0x198] sm:$0xf] %vm49, %v5988
    %6164 = vst.msk [vmem:[#allocation4 + $0x1ac] sm:$0xf] %vm49, %v6002
    %6165 = vst.msk [vmem:[#allocation4 + $0x1c0] sm:$0xf] %vm49, %v6016
    %6166 = vst.msk [vmem:[#allocation4 + $0x1d4] sm:$0xf] %vm49, %v6030
    %6167 = vst.msk [vmem:[#allocation4 + $0x1e8] sm:$0xf] %vm49, %v6044
    %6168 = vst.msk [vmem:[#allocation4 + $0x1fc] sm:$0xf] %vm49, %v6058
    %6169 = vst.msk [vmem:[#allocation4 + $0x210] sm:$0xf] %vm49, %v6072
    %6170 = vst.msk [vmem:[#allocation4 + $0x224] sm:$0xf] %vm49, %v6086
    %6171 = vst.msk [vmem:[#allocation4 + $0x238] sm:$0xf] %vm49, %v6100
    %6172 = vst.msk [vmem:[#allocation4 + $0x24c] sm:$0xf] %vm49, %v6114
    %6173 = vst.msk [vmem:[#allocation4 + $0x260] sm:$0xf] %vm49, %v6128
    %6174 = vst.msk [vmem:[#allocation4 + $0x274] sm:$0xf] %vm49, %v6142
    %v6175 = vld [vmem:[%s3137] sm:$0xf]
    %v6176 = vld [vmem:[%s3137 + $0x4] sm:$0x1]
    %v6177 = vld [vmem:[%s3137 + $0x10] sm:$0xf]
    %v6178 = vld [vmem:[%s3137 + $0x14] sm:$0x1]
    %v6179 = vld [vmem:[%s3137 + $0x20] sm:$0xf]
    %v6180 = vld [vmem:[%s3137 + $0x24] sm:$0x1]
    %v6181 = vld [vmem:[%s3137 + $0x30] sm:$0xf]
    %v6182 = vld [vmem:[%s3137 + $0x34] sm:$0x1]
    %v6183 = vld [vmem:[%s3137 + $0x40] sm:$0xf]
    %v6184 = vld [vmem:[%s3137 + $0x44] sm:$0x1]
    %v6185 = vld [vmem:[%s3137 + $0x50] sm:$0xf]
    %v6186 = vld [vmem:[%s3137 + $0x54] sm:$0x1]
    %v6187 = vld [vmem:[%s3137 + $0x60] sm:$0xf]
    %v6188 = vld [vmem:[%s3137 + $0x64] sm:$0x1]
    %v6189 = vld [vmem:[%s3137 + $0x70] sm:$0xf]
    %v6190 = vld [vmem:[%s3137 + $0x74] sm:$0x1]
    %v6191 = vld [vmem:[%s3137 + $0x120] sm:$0xf]
    %v6192 = vld [vmem:[%s3137 + $0x124] sm:$0x1]
    %v6193 = vld [vmem:[%s3137 + $0x130] sm:$0xf]
    %v6194 = vld [vmem:[%s3137 + $0x134] sm:$0x1]
    %v6195 = vld [vmem:[%s3137 + $0x140] sm:$0xf]
    %v6196 = vld [vmem:[%s3137 + $0x144] sm:$0x1]
    %v6197 = vld [vmem:[%s3137 + $0x150] sm:$0xf]
    %v6198 = vld [vmem:[%s3137 + $0x154] sm:$0x1]
    %v6199 = vld [vmem:[%s3137 + $0x160] sm:$0xf]
    %v6200 = vld [vmem:[%s3137 + $0x164] sm:$0x1]
    %v6201 = vld [vmem:[%s3137 + $0x170] sm:$0xf]
    %v6202 = vld [vmem:[%s3137 + $0x174] sm:$0x1]
    %v6203 = vld [vmem:[%s3137 + $0x180] sm:$0xf]
    %v6204 = vld [vmem:[%s3137 + $0x184] sm:$0x1]
    %v6205 = vld [vmem:[%s3137 + $0x190] sm:$0xf]
    %v6206 = vld [vmem:[%s3137 + $0x194] sm:$0x1]
    %v6208 = vshrl.u32 %v6175, 16
    %v6210 = vrot.slane %v6208, 4
    %v6211 = vshll.u32 %v6175, 16
    %v6213 = vrot.slane %v6211, 5
    %v6214 = vor.u32 %v6210, %v6213
    %v6215 = vrot.slane %v6214, 4
    %v6217 = vshll.u32 %v6176, 16
    %v6219 = vrot.slane %v6217, 5
    %v6220 = vsel %vm404, %v6215, %v6219
    %v6222 = vshrl.u32 %v6177, 16
    %v6224 = vrot.slane %v6222, 4
    %v6225 = vshll.u32 %v6177, 16
    %v6227 = vrot.slane %v6225, 5
    %v6228 = vor.u32 %v6224, %v6227
    %v6229 = vrot.slane %v6228, 4
    %v6231 = vshll.u32 %v6178, 16
    %v6233 = vrot.slane %v6231, 5
    %v6234 = vsel %vm404, %v6229, %v6233
    %v6236 = vshrl.u32 %v6179, 16
    %v6238 = vrot.slane %v6236, 4
    %v6239 = vshll.u32 %v6179, 16
    %v6241 = vrot.slane %v6239, 5
    %v6242 = vor.u32 %v6238, %v6241
    %v6243 = vrot.slane %v6242, 4
    %v6245 = vshll.u32 %v6180, 16
    %v6247 = vrot.slane %v6245, 5
    %v6248 = vsel %vm404, %v6243, %v6247
    %v6250 = vshrl.u32 %v6181, 16
    %v6252 = vrot.slane %v6250, 4
    %v6253 = vshll.u32 %v6181, 16
    %v6255 = vrot.slane %v6253, 5
    %v6256 = vor.u32 %v6252, %v6255
    %v6257 = vrot.slane %v6256, 4
    %v6259 = vshll.u32 %v6182, 16
    %v6261 = vrot.slane %v6259, 5
    %v6262 = vsel %vm404, %v6257, %v6261
    %v6264 = vshrl.u32 %v6183, 16
    %v6266 = vrot.slane %v6264, 4
    %v6267 = vshll.u32 %v6183, 16
    %v6269 = vrot.slane %v6267, 5
    %v6270 = vor.u32 %v6266, %v6269
    %v6271 = vrot.slane %v6270, 4
    %v6273 = vshll.u32 %v6184, 16
    %v6275 = vrot.slane %v6273, 5
    %v6276 = vsel %vm404, %v6271, %v6275
    %v6278 = vshrl.u32 %v6185, 16
    %v6280 = vrot.slane %v6278, 4
    %v6281 = vshll.u32 %v6185, 16
    %v6283 = vrot.slane %v6281, 5
    %v6284 = vor.u32 %v6280, %v6283
    %v6285 = vrot.slane %v6284, 4
    %v6287 = vshll.u32 %v6186, 16
    %v6289 = vrot.slane %v6287, 5
    %v6290 = vsel %vm404, %v6285, %v6289
    %v6292 = vshrl.u32 %v6187, 16
    %v6294 = vrot.slane %v6292, 4
    %v6295 = vshll.u32 %v6187, 16
    %v6297 = vrot.slane %v6295, 5
    %v6298 = vor.u32 %v6294, %v6297
    %v6299 = vrot.slane %v6298, 4
    %v6301 = vshll.u32 %v6188, 16
    %v6303 = vrot.slane %v6301, 5
    %v6304 = vsel %vm404, %v6299, %v6303
    %v6306 = vshrl.u32 %v6189, 16
    %v6308 = vrot.slane %v6306, 4
    %v6309 = vshll.u32 %v6189, 16
    %v6311 = vrot.slane %v6309, 5
    %v6312 = vor.u32 %v6308, %v6311
    %v6313 = vrot.slane %v6312, 4
    %v6315 = vshll.u32 %v6190, 16
    %v6317 = vrot.slane %v6315, 5
    %v6318 = vsel %vm404, %v6313, %v6317
    %v6320 = vshrl.u32 %v6191, 16
    %v6322 = vrot.slane %v6320, 4
    %v6323 = vshll.u32 %v6191, 16
    %v6325 = vrot.slane %v6323, 5
    %v6326 = vor.u32 %v6322, %v6325
    %v6327 = vrot.slane %v6326, 4
    %v6329 = vshll.u32 %v6192, 16
    %v6331 = vrot.slane %v6329, 5
    %v6332 = vsel %vm404, %v6327, %v6331
    %v6334 = vshrl.u32 %v6193, 16
    %v6336 = vrot.slane %v6334, 4
    %v6337 = vshll.u32 %v6193, 16
    %v6339 = vrot.slane %v6337, 5
    %v6340 = vor.u32 %v6336, %v6339
    %v6341 = vrot.slane %v6340, 4
    %v6343 = vshll.u32 %v6194, 16
    %v6345 = vrot.slane %v6343, 5
    %v6346 = vsel %vm404, %v6341, %v6345
    %v6348 = vshrl.u32 %v6195, 16
    %v6350 = vrot.slane %v6348, 4
    %v6351 = vshll.u32 %v6195, 16
    %v6353 = vrot.slane %v6351, 5
    %v6354 = vor.u32 %v6350, %v6353
    %v6355 = vrot.slane %v6354, 4
    %v6357 = vshll.u32 %v6196, 16
    %v6359 = vrot.slane %v6357, 5
    %v6360 = vsel %vm404, %v6355, %v6359
    %v6362 = vshrl.u32 %v6197, 16
    %v6364 = vrot.slane %v6362, 4
    %v6365 = vshll.u32 %v6197, 16
    %v6367 = vrot.slane %v6365, 5
    %v6368 = vor.u32 %v6364, %v6367
    %v6369 = vrot.slane %v6368, 4
    %v6371 = vshll.u32 %v6198, 16
    %v6373 = vrot.slane %v6371, 5
    %v6374 = vsel %vm404, %v6369, %v6373
    %v6376 = vshrl.u32 %v6199, 16
    %v6378 = vrot.slane %v6376, 4
    %v6379 = vshll.u32 %v6199, 16
    %v6381 = vrot.slane %v6379, 5
    %v6382 = vor.u32 %v6378, %v6381
    %v6383 = vrot.slane %v6382, 4
    %v6385 = vshll.u32 %v6200, 16
    %v6387 = vrot.slane %v6385, 5
    %v6388 = vsel %vm404, %v6383, %v6387
    %v6390 = vshrl.u32 %v6201, 16
    %v6392 = vrot.slane %v6390, 4
    %v6393 = vshll.u32 %v6201, 16
    %v6395 = vrot.slane %v6393, 5
    %v6396 = vor.u32 %v6392, %v6395
    %v6397 = vrot.slane %v6396, 4
    %v6399 = vshll.u32 %v6202, 16
    %v6401 = vrot.slane %v6399, 5
    %v6402 = vsel %vm404, %v6397, %v6401
    %v6404 = vshrl.u32 %v6203, 16
    %v6406 = vrot.slane %v6404, 4
    %v6407 = vshll.u32 %v6203, 16
    %v6409 = vrot.slane %v6407, 5
    %v6410 = vor.u32 %v6406, %v6409
    %v6411 = vrot.slane %v6410, 4
    %v6413 = vshll.u32 %v6204, 16
    %v6415 = vrot.slane %v6413, 5
    %v6416 = vsel %vm404, %v6411, %v6415
    %v6418 = vshrl.u32 %v6205, 16
    %v6420 = vrot.slane %v6418, 4
    %v6421 = vshll.u32 %v6205, 16
    %v6423 = vrot.slane %v6421, 5
    %v6424 = vor.u32 %v6420, %v6423
    %v6425 = vrot.slane %v6424, 4
    %v6427 = vshll.u32 %v6206, 16
    %v6429 = vrot.slane %v6427, 5
    %v6430 = vsel %vm404, %v6425, %v6429
    %6431 = vrot.lane.b32.xlu0 %v6220, 64
    %v6432 = vpop.permute.xlu0 %6431
    %6433 = vrot.lane.b32.xlu0 %v6234, 64
    %v6434 = vpop.permute.xlu0 %6433
    %6435 = vrot.lane.b32.xlu0 %v6248, 64
    %v6436 = vpop.permute.xlu0 %6435
    %6437 = vrot.lane.b32.xlu0 %v6262, 64
    %v6438 = vpop.permute.xlu0 %6437
    %6439 = vrot.lane.b32.xlu0 %v6276, 64
    %v6440 = vpop.permute.xlu0 %6439
    %6441 = vrot.lane.b32.xlu0 %v6290, 64
    %v6442 = vpop.permute.xlu0 %6441
    %6443 = vrot.lane.b32.xlu0 %v6304, 64
    %v6444 = vpop.permute.xlu0 %6443
    %6445 = vrot.lane.b32.xlu0 %v6318, 64
    %v6446 = vpop.permute.xlu0 %6445
    %6447 = vrot.lane.b32.xlu0 %v6332, 64
    %v6448 = vpop.permute.xlu0 %6447
    %6449 = vrot.lane.b32.xlu0 %v6346, 64
    %v6450 = vpop.permute.xlu0 %6449
    %6451 = vrot.lane.b32.xlu0 %v6360, 64
    %v6452 = vpop.permute.xlu0 %6451
    %6453 = vrot.lane.b32.xlu0 %v6374, 64
    %v6454 = vpop.permute.xlu0 %6453
    %6455 = vrot.lane.b32.xlu0 %v6388, 64
    %v6456 = vpop.permute.xlu0 %6455
    %6457 = vrot.lane.b32.xlu0 %v6402, 64
    %v6458 = vpop.permute.xlu0 %6457
    %6459 = vrot.lane.b32.xlu0 %v6416, 64
    %v6460 = vpop.permute.xlu0 %6459
    %6461 = vrot.lane.b32.xlu0 %v6430, 64
    %v6462 = vpop.permute.xlu0 %6461
    %6479 = vst.msk [vmem:[#allocation4 + $0x148] sm:$0xf] %vm3982, %v6432
    %6480 = vst.msk [vmem:[#allocation4 + $0x15c] sm:$0xf] %vm3982, %v6434
    %6481 = vst.msk [vmem:[#allocation4 + $0x170] sm:$0xf] %vm3982, %v6436
    %6482 = vst.msk [vmem:[#allocation4 + $0x184] sm:$0xf] %vm3982, %v6438
    %6483 = vst.msk [vmem:[#allocation4 + $0x198] sm:$0xf] %vm3982, %v6440
    %6484 = vst.msk [vmem:[#allocation4 + $0x1ac] sm:$0xf] %vm3982, %v6442
    %6485 = vst.msk [vmem:[#allocation4 + $0x1c0] sm:$0xf] %vm3982, %v6444
    %6486 = vst.msk [vmem:[#allocation4 + $0x1d4] sm:$0xf] %vm3982, %v6446
    %6487 = vst.msk [vmem:[#allocation4 + $0x1e8] sm:$0xf] %vm3982, %v6448
    %6488 = vst.msk [vmem:[#allocation4 + $0x1fc] sm:$0xf] %vm3982, %v6450
    %6489 = vst.msk [vmem:[#allocation4 + $0x210] sm:$0xf] %vm3982, %v6452
    %6490 = vst.msk [vmem:[#allocation4 + $0x224] sm:$0xf] %vm3982, %v6454
    %6491 = vst.msk [vmem:[#allocation4 + $0x238] sm:$0xf] %vm3982, %v6456
    %6492 = vst.msk [vmem:[#allocation4 + $0x24c] sm:$0xf] %vm3982, %v6458
    %6493 = vst.msk [vmem:[#allocation4 + $0x260] sm:$0xf] %vm3982, %v6460
    %6494 = vst.msk [vmem:[#allocation4 + $0x274] sm:$0xf] %vm3982, %v6462
    %v6495 = vld [vmem:[%s3531] sm:$0xf]
    %v6496 = vld [vmem:[%s3531 + $0x10] sm:$0xf]
    %v6497 = vld [vmem:[%s3531 + $0x20] sm:$0xf]
    %v6498 = vld [vmem:[%s3531 + $0x30] sm:$0xf]
    %v6499 = vld [vmem:[%s3531 + $0x40] sm:$0xf]
    %v6500 = vld [vmem:[%s3531 + $0x50] sm:$0xf]
    %v6501 = vld [vmem:[%s3531 + $0x60] sm:$0xf]
    %v6502 = vld [vmem:[%s3531 + $0x70] sm:$0xf]
    %v6503 = vld [vmem:[%s3531 + $0x120] sm:$0xf]
    %v6504 = vld [vmem:[%s3531 + $0x130] sm:$0xf]
    %v6505 = vld [vmem:[%s3531 + $0x140] sm:$0xf]
    %v6506 = vld [vmem:[%s3531 + $0x150] sm:$0xf]
    %v6507 = vld [vmem:[%s3531 + $0x160] sm:$0xf]
    %v6508 = vld [vmem:[%s3531 + $0x170] sm:$0xf]
    %v6509 = vld [vmem:[%s3531 + $0x180] sm:$0xf]
    %v6510 = vld [vmem:[%s3531 + $0x190] sm:$0xf]
    %6511 = vst.msk [vmem:[#allocation4 + $0x14c] sm:$0xf] %vm49, %v6495
    %6512 = vst.msk [vmem:[#allocation4 + $0x160] sm:$0xf] %vm49, %v6496
    %6513 = vst.msk [vmem:[#allocation4 + $0x174] sm:$0xf] %vm49, %v6497
    %6514 = vst.msk [vmem:[#allocation4 + $0x188] sm:$0xf] %vm49, %v6498
    %6515 = vst.msk [vmem:[#allocation4 + $0x19c] sm:$0xf] %vm49, %v6499
    %6516 = vst.msk [vmem:[#allocation4 + $0x1b0] sm:$0xf] %vm49, %v6500
    %6517 = vst.msk [vmem:[#allocation4 + $0x1c4] sm:$0xf] %vm49, %v6501
    %6518 = vst.msk [vmem:[#allocation4 + $0x1d8] sm:$0xf] %vm49, %v6502
    %6519 = vst.msk [vmem:[#allocation4 + $0x1ec] sm:$0xf] %vm49, %v6503
    %6520 = vst.msk [vmem:[#allocation4 + $0x200] sm:$0xf] %vm49, %v6504
    %6521 = vst.msk [vmem:[#allocation4 + $0x214] sm:$0xf] %vm49, %v6505
    %6522 = vst.msk [vmem:[#allocation4 + $0x228] sm:$0xf] %vm49, %v6506
    %6523 = vst.msk [vmem:[#allocation4 + $0x23c] sm:$0xf] %vm49, %v6507
    %6524 = vst.msk [vmem:[#allocation4 + $0x250] sm:$0xf] %vm49, %v6508
    %6525 = vst.msk [vmem:[#allocation4 + $0x264] sm:$0xf] %vm49, %v6509
    %6526 = vst.msk [vmem:[#allocation4 + $0x278] sm:$0xf] %vm49, %v6510
    %v6527 = vld [vmem:[%s3772] sm:$0xf]
    %v6528 = vld [vmem:[%s3772 + $0x4] sm:$0x1]
    %v6529 = vld [vmem:[%s3772 + $0x10] sm:$0xf]
    %v6530 = vld [vmem:[%s3772 + $0x14] sm:$0x1]
    %v6531 = vld [vmem:[%s3772 + $0x20] sm:$0xf]
    %v6532 = vld [vmem:[%s3772 + $0x24] sm:$0x1]
    %v6533 = vld [vmem:[%s3772 + $0x30] sm:$0xf]
    %v6534 = vld [vmem:[%s3772 + $0x34] sm:$0x1]
    %v6535 = vld [vmem:[%s3772 + $0x40] sm:$0xf]
    %v6536 = vld [vmem:[%s3772 + $0x44] sm:$0x1]
    %v6537 = vld [vmem:[%s3772 + $0x50] sm:$0xf]
    %v6538 = vld [vmem:[%s3772 + $0x54] sm:$0x1]
    %v6539 = vld [vmem:[%s3772 + $0x60] sm:$0xf]
    %v6540 = vld [vmem:[%s3772 + $0x64] sm:$0x1]
    %v6541 = vld [vmem:[%s3772 + $0x70] sm:$0xf]
    %v6542 = vld [vmem:[%s3772 + $0x74] sm:$0x1]
    %v6543 = vld [vmem:[%s3772 + $0x120] sm:$0xf]
    %v6544 = vld [vmem:[%s3772 + $0x124] sm:$0x1]
    %v6545 = vld [vmem:[%s3772 + $0x130] sm:$0xf]
    %v6546 = vld [vmem:[%s3772 + $0x134] sm:$0x1]
    %v6547 = vld [vmem:[%s3772 + $0x140] sm:$0xf]
    %v6548 = vld [vmem:[%s3772 + $0x144] sm:$0x1]
    %v6549 = vld [vmem:[%s3772 + $0x150] sm:$0xf]
    %v6550 = vld [vmem:[%s3772 + $0x154] sm:$0x1]
    %v6551 = vld [vmem:[%s3772 + $0x160] sm:$0xf]
    %v6552 = vld [vmem:[%s3772 + $0x164] sm:$0x1]
    %v6553 = vld [vmem:[%s3772 + $0x170] sm:$0xf]
    %v6554 = vld [vmem:[%s3772 + $0x174] sm:$0x1]
    %v6555 = vld [vmem:[%s3772 + $0x180] sm:$0xf]
    %v6556 = vld [vmem:[%s3772 + $0x184] sm:$0x1]
    %v6557 = vld [vmem:[%s3772 + $0x190] sm:$0xf]
    %v6558 = vld [vmem:[%s3772 + $0x194] sm:$0x1]
    %v6560 = vshrl.u32 %v6527, 16
    %v6562 = vrot.slane %v6560, 4
    %v6563 = vshll.u32 %v6527, 16
    %v6565 = vrot.slane %v6563, 5
    %v6566 = vor.u32 %v6562, %v6565
    %v6567 = vrot.slane %v6566, 4
    %v6569 = vshll.u32 %v6528, 16
    %v6571 = vrot.slane %v6569, 5
    %v6572 = vsel %vm404, %v6567, %v6571
    %v6574 = vshrl.u32 %v6529, 16
    %v6576 = vrot.slane %v6574, 4
    %v6577 = vshll.u32 %v6529, 16
    %v6579 = vrot.slane %v6577, 5
    %v6580 = vor.u32 %v6576, %v6579
    %v6581 = vrot.slane %v6580, 4
    %v6583 = vshll.u32 %v6530, 16
    %v6585 = vrot.slane %v6583, 5
    %v6586 = vsel %vm404, %v6581, %v6585
    %v6588 = vshrl.u32 %v6531, 16
    %v6590 = vrot.slane %v6588, 4
    %v6591 = vshll.u32 %v6531, 16
    %v6593 = vrot.slane %v6591, 5
    %v6594 = vor.u32 %v6590, %v6593
    %v6595 = vrot.slane %v6594, 4
    %v6597 = vshll.u32 %v6532, 16
    %v6599 = vrot.slane %v6597, 5
    %v6600 = vsel %vm404, %v6595, %v6599
    %v6602 = vshrl.u32 %v6533, 16
    %v6604 = vrot.slane %v6602, 4
    %v6605 = vshll.u32 %v6533, 16
    %v6607 = vrot.slane %v6605, 5
    %v6608 = vor.u32 %v6604, %v6607
    %v6609 = vrot.slane %v6608, 4
    %v6611 = vshll.u32 %v6534, 16
    %v6613 = vrot.slane %v6611, 5
    %v6614 = vsel %vm404, %v6609, %v6613
    %v6616 = vshrl.u32 %v6535, 16
    %v6618 = vrot.slane %v6616, 4
    %v6619 = vshll.u32 %v6535, 16
    %v6621 = vrot.slane %v6619, 5
    %v6622 = vor.u32 %v6618, %v6621
    %v6623 = vrot.slane %v6622, 4
    %v6625 = vshll.u32 %v6536, 16
    %v6627 = vrot.slane %v6625, 5
    %v6628 = vsel %vm404, %v6623, %v6627
    %v6630 = vshrl.u32 %v6537, 16
    %v6632 = vrot.slane %v6630, 4
    %v6633 = vshll.u32 %v6537, 16
    %v6635 = vrot.slane %v6633, 5
    %v6636 = vor.u32 %v6632, %v6635
    %v6637 = vrot.slane %v6636, 4
    %v6639 = vshll.u32 %v6538, 16
    %v6641 = vrot.slane %v6639, 5
    %v6642 = vsel %vm404, %v6637, %v6641
    %v6644 = vshrl.u32 %v6539, 16
    %v6646 = vrot.slane %v6644, 4
    %v6647 = vshll.u32 %v6539, 16
    %v6649 = vrot.slane %v6647, 5
    %v6650 = vor.u32 %v6646, %v6649
    %v6651 = vrot.slane %v6650, 4
    %v6653 = vshll.u32 %v6540, 16
    %v6655 = vrot.slane %v6653, 5
    %v6656 = vsel %vm404, %v6651, %v6655
    %v6658 = vshrl.u32 %v6541, 16
    %v6660 = vrot.slane %v6658, 4
    %v6661 = vshll.u32 %v6541, 16
    %v6663 = vrot.slane %v6661, 5
    %v6664 = vor.u32 %v6660, %v6663
    %v6665 = vrot.slane %v6664, 4
    %v6667 = vshll.u32 %v6542, 16
    %v6669 = vrot.slane %v6667, 5
    %v6670 = vsel %vm404, %v6665, %v6669
    %v6672 = vshrl.u32 %v6543, 16
    %v6674 = vrot.slane %v6672, 4
    %v6675 = vshll.u32 %v6543, 16
    %v6677 = vrot.slane %v6675, 5
    %v6678 = vor.u32 %v6674, %v6677
    %v6679 = vrot.slane %v6678, 4
    %v6681 = vshll.u32 %v6544, 16
    %v6683 = vrot.slane %v6681, 5
    %v6684 = vsel %vm404, %v6679, %v6683
    %v6686 = vshrl.u32 %v6545, 16
    %v6688 = vrot.slane %v6686, 4
    %v6689 = vshll.u32 %v6545, 16
    %v6691 = vrot.slane %v6689, 5
    %v6692 = vor.u32 %v6688, %v6691
    %v6693 = vrot.slane %v6692, 4
    %v6695 = vshll.u32 %v6546, 16
    %v6697 = vrot.slane %v6695, 5
    %v6698 = vsel %vm404, %v6693, %v6697
    %v6700 = vshrl.u32 %v6547, 16
    %v6702 = vrot.slane %v6700, 4
    %v6703 = vshll.u32 %v6547, 16
    %v6705 = vrot.slane %v6703, 5
    %v6706 = vor.u32 %v6702, %v6705
    %v6707 = vrot.slane %v6706, 4
    %v6709 = vshll.u32 %v6548, 16
    %v6711 = vrot.slane %v6709, 5
    %v6712 = vsel %vm404, %v6707, %v6711
    %v6714 = vshrl.u32 %v6549, 16
    %v6716 = vrot.slane %v6714, 4
    %v6717 = vshll.u32 %v6549, 16
    %v6719 = vrot.slane %v6717, 5
    %v6720 = vor.u32 %v6716, %v6719
    %v6721 = vrot.slane %v6720, 4
    %v6723 = vshll.u32 %v6550, 16
    %v6725 = vrot.slane %v6723, 5
    %v6726 = vsel %vm404, %v6721, %v6725
    %v6728 = vshrl.u32 %v6551, 16
    %v6730 = vrot.slane %v6728, 4
    %v6731 = vshll.u32 %v6551, 16
    %v6733 = vrot.slane %v6731, 5
    %v6734 = vor.u32 %v6730, %v6733
    %v6735 = vrot.slane %v6734, 4
    %v6737 = vshll.u32 %v6552, 16
    %v6739 = vrot.slane %v6737, 5
    %v6740 = vsel %vm404, %v6735, %v6739
    %v6742 = vshrl.u32 %v6553, 16
    %v6744 = vrot.slane %v6742, 4
    %v6745 = vshll.u32 %v6553, 16
    %v6747 = vrot.slane %v6745, 5
    %v6748 = vor.u32 %v6744, %v6747
    %v6749 = vrot.slane %v6748, 4
    %v6751 = vshll.u32 %v6554, 16
    %v6753 = vrot.slane %v6751, 5
    %v6754 = vsel %vm404, %v6749, %v6753
    %v6756 = vshrl.u32 %v6555, 16
    %v6758 = vrot.slane %v6756, 4
    %v6759 = vshll.u32 %v6555, 16
    %v6761 = vrot.slane %v6759, 5
    %v6762 = vor.u32 %v6758, %v6761
    %v6763 = vrot.slane %v6762, 4
    %v6765 = vshll.u32 %v6556, 16
    %v6767 = vrot.slane %v6765, 5
    %v6768 = vsel %vm404, %v6763, %v6767
    %v6770 = vshrl.u32 %v6557, 16
    %v6772 = vrot.slane %v6770, 4
    %v6773 = vshll.u32 %v6557, 16
    %v6775 = vrot.slane %v6773, 5
    %v6776 = vor.u32 %v6772, %v6775
    %v6777 = vrot.slane %v6776, 4
    %v6779 = vshll.u32 %v6558, 16
    %v6781 = vrot.slane %v6779, 5
    %v6782 = vsel %vm404, %v6777, %v6781
    %6783 = vrot.lane.b32.xlu0 %v6572, 64
    %v6784 = vpop.permute.xlu0 %6783
    %6785 = vrot.lane.b32.xlu0 %v6586, 64
    %v6786 = vpop.permute.xlu0 %6785
    %6787 = vrot.lane.b32.xlu0 %v6600, 64
    %v6788 = vpop.permute.xlu0 %6787
    %6789 = vrot.lane.b32.xlu0 %v6614, 64
    %v6790 = vpop.permute.xlu0 %6789
    %6791 = vrot.lane.b32.xlu0 %v6628, 64
    %v6792 = vpop.permute.xlu0 %6791
    %6793 = vrot.lane.b32.xlu0 %v6642, 64
    %v6794 = vpop.permute.xlu0 %6793
    %6795 = vrot.lane.b32.xlu0 %v6656, 64
    %v6796 = vpop.permute.xlu0 %6795
    %6797 = vrot.lane.b32.xlu0 %v6670, 64
    %v6798 = vpop.permute.xlu0 %6797
    %6799 = vrot.lane.b32.xlu0 %v6684, 64
    %v6800 = vpop.permute.xlu0 %6799
    %6801 = vrot.lane.b32.xlu0 %v6698, 64
    %v6802 = vpop.permute.xlu0 %6801
    %6803 = vrot.lane.b32.xlu0 %v6712, 64
    %v6804 = vpop.permute.xlu0 %6803
    %6805 = vrot.lane.b32.xlu0 %v6726, 64
    %v6806 = vpop.permute.xlu0 %6805
    %6807 = vrot.lane.b32.xlu0 %v6740, 64
    %v6808 = vpop.permute.xlu0 %6807
    %6809 = vrot.lane.b32.xlu0 %v6754, 64
    %v6810 = vpop.permute.xlu0 %6809
    %6811 = vrot.lane.b32.xlu0 %v6768, 64
    %v6812 = vpop.permute.xlu0 %6811
    %6813 = vrot.lane.b32.xlu0 %v6782, 64
    %v6814 = vpop.permute.xlu0 %6813
    %6831 = vst.msk [vmem:[#allocation4 + $0x14c] sm:$0xf] %vm3982, %v6784
    %6832 = vst.msk [vmem:[#allocation4 + $0x160] sm:$0xf] %vm3982, %v6786
    %6833 = vst.msk [vmem:[#allocation4 + $0x174] sm:$0xf] %vm3982, %v6788
    %6834 = vst.msk [vmem:[#allocation4 + $0x188] sm:$0xf] %vm3982, %v6790
    %6835 = vst.msk [vmem:[#allocation4 + $0x19c] sm:$0xf] %vm3982, %v6792
    %6836 = vst.msk [vmem:[#allocation4 + $0x1b0] sm:$0xf] %vm3982, %v6794
    %6837 = vst.msk [vmem:[#allocation4 + $0x1c4] sm:$0xf] %vm3982, %v6796
    %6838 = vst.msk [vmem:[#allocation4 + $0x1d8] sm:$0xf] %vm3982, %v6798
    %6839 = vst.msk [vmem:[#allocation4 + $0x1ec] sm:$0xf] %vm3982, %v6800
    %6840 = vst.msk [vmem:[#allocation4 + $0x200] sm:$0xf] %vm3982, %v6802
    %6841 = vst.msk [vmem:[#allocation4 + $0x214] sm:$0xf] %vm3982, %v6804
    %6842 = vst.msk [vmem:[#allocation4 + $0x228] sm:$0xf] %vm3982, %v6806
    %6843 = vst.msk [vmem:[#allocation4 + $0x23c] sm:$0xf] %vm3982, %v6808
    %6844 = vst.msk [vmem:[#allocation4 + $0x250] sm:$0xf] %vm3982, %v6810
    %6845 = vst.msk [vmem:[#allocation4 + $0x264] sm:$0xf] %vm3982, %v6812
    %6846 = vst.msk [vmem:[#allocation4 + $0x278] sm:$0xf] %vm3982, %v6814
    %v6847 = vld [vmem:[%s3531] sm:$0xf]
    %v6848 = vld [vmem:[%s3531 + $0x4] sm:$0x1]
    %v6849 = vld [vmem:[%s3531 + $0x10] sm:$0xf]
    %v6850 = vld [vmem:[%s3531 + $0x14] sm:$0x1]
    %v6851 = vld [vmem:[%s3531 + $0x20] sm:$0xf]
    %v6852 = vld [vmem:[%s3531 + $0x24] sm:$0x1]
    %v6853 = vld [vmem:[%s3531 + $0x30] sm:$0xf]
    %v6854 = vld [vmem:[%s3531 + $0x34] sm:$0x1]
    %v6855 = vld [vmem:[%s3531 + $0x40] sm:$0xf]
    %v6856 = vld [vmem:[%s3531 + $0x44] sm:$0x1]
    %v6857 = vld [vmem:[%s3531 + $0x50] sm:$0xf]
    %v6858 = vld [vmem:[%s3531 + $0x54] sm:$0x1]
    %v6859 = vld [vmem:[%s3531 + $0x60] sm:$0xf]
    %v6860 = vld [vmem:[%s3531 + $0x64] sm:$0x1]
    %v6861 = vld [vmem:[%s3531 + $0x70] sm:$0xf]
    %v6862 = vld [vmem:[%s3531 + $0x74] sm:$0x1]
    %v6863 = vld [vmem:[%s3531 + $0x120] sm:$0xf]
    %v6864 = vld [vmem:[%s3531 + $0x124] sm:$0x1]
    %v6865 = vld [vmem:[%s3531 + $0x130] sm:$0xf]
    %v6866 = vld [vmem:[%s3531 + $0x134] sm:$0x1]
    %v6867 = vld [vmem:[%s3531 + $0x140] sm:$0xf]
    %v6868 = vld [vmem:[%s3531 + $0x144] sm:$0x1]
    %v6869 = vld [vmem:[%s3531 + $0x150] sm:$0xf]
    %v6870 = vld [vmem:[%s3531 + $0x154] sm:$0x1]
    %v6871 = vld [vmem:[%s3531 + $0x160] sm:$0xf]
    %v6872 = vld [vmem:[%s3531 + $0x164] sm:$0x1]
    %v6873 = vld [vmem:[%s3531 + $0x170] sm:$0xf]
    %v6874 = vld [vmem:[%s3531 + $0x174] sm:$0x1]
    %v6875 = vld [vmem:[%s3531 + $0x180] sm:$0xf]
    %v6876 = vld [vmem:[%s3531 + $0x184] sm:$0x1]
    %v6877 = vld [vmem:[%s3531 + $0x190] sm:$0xf]
    %v6878 = vld [vmem:[%s3531 + $0x194] sm:$0x1]
    %v6880 = vshrl.u32 %v6847, 16
    %v6882 = vrot.slane %v6880, 4
    %v6883 = vshll.u32 %v6847, 16
    %v6885 = vrot.slane %v6883, 5
    %v6886 = vor.u32 %v6882, %v6885
    %v6887 = vrot.slane %v6886, 4
    %v6889 = vshll.u32 %v6848, 16
    %v6891 = vrot.slane %v6889, 5
    %v6892 = vsel %vm404, %v6887, %v6891
    %v6894 = vshrl.u32 %v6849, 16
    %v6896 = vrot.slane %v6894, 4
    %v6897 = vshll.u32 %v6849, 16
    %v6899 = vrot.slane %v6897, 5
    %v6900 = vor.u32 %v6896, %v6899
    %v6901 = vrot.slane %v6900, 4
    %v6903 = vshll.u32 %v6850, 16
    %v6905 = vrot.slane %v6903, 5
    %v6906 = vsel %vm404, %v6901, %v6905
    %v6908 = vshrl.u32 %v6851, 16
    %v6910 = vrot.slane %v6908, 4
    %v6911 = vshll.u32 %v6851, 16
    %v6913 = vrot.slane %v6911, 5
    %v6914 = vor.u32 %v6910, %v6913
    %v6915 = vrot.slane %v6914, 4
    %v6917 = vshll.u32 %v6852, 16
    %v6919 = vrot.slane %v6917, 5
    %v6920 = vsel %vm404, %v6915, %v6919
    %v6922 = vshrl.u32 %v6853, 16
    %v6924 = vrot.slane %v6922, 4
    %v6925 = vshll.u32 %v6853, 16
    %v6927 = vrot.slane %v6925, 5
    %v6928 = vor.u32 %v6924, %v6927
    %v6929 = vrot.slane %v6928, 4
    %v6931 = vshll.u32 %v6854, 16
    %v6933 = vrot.slane %v6931, 5
    %v6934 = vsel %vm404, %v6929, %v6933
    %v6936 = vshrl.u32 %v6855, 16
    %v6938 = vrot.slane %v6936, 4
    %v6939 = vshll.u32 %v6855, 16
    %v6941 = vrot.slane %v6939, 5
    %v6942 = vor.u32 %v6938, %v6941
    %v6943 = vrot.slane %v6942, 4
    %v6945 = vshll.u32 %v6856, 16
    %v6947 = vrot.slane %v6945, 5
    %v6948 = vsel %vm404, %v6943, %v6947
    %v6950 = vshrl.u32 %v6857, 16
    %v6952 = vrot.slane %v6950, 4
    %v6953 = vshll.u32 %v6857, 16
    %v6955 = vrot.slane %v6953, 5
    %v6956 = vor.u32 %v6952, %v6955
    %v6957 = vrot.slane %v6956, 4
    %v6959 = vshll.u32 %v6858, 16
    %v6961 = vrot.slane %v6959, 5
    %v6962 = vsel %vm404, %v6957, %v6961
    %v6964 = vshrl.u32 %v6859, 16
    %v6966 = vrot.slane %v6964, 4
    %v6967 = vshll.u32 %v6859, 16
    %v6969 = vrot.slane %v6967, 5
    %v6970 = vor.u32 %v6966, %v6969
    %v6971 = vrot.slane %v6970, 4
    %v6973 = vshll.u32 %v6860, 16
    %v6975 = vrot.slane %v6973, 5
    %v6976 = vsel %vm404, %v6971, %v6975
    %v6978 = vshrl.u32 %v6861, 16
    %v6980 = vrot.slane %v6978, 4
    %v6981 = vshll.u32 %v6861, 16
    %v6983 = vrot.slane %v6981, 5
    %v6984 = vor.u32 %v6980, %v6983
    %v6985 = vrot.slane %v6984, 4
    %v6987 = vshll.u32 %v6862, 16
    %v6989 = vrot.slane %v6987, 5
    %v6990 = vsel %vm404, %v6985, %v6989
    %v6992 = vshrl.u32 %v6863, 16
    %v6994 = vrot.slane %v6992, 4
    %v6995 = vshll.u32 %v6863, 16
    %v6997 = vrot.slane %v6995, 5
    %v6998 = vor.u32 %v6994, %v6997
    %v6999 = vrot.slane %v6998, 4
    %v7001 = vshll.u32 %v6864, 16
    %v7003 = vrot.slane %v7001, 5
    %v7004 = vsel %vm404, %v6999, %v7003
    %v7006 = vshrl.u32 %v6865, 16
    %v7008 = vrot.slane %v7006, 4
    %v7009 = vshll.u32 %v6865, 16
    %v7011 = vrot.slane %v7009, 5
    %v7012 = vor.u32 %v7008, %v7011
    %v7013 = vrot.slane %v7012, 4
    %v7015 = vshll.u32 %v6866, 16
    %v7017 = vrot.slane %v7015, 5
    %v7018 = vsel %vm404, %v7013, %v7017
    %v7020 = vshrl.u32 %v6867, 16
    %v7022 = vrot.slane %v7020, 4
    %v7023 = vshll.u32 %v6867, 16
    %v7025 = vrot.slane %v7023, 5
    %v7026 = vor.u32 %v7022, %v7025
    %v7027 = vrot.slane %v7026, 4
    %v7029 = vshll.u32 %v6868, 16
    %v7031 = vrot.slane %v7029, 5
    %v7032 = vsel %vm404, %v7027, %v7031
    %v7034 = vshrl.u32 %v6869, 16
    %v7036 = vrot.slane %v7034, 4
    %v7037 = vshll.u32 %v6869, 16
    %v7039 = vrot.slane %v7037, 5
    %v7040 = vor.u32 %v7036, %v7039
    %v7041 = vrot.slane %v7040, 4
    %v7043 = vshll.u32 %v6870, 16
    %v7045 = vrot.slane %v7043, 5
    %v7046 = vsel %vm404, %v7041, %v7045
    %v7048 = vshrl.u32 %v6871, 16
    %v7050 = vrot.slane %v7048, 4
    %v7051 = vshll.u32 %v6871, 16
    %v7053 = vrot.slane %v7051, 5
    %v7054 = vor.u32 %v7050, %v7053
    %v7055 = vrot.slane %v7054, 4
    %v7057 = vshll.u32 %v6872, 16
    %v7059 = vrot.slane %v7057, 5
    %v7060 = vsel %vm404, %v7055, %v7059
    %v7062 = vshrl.u32 %v6873, 16
    %v7064 = vrot.slane %v7062, 4
    %v7065 = vshll.u32 %v6873, 16
    %v7067 = vrot.slane %v7065, 5
    %v7068 = vor.u32 %v7064, %v7067
    %v7069 = vrot.slane %v7068, 4
    %v7071 = vshll.u32 %v6874, 16
    %v7073 = vrot.slane %v7071, 5
    %v7074 = vsel %vm404, %v7069, %v7073
    %v7076 = vshrl.u32 %v6875, 16
    %v7078 = vrot.slane %v7076, 4
    %v7079 = vshll.u32 %v6875, 16
    %v7081 = vrot.slane %v7079, 5
    %v7082 = vor.u32 %v7078, %v7081
    %v7083 = vrot.slane %v7082, 4
    %v7085 = vshll.u32 %v6876, 16
    %v7087 = vrot.slane %v7085, 5
    %v7088 = vsel %vm404, %v7083, %v7087
    %v7090 = vshrl.u32 %v6877, 16
    %v7092 = vrot.slane %v7090, 4
    %v7093 = vshll.u32 %v6877, 16
    %v7095 = vrot.slane %v7093, 5
    %v7096 = vor.u32 %v7092, %v7095
    %v7097 = vrot.slane %v7096, 4
    %v7099 = vshll.u32 %v6878, 16
    %v7101 = vrot.slane %v7099, 5
    %v7102 = vsel %vm404, %v7097, %v7101
    %7119 = vst.msk [vmem:[#allocation4 + $0x150] sm:$0xf] %vm49, %v6892
    %7120 = vst.msk [vmem:[#allocation4 + $0x164] sm:$0xf] %vm49, %v6906
    %7121 = vst.msk [vmem:[#allocation4 + $0x178] sm:$0xf] %vm49, %v6920
    %7122 = vst.msk [vmem:[#allocation4 + $0x18c] sm:$0xf] %vm49, %v6934
    %7123 = vst.msk [vmem:[#allocation4 + $0x1a0] sm:$0xf] %vm49, %v6948
    %7124 = vst.msk [vmem:[#allocation4 + $0x1b4] sm:$0xf] %vm49, %v6962
    %7125 = vst.msk [vmem:[#allocation4 + $0x1c8] sm:$0xf] %vm49, %v6976
    %7126 = vst.msk [vmem:[#allocation4 + $0x1dc] sm:$0xf] %vm49, %v6990
    %7127 = vst.msk [vmem:[#allocation4 + $0x1f0] sm:$0xf] %vm49, %v7004
    %7128 = vst.msk [vmem:[#allocation4 + $0x204] sm:$0xf] %vm49, %v7018
    %7129 = vst.msk [vmem:[#allocation4 + $0x218] sm:$0xf] %vm49, %v7032
    %7130 = vst.msk [vmem:[#allocation4 + $0x22c] sm:$0xf] %vm49, %v7046
    %7131 = vst.msk [vmem:[#allocation4 + $0x240] sm:$0xf] %vm49, %v7060
    %7132 = vst.msk [vmem:[#allocation4 + $0x254] sm:$0xf] %vm49, %v7074
    %7133 = vst.msk [vmem:[#allocation4 + $0x268] sm:$0xf] %vm49, %v7088
    %7134 = vst.msk [vmem:[#allocation4 + $0x27c] sm:$0xf] %vm49, %v7102
    %v7135 = vld [vmem:[%s3378] sm:$0xf]
    %v7136 = vld [vmem:[%s3378 + $0x10] sm:$0xf]
    %v7137 = vld [vmem:[%s3378 + $0x20] sm:$0xf]
    %v7138 = vld [vmem:[%s3378 + $0x30] sm:$0xf]
    %v7139 = vld [vmem:[%s3378 + $0x40] sm:$0xf]
    %v7140 = vld [vmem:[%s3378 + $0x50] sm:$0xf]
    %v7141 = vld [vmem:[%s3378 + $0x60] sm:$0xf]
    %v7142 = vld [vmem:[%s3378 + $0x70] sm:$0xf]
    %v7143 = vld [vmem:[%s3378 + $0x120] sm:$0xf]
    %v7144 = vld [vmem:[%s3378 + $0x130] sm:$0xf]
    %v7145 = vld [vmem:[%s3378 + $0x140] sm:$0xf]
    %v7146 = vld [vmem:[%s3378 + $0x150] sm:$0xf]
    %v7147 = vld [vmem:[%s3378 + $0x160] sm:$0xf]
    %v7148 = vld [vmem:[%s3378 + $0x170] sm:$0xf]
    %v7149 = vld [vmem:[%s3378 + $0x180] sm:$0xf]
    %v7150 = vld [vmem:[%s3378 + $0x190] sm:$0xf]
    %7151 = vst.msk [vmem:[#allocation4 + $0x280] sm:$0xf] %vm49, %v7135
    %7152 = vst.msk [vmem:[#allocation4 + $0x294] sm:$0xf] %vm49, %v7136
    %7153 = vst.msk [vmem:[#allocation4 + $0x2a8] sm:$0xf] %vm49, %v7137
    %7154 = vst.msk [vmem:[#allocation4 + $0x2bc] sm:$0xf] %vm49, %v7138
    %7155 = vst.msk [vmem:[#allocation4 + $0x2d0] sm:$0xf] %vm49, %v7139
    %7156 = vst.msk [vmem:[#allocation4 + $0x2e4] sm:$0xf] %vm49, %v7140
    %7157 = vst.msk [vmem:[#allocation4 + $0x2f8] sm:$0xf] %vm49, %v7141
    %7158 = vst.msk [vmem:[#allocation4 + $0x30c] sm:$0xf] %vm49, %v7142
    %7159 = vst.msk [vmem:[#allocation4 + $0x320] sm:$0xf] %vm49, %v7143
    %7160 = vst.msk [vmem:[#allocation4 + $0x334] sm:$0xf] %vm49, %v7144
    %7161 = vst.msk [vmem:[#allocation4 + $0x348] sm:$0xf] %vm49, %v7145
    %7162 = vst.msk [vmem:[#allocation4 + $0x35c] sm:$0xf] %vm49, %v7146
    %7163 = vst.msk [vmem:[#allocation4 + $0x370] sm:$0xf] %vm49, %v7147
    %7164 = vst.msk [vmem:[#allocation4 + $0x384] sm:$0xf] %vm49, %v7148
    %7165 = vst.msk [vmem:[#allocation4 + $0x398] sm:$0xf] %vm49, %v7149
    %7166 = vst.msk [vmem:[#allocation4 + $0x3ac] sm:$0xf] %vm49, %v7150
    %v7167 = vld [vmem:[%s3137] sm:$0xf]
    %v7168 = vld [vmem:[%s3137 + $0x10] sm:$0xf]
    %v7169 = vld [vmem:[%s3137 + $0x20] sm:$0xf]
    %v7170 = vld [vmem:[%s3137 + $0x30] sm:$0xf]
    %v7171 = vld [vmem:[%s3137 + $0x40] sm:$0xf]
    %v7172 = vld [vmem:[%s3137 + $0x50] sm:$0xf]
    %v7173 = vld [vmem:[%s3137 + $0x60] sm:$0xf]
    %v7174 = vld [vmem:[%s3137 + $0x70] sm:$0xf]
    %v7175 = vld [vmem:[%s3137 + $0x120] sm:$0xf]
    %v7176 = vld [vmem:[%s3137 + $0x130] sm:$0xf]
    %v7177 = vld [vmem:[%s3137 + $0x140] sm:$0xf]
    %v7178 = vld [vmem:[%s3137 + $0x150] sm:$0xf]
    %v7179 = vld [vmem:[%s3137 + $0x160] sm:$0xf]
    %v7180 = vld [vmem:[%s3137 + $0x170] sm:$0xf]
    %v7181 = vld [vmem:[%s3137 + $0x180] sm:$0xf]
    %v7182 = vld [vmem:[%s3137 + $0x190] sm:$0xf]
    %7199 = vrot.lane.b32.xlu0 %v7167, 64
    %v7200 = vpop.permute.xlu0 %7199
    %7201 = vrot.lane.b32.xlu0 %v7168, 64
    %v7202 = vpop.permute.xlu0 %7201
    %7203 = vrot.lane.b32.xlu0 %v7169, 64
    %v7204 = vpop.permute.xlu0 %7203
    %7205 = vrot.lane.b32.xlu0 %v7170, 64
    %v7206 = vpop.permute.xlu0 %7205
    %7207 = vrot.lane.b32.xlu0 %v7171, 64
    %v7208 = vpop.permute.xlu0 %7207
    %7209 = vrot.lane.b32.xlu0 %v7172, 64
    %v7210 = vpop.permute.xlu0 %7209
    %7211 = vrot.lane.b32.xlu0 %v7173, 64
    %v7212 = vpop.permute.xlu0 %7211
    %7213 = vrot.lane.b32.xlu0 %v7174, 64
    %v7214 = vpop.permute.xlu0 %7213
    %7215 = vrot.lane.b32.xlu0 %v7175, 64
    %v7216 = vpop.permute.xlu0 %7215
    %7217 = vrot.lane.b32.xlu0 %v7176, 64
    %v7218 = vpop.permute.xlu0 %7217
    %7219 = vrot.lane.b32.xlu0 %v7177, 64
    %v7220 = vpop.permute.xlu0 %7219
    %7221 = vrot.lane.b32.xlu0 %v7178, 64
    %v7222 = vpop.permute.xlu0 %7221
    %7223 = vrot.lane.b32.xlu0 %v7179, 64
    %v7224 = vpop.permute.xlu0 %7223
    %7225 = vrot.lane.b32.xlu0 %v7180, 64
    %v7226 = vpop.permute.xlu0 %7225
    %7227 = vrot.lane.b32.xlu0 %v7181, 64
    %v7228 = vpop.permute.xlu0 %7227
    %7229 = vrot.lane.b32.xlu0 %v7182, 64
    %v7230 = vpop.permute.xlu0 %7229
    %7247 = vst.msk [vmem:[#allocation4 + $0x280] sm:$0xf] %vm3982, %v7200
    %7248 = vst.msk [vmem:[#allocation4 + $0x294] sm:$0xf] %vm3982, %v7202
    %7249 = vst.msk [vmem:[#allocation4 + $0x2a8] sm:$0xf] %vm3982, %v7204
    %7250 = vst.msk [vmem:[#allocation4 + $0x2bc] sm:$0xf] %vm3982, %v7206
    %7251 = vst.msk [vmem:[#allocation4 + $0x2d0] sm:$0xf] %vm3982, %v7208
    %7252 = vst.msk [vmem:[#allocation4 + $0x2e4] sm:$0xf] %vm3982, %v7210
    %7253 = vst.msk [vmem:[#allocation4 + $0x2f8] sm:$0xf] %vm3982, %v7212
    %7254 = vst.msk [vmem:[#allocation4 + $0x30c] sm:$0xf] %vm3982, %v7214
    %7255 = vst.msk [vmem:[#allocation4 + $0x320] sm:$0xf] %vm3982, %v7216
    %7256 = vst.msk [vmem:[#allocation4 + $0x334] sm:$0xf] %vm3982, %v7218
    %7257 = vst.msk [vmem:[#allocation4 + $0x348] sm:$0xf] %vm3982, %v7220
    %7258 = vst.msk [vmem:[#allocation4 + $0x35c] sm:$0xf] %vm3982, %v7222
    %7259 = vst.msk [vmem:[#allocation4 + $0x370] sm:$0xf] %vm3982, %v7224
    %7260 = vst.msk [vmem:[#allocation4 + $0x384] sm:$0xf] %vm3982, %v7226
    %7261 = vst.msk [vmem:[#allocation4 + $0x398] sm:$0xf] %vm3982, %v7228
    %7262 = vst.msk [vmem:[#allocation4 + $0x3ac] sm:$0xf] %vm3982, %v7230
    %v7263 = vld [vmem:[%s3378] sm:$0xf]
    %v7264 = vld [vmem:[%s3378 + $0x4] sm:$0x1]
    %v7265 = vld [vmem:[%s3378 + $0x10] sm:$0xf]
    %v7266 = vld [vmem:[%s3378 + $0x14] sm:$0x1]
    %v7267 = vld [vmem:[%s3378 + $0x20] sm:$0xf]
    %v7268 = vld [vmem:[%s3378 + $0x24] sm:$0x1]
    %v7269 = vld [vmem:[%s3378 + $0x30] sm:$0xf]
    %v7270 = vld [vmem:[%s3378 + $0x34] sm:$0x1]
    %v7271 = vld [vmem:[%s3378 + $0x40] sm:$0xf]
    %v7272 = vld [vmem:[%s3378 + $0x44] sm:$0x1]
    %v7273 = vld [vmem:[%s3378 + $0x50] sm:$0xf]
    %v7274 = vld [vmem:[%s3378 + $0x54] sm:$0x1]
    %v7275 = vld [vmem:[%s3378 + $0x60] sm:$0xf]
    %v7276 = vld [vmem:[%s3378 + $0x64] sm:$0x1]
    %v7277 = vld [vmem:[%s3378 + $0x70] sm:$0xf]
    %v7278 = vld [vmem:[%s3378 + $0x74] sm:$0x1]
    %v7279 = vld [vmem:[%s3378 + $0x120] sm:$0xf]
    %v7280 = vld [vmem:[%s3378 + $0x124] sm:$0x1]
    %v7281 = vld [vmem:[%s3378 + $0x130] sm:$0xf]
    %v7282 = vld [vmem:[%s3378 + $0x134] sm:$0x1]
    %v7283 = vld [vmem:[%s3378 + $0x140] sm:$0xf]
    %v7284 = vld [vmem:[%s3378 + $0x144] sm:$0x1]
    %v7285 = vld [vmem:[%s3378 + $0x150] sm:$0xf]
    %v7286 = vld [vmem:[%s3378 + $0x154] sm:$0x1]
    %v7287 = vld [vmem:[%s3378 + $0x160] sm:$0xf]
    %v7288 = vld [vmem:[%s3378 + $0x164] sm:$0x1]
    %v7289 = vld [vmem:[%s3378 + $0x170] sm:$0xf]
    %v7290 = vld [vmem:[%s3378 + $0x174] sm:$0x1]
    %v7291 = vld [vmem:[%s3378 + $0x180] sm:$0xf]
    %v7292 = vld [vmem:[%s3378 + $0x184] sm:$0x1]
    %v7293 = vld [vmem:[%s3378 + $0x190] sm:$0xf]
    %v7294 = vld [vmem:[%s3378 + $0x194] sm:$0x1]
    %v7296 = vshrl.u32 %v7263, 16
    %v7298 = vrot.slane %v7296, 4
    %v7299 = vshll.u32 %v7263, 16
    %v7301 = vrot.slane %v7299, 5
    %v7302 = vor.u32 %v7298, %v7301
    %v7303 = vrot.slane %v7302, 4
    %v7305 = vshll.u32 %v7264, 16
    %v7307 = vrot.slane %v7305, 5
    %v7308 = vsel %vm404, %v7303, %v7307
    %v7310 = vshrl.u32 %v7265, 16
    %v7312 = vrot.slane %v7310, 4
    %v7313 = vshll.u32 %v7265, 16
    %v7315 = vrot.slane %v7313, 5
    %v7316 = vor.u32 %v7312, %v7315
    %v7317 = vrot.slane %v7316, 4
    %v7319 = vshll.u32 %v7266, 16
    %v7321 = vrot.slane %v7319, 5
    %v7322 = vsel %vm404, %v7317, %v7321
    %v7324 = vshrl.u32 %v7267, 16
    %v7326 = vrot.slane %v7324, 4
    %v7327 = vshll.u32 %v7267, 16
    %v7329 = vrot.slane %v7327, 5
    %v7330 = vor.u32 %v7326, %v7329
    %v7331 = vrot.slane %v7330, 4
    %v7333 = vshll.u32 %v7268, 16
    %v7335 = vrot.slane %v7333, 5
    %v7336 = vsel %vm404, %v7331, %v7335
    %v7338 = vshrl.u32 %v7269, 16
    %v7340 = vrot.slane %v7338, 4
    %v7341 = vshll.u32 %v7269, 16
    %v7343 = vrot.slane %v7341, 5
    %v7344 = vor.u32 %v7340, %v7343
    %v7345 = vrot.slane %v7344, 4
    %v7347 = vshll.u32 %v7270, 16
    %v7349 = vrot.slane %v7347, 5
    %v7350 = vsel %vm404, %v7345, %v7349
    %v7352 = vshrl.u32 %v7271, 16
    %v7354 = vrot.slane %v7352, 4
    %v7355 = vshll.u32 %v7271, 16
    %v7357 = vrot.slane %v7355, 5
    %v7358 = vor.u32 %v7354, %v7357
    %v7359 = vrot.slane %v7358, 4
    %v7361 = vshll.u32 %v7272, 16
    %v7363 = vrot.slane %v7361, 5
    %v7364 = vsel %vm404, %v7359, %v7363
    %v7366 = vshrl.u32 %v7273, 16
    %v7368 = vrot.slane %v7366, 4
    %v7369 = vshll.u32 %v7273, 16
    %v7371 = vrot.slane %v7369, 5
    %v7372 = vor.u32 %v7368, %v7371
    %v7373 = vrot.slane %v7372, 4
    %v7375 = vshll.u32 %v7274, 16
    %v7377 = vrot.slane %v7375, 5
    %v7378 = vsel %vm404, %v7373, %v7377
    %v7380 = vshrl.u32 %v7275, 16
    %v7382 = vrot.slane %v7380, 4
    %v7383 = vshll.u32 %v7275, 16
    %v7385 = vrot.slane %v7383, 5
    %v7386 = vor.u32 %v7382, %v7385
    %v7387 = vrot.slane %v7386, 4
    %v7389 = vshll.u32 %v7276, 16
    %v7391 = vrot.slane %v7389, 5
    %v7392 = vsel %vm404, %v7387, %v7391
    %v7394 = vshrl.u32 %v7277, 16
    %v7396 = vrot.slane %v7394, 4
    %v7397 = vshll.u32 %v7277, 16
    %v7399 = vrot.slane %v7397, 5
    %v7400 = vor.u32 %v7396, %v7399
    %v7401 = vrot.slane %v7400, 4
    %v7403 = vshll.u32 %v7278, 16
    %v7405 = vrot.slane %v7403, 5
    %v7406 = vsel %vm404, %v7401, %v7405
    %v7408 = vshrl.u32 %v7279, 16
    %v7410 = vrot.slane %v7408, 4
    %v7411 = vshll.u32 %v7279, 16
    %v7413 = vrot.slane %v7411, 5
    %v7414 = vor.u32 %v7410, %v7413
    %v7415 = vrot.slane %v7414, 4
    %v7417 = vshll.u32 %v7280, 16
    %v7419 = vrot.slane %v7417, 5
    %v7420 = vsel %vm404, %v7415, %v7419
    %v7422 = vshrl.u32 %v7281, 16
    %v7424 = vrot.slane %v7422, 4
    %v7425 = vshll.u32 %v7281, 16
    %v7427 = vrot.slane %v7425, 5
    %v7428 = vor.u32 %v7424, %v7427
    %v7429 = vrot.slane %v7428, 4
    %v7431 = vshll.u32 %v7282, 16
    %v7433 = vrot.slane %v7431, 5
    %v7434 = vsel %vm404, %v7429, %v7433
    %v7436 = vshrl.u32 %v7283, 16
    %v7438 = vrot.slane %v7436, 4
    %v7439 = vshll.u32 %v7283, 16
    %v7441 = vrot.slane %v7439, 5
    %v7442 = vor.u32 %v7438, %v7441
    %v7443 = vrot.slane %v7442, 4
    %v7445 = vshll.u32 %v7284, 16
    %v7447 = vrot.slane %v7445, 5
    %v7448 = vsel %vm404, %v7443, %v7447
    %v7450 = vshrl.u32 %v7285, 16
    %v7452 = vrot.slane %v7450, 4
    %v7453 = vshll.u32 %v7285, 16
    %v7455 = vrot.slane %v7453, 5
    %v7456 = vor.u32 %v7452, %v7455
    %v7457 = vrot.slane %v7456, 4
    %v7459 = vshll.u32 %v7286, 16
    %v7461 = vrot.slane %v7459, 5
    %v7462 = vsel %vm404, %v7457, %v7461
    %v7464 = vshrl.u32 %v7287, 16
    %v7466 = vrot.slane %v7464, 4
    %v7467 = vshll.u32 %v7287, 16
    %v7469 = vrot.slane %v7467, 5
    %v7470 = vor.u32 %v7466, %v7469
    %v7471 = vrot.slane %v7470, 4
    %v7473 = vshll.u32 %v7288, 16
    %v7475 = vrot.slane %v7473, 5
    %v7476 = vsel %vm404, %v7471, %v7475
    %v7478 = vshrl.u32 %v7289, 16
    %v7480 = vrot.slane %v7478, 4
    %v7481 = vshll.u32 %v7289, 16
    %v7483 = vrot.slane %v7481, 5
    %v7484 = vor.u32 %v7480, %v7483
    %v7485 = vrot.slane %v7484, 4
    %v7487 = vshll.u32 %v7290, 16
    %v7489 = vrot.slane %v7487, 5
    %v7490 = vsel %vm404, %v7485, %v7489
    %v7492 = vshrl.u32 %v7291, 16
    %v7494 = vrot.slane %v7492, 4
    %v7495 = vshll.u32 %v7291, 16
    %v7497 = vrot.slane %v7495, 5
    %v7498 = vor.u32 %v7494, %v7497
    %v7499 = vrot.slane %v7498, 4
    %v7501 = vshll.u32 %v7292, 16
    %v7503 = vrot.slane %v7501, 5
    %v7504 = vsel %vm404, %v7499, %v7503
    %v7506 = vshrl.u32 %v7293, 16
    %v7508 = vrot.slane %v7506, 4
    %v7509 = vshll.u32 %v7293, 16
    %v7511 = vrot.slane %v7509, 5
    %v7512 = vor.u32 %v7508, %v7511
    %v7513 = vrot.slane %v7512, 4
    %v7515 = vshll.u32 %v7294, 16
    %v7517 = vrot.slane %v7515, 5
    %v7518 = vsel %vm404, %v7513, %v7517
    %7535 = vst.msk [vmem:[#allocation4 + $0x284] sm:$0xf] %vm49, %v7308
    %7536 = vst.msk [vmem:[#allocation4 + $0x298] sm:$0xf] %vm49, %v7322
    %7537 = vst.msk [vmem:[#allocation4 + $0x2ac] sm:$0xf] %vm49, %v7336
    %7538 = vst.msk [vmem:[#allocation4 + $0x2c0] sm:$0xf] %vm49, %v7350
    %7539 = vst.msk [vmem:[#allocation4 + $0x2d4] sm:$0xf] %vm49, %v7364
    %7540 = vst.msk [vmem:[#allocation4 + $0x2e8] sm:$0xf] %vm49, %v7378
    %7541 = vst.msk [vmem:[#allocation4 + $0x2fc] sm:$0xf] %vm49, %v7392
    %7542 = vst.msk [vmem:[#allocation4 + $0x310] sm:$0xf] %vm49, %v7406
    %7543 = vst.msk [vmem:[#allocation4 + $0x324] sm:$0xf] %vm49, %v7420
    %7544 = vst.msk [vmem:[#allocation4 + $0x338] sm:$0xf] %vm49, %v7434
    %7545 = vst.msk [vmem:[#allocation4 + $0x34c] sm:$0xf] %vm49, %v7448
    %7546 = vst.msk [vmem:[#allocation4 + $0x360] sm:$0xf] %vm49, %v7462
    %7547 = vst.msk [vmem:[#allocation4 + $0x374] sm:$0xf] %vm49, %v7476
    %7548 = vst.msk [vmem:[#allocation4 + $0x388] sm:$0xf] %vm49, %v7490
    %7549 = vst.msk [vmem:[#allocation4 + $0x39c] sm:$0xf] %vm49, %v7504
    %7550 = vst.msk [vmem:[#allocation4 + $0x3b0] sm:$0xf] %vm49, %v7518
    %v7551 = vld [vmem:[%s3772] sm:$0xf]
    %v7552 = vld [vmem:[%s3772 + $0x10] sm:$0xf]
    %v7553 = vld [vmem:[%s3772 + $0x20] sm:$0xf]
    %v7554 = vld [vmem:[%s3772 + $0x30] sm:$0xf]
    %v7555 = vld [vmem:[%s3772 + $0x40] sm:$0xf]
    %v7556 = vld [vmem:[%s3772 + $0x50] sm:$0xf]
    %v7557 = vld [vmem:[%s3772 + $0x60] sm:$0xf]
    %v7558 = vld [vmem:[%s3772 + $0x70] sm:$0xf]
    %v7559 = vld [vmem:[%s3772 + $0x120] sm:$0xf]
    %v7560 = vld [vmem:[%s3772 + $0x130] sm:$0xf]
    %v7561 = vld [vmem:[%s3772 + $0x140] sm:$0xf]
    %v7562 = vld [vmem:[%s3772 + $0x150] sm:$0xf]
    %v7563 = vld [vmem:[%s3772 + $0x160] sm:$0xf]
    %v7564 = vld [vmem:[%s3772 + $0x170] sm:$0xf]
    %v7565 = vld [vmem:[%s3772 + $0x180] sm:$0xf]
    %v7566 = vld [vmem:[%s3772 + $0x190] sm:$0xf]
    %7583 = vrot.lane.b32.xlu0 %v7551, 64
    %v7584 = vpop.permute.xlu0 %7583
    %7585 = vrot.lane.b32.xlu0 %v7552, 64
    %v7586 = vpop.permute.xlu0 %7585
    %7587 = vrot.lane.b32.xlu0 %v7553, 64
    %v7588 = vpop.permute.xlu0 %7587
    %7589 = vrot.lane.b32.xlu0 %v7554, 64
    %v7590 = vpop.permute.xlu0 %7589
    %7591 = vrot.lane.b32.xlu0 %v7555, 64
    %v7592 = vpop.permute.xlu0 %7591
    %7593 = vrot.lane.b32.xlu0 %v7556, 64
    %v7594 = vpop.permute.xlu0 %7593
    %7595 = vrot.lane.b32.xlu0 %v7557, 64
    %v7596 = vpop.permute.xlu0 %7595
    %7597 = vrot.lane.b32.xlu0 %v7558, 64
    %v7598 = vpop.permute.xlu0 %7597
    %7599 = vrot.lane.b32.xlu0 %v7559, 64
    %v7600 = vpop.permute.xlu0 %7599
    %7601 = vrot.lane.b32.xlu0 %v7560, 64
    %v7602 = vpop.permute.xlu0 %7601
    %7603 = vrot.lane.b32.xlu0 %v7561, 64
    %v7604 = vpop.permute.xlu0 %7603
    %7605 = vrot.lane.b32.xlu0 %v7562, 64
    %v7606 = vpop.permute.xlu0 %7605
    %7607 = vrot.lane.b32.xlu0 %v7563, 64
    %v7608 = vpop.permute.xlu0 %7607
    %7609 = vrot.lane.b32.xlu0 %v7564, 64
    %v7610 = vpop.permute.xlu0 %7609
    %7611 = vrot.lane.b32.xlu0 %v7565, 64
    %v7612 = vpop.permute.xlu0 %7611
    %7613 = vrot.lane.b32.xlu0 %v7566, 64
    %v7614 = vpop.permute.xlu0 %7613
    %7631 = vst.msk [vmem:[#allocation4 + $0x284] sm:$0xf] %vm3982, %v7584
    %7632 = vst.msk [vmem:[#allocation4 + $0x298] sm:$0xf] %vm3982, %v7586
    %7633 = vst.msk [vmem:[#allocation4 + $0x2ac] sm:$0xf] %vm3982, %v7588
    %7634 = vst.msk [vmem:[#allocation4 + $0x2c0] sm:$0xf] %vm3982, %v7590
    %7635 = vst.msk [vmem:[#allocation4 + $0x2d4] sm:$0xf] %vm3982, %v7592
    %7636 = vst.msk [vmem:[#allocation4 + $0x2e8] sm:$0xf] %vm3982, %v7594
    %7637 = vst.msk [vmem:[#allocation4 + $0x2fc] sm:$0xf] %vm3982, %v7596
    %7638 = vst.msk [vmem:[#allocation4 + $0x310] sm:$0xf] %vm3982, %v7598
    %7639 = vst.msk [vmem:[#allocation4 + $0x324] sm:$0xf] %vm3982, %v7600
    %7640 = vst.msk [vmem:[#allocation4 + $0x338] sm:$0xf] %vm3982, %v7602
    %7641 = vst.msk [vmem:[#allocation4 + $0x34c] sm:$0xf] %vm3982, %v7604
    %7642 = vst.msk [vmem:[#allocation4 + $0x360] sm:$0xf] %vm3982, %v7606
    %7643 = vst.msk [vmem:[#allocation4 + $0x374] sm:$0xf] %vm3982, %v7608
    %7644 = vst.msk [vmem:[#allocation4 + $0x388] sm:$0xf] %vm3982, %v7610
    %7645 = vst.msk [vmem:[#allocation4 + $0x39c] sm:$0xf] %vm3982, %v7612
    %7646 = vst.msk [vmem:[#allocation4 + $0x3b0] sm:$0xf] %vm3982, %v7614
    %v7647 = vld [vmem:[%s3531] sm:$0xf]
    %v7648 = vld [vmem:[%s3531 + $0x10] sm:$0xf]
    %v7649 = vld [vmem:[%s3531 + $0x20] sm:$0xf]
    %v7650 = vld [vmem:[%s3531 + $0x30] sm:$0xf]
    %v7651 = vld [vmem:[%s3531 + $0x40] sm:$0xf]
    %v7652 = vld [vmem:[%s3531 + $0x50] sm:$0xf]
    %v7653 = vld [vmem:[%s3531 + $0x60] sm:$0xf]
    %v7654 = vld [vmem:[%s3531 + $0x70] sm:$0xf]
    %v7655 = vld [vmem:[%s3531 + $0x120] sm:$0xf]
    %v7656 = vld [vmem:[%s3531 + $0x130] sm:$0xf]
    %v7657 = vld [vmem:[%s3531 + $0x140] sm:$0xf]
    %v7658 = vld [vmem:[%s3531 + $0x150] sm:$0xf]
    %v7659 = vld [vmem:[%s3531 + $0x160] sm:$0xf]
    %v7660 = vld [vmem:[%s3531 + $0x170] sm:$0xf]
    %v7661 = vld [vmem:[%s3531 + $0x180] sm:$0xf]
    %v7662 = vld [vmem:[%s3531 + $0x190] sm:$0xf]
    %7663 = vst.msk [vmem:[#allocation4 + $0x288] sm:$0xf] %vm49, %v7647
    %7664 = vst.msk [vmem:[#allocation4 + $0x29c] sm:$0xf] %vm49, %v7648
    %7665 = vst.msk [vmem:[#allocation4 + $0x2b0] sm:$0xf] %vm49, %v7649
    %7666 = vst.msk [vmem:[#allocation4 + $0x2c4] sm:$0xf] %vm49, %v7650
    %7667 = vst.msk [vmem:[#allocation4 + $0x2d8] sm:$0xf] %vm49, %v7651
    %7668 = vst.msk [vmem:[#allocation4 + $0x2ec] sm:$0xf] %vm49, %v7652
    %7669 = vst.msk [vmem:[#allocation4 + $0x300] sm:$0xf] %vm49, %v7653
    %7670 = vst.msk [vmem:[#allocation4 + $0x314] sm:$0xf] %vm49, %v7654
    %7671 = vst.msk [vmem:[#allocation4 + $0x328] sm:$0xf] %vm49, %v7655
    %7672 = vst.msk [vmem:[#allocation4 + $0x33c] sm:$0xf] %vm49, %v7656
    %7673 = vst.msk [vmem:[#allocation4 + $0x350] sm:$0xf] %vm49, %v7657
    %7674 = vst.msk [vmem:[#allocation4 + $0x364] sm:$0xf] %vm49, %v7658
    %7675 = vst.msk [vmem:[#allocation4 + $0x378] sm:$0xf] %vm49, %v7659
    %7676 = vst.msk [vmem:[#allocation4 + $0x38c] sm:$0xf] %vm49, %v7660
    %7677 = vst.msk [vmem:[#allocation4 + $0x3a0] sm:$0xf] %vm49, %v7661
    %7678 = vst.msk [vmem:[#allocation4 + $0x3b4] sm:$0xf] %vm49, %v7662
    %v7679 = vld [vmem:[%s3772] sm:$0xf]
    %v7680 = vld [vmem:[%s3772 + $0x4] sm:$0x1]
    %v7681 = vld [vmem:[%s3772 + $0x10] sm:$0xf]
    %v7682 = vld [vmem:[%s3772 + $0x14] sm:$0x1]
    %v7683 = vld [vmem:[%s3772 + $0x20] sm:$0xf]
    %v7684 = vld [vmem:[%s3772 + $0x24] sm:$0x1]
    %v7685 = vld [vmem:[%s3772 + $0x30] sm:$0xf]
    %v7686 = vld [vmem:[%s3772 + $0x34] sm:$0x1]
    %v7687 = vld [vmem:[%s3772 + $0x40] sm:$0xf]
    %v7688 = vld [vmem:[%s3772 + $0x44] sm:$0x1]
    %v7689 = vld [vmem:[%s3772 + $0x50] sm:$0xf]
    %v7690 = vld [vmem:[%s3772 + $0x54] sm:$0x1]
    %v7691 = vld [vmem:[%s3772 + $0x60] sm:$0xf]
    %v7692 = vld [vmem:[%s3772 + $0x64] sm:$0x1]
    %v7693 = vld [vmem:[%s3772 + $0x70] sm:$0xf]
    %v7694 = vld [vmem:[%s3772 + $0x74] sm:$0x1]
    %v7695 = vld [vmem:[%s3772 + $0x120] sm:$0xf]
    %v7696 = vld [vmem:[%s3772 + $0x124] sm:$0x1]
    %v7697 = vld [vmem:[%s3772 + $0x130] sm:$0xf]
    %v7698 = vld [vmem:[%s3772 + $0x134] sm:$0x1]
    %v7699 = vld [vmem:[%s3772 + $0x140] sm:$0xf]
    %v7700 = vld [vmem:[%s3772 + $0x144] sm:$0x1]
    %v7701 = vld [vmem:[%s3772 + $0x150] sm:$0xf]
    %v7702 = vld [vmem:[%s3772 + $0x154] sm:$0x1]
    %v7703 = vld [vmem:[%s3772 + $0x160] sm:$0xf]
    %v7704 = vld [vmem:[%s3772 + $0x164] sm:$0x1]
    %v7705 = vld [vmem:[%s3772 + $0x170] sm:$0xf]
    %v7706 = vld [vmem:[%s3772 + $0x174] sm:$0x1]
    %v7707 = vld [vmem:[%s3772 + $0x180] sm:$0xf]
    %v7708 = vld [vmem:[%s3772 + $0x184] sm:$0x1]
    %v7709 = vld [vmem:[%s3772 + $0x190] sm:$0xf]
    %v7710 = vld [vmem:[%s3772 + $0x194] sm:$0x1]
    %v7712 = vshrl.u32 %v7679, 16
    %v7714 = vrot.slane %v7712, 4
    %v7715 = vshll.u32 %v7679, 16
    %v7717 = vrot.slane %v7715, 5
    %v7718 = vor.u32 %v7714, %v7717
    %v7719 = vrot.slane %v7718, 4
    %v7721 = vshll.u32 %v7680, 16
    %v7723 = vrot.slane %v7721, 5
    %v7724 = vsel %vm404, %v7719, %v7723
    %v7726 = vshrl.u32 %v7681, 16
    %v7728 = vrot.slane %v7726, 4
    %v7729 = vshll.u32 %v7681, 16
    %v7731 = vrot.slane %v7729, 5
    %v7732 = vor.u32 %v7728, %v7731
    %v7733 = vrot.slane %v7732, 4
    %v7735 = vshll.u32 %v7682, 16
    %v7737 = vrot.slane %v7735, 5
    %v7738 = vsel %vm404, %v7733, %v7737
    %v7740 = vshrl.u32 %v7683, 16
    %v7742 = vrot.slane %v7740, 4
    %v7743 = vshll.u32 %v7683, 16
    %v7745 = vrot.slane %v7743, 5
    %v7746 = vor.u32 %v7742, %v7745
    %v7747 = vrot.slane %v7746, 4
    %v7749 = vshll.u32 %v7684, 16
    %v7751 = vrot.slane %v7749, 5
    %v7752 = vsel %vm404, %v7747, %v7751
    %v7754 = vshrl.u32 %v7685, 16
    %v7756 = vrot.slane %v7754, 4
    %v7757 = vshll.u32 %v7685, 16
    %v7759 = vrot.slane %v7757, 5
    %v7760 = vor.u32 %v7756, %v7759
    %v7761 = vrot.slane %v7760, 4
    %v7763 = vshll.u32 %v7686, 16
    %v7765 = vrot.slane %v7763, 5
    %v7766 = vsel %vm404, %v7761, %v7765
    %v7768 = vshrl.u32 %v7687, 16
    %v7770 = vrot.slane %v7768, 4
    %v7771 = vshll.u32 %v7687, 16
    %v7773 = vrot.slane %v7771, 5
    %v7774 = vor.u32 %v7770, %v7773
    %v7775 = vrot.slane %v7774, 4
    %v7777 = vshll.u32 %v7688, 16
    %v7779 = vrot.slane %v7777, 5
    %v7780 = vsel %vm404, %v7775, %v7779
    %v7782 = vshrl.u32 %v7689, 16
    %v7784 = vrot.slane %v7782, 4
    %v7785 = vshll.u32 %v7689, 16
    %v7787 = vrot.slane %v7785, 5
    %v7788 = vor.u32 %v7784, %v7787
    %v7789 = vrot.slane %v7788, 4
    %v7791 = vshll.u32 %v7690, 16
    %v7793 = vrot.slane %v7791, 5
    %v7794 = vsel %vm404, %v7789, %v7793
    %v7796 = vshrl.u32 %v7691, 16
    %v7798 = vrot.slane %v7796, 4
    %v7799 = vshll.u32 %v7691, 16
    %v7801 = vrot.slane %v7799, 5
    %v7802 = vor.u32 %v7798, %v7801
    %v7803 = vrot.slane %v7802, 4
    %v7805 = vshll.u32 %v7692, 16
    %v7807 = vrot.slane %v7805, 5
    %v7808 = vsel %vm404, %v7803, %v7807
    %v7810 = vshrl.u32 %v7693, 16
    %v7812 = vrot.slane %v7810, 4
    %v7813 = vshll.u32 %v7693, 16
    %v7815 = vrot.slane %v7813, 5
    %v7816 = vor.u32 %v7812, %v7815
    %v7817 = vrot.slane %v7816, 4
    %v7819 = vshll.u32 %v7694, 16
    %v7821 = vrot.slane %v7819, 5
    %v7822 = vsel %vm404, %v7817, %v7821
    %v7824 = vshrl.u32 %v7695, 16
    %v7826 = vrot.slane %v7824, 4
    %v7827 = vshll.u32 %v7695, 16
    %v7829 = vrot.slane %v7827, 5
    %v7830 = vor.u32 %v7826, %v7829
    %v7831 = vrot.slane %v7830, 4
    %v7833 = vshll.u32 %v7696, 16
    %v7835 = vrot.slane %v7833, 5
    %v7836 = vsel %vm404, %v7831, %v7835
    %v7838 = vshrl.u32 %v7697, 16
    %v7840 = vrot.slane %v7838, 4
    %v7841 = vshll.u32 %v7697, 16
    %v7843 = vrot.slane %v7841, 5
    %v7844 = vor.u32 %v7840, %v7843
    %v7845 = vrot.slane %v7844, 4
    %v7847 = vshll.u32 %v7698, 16
    %v7849 = vrot.slane %v7847, 5
    %v7850 = vsel %vm404, %v7845, %v7849
    %v7852 = vshrl.u32 %v7699, 16
    %v7854 = vrot.slane %v7852, 4
    %v7855 = vshll.u32 %v7699, 16
    %v7857 = vrot.slane %v7855, 5
    %v7858 = vor.u32 %v7854, %v7857
    %v7859 = vrot.slane %v7858, 4
    %v7861 = vshll.u32 %v7700, 16
    %v7863 = vrot.slane %v7861, 5
    %v7864 = vsel %vm404, %v7859, %v7863
    %v7866 = vshrl.u32 %v7701, 16
    %v7868 = vrot.slane %v7866, 4
    %v7869 = vshll.u32 %v7701, 16
    %v7871 = vrot.slane %v7869, 5
    %v7872 = vor.u32 %v7868, %v7871
    %v7873 = vrot.slane %v7872, 4
    %v7875 = vshll.u32 %v7702, 16
    %v7877 = vrot.slane %v7875, 5
    %v7878 = vsel %vm404, %v7873, %v7877
    %v7880 = vshrl.u32 %v7703, 16
    %v7882 = vrot.slane %v7880, 4
    %v7883 = vshll.u32 %v7703, 16
    %v7885 = vrot.slane %v7883, 5
    %v7886 = vor.u32 %v7882, %v7885
    %v7887 = vrot.slane %v7886, 4
    %v7889 = vshll.u32 %v7704, 16
    %v7891 = vrot.slane %v7889, 5
    %v7892 = vsel %vm404, %v7887, %v7891
    %v7894 = vshrl.u32 %v7705, 16
    %v7896 = vrot.slane %v7894, 4
    %v7897 = vshll.u32 %v7705, 16
    %v7899 = vrot.slane %v7897, 5
    %v7900 = vor.u32 %v7896, %v7899
    %v7901 = vrot.slane %v7900, 4
    %v7903 = vshll.u32 %v7706, 16
    %v7905 = vrot.slane %v7903, 5
    %v7906 = vsel %vm404, %v7901, %v7905
    %v7908 = vshrl.u32 %v7707, 16
    %v7910 = vrot.slane %v7908, 4
    %v7911 = vshll.u32 %v7707, 16
    %v7913 = vrot.slane %v7911, 5
    %v7914 = vor.u32 %v7910, %v7913
    %v7915 = vrot.slane %v7914, 4
    %v7917 = vshll.u32 %v7708, 16
    %v7919 = vrot.slane %v7917, 5
    %v7920 = vsel %vm404, %v7915, %v7919
    %v7922 = vshrl.u32 %v7709, 16
    %v7924 = vrot.slane %v7922, 4
    %v7925 = vshll.u32 %v7709, 16
    %v7927 = vrot.slane %v7925, 5
    %v7928 = vor.u32 %v7924, %v7927
    %v7929 = vrot.slane %v7928, 4
    %v7931 = vshll.u32 %v7710, 16
    %v7933 = vrot.slane %v7931, 5
    %v7934 = vsel %vm404, %v7929, %v7933
    %7935 = vrot.lane.b32.xlu0 %v7724, 64
    %v7936 = vpop.permute.xlu0 %7935
    %7937 = vrot.lane.b32.xlu0 %v7738, 64
    %v7938 = vpop.permute.xlu0 %7937
    %7939 = vrot.lane.b32.xlu0 %v7752, 64
    %v7940 = vpop.permute.xlu0 %7939
    %7941 = vrot.lane.b32.xlu0 %v7766, 64
    %v7942 = vpop.permute.xlu0 %7941
    %7943 = vrot.lane.b32.xlu0 %v7780, 64
    %v7944 = vpop.permute.xlu0 %7943
    %7945 = vrot.lane.b32.xlu0 %v7794, 64
    %v7946 = vpop.permute.xlu0 %7945
    %7947 = vrot.lane.b32.xlu0 %v7808, 64
    %v7948 = vpop.permute.xlu0 %7947
    %7949 = vrot.lane.b32.xlu0 %v7822, 64
    %v7950 = vpop.permute.xlu0 %7949
    %7951 = vrot.lane.b32.xlu0 %v7836, 64
    %v7952 = vpop.permute.xlu0 %7951
    %7953 = vrot.lane.b32.xlu0 %v7850, 64
    %v7954 = vpop.permute.xlu0 %7953
    %7955 = vrot.lane.b32.xlu0 %v7864, 64
    %v7956 = vpop.permute.xlu0 %7955
    %7957 = vrot.lane.b32.xlu0 %v7878, 64
    %v7958 = vpop.permute.xlu0 %7957
    %7959 = vrot.lane.b32.xlu0 %v7892, 64
    %v7960 = vpop.permute.xlu0 %7959
    %7961 = vrot.lane.b32.xlu0 %v7906, 64
    %v7962 = vpop.permute.xlu0 %7961
    %7963 = vrot.lane.b32.xlu0 %v7920, 64
    %v7964 = vpop.permute.xlu0 %7963
    %7965 = vrot.lane.b32.xlu0 %v7934, 64
    %v7966 = vpop.permute.xlu0 %7965
    %7983 = vst.msk [vmem:[#allocation4 + $0x288] sm:$0xf] %vm3982, %v7936
    %7984 = vst.msk [vmem:[#allocation4 + $0x29c] sm:$0xf] %vm3982, %v7938
    %7985 = vst.msk [vmem:[#allocation4 + $0x2b0] sm:$0xf] %vm3982, %v7940
    %7986 = vst.msk [vmem:[#allocation4 + $0x2c4] sm:$0xf] %vm3982, %v7942
    %7987 = vst.msk [vmem:[#allocation4 + $0x2d8] sm:$0xf] %vm3982, %v7944
    %7988 = vst.msk [vmem:[#allocation4 + $0x2ec] sm:$0xf] %vm3982, %v7946
    %7989 = vst.msk [vmem:[#allocation4 + $0x300] sm:$0xf] %vm3982, %v7948
    %7990 = vst.msk [vmem:[#allocation4 + $0x314] sm:$0xf] %vm3982, %v7950
    %7991 = vst.msk [vmem:[#allocation4 + $0x328] sm:$0xf] %vm3982, %v7952
    %7992 = vst.msk [vmem:[#allocation4 + $0x33c] sm:$0xf] %vm3982, %v7954
    %7993 = vst.msk [vmem:[#allocation4 + $0x350] sm:$0xf] %vm3982, %v7956
    %7994 = vst.msk [vmem:[#allocation4 + $0x364] sm:$0xf] %vm3982, %v7958
    %7995 = vst.msk [vmem:[#allocation4 + $0x378] sm:$0xf] %vm3982, %v7960
    %7996 = vst.msk [vmem:[#allocation4 + $0x38c] sm:$0xf] %vm3982, %v7962
    %7997 = vst.msk [vmem:[#allocation4 + $0x3a0] sm:$0xf] %vm3982, %v7964
    %7998 = vst.msk [vmem:[#allocation4 + $0x3b4] sm:$0xf] %vm3982, %v7966
    %s7999 = scalar_lea.vmem [#allocation3], 160
    %v8000 = vld [vmem:[%s7999] sm:$0xf]
    %v8001 = vld [vmem:[%s7999 + $0x10] sm:$0xf]
    %v8002 = vld [vmem:[%s7999 + $0x20] sm:$0xf]
    %v8003 = vld [vmem:[%s7999 + $0x30] sm:$0xf]
    %v8004 = vld [vmem:[%s7999 + $0x40] sm:$0xf]
    %v8005 = vld [vmem:[%s7999 + $0x50] sm:$0xf]
    %v8006 = vld [vmem:[%s7999 + $0x60] sm:$0xf]
    %v8007 = vld [vmem:[%s7999 + $0x70] sm:$0xf]
    %v8008 = vld [vmem:[%s7999 + $0x120] sm:$0xf]
    %v8009 = vld [vmem:[%s7999 + $0x130] sm:$0xf]
    %v8010 = vld [vmem:[%s7999 + $0x140] sm:$0xf]
    %v8011 = vld [vmem:[%s7999 + $0x150] sm:$0xf]
    %v8012 = vld [vmem:[%s7999 + $0x160] sm:$0xf]
    %v8013 = vld [vmem:[%s7999 + $0x170] sm:$0xf]
    %v8014 = vld [vmem:[%s7999 + $0x180] sm:$0xf]
    %v8015 = vld [vmem:[%s7999 + $0x190] sm:$0xf]
    %8016 = vst.msk [vmem:[#allocation4 + $0x28c] sm:$0xf] %vm49, %v8000
    %8017 = vst.msk [vmem:[#allocation4 + $0x2a0] sm:$0xf] %vm49, %v8001
    %8018 = vst.msk [vmem:[#allocation4 + $0x2b4] sm:$0xf] %vm49, %v8002
    %8019 = vst.msk [vmem:[#allocation4 + $0x2c8] sm:$0xf] %vm49, %v8003
    %8020 = vst.msk [vmem:[#allocation4 + $0x2dc] sm:$0xf] %vm49, %v8004
    %8021 = vst.msk [vmem:[#allocation4 + $0x2f0] sm:$0xf] %vm49, %v8005
    %8022 = vst.msk [vmem:[#allocation4 + $0x304] sm:$0xf] %vm49, %v8006
    %8023 = vst.msk [vmem:[#allocation4 + $0x318] sm:$0xf] %vm49, %v8007
    %8024 = vst.msk [vmem:[#allocation4 + $0x32c] sm:$0xf] %vm49, %v8008
    %8025 = vst.msk [vmem:[#allocation4 + $0x340] sm:$0xf] %vm49, %v8009
    %8026 = vst.msk [vmem:[#allocation4 + $0x354] sm:$0xf] %vm49, %v8010
    %8027 = vst.msk [vmem:[#allocation4 + $0x368] sm:$0xf] %vm49, %v8011
    %8028 = vst.msk [vmem:[#allocation4 + $0x37c] sm:$0xf] %vm49, %v8012
    %8029 = vst.msk [vmem:[#allocation4 + $0x390] sm:$0xf] %vm49, %v8013
    %8030 = vst.msk [vmem:[#allocation4 + $0x3a4] sm:$0xf] %vm49, %v8014
    %8031 = vst.msk [vmem:[#allocation4 + $0x3b8] sm:$0xf] %vm49, %v8015
    %s8032 = scalar_lea.vmem [#allocation3], 168
    %v8033 = vld [vmem:[%s8032] sm:$0xf]
    %v8034 = vld [vmem:[%s8032 + $0x10] sm:$0xf]
    %v8035 = vld [vmem:[%s8032 + $0x20] sm:$0xf]
    %v8036 = vld [vmem:[%s8032 + $0x30] sm:$0xf]
    %v8037 = vld [vmem:[%s8032 + $0x40] sm:$0xf]
    %v8038 = vld [vmem:[%s8032 + $0x50] sm:$0xf]
    %v8039 = vld [vmem:[%s8032 + $0x60] sm:$0xf]
    %v8040 = vld [vmem:[%s8032 + $0x70] sm:$0xf]
    %v8041 = vld [vmem:[%s8032 + $0x120] sm:$0xf]
    %v8042 = vld [vmem:[%s8032 + $0x130] sm:$0xf]
    %v8043 = vld [vmem:[%s8032 + $0x140] sm:$0xf]
    %v8044 = vld [vmem:[%s8032 + $0x150] sm:$0xf]
    %v8045 = vld [vmem:[%s8032 + $0x160] sm:$0xf]
    %v8046 = vld [vmem:[%s8032 + $0x170] sm:$0xf]
    %v8047 = vld [vmem:[%s8032 + $0x180] sm:$0xf]
    %v8048 = vld [vmem:[%s8032 + $0x190] sm:$0xf]
    %8065 = vrot.lane.b32.xlu0 %v8033, 64
    %v8066 = vpop.permute.xlu0 %8065
    %8067 = vrot.lane.b32.xlu0 %v8034, 64
    %v8068 = vpop.permute.xlu0 %8067
    %8069 = vrot.lane.b32.xlu0 %v8035, 64
    %v8070 = vpop.permute.xlu0 %8069
    %8071 = vrot.lane.b32.xlu0 %v8036, 64
    %v8072 = vpop.permute.xlu0 %8071
    %8073 = vrot.lane.b32.xlu0 %v8037, 64
    %v8074 = vpop.permute.xlu0 %8073
    %8075 = vrot.lane.b32.xlu0 %v8038, 64
    %v8076 = vpop.permute.xlu0 %8075
    %8077 = vrot.lane.b32.xlu0 %v8039, 64
    %v8078 = vpop.permute.xlu0 %8077
    %8079 = vrot.lane.b32.xlu0 %v8040, 64
    %v8080 = vpop.permute.xlu0 %8079
    %8081 = vrot.lane.b32.xlu0 %v8041, 64
    %v8082 = vpop.permute.xlu0 %8081
    %8083 = vrot.lane.b32.xlu0 %v8042, 64
    %v8084 = vpop.permute.xlu0 %8083
    %8085 = vrot.lane.b32.xlu0 %v8043, 64
    %v8086 = vpop.permute.xlu0 %8085
    %8087 = vrot.lane.b32.xlu0 %v8044, 64
    %v8088 = vpop.permute.xlu0 %8087
    %8089 = vrot.lane.b32.xlu0 %v8045, 64
    %v8090 = vpop.permute.xlu0 %8089
    %8091 = vrot.lane.b32.xlu0 %v8046, 64
    %v8092 = vpop.permute.xlu0 %8091
    %8093 = vrot.lane.b32.xlu0 %v8047, 64
    %v8094 = vpop.permute.xlu0 %8093
    %8095 = vrot.lane.b32.xlu0 %v8048, 64
    %v8096 = vpop.permute.xlu0 %8095
    %8113 = vst.msk [vmem:[#allocation4 + $0x28c] sm:$0xf] %vm3982, %v8066
    %8114 = vst.msk [vmem:[#allocation4 + $0x2a0] sm:$0xf] %vm3982, %v8068
    %8115 = vst.msk [vmem:[#allocation4 + $0x2b4] sm:$0xf] %vm3982, %v8070
    %8116 = vst.msk [vmem:[#allocation4 + $0x2c8] sm:$0xf] %vm3982, %v8072
    %8117 = vst.msk [vmem:[#allocation4 + $0x2dc] sm:$0xf] %vm3982, %v8074
    %8118 = vst.msk [vmem:[#allocation4 + $0x2f0] sm:$0xf] %vm3982, %v8076
    %8119 = vst.msk [vmem:[#allocation4 + $0x304] sm:$0xf] %vm3982, %v8078
    %8120 = vst.msk [vmem:[#allocation4 + $0x318] sm:$0xf] %vm3982, %v8080
    %8121 = vst.msk [vmem:[#allocation4 + $0x32c] sm:$0xf] %vm3982, %v8082
    %8122 = vst.msk [vmem:[#allocation4 + $0x340] sm:$0xf] %vm3982, %v8084
    %8123 = vst.msk [vmem:[#allocation4 + $0x354] sm:$0xf] %vm3982, %v8086
    %8124 = vst.msk [vmem:[#allocation4 + $0x368] sm:$0xf] %vm3982, %v8088
    %8125 = vst.msk [vmem:[#allocation4 + $0x37c] sm:$0xf] %vm3982, %v8090
    %8126 = vst.msk [vmem:[#allocation4 + $0x390] sm:$0xf] %vm3982, %v8092
    %8127 = vst.msk [vmem:[#allocation4 + $0x3a4] sm:$0xf] %vm3982, %v8094
    %8128 = vst.msk [vmem:[#allocation4 + $0x3b8] sm:$0xf] %vm3982, %v8096
    %v8129 = vld [vmem:[%s7999] sm:$0xf]
    %v8130 = vld [vmem:[%s7999 + $0x4] sm:$0x1]
    %v8131 = vld [vmem:[%s7999 + $0x10] sm:$0xf]
    %v8132 = vld [vmem:[%s7999 + $0x14] sm:$0x1]
    %v8133 = vld [vmem:[%s7999 + $0x20] sm:$0xf]
    %v8134 = vld [vmem:[%s7999 + $0x24] sm:$0x1]
    %v8135 = vld [vmem:[%s7999 + $0x30] sm:$0xf]
    %v8136 = vld [vmem:[%s7999 + $0x34] sm:$0x1]
    %v8137 = vld [vmem:[%s7999 + $0x40] sm:$0xf]
    %v8138 = vld [vmem:[%s7999 + $0x44] sm:$0x1]
    %v8139 = vld [vmem:[%s7999 + $0x50] sm:$0xf]
    %v8140 = vld [vmem:[%s7999 + $0x54] sm:$0x1]
    %v8141 = vld [vmem:[%s7999 + $0x60] sm:$0xf]
    %v8142 = vld [vmem:[%s7999 + $0x64] sm:$0x1]
    %v8143 = vld [vmem:[%s7999 + $0x70] sm:$0xf]
    %v8144 = vld [vmem:[%s7999 + $0x74] sm:$0x1]
    %v8145 = vld [vmem:[%s7999 + $0x120] sm:$0xf]
    %v8146 = vld [vmem:[%s7999 + $0x124] sm:$0x1]
    %v8147 = vld [vmem:[%s7999 + $0x130] sm:$0xf]
    %v8148 = vld [vmem:[%s7999 + $0x134] sm:$0x1]
    %v8149 = vld [vmem:[%s7999 + $0x140] sm:$0xf]
    %v8150 = vld [vmem:[%s7999 + $0x144] sm:$0x1]
    %v8151 = vld [vmem:[%s7999 + $0x150] sm:$0xf]
    %v8152 = vld [vmem:[%s7999 + $0x154] sm:$0x1]
    %v8153 = vld [vmem:[%s7999 + $0x160] sm:$0xf]
    %v8154 = vld [vmem:[%s7999 + $0x164] sm:$0x1]
    %v8155 = vld [vmem:[%s7999 + $0x170] sm:$0xf]
    %v8156 = vld [vmem:[%s7999 + $0x174] sm:$0x1]
    %v8157 = vld [vmem:[%s7999 + $0x180] sm:$0xf]
    %v8158 = vld [vmem:[%s7999 + $0x184] sm:$0x1]
    %v8159 = vld [vmem:[%s7999 + $0x190] sm:$0xf]
    %v8160 = vld [vmem:[%s7999 + $0x194] sm:$0x1]
    %v8162 = vshrl.u32 %v8129, 16
    %v8164 = vrot.slane %v8162, 4
    %v8165 = vshll.u32 %v8129, 16
    %v8167 = vrot.slane %v8165, 5
    %v8168 = vor.u32 %v8164, %v8167
    %v8169 = vrot.slane %v8168, 4
    %v8171 = vshll.u32 %v8130, 16
    %v8173 = vrot.slane %v8171, 5
    %v8174 = vsel %vm404, %v8169, %v8173
    %v8176 = vshrl.u32 %v8131, 16
    %v8178 = vrot.slane %v8176, 4
    %v8179 = vshll.u32 %v8131, 16
    %v8181 = vrot.slane %v8179, 5
    %v8182 = vor.u32 %v8178, %v8181
    %v8183 = vrot.slane %v8182, 4
    %v8185 = vshll.u32 %v8132, 16
    %v8187 = vrot.slane %v8185, 5
    %v8188 = vsel %vm404, %v8183, %v8187
    %v8190 = vshrl.u32 %v8133, 16
    %v8192 = vrot.slane %v8190, 4
    %v8193 = vshll.u32 %v8133, 16
    %v8195 = vrot.slane %v8193, 5
    %v8196 = vor.u32 %v8192, %v8195
    %v8197 = vrot.slane %v8196, 4
    %v8199 = vshll.u32 %v8134, 16
    %v8201 = vrot.slane %v8199, 5
    %v8202 = vsel %vm404, %v8197, %v8201
    %v8204 = vshrl.u32 %v8135, 16
    %v8206 = vrot.slane %v8204, 4
    %v8207 = vshll.u32 %v8135, 16
    %v8209 = vrot.slane %v8207, 5
    %v8210 = vor.u32 %v8206, %v8209
    %v8211 = vrot.slane %v8210, 4
    %v8213 = vshll.u32 %v8136, 16
    %v8215 = vrot.slane %v8213, 5
    %v8216 = vsel %vm404, %v8211, %v8215
    %v8218 = vshrl.u32 %v8137, 16
    %v8220 = vrot.slane %v8218, 4
    %v8221 = vshll.u32 %v8137, 16
    %v8223 = vrot.slane %v8221, 5
    %v8224 = vor.u32 %v8220, %v8223
    %v8225 = vrot.slane %v8224, 4
    %v8227 = vshll.u32 %v8138, 16
    %v8229 = vrot.slane %v8227, 5
    %v8230 = vsel %vm404, %v8225, %v8229
    %v8232 = vshrl.u32 %v8139, 16
    %v8234 = vrot.slane %v8232, 4
    %v8235 = vshll.u32 %v8139, 16
    %v8237 = vrot.slane %v8235, 5
    %v8238 = vor.u32 %v8234, %v8237
    %v8239 = vrot.slane %v8238, 4
    %v8241 = vshll.u32 %v8140, 16
    %v8243 = vrot.slane %v8241, 5
    %v8244 = vsel %vm404, %v8239, %v8243
    %v8246 = vshrl.u32 %v8141, 16
    %v8248 = vrot.slane %v8246, 4
    %v8249 = vshll.u32 %v8141, 16
    %v8251 = vrot.slane %v8249, 5
    %v8252 = vor.u32 %v8248, %v8251
    %v8253 = vrot.slane %v8252, 4
    %v8255 = vshll.u32 %v8142, 16
    %v8257 = vrot.slane %v8255, 5
    %v8258 = vsel %vm404, %v8253, %v8257
    %v8260 = vshrl.u32 %v8143, 16
    %v8262 = vrot.slane %v8260, 4
    %v8263 = vshll.u32 %v8143, 16
    %v8265 = vrot.slane %v8263, 5
    %v8266 = vor.u32 %v8262, %v8265
    %v8267 = vrot.slane %v8266, 4
    %v8269 = vshll.u32 %v8144, 16
    %v8271 = vrot.slane %v8269, 5
    %v8272 = vsel %vm404, %v8267, %v8271
    %v8274 = vshrl.u32 %v8145, 16
    %v8276 = vrot.slane %v8274, 4
    %v8277 = vshll.u32 %v8145, 16
    %v8279 = vrot.slane %v8277, 5
    %v8280 = vor.u32 %v8276, %v8279
    %v8281 = vrot.slane %v8280, 4
    %v8283 = vshll.u32 %v8146, 16
    %v8285 = vrot.slane %v8283, 5
    %v8286 = vsel %vm404, %v8281, %v8285
    %v8288 = vshrl.u32 %v8147, 16
    %v8290 = vrot.slane %v8288, 4
    %v8291 = vshll.u32 %v8147, 16
    %v8293 = vrot.slane %v8291, 5
    %v8294 = vor.u32 %v8290, %v8293
    %v8295 = vrot.slane %v8294, 4
    %v8297 = vshll.u32 %v8148, 16
    %v8299 = vrot.slane %v8297, 5
    %v8300 = vsel %vm404, %v8295, %v8299
    %v8302 = vshrl.u32 %v8149, 16
    %v8304 = vrot.slane %v8302, 4
    %v8305 = vshll.u32 %v8149, 16
    %v8307 = vrot.slane %v8305, 5
    %v8308 = vor.u32 %v8304, %v8307
    %v8309 = vrot.slane %v8308, 4
    %v8311 = vshll.u32 %v8150, 16
    %v8313 = vrot.slane %v8311, 5
    %v8314 = vsel %vm404, %v8309, %v8313
    %v8316 = vshrl.u32 %v8151, 16
    %v8318 = vrot.slane %v8316, 4
    %v8319 = vshll.u32 %v8151, 16
    %v8321 = vrot.slane %v8319, 5
    %v8322 = vor.u32 %v8318, %v8321
    %v8323 = vrot.slane %v8322, 4
    %v8325 = vshll.u32 %v8152, 16
    %v8327 = vrot.slane %v8325, 5
    %v8328 = vsel %vm404, %v8323, %v8327
    %v8330 = vshrl.u32 %v8153, 16
    %v8332 = vrot.slane %v8330, 4
    %v8333 = vshll.u32 %v8153, 16
    %v8335 = vrot.slane %v8333, 5
    %v8336 = vor.u32 %v8332, %v8335
    %v8337 = vrot.slane %v8336, 4
    %v8339 = vshll.u32 %v8154, 16
    %v8341 = vrot.slane %v8339, 5
    %v8342 = vsel %vm404, %v8337, %v8341
    %v8344 = vshrl.u32 %v8155, 16
    %v8346 = vrot.slane %v8344, 4
    %v8347 = vshll.u32 %v8155, 16
    %v8349 = vrot.slane %v8347, 5
    %v8350 = vor.u32 %v8346, %v8349
    %v8351 = vrot.slane %v8350, 4
    %v8353 = vshll.u32 %v8156, 16
    %v8355 = vrot.slane %v8353, 5
    %v8356 = vsel %vm404, %v8351, %v8355
    %v8358 = vshrl.u32 %v8157, 16
    %v8360 = vrot.slane %v8358, 4
    %v8361 = vshll.u32 %v8157, 16
    %v8363 = vrot.slane %v8361, 5
    %v8364 = vor.u32 %v8360, %v8363
    %v8365 = vrot.slane %v8364, 4
    %v8367 = vshll.u32 %v8158, 16
    %v8369 = vrot.slane %v8367, 5
    %v8370 = vsel %vm404, %v8365, %v8369
    %v8372 = vshrl.u32 %v8159, 16
    %v8374 = vrot.slane %v8372, 4
    %v8375 = vshll.u32 %v8159, 16
    %v8377 = vrot.slane %v8375, 5
    %v8378 = vor.u32 %v8374, %v8377
    %v8379 = vrot.slane %v8378, 4
    %v8381 = vshll.u32 %v8160, 16
    %v8383 = vrot.slane %v8381, 5
    %v8384 = vsel %vm404, %v8379, %v8383
    %8401 = vst.msk [vmem:[#allocation4 + $0x290] sm:$0xf] %vm49, %v8174
    %8402 = vst.msk [vmem:[#allocation4 + $0x2a4] sm:$0xf] %vm49, %v8188
    %8403 = vst.msk [vmem:[#allocation4 + $0x2b8] sm:$0xf] %vm49, %v8202
    %8404 = vst.msk [vmem:[#allocation4 + $0x2cc] sm:$0xf] %vm49, %v8216
    %8405 = vst.msk [vmem:[#allocation4 + $0x2e0] sm:$0xf] %vm49, %v8230
    %8406 = vst.msk [vmem:[#allocation4 + $0x2f4] sm:$0xf] %vm49, %v8244
    %8407 = vst.msk [vmem:[#allocation4 + $0x308] sm:$0xf] %vm49, %v8258
    %8408 = vst.msk [vmem:[#allocation4 + $0x31c] sm:$0xf] %vm49, %v8272
    %8409 = vst.msk [vmem:[#allocation4 + $0x330] sm:$0xf] %vm49, %v8286
    %8410 = vst.msk [vmem:[#allocation4 + $0x344] sm:$0xf] %vm49, %v8300
    %8411 = vst.msk [vmem:[#allocation4 + $0x358] sm:$0xf] %vm49, %v8314
    %8412 = vst.msk [vmem:[#allocation4 + $0x36c] sm:$0xf] %vm49, %v8328
    %8413 = vst.msk [vmem:[#allocation4 + $0x380] sm:$0xf] %vm49, %v8342
    %8414 = vst.msk [vmem:[#allocation4 + $0x394] sm:$0xf] %vm49, %v8356
    %8415 = vst.msk [vmem:[#allocation4 + $0x3a8] sm:$0xf] %vm49, %v8370
    %8416 = vst.msk [vmem:[#allocation4 + $0x3bc] sm:$0xf] %vm49, %v8384
    %v8417 = vld [vmem:[%s3137] sm:$0xf]
    %v8418 = vld [vmem:[%s3137 + $0x10] sm:$0xf]
    %v8419 = vld [vmem:[%s3137 + $0x20] sm:$0xf]
    %v8420 = vld [vmem:[%s3137 + $0x30] sm:$0xf]
    %v8421 = vld [vmem:[%s3137 + $0x40] sm:$0xf]
    %v8422 = vld [vmem:[%s3137 + $0x50] sm:$0xf]
    %v8423 = vld [vmem:[%s3137 + $0x60] sm:$0xf]
    %v8424 = vld [vmem:[%s3137 + $0x70] sm:$0xf]
    %v8425 = vld [vmem:[%s3137 + $0x120] sm:$0xf]
    %v8426 = vld [vmem:[%s3137 + $0x130] sm:$0xf]
    %v8427 = vld [vmem:[%s3137 + $0x140] sm:$0xf]
    %v8428 = vld [vmem:[%s3137 + $0x150] sm:$0xf]
    %v8429 = vld [vmem:[%s3137 + $0x160] sm:$0xf]
    %v8430 = vld [vmem:[%s3137 + $0x170] sm:$0xf]
    %v8431 = vld [vmem:[%s3137 + $0x180] sm:$0xf]
    %v8432 = vld [vmem:[%s3137 + $0x190] sm:$0xf]
    %8433 = vst.msk [vmem:[#allocation4 + $0x3c0] sm:$0xf] %vm49, %v8417
    %8434 = vst.msk [vmem:[#allocation4 + $0x3d4] sm:$0xf] %vm49, %v8418
    %8435 = vst.msk [vmem:[#allocation4 + $0x3e8] sm:$0xf] %vm49, %v8419
    %8436 = vst.msk [vmem:[#allocation4 + $0x3fc] sm:$0xf] %vm49, %v8420
    %8437 = vst.msk [vmem:[#allocation4 + $0x410] sm:$0xf] %vm49, %v8421
    %8438 = vst.msk [vmem:[#allocation4 + $0x424] sm:$0xf] %vm49, %v8422
    %8439 = vst.msk [vmem:[#allocation4 + $0x438] sm:$0xf] %vm49, %v8423
    %8440 = vst.msk [vmem:[#allocation4 + $0x44c] sm:$0xf] %vm49, %v8424
    %8441 = vst.msk [vmem:[#allocation4 + $0x460] sm:$0xf] %vm49, %v8425
    %8442 = vst.msk [vmem:[#allocation4 + $0x474] sm:$0xf] %vm49, %v8426
    %8443 = vst.msk [vmem:[#allocation4 + $0x488] sm:$0xf] %vm49, %v8427
    %8444 = vst.msk [vmem:[#allocation4 + $0x49c] sm:$0xf] %vm49, %v8428
    %8445 = vst.msk [vmem:[#allocation4 + $0x4b0] sm:$0xf] %vm49, %v8429
    %8446 = vst.msk [vmem:[#allocation4 + $0x4c4] sm:$0xf] %vm49, %v8430
    %8447 = vst.msk [vmem:[#allocation4 + $0x4d8] sm:$0xf] %vm49, %v8431
    %8448 = vst.msk [vmem:[#allocation4 + $0x4ec] sm:$0xf] %vm49, %v8432
    %v8449 = vld [vmem:[%s3378] sm:$0xf]
    %v8450 = vld [vmem:[%s3378 + $0x4] sm:$0x1]
    %v8451 = vld [vmem:[%s3378 + $0x10] sm:$0xf]
    %v8452 = vld [vmem:[%s3378 + $0x14] sm:$0x1]
    %v8453 = vld [vmem:[%s3378 + $0x20] sm:$0xf]
    %v8454 = vld [vmem:[%s3378 + $0x24] sm:$0x1]
    %v8455 = vld [vmem:[%s3378 + $0x30] sm:$0xf]
    %v8456 = vld [vmem:[%s3378 + $0x34] sm:$0x1]
    %v8457 = vld [vmem:[%s3378 + $0x40] sm:$0xf]
    %v8458 = vld [vmem:[%s3378 + $0x44] sm:$0x1]
    %v8459 = vld [vmem:[%s3378 + $0x50] sm:$0xf]
    %v8460 = vld [vmem:[%s3378 + $0x54] sm:$0x1]
    %v8461 = vld [vmem:[%s3378 + $0x60] sm:$0xf]
    %v8462 = vld [vmem:[%s3378 + $0x64] sm:$0x1]
    %v8463 = vld [vmem:[%s3378 + $0x70] sm:$0xf]
    %v8464 = vld [vmem:[%s3378 + $0x74] sm:$0x1]
    %v8465 = vld [vmem:[%s3378 + $0x120] sm:$0xf]
    %v8466 = vld [vmem:[%s3378 + $0x124] sm:$0x1]
    %v8467 = vld [vmem:[%s3378 + $0x130] sm:$0xf]
    %v8468 = vld [vmem:[%s3378 + $0x134] sm:$0x1]
    %v8469 = vld [vmem:[%s3378 + $0x140] sm:$0xf]
    %v8470 = vld [vmem:[%s3378 + $0x144] sm:$0x1]
    %v8471 = vld [vmem:[%s3378 + $0x150] sm:$0xf]
    %v8472 = vld [vmem:[%s3378 + $0x154] sm:$0x1]
    %v8473 = vld [vmem:[%s3378 + $0x160] sm:$0xf]
    %v8474 = vld [vmem:[%s3378 + $0x164] sm:$0x1]
    %v8475 = vld [vmem:[%s3378 + $0x170] sm:$0xf]
    %v8476 = vld [vmem:[%s3378 + $0x174] sm:$0x1]
    %v8477 = vld [vmem:[%s3378 + $0x180] sm:$0xf]
    %v8478 = vld [vmem:[%s3378 + $0x184] sm:$0x1]
    %v8479 = vld [vmem:[%s3378 + $0x190] sm:$0xf]
    %v8480 = vld [vmem:[%s3378 + $0x194] sm:$0x1]
    %v8482 = vshrl.u32 %v8449, 16
    %v8484 = vrot.slane %v8482, 4
    %v8485 = vshll.u32 %v8449, 16
    %v8487 = vrot.slane %v8485, 5
    %v8488 = vor.u32 %v8484, %v8487
    %v8489 = vrot.slane %v8488, 4
    %v8491 = vshll.u32 %v8450, 16
    %v8493 = vrot.slane %v8491, 5
    %v8494 = vsel %vm404, %v8489, %v8493
    %v8496 = vshrl.u32 %v8451, 16
    %v8498 = vrot.slane %v8496, 4
    %v8499 = vshll.u32 %v8451, 16
    %v8501 = vrot.slane %v8499, 5
    %v8502 = vor.u32 %v8498, %v8501
    %v8503 = vrot.slane %v8502, 4
    %v8505 = vshll.u32 %v8452, 16
    %v8507 = vrot.slane %v8505, 5
    %v8508 = vsel %vm404, %v8503, %v8507
    %v8510 = vshrl.u32 %v8453, 16
    %v8512 = vrot.slane %v8510, 4
    %v8513 = vshll.u32 %v8453, 16
    %v8515 = vrot.slane %v8513, 5
    %v8516 = vor.u32 %v8512, %v8515
    %v8517 = vrot.slane %v8516, 4
    %v8519 = vshll.u32 %v8454, 16
    %v8521 = vrot.slane %v8519, 5
    %v8522 = vsel %vm404, %v8517, %v8521
    %v8524 = vshrl.u32 %v8455, 16
    %v8526 = vrot.slane %v8524, 4
    %v8527 = vshll.u32 %v8455, 16
    %v8529 = vrot.slane %v8527, 5
    %v8530 = vor.u32 %v8526, %v8529
    %v8531 = vrot.slane %v8530, 4
    %v8533 = vshll.u32 %v8456, 16
    %v8535 = vrot.slane %v8533, 5
    %v8536 = vsel %vm404, %v8531, %v8535
    %v8538 = vshrl.u32 %v8457, 16
    %v8540 = vrot.slane %v8538, 4
    %v8541 = vshll.u32 %v8457, 16
    %v8543 = vrot.slane %v8541, 5
    %v8544 = vor.u32 %v8540, %v8543
    %v8545 = vrot.slane %v8544, 4
    %v8547 = vshll.u32 %v8458, 16
    %v8549 = vrot.slane %v8547, 5
    %v8550 = vsel %vm404, %v8545, %v8549
    %v8552 = vshrl.u32 %v8459, 16
    %v8554 = vrot.slane %v8552, 4
    %v8555 = vshll.u32 %v8459, 16
    %v8557 = vrot.slane %v8555, 5
    %v8558 = vor.u32 %v8554, %v8557
    %v8559 = vrot.slane %v8558, 4
    %v8561 = vshll.u32 %v8460, 16
    %v8563 = vrot.slane %v8561, 5
    %v8564 = vsel %vm404, %v8559, %v8563
    %v8566 = vshrl.u32 %v8461, 16
    %v8568 = vrot.slane %v8566, 4
    %v8569 = vshll.u32 %v8461, 16
    %v8571 = vrot.slane %v8569, 5
    %v8572 = vor.u32 %v8568, %v8571
    %v8573 = vrot.slane %v8572, 4
    %v8575 = vshll.u32 %v8462, 16
    %v8577 = vrot.slane %v8575, 5
    %v8578 = vsel %vm404, %v8573, %v8577
    %v8580 = vshrl.u32 %v8463, 16
    %v8582 = vrot.slane %v8580, 4
    %v8583 = vshll.u32 %v8463, 16
    %v8585 = vrot.slane %v8583, 5
    %v8586 = vor.u32 %v8582, %v8585
    %v8587 = vrot.slane %v8586, 4
    %v8589 = vshll.u32 %v8464, 16
    %v8591 = vrot.slane %v8589, 5
    %v8592 = vsel %vm404, %v8587, %v8591
    %v8594 = vshrl.u32 %v8465, 16
    %v8596 = vrot.slane %v8594, 4
    %v8597 = vshll.u32 %v8465, 16
    %v8599 = vrot.slane %v8597, 5
    %v8600 = vor.u32 %v8596, %v8599
    %v8601 = vrot.slane %v8600, 4
    %v8603 = vshll.u32 %v8466, 16
    %v8605 = vrot.slane %v8603, 5
    %v8606 = vsel %vm404, %v8601, %v8605
    %v8608 = vshrl.u32 %v8467, 16
    %v8610 = vrot.slane %v8608, 4
    %v8611 = vshll.u32 %v8467, 16
    %v8613 = vrot.slane %v8611, 5
    %v8614 = vor.u32 %v8610, %v8613
    %v8615 = vrot.slane %v8614, 4
    %v8617 = vshll.u32 %v8468, 16
    %v8619 = vrot.slane %v8617, 5
    %v8620 = vsel %vm404, %v8615, %v8619
    %v8622 = vshrl.u32 %v8469, 16
    %v8624 = vrot.slane %v8622, 4
    %v8625 = vshll.u32 %v8469, 16
    %v8627 = vrot.slane %v8625, 5
    %v8628 = vor.u32 %v8624, %v8627
    %v8629 = vrot.slane %v8628, 4
    %v8631 = vshll.u32 %v8470, 16
    %v8633 = vrot.slane %v8631, 5
    %v8634 = vsel %vm404, %v8629, %v8633
    %v8636 = vshrl.u32 %v8471, 16
    %v8638 = vrot.slane %v8636, 4
    %v8639 = vshll.u32 %v8471, 16
    %v8641 = vrot.slane %v8639, 5
    %v8642 = vor.u32 %v8638, %v8641
    %v8643 = vrot.slane %v8642, 4
    %v8645 = vshll.u32 %v8472, 16
    %v8647 = vrot.slane %v8645, 5
    %v8648 = vsel %vm404, %v8643, %v8647
    %v8650 = vshrl.u32 %v8473, 16
    %v8652 = vrot.slane %v8650, 4
    %v8653 = vshll.u32 %v8473, 16
    %v8655 = vrot.slane %v8653, 5
    %v8656 = vor.u32 %v8652, %v8655
    %v8657 = vrot.slane %v8656, 4
    %v8659 = vshll.u32 %v8474, 16
    %v8661 = vrot.slane %v8659, 5
    %v8662 = vsel %vm404, %v8657, %v8661
    %v8664 = vshrl.u32 %v8475, 16
    %v8666 = vrot.slane %v8664, 4
    %v8667 = vshll.u32 %v8475, 16
    %v8669 = vrot.slane %v8667, 5
    %v8670 = vor.u32 %v8666, %v8669
    %v8671 = vrot.slane %v8670, 4
    %v8673 = vshll.u32 %v8476, 16
    %v8675 = vrot.slane %v8673, 5
    %v8676 = vsel %vm404, %v8671, %v8675
    %v8678 = vshrl.u32 %v8477, 16
    %v8680 = vrot.slane %v8678, 4
    %v8681 = vshll.u32 %v8477, 16
    %v8683 = vrot.slane %v8681, 5
    %v8684 = vor.u32 %v8680, %v8683
    %v8685 = vrot.slane %v8684, 4
    %v8687 = vshll.u32 %v8478, 16
    %v8689 = vrot.slane %v8687, 5
    %v8690 = vsel %vm404, %v8685, %v8689
    %v8692 = vshrl.u32 %v8479, 16
    %v8694 = vrot.slane %v8692, 4
    %v8695 = vshll.u32 %v8479, 16
    %v8697 = vrot.slane %v8695, 5
    %v8698 = vor.u32 %v8694, %v8697
    %v8699 = vrot.slane %v8698, 4
    %v8701 = vshll.u32 %v8480, 16
    %v8703 = vrot.slane %v8701, 5
    %v8704 = vsel %vm404, %v8699, %v8703
    %8705 = vrot.lane.b32.xlu0 %v8494, 64
    %v8706 = vpop.permute.xlu0 %8705
    %8707 = vrot.lane.b32.xlu0 %v8508, 64
    %v8708 = vpop.permute.xlu0 %8707
    %8709 = vrot.lane.b32.xlu0 %v8522, 64
    %v8710 = vpop.permute.xlu0 %8709
    %8711 = vrot.lane.b32.xlu0 %v8536, 64
    %v8712 = vpop.permute.xlu0 %8711
    %8713 = vrot.lane.b32.xlu0 %v8550, 64
    %v8714 = vpop.permute.xlu0 %8713
    %8715 = vrot.lane.b32.xlu0 %v8564, 64
    %v8716 = vpop.permute.xlu0 %8715
    %8717 = vrot.lane.b32.xlu0 %v8578, 64
    %v8718 = vpop.permute.xlu0 %8717
    %8719 = vrot.lane.b32.xlu0 %v8592, 64
    %v8720 = vpop.permute.xlu0 %8719
    %8721 = vrot.lane.b32.xlu0 %v8606, 64
    %v8722 = vpop.permute.xlu0 %8721
    %8723 = vrot.lane.b32.xlu0 %v8620, 64
    %v8724 = vpop.permute.xlu0 %8723
    %8725 = vrot.lane.b32.xlu0 %v8634, 64
    %v8726 = vpop.permute.xlu0 %8725
    %8727 = vrot.lane.b32.xlu0 %v8648, 64
    %v8728 = vpop.permute.xlu0 %8727
    %8729 = vrot.lane.b32.xlu0 %v8662, 64
    %v8730 = vpop.permute.xlu0 %8729
    %8731 = vrot.lane.b32.xlu0 %v8676, 64
    %v8732 = vpop.permute.xlu0 %8731
    %8733 = vrot.lane.b32.xlu0 %v8690, 64
    %v8734 = vpop.permute.xlu0 %8733
    %8735 = vrot.lane.b32.xlu0 %v8704, 64
    %v8736 = vpop.permute.xlu0 %8735
    %8753 = vst.msk [vmem:[#allocation4 + $0x3c0] sm:$0xf] %vm3982, %v8706
    %8754 = vst.msk [vmem:[#allocation4 + $0x3d4] sm:$0xf] %vm3982, %v8708
    %8755 = vst.msk [vmem:[#allocation4 + $0x3e8] sm:$0xf] %vm3982, %v8710
    %8756 = vst.msk [vmem:[#allocation4 + $0x3fc] sm:$0xf] %vm3982, %v8712
    %8757 = vst.msk [vmem:[#allocation4 + $0x410] sm:$0xf] %vm3982, %v8714
    %8758 = vst.msk [vmem:[#allocation4 + $0x424] sm:$0xf] %vm3982, %v8716
    %8759 = vst.msk [vmem:[#allocation4 + $0x438] sm:$0xf] %vm3982, %v8718
    %8760 = vst.msk [vmem:[#allocation4 + $0x44c] sm:$0xf] %vm3982, %v8720
    %8761 = vst.msk [vmem:[#allocation4 + $0x460] sm:$0xf] %vm3982, %v8722
    %8762 = vst.msk [vmem:[#allocation4 + $0x474] sm:$0xf] %vm3982, %v8724
    %8763 = vst.msk [vmem:[#allocation4 + $0x488] sm:$0xf] %vm3982, %v8726
    %8764 = vst.msk [vmem:[#allocation4 + $0x49c] sm:$0xf] %vm3982, %v8728
    %8765 = vst.msk [vmem:[#allocation4 + $0x4b0] sm:$0xf] %vm3982, %v8730
    %8766 = vst.msk [vmem:[#allocation4 + $0x4c4] sm:$0xf] %vm3982, %v8732
    %8767 = vst.msk [vmem:[#allocation4 + $0x4d8] sm:$0xf] %vm3982, %v8734
    %8768 = vst.msk [vmem:[#allocation4 + $0x4ec] sm:$0xf] %vm3982, %v8736
    %v8769 = vld [vmem:[%s3137] sm:$0xf]
    %v8770 = vld [vmem:[%s3137 + $0x4] sm:$0x1]
    %v8771 = vld [vmem:[%s3137 + $0x10] sm:$0xf]
    %v8772 = vld [vmem:[%s3137 + $0x14] sm:$0x1]
    %v8773 = vld [vmem:[%s3137 + $0x20] sm:$0xf]
    %v8774 = vld [vmem:[%s3137 + $0x24] sm:$0x1]
    %v8775 = vld [vmem:[%s3137 + $0x30] sm:$0xf]
    %v8776 = vld [vmem:[%s3137 + $0x34] sm:$0x1]
    %v8777 = vld [vmem:[%s3137 + $0x40] sm:$0xf]
    %v8778 = vld [vmem:[%s3137 + $0x44] sm:$0x1]
    %v8779 = vld [vmem:[%s3137 + $0x50] sm:$0xf]
    %v8780 = vld [vmem:[%s3137 + $0x54] sm:$0x1]
    %v8781 = vld [vmem:[%s3137 + $0x60] sm:$0xf]
    %v8782 = vld [vmem:[%s3137 + $0x64] sm:$0x1]
    %v8783 = vld [vmem:[%s3137 + $0x70] sm:$0xf]
    %v8784 = vld [vmem:[%s3137 + $0x74] sm:$0x1]
    %v8785 = vld [vmem:[%s3137 + $0x120] sm:$0xf]
    %v8786 = vld [vmem:[%s3137 + $0x124] sm:$0x1]
    %v8787 = vld [vmem:[%s3137 + $0x130] sm:$0xf]
    %v8788 = vld [vmem:[%s3137 + $0x134] sm:$0x1]
    %v8789 = vld [vmem:[%s3137 + $0x140] sm:$0xf]
    %v8790 = vld [vmem:[%s3137 + $0x144] sm:$0x1]
    %v8791 = vld [vmem:[%s3137 + $0x150] sm:$0xf]
    %v8792 = vld [vmem:[%s3137 + $0x154] sm:$0x1]
    %v8793 = vld [vmem:[%s3137 + $0x160] sm:$0xf]
    %v8794 = vld [vmem:[%s3137 + $0x164] sm:$0x1]
    %v8795 = vld [vmem:[%s3137 + $0x170] sm:$0xf]
    %v8796 = vld [vmem:[%s3137 + $0x174] sm:$0x1]
    %v8797 = vld [vmem:[%s3137 + $0x180] sm:$0xf]
    %v8798 = vld [vmem:[%s3137 + $0x184] sm:$0x1]
    %v8799 = vld [vmem:[%s3137 + $0x190] sm:$0xf]
    %v8800 = vld [vmem:[%s3137 + $0x194] sm:$0x1]
    %v8802 = vshrl.u32 %v8769, 16
    %v8804 = vrot.slane %v8802, 4
    %v8805 = vshll.u32 %v8769, 16
    %v8807 = vrot.slane %v8805, 5
    %v8808 = vor.u32 %v8804, %v8807
    %v8809 = vrot.slane %v8808, 4
    %v8811 = vshll.u32 %v8770, 16
    %v8813 = vrot.slane %v8811, 5
    %v8814 = vsel %vm404, %v8809, %v8813
    %v8816 = vshrl.u32 %v8771, 16
    %v8818 = vrot.slane %v8816, 4
    %v8819 = vshll.u32 %v8771, 16
    %v8821 = vrot.slane %v8819, 5
    %v8822 = vor.u32 %v8818, %v8821
    %v8823 = vrot.slane %v8822, 4
    %v8825 = vshll.u32 %v8772, 16
    %v8827 = vrot.slane %v8825, 5
    %v8828 = vsel %vm404, %v8823, %v8827
    %v8830 = vshrl.u32 %v8773, 16
    %v8832 = vrot.slane %v8830, 4
    %v8833 = vshll.u32 %v8773, 16
    %v8835 = vrot.slane %v8833, 5
    %v8836 = vor.u32 %v8832, %v8835
    %v8837 = vrot.slane %v8836, 4
    %v8839 = vshll.u32 %v8774, 16
    %v8841 = vrot.slane %v8839, 5
    %v8842 = vsel %vm404, %v8837, %v8841
    %v8844 = vshrl.u32 %v8775, 16
    %v8846 = vrot.slane %v8844, 4
    %v8847 = vshll.u32 %v8775, 16
    %v8849 = vrot.slane %v8847, 5
    %v8850 = vor.u32 %v8846, %v8849
    %v8851 = vrot.slane %v8850, 4
    %v8853 = vshll.u32 %v8776, 16
    %v8855 = vrot.slane %v8853, 5
    %v8856 = vsel %vm404, %v8851, %v8855
    %v8858 = vshrl.u32 %v8777, 16
    %v8860 = vrot.slane %v8858, 4
    %v8861 = vshll.u32 %v8777, 16
    %v8863 = vrot.slane %v8861, 5
    %v8864 = vor.u32 %v8860, %v8863
    %v8865 = vrot.slane %v8864, 4
    %v8867 = vshll.u32 %v8778, 16
    %v8869 = vrot.slane %v8867, 5
    %v8870 = vsel %vm404, %v8865, %v8869
    %v8872 = vshrl.u32 %v8779, 16
    %v8874 = vrot.slane %v8872, 4
    %v8875 = vshll.u32 %v8779, 16
    %v8877 = vrot.slane %v8875, 5
    %v8878 = vor.u32 %v8874, %v8877
    %v8879 = vrot.slane %v8878, 4
    %v8881 = vshll.u32 %v8780, 16
    %v8883 = vrot.slane %v8881, 5
    %v8884 = vsel %vm404, %v8879, %v8883
    %v8886 = vshrl.u32 %v8781, 16
    %v8888 = vrot.slane %v8886, 4
    %v8889 = vshll.u32 %v8781, 16
    %v8891 = vrot.slane %v8889, 5
    %v8892 = vor.u32 %v8888, %v8891
    %v8893 = vrot.slane %v8892, 4
    %v8895 = vshll.u32 %v8782, 16
    %v8897 = vrot.slane %v8895, 5
    %v8898 = vsel %vm404, %v8893, %v8897
    %v8900 = vshrl.u32 %v8783, 16
    %v8902 = vrot.slane %v8900, 4
    %v8903 = vshll.u32 %v8783, 16
    %v8905 = vrot.slane %v8903, 5
    %v8906 = vor.u32 %v8902, %v8905
    %v8907 = vrot.slane %v8906, 4
    %v8909 = vshll.u32 %v8784, 16
    %v8911 = vrot.slane %v8909, 5
    %v8912 = vsel %vm404, %v8907, %v8911
    %v8914 = vshrl.u32 %v8785, 16
    %v8916 = vrot.slane %v8914, 4
    %v8917 = vshll.u32 %v8785, 16
    %v8919 = vrot.slane %v8917, 5
    %v8920 = vor.u32 %v8916, %v8919
    %v8921 = vrot.slane %v8920, 4
    %v8923 = vshll.u32 %v8786, 16
    %v8925 = vrot.slane %v8923, 5
    %v8926 = vsel %vm404, %v8921, %v8925
    %v8928 = vshrl.u32 %v8787, 16
    %v8930 = vrot.slane %v8928, 4
    %v8931 = vshll.u32 %v8787, 16
    %v8933 = vrot.slane %v8931, 5
    %v8934 = vor.u32 %v8930, %v8933
    %v8935 = vrot.slane %v8934, 4
    %v8937 = vshll.u32 %v8788, 16
    %v8939 = vrot.slane %v8937, 5
    %v8940 = vsel %vm404, %v8935, %v8939
    %v8942 = vshrl.u32 %v8789, 16
    %v8944 = vrot.slane %v8942, 4
    %v8945 = vshll.u32 %v8789, 16
    %v8947 = vrot.slane %v8945, 5
    %v8948 = vor.u32 %v8944, %v8947
    %v8949 = vrot.slane %v8948, 4
    %v8951 = vshll.u32 %v8790, 16
    %v8953 = vrot.slane %v8951, 5
    %v8954 = vsel %vm404, %v8949, %v8953
    %v8956 = vshrl.u32 %v8791, 16
    %v8958 = vrot.slane %v8956, 4
    %v8959 = vshll.u32 %v8791, 16
    %v8961 = vrot.slane %v8959, 5
    %v8962 = vor.u32 %v8958, %v8961
    %v8963 = vrot.slane %v8962, 4
    %v8965 = vshll.u32 %v8792, 16
    %v8967 = vrot.slane %v8965, 5
    %v8968 = vsel %vm404, %v8963, %v8967
    %v8970 = vshrl.u32 %v8793, 16
    %v8972 = vrot.slane %v8970, 4
    %v8973 = vshll.u32 %v8793, 16
    %v8975 = vrot.slane %v8973, 5
    %v8976 = vor.u32 %v8972, %v8975
    %v8977 = vrot.slane %v8976, 4
    %v8979 = vshll.u32 %v8794, 16
    %v8981 = vrot.slane %v8979, 5
    %v8982 = vsel %vm404, %v8977, %v8981
    %v8984 = vshrl.u32 %v8795, 16
    %v8986 = vrot.slane %v8984, 4
    %v8987 = vshll.u32 %v8795, 16
    %v8989 = vrot.slane %v8987, 5
    %v8990 = vor.u32 %v8986, %v8989
    %v8991 = vrot.slane %v8990, 4
    %v8993 = vshll.u32 %v8796, 16
    %v8995 = vrot.slane %v8993, 5
    %v8996 = vsel %vm404, %v8991, %v8995
    %v8998 = vshrl.u32 %v8797, 16
    %v9000 = vrot.slane %v8998, 4
    %v9001 = vshll.u32 %v8797, 16
    %v9003 = vrot.slane %v9001, 5
    %v9004 = vor.u32 %v9000, %v9003
    %v9005 = vrot.slane %v9004, 4
    %v9007 = vshll.u32 %v8798, 16
    %v9009 = vrot.slane %v9007, 5
    %v9010 = vsel %vm404, %v9005, %v9009
    %v9012 = vshrl.u32 %v8799, 16
    %v9014 = vrot.slane %v9012, 4
    %v9015 = vshll.u32 %v8799, 16
    %v9017 = vrot.slane %v9015, 5
    %v9018 = vor.u32 %v9014, %v9017
    %v9019 = vrot.slane %v9018, 4
    %v9021 = vshll.u32 %v8800, 16
    %v9023 = vrot.slane %v9021, 5
    %v9024 = vsel %vm404, %v9019, %v9023
    %9041 = vst.msk [vmem:[#allocation4 + $0x3c4] sm:$0xf] %vm49, %v8814
    %9042 = vst.msk [vmem:[#allocation4 + $0x3d8] sm:$0xf] %vm49, %v8828
    %9043 = vst.msk [vmem:[#allocation4 + $0x3ec] sm:$0xf] %vm49, %v8842
    %9044 = vst.msk [vmem:[#allocation4 + $0x400] sm:$0xf] %vm49, %v8856
    %9045 = vst.msk [vmem:[#allocation4 + $0x414] sm:$0xf] %vm49, %v8870
    %9046 = vst.msk [vmem:[#allocation4 + $0x428] sm:$0xf] %vm49, %v8884
    %9047 = vst.msk [vmem:[#allocation4 + $0x43c] sm:$0xf] %vm49, %v8898
    %9048 = vst.msk [vmem:[#allocation4 + $0x450] sm:$0xf] %vm49, %v8912
    %9049 = vst.msk [vmem:[#allocation4 + $0x464] sm:$0xf] %vm49, %v8926
    %9050 = vst.msk [vmem:[#allocation4 + $0x478] sm:$0xf] %vm49, %v8940
    %9051 = vst.msk [vmem:[#allocation4 + $0x48c] sm:$0xf] %vm49, %v8954
    %9052 = vst.msk [vmem:[#allocation4 + $0x4a0] sm:$0xf] %vm49, %v8968
    %9053 = vst.msk [vmem:[#allocation4 + $0x4b4] sm:$0xf] %vm49, %v8982
    %9054 = vst.msk [vmem:[#allocation4 + $0x4c8] sm:$0xf] %vm49, %v8996
    %9055 = vst.msk [vmem:[#allocation4 + $0x4dc] sm:$0xf] %vm49, %v9010
    %9056 = vst.msk [vmem:[#allocation4 + $0x4f0] sm:$0xf] %vm49, %v9024
    %v9057 = vld [vmem:[%s3531] sm:$0xf]
    %v9058 = vld [vmem:[%s3531 + $0x10] sm:$0xf]
    %v9059 = vld [vmem:[%s3531 + $0x20] sm:$0xf]
    %v9060 = vld [vmem:[%s3531 + $0x30] sm:$0xf]
    %v9061 = vld [vmem:[%s3531 + $0x40] sm:$0xf]
    %v9062 = vld [vmem:[%s3531 + $0x50] sm:$0xf]
    %v9063 = vld [vmem:[%s3531 + $0x60] sm:$0xf]
    %v9064 = vld [vmem:[%s3531 + $0x70] sm:$0xf]
    %v9065 = vld [vmem:[%s3531 + $0x120] sm:$0xf]
    %v9066 = vld [vmem:[%s3531 + $0x130] sm:$0xf]
    %v9067 = vld [vmem:[%s3531 + $0x140] sm:$0xf]
    %v9068 = vld [vmem:[%s3531 + $0x150] sm:$0xf]
    %v9069 = vld [vmem:[%s3531 + $0x160] sm:$0xf]
    %v9070 = vld [vmem:[%s3531 + $0x170] sm:$0xf]
    %v9071 = vld [vmem:[%s3531 + $0x180] sm:$0xf]
    %v9072 = vld [vmem:[%s3531 + $0x190] sm:$0xf]
    %9089 = vrot.lane.b32.xlu0 %v9057, 64
    %v9090 = vpop.permute.xlu0 %9089
    %9091 = vrot.lane.b32.xlu0 %v9058, 64
    %v9092 = vpop.permute.xlu0 %9091
    %9093 = vrot.lane.b32.xlu0 %v9059, 64
    %v9094 = vpop.permute.xlu0 %9093
    %9095 = vrot.lane.b32.xlu0 %v9060, 64
    %v9096 = vpop.permute.xlu0 %9095
    %9097 = vrot.lane.b32.xlu0 %v9061, 64
    %v9098 = vpop.permute.xlu0 %9097
    %9099 = vrot.lane.b32.xlu0 %v9062, 64
    %v9100 = vpop.permute.xlu0 %9099
    %9101 = vrot.lane.b32.xlu0 %v9063, 64
    %v9102 = vpop.permute.xlu0 %9101
    %9103 = vrot.lane.b32.xlu0 %v9064, 64
    %v9104 = vpop.permute.xlu0 %9103
    %9105 = vrot.lane.b32.xlu0 %v9065, 64
    %v9106 = vpop.permute.xlu0 %9105
    %9107 = vrot.lane.b32.xlu0 %v9066, 64
    %v9108 = vpop.permute.xlu0 %9107
    %9109 = vrot.lane.b32.xlu0 %v9067, 64
    %v9110 = vpop.permute.xlu0 %9109
    %9111 = vrot.lane.b32.xlu0 %v9068, 64
    %v9112 = vpop.permute.xlu0 %9111
    %9113 = vrot.lane.b32.xlu0 %v9069, 64
    %v9114 = vpop.permute.xlu0 %9113
    %9115 = vrot.lane.b32.xlu0 %v9070, 64
    %v9116 = vpop.permute.xlu0 %9115
    %9117 = vrot.lane.b32.xlu0 %v9071, 64
    %v9118 = vpop.permute.xlu0 %9117
    %9119 = vrot.lane.b32.xlu0 %v9072, 64
    %v9120 = vpop.permute.xlu0 %9119
    %9137 = vst.msk [vmem:[#allocation4 + $0x3c4] sm:$0xf] %vm3982, %v9090
    %9138 = vst.msk [vmem:[#allocation4 + $0x3d8] sm:$0xf] %vm3982, %v9092
    %9139 = vst.msk [vmem:[#allocation4 + $0x3ec] sm:$0xf] %vm3982, %v9094
    %9140 = vst.msk [vmem:[#allocation4 + $0x400] sm:$0xf] %vm3982, %v9096
    %9141 = vst.msk [vmem:[#allocation4 + $0x414] sm:$0xf] %vm3982, %v9098
    %9142 = vst.msk [vmem:[#allocation4 + $0x428] sm:$0xf] %vm3982, %v9100
    %9143 = vst.msk [vmem:[#allocation4 + $0x43c] sm:$0xf] %vm3982, %v9102
    %9144 = vst.msk [vmem:[#allocation4 + $0x450] sm:$0xf] %vm3982, %v9104
    %9145 = vst.msk [vmem:[#allocation4 + $0x464] sm:$0xf] %vm3982, %v9106
    %9146 = vst.msk [vmem:[#allocation4 + $0x478] sm:$0xf] %vm3982, %v9108
    %9147 = vst.msk [vmem:[#allocation4 + $0x48c] sm:$0xf] %vm3982, %v9110
    %9148 = vst.msk [vmem:[#allocation4 + $0x4a0] sm:$0xf] %vm3982, %v9112
    %9149 = vst.msk [vmem:[#allocation4 + $0x4b4] sm:$0xf] %vm3982, %v9114
    %9150 = vst.msk [vmem:[#allocation4 + $0x4c8] sm:$0xf] %vm3982, %v9116
    %9151 = vst.msk [vmem:[#allocation4 + $0x4dc] sm:$0xf] %vm3982, %v9118
    %9152 = vst.msk [vmem:[#allocation4 + $0x4f0] sm:$0xf] %vm3982, %v9120
    %v9153 = vld [vmem:[%s3772] sm:$0xf]
    %v9154 = vld [vmem:[%s3772 + $0x4] sm:$0x1]
    %v9155 = vld [vmem:[%s3772 + $0x10] sm:$0xf]
    %v9156 = vld [vmem:[%s3772 + $0x14] sm:$0x1]
    %v9157 = vld [vmem:[%s3772 + $0x20] sm:$0xf]
    %v9158 = vld [vmem:[%s3772 + $0x24] sm:$0x1]
    %v9159 = vld [vmem:[%s3772 + $0x30] sm:$0xf]
    %v9160 = vld [vmem:[%s3772 + $0x34] sm:$0x1]
    %v9161 = vld [vmem:[%s3772 + $0x40] sm:$0xf]
    %v9162 = vld [vmem:[%s3772 + $0x44] sm:$0x1]
    %v9163 = vld [vmem:[%s3772 + $0x50] sm:$0xf]
    %v9164 = vld [vmem:[%s3772 + $0x54] sm:$0x1]
    %v9165 = vld [vmem:[%s3772 + $0x60] sm:$0xf]
    %v9166 = vld [vmem:[%s3772 + $0x64] sm:$0x1]
    %v9167 = vld [vmem:[%s3772 + $0x70] sm:$0xf]
    %v9168 = vld [vmem:[%s3772 + $0x74] sm:$0x1]
    %v9169 = vld [vmem:[%s3772 + $0x120] sm:$0xf]
    %v9170 = vld [vmem:[%s3772 + $0x124] sm:$0x1]
    %v9171 = vld [vmem:[%s3772 + $0x130] sm:$0xf]
    %v9172 = vld [vmem:[%s3772 + $0x134] sm:$0x1]
    %v9173 = vld [vmem:[%s3772 + $0x140] sm:$0xf]
    %v9174 = vld [vmem:[%s3772 + $0x144] sm:$0x1]
    %v9175 = vld [vmem:[%s3772 + $0x150] sm:$0xf]
    %v9176 = vld [vmem:[%s3772 + $0x154] sm:$0x1]
    %v9177 = vld [vmem:[%s3772 + $0x160] sm:$0xf]
    %v9178 = vld [vmem:[%s3772 + $0x164] sm:$0x1]
    %v9179 = vld [vmem:[%s3772 + $0x170] sm:$0xf]
    %v9180 = vld [vmem:[%s3772 + $0x174] sm:$0x1]
    %v9181 = vld [vmem:[%s3772 + $0x180] sm:$0xf]
    %v9182 = vld [vmem:[%s3772 + $0x184] sm:$0x1]
    %v9183 = vld [vmem:[%s3772 + $0x190] sm:$0xf]
    %v9184 = vld [vmem:[%s3772 + $0x194] sm:$0x1]
    %v9186 = vshrl.u32 %v9153, 16
    %v9188 = vrot.slane %v9186, 4
    %v9189 = vshll.u32 %v9153, 16
    %v9191 = vrot.slane %v9189, 5
    %v9192 = vor.u32 %v9188, %v9191
    %v9193 = vrot.slane %v9192, 4
    %v9195 = vshll.u32 %v9154, 16
    %v9197 = vrot.slane %v9195, 5
    %v9198 = vsel %vm404, %v9193, %v9197
    %v9200 = vshrl.u32 %v9155, 16
    %v9202 = vrot.slane %v9200, 4
    %v9203 = vshll.u32 %v9155, 16
    %v9205 = vrot.slane %v9203, 5
    %v9206 = vor.u32 %v9202, %v9205
    %v9207 = vrot.slane %v9206, 4
    %v9209 = vshll.u32 %v9156, 16
    %v9211 = vrot.slane %v9209, 5
    %v9212 = vsel %vm404, %v9207, %v9211
    %v9214 = vshrl.u32 %v9157, 16
    %v9216 = vrot.slane %v9214, 4
    %v9217 = vshll.u32 %v9157, 16
    %v9219 = vrot.slane %v9217, 5
    %v9220 = vor.u32 %v9216, %v9219
    %v9221 = vrot.slane %v9220, 4
    %v9223 = vshll.u32 %v9158, 16
    %v9225 = vrot.slane %v9223, 5
    %v9226 = vsel %vm404, %v9221, %v9225
    %v9228 = vshrl.u32 %v9159, 16
    %v9230 = vrot.slane %v9228, 4
    %v9231 = vshll.u32 %v9159, 16
    %v9233 = vrot.slane %v9231, 5
    %v9234 = vor.u32 %v9230, %v9233
    %v9235 = vrot.slane %v9234, 4
    %v9237 = vshll.u32 %v9160, 16
    %v9239 = vrot.slane %v9237, 5
    %v9240 = vsel %vm404, %v9235, %v9239
    %v9242 = vshrl.u32 %v9161, 16
    %v9244 = vrot.slane %v9242, 4
    %v9245 = vshll.u32 %v9161, 16
    %v9247 = vrot.slane %v9245, 5
    %v9248 = vor.u32 %v9244, %v9247
    %v9249 = vrot.slane %v9248, 4
    %v9251 = vshll.u32 %v9162, 16
    %v9253 = vrot.slane %v9251, 5
    %v9254 = vsel %vm404, %v9249, %v9253
    %v9256 = vshrl.u32 %v9163, 16
    %v9258 = vrot.slane %v9256, 4
    %v9259 = vshll.u32 %v9163, 16
    %v9261 = vrot.slane %v9259, 5
    %v9262 = vor.u32 %v9258, %v9261
    %v9263 = vrot.slane %v9262, 4
    %v9265 = vshll.u32 %v9164, 16
    %v9267 = vrot.slane %v9265, 5
    %v9268 = vsel %vm404, %v9263, %v9267
    %v9270 = vshrl.u32 %v9165, 16
    %v9272 = vrot.slane %v9270, 4
    %v9273 = vshll.u32 %v9165, 16
    %v9275 = vrot.slane %v9273, 5
    %v9276 = vor.u32 %v9272, %v9275
    %v9277 = vrot.slane %v9276, 4
    %v9279 = vshll.u32 %v9166, 16
    %v9281 = vrot.slane %v9279, 5
    %v9282 = vsel %vm404, %v9277, %v9281
    %v9284 = vshrl.u32 %v9167, 16
    %v9286 = vrot.slane %v9284, 4
    %v9287 = vshll.u32 %v9167, 16
    %v9289 = vrot.slane %v9287, 5
    %v9290 = vor.u32 %v9286, %v9289
    %v9291 = vrot.slane %v9290, 4
    %v9293 = vshll.u32 %v9168, 16
    %v9295 = vrot.slane %v9293, 5
    %v9296 = vsel %vm404, %v9291, %v9295
    %v9298 = vshrl.u32 %v9169, 16
    %v9300 = vrot.slane %v9298, 4
    %v9301 = vshll.u32 %v9169, 16
    %v9303 = vrot.slane %v9301, 5
    %v9304 = vor.u32 %v9300, %v9303
    %v9305 = vrot.slane %v9304, 4
    %v9307 = vshll.u32 %v9170, 16
    %v9309 = vrot.slane %v9307, 5
    %v9310 = vsel %vm404, %v9305, %v9309
    %v9312 = vshrl.u32 %v9171, 16
    %v9314 = vrot.slane %v9312, 4
    %v9315 = vshll.u32 %v9171, 16
    %v9317 = vrot.slane %v9315, 5
    %v9318 = vor.u32 %v9314, %v9317
    %v9319 = vrot.slane %v9318, 4
    %v9321 = vshll.u32 %v9172, 16
    %v9323 = vrot.slane %v9321, 5
    %v9324 = vsel %vm404, %v9319, %v9323
    %v9326 = vshrl.u32 %v9173, 16
    %v9328 = vrot.slane %v9326, 4
    %v9329 = vshll.u32 %v9173, 16
    %v9331 = vrot.slane %v9329, 5
    %v9332 = vor.u32 %v9328, %v9331
    %v9333 = vrot.slane %v9332, 4
    %v9335 = vshll.u32 %v9174, 16
    %v9337 = vrot.slane %v9335, 5
    %v9338 = vsel %vm404, %v9333, %v9337
    %v9340 = vshrl.u32 %v9175, 16
    %v9342 = vrot.slane %v9340, 4
    %v9343 = vshll.u32 %v9175, 16
    %v9345 = vrot.slane %v9343, 5
    %v9346 = vor.u32 %v9342, %v9345
    %v9347 = vrot.slane %v9346, 4
    %v9349 = vshll.u32 %v9176, 16
    %v9351 = vrot.slane %v9349, 5
    %v9352 = vsel %vm404, %v9347, %v9351
    %v9354 = vshrl.u32 %v9177, 16
    %v9356 = vrot.slane %v9354, 4
    %v9357 = vshll.u32 %v9177, 16
    %v9359 = vrot.slane %v9357, 5
    %v9360 = vor.u32 %v9356, %v9359
    %v9361 = vrot.slane %v9360, 4
    %v9363 = vshll.u32 %v9178, 16
    %v9365 = vrot.slane %v9363, 5
    %v9366 = vsel %vm404, %v9361, %v9365
    %v9368 = vshrl.u32 %v9179, 16
    %v9370 = vrot.slane %v9368, 4
    %v9371 = vshll.u32 %v9179, 16
    %v9373 = vrot.slane %v9371, 5
    %v9374 = vor.u32 %v9370, %v9373
    %v9375 = vrot.slane %v9374, 4
    %v9377 = vshll.u32 %v9180, 16
    %v9379 = vrot.slane %v9377, 5
    %v9380 = vsel %vm404, %v9375, %v9379
    %v9382 = vshrl.u32 %v9181, 16
    %v9384 = vrot.slane %v9382, 4
    %v9385 = vshll.u32 %v9181, 16
    %v9387 = vrot.slane %v9385, 5
    %v9388 = vor.u32 %v9384, %v9387
    %v9389 = vrot.slane %v9388, 4
    %v9391 = vshll.u32 %v9182, 16
    %v9393 = vrot.slane %v9391, 5
    %v9394 = vsel %vm404, %v9389, %v9393
    %v9396 = vshrl.u32 %v9183, 16
    %v9398 = vrot.slane %v9396, 4
    %v9399 = vshll.u32 %v9183, 16
    %v9401 = vrot.slane %v9399, 5
    %v9402 = vor.u32 %v9398, %v9401
    %v9403 = vrot.slane %v9402, 4
    %v9405 = vshll.u32 %v9184, 16
    %v9407 = vrot.slane %v9405, 5
    %v9408 = vsel %vm404, %v9403, %v9407
    %9425 = vst.msk [vmem:[#allocation4 + $0x3c8] sm:$0xf] %vm49, %v9198
    %9426 = vst.msk [vmem:[#allocation4 + $0x3dc] sm:$0xf] %vm49, %v9212
    %9427 = vst.msk [vmem:[#allocation4 + $0x3f0] sm:$0xf] %vm49, %v9226
    %9428 = vst.msk [vmem:[#allocation4 + $0x404] sm:$0xf] %vm49, %v9240
    %9429 = vst.msk [vmem:[#allocation4 + $0x418] sm:$0xf] %vm49, %v9254
    %9430 = vst.msk [vmem:[#allocation4 + $0x42c] sm:$0xf] %vm49, %v9268
    %9431 = vst.msk [vmem:[#allocation4 + $0x440] sm:$0xf] %vm49, %v9282
    %9432 = vst.msk [vmem:[#allocation4 + $0x454] sm:$0xf] %vm49, %v9296
    %9433 = vst.msk [vmem:[#allocation4 + $0x468] sm:$0xf] %vm49, %v9310
    %9434 = vst.msk [vmem:[#allocation4 + $0x47c] sm:$0xf] %vm49, %v9324
    %9435 = vst.msk [vmem:[#allocation4 + $0x490] sm:$0xf] %vm49, %v9338
    %9436 = vst.msk [vmem:[#allocation4 + $0x4a4] sm:$0xf] %vm49, %v9352
    %9437 = vst.msk [vmem:[#allocation4 + $0x4b8] sm:$0xf] %vm49, %v9366
    %9438 = vst.msk [vmem:[#allocation4 + $0x4cc] sm:$0xf] %vm49, %v9380
    %9439 = vst.msk [vmem:[#allocation4 + $0x4e0] sm:$0xf] %vm49, %v9394
    %9440 = vst.msk [vmem:[#allocation4 + $0x4f4] sm:$0xf] %vm49, %v9408
    %v9441 = vld [vmem:[%s3531] sm:$0xf]
    %v9442 = vld [vmem:[%s3531 + $0x4] sm:$0x1]
    %v9443 = vld [vmem:[%s3531 + $0x10] sm:$0xf]
    %v9444 = vld [vmem:[%s3531 + $0x14] sm:$0x1]
    %v9445 = vld [vmem:[%s3531 + $0x20] sm:$0xf]
    %v9446 = vld [vmem:[%s3531 + $0x24] sm:$0x1]
    %v9447 = vld [vmem:[%s3531 + $0x30] sm:$0xf]
    %v9448 = vld [vmem:[%s3531 + $0x34] sm:$0x1]
    %v9449 = vld [vmem:[%s3531 + $0x40] sm:$0xf]
    %v9450 = vld [vmem:[%s3531 + $0x44] sm:$0x1]
    %v9451 = vld [vmem:[%s3531 + $0x50] sm:$0xf]
    %v9452 = vld [vmem:[%s3531 + $0x54] sm:$0x1]
    %v9453 = vld [vmem:[%s3531 + $0x60] sm:$0xf]
    %v9454 = vld [vmem:[%s3531 + $0x64] sm:$0x1]
    %v9455 = vld [vmem:[%s3531 + $0x70] sm:$0xf]
    %v9456 = vld [vmem:[%s3531 + $0x74] sm:$0x1]
    %v9457 = vld [vmem:[%s3531 + $0x120] sm:$0xf]
    %v9458 = vld [vmem:[%s3531 + $0x124] sm:$0x1]
    %v9459 = vld [vmem:[%s3531 + $0x130] sm:$0xf]
    %v9460 = vld [vmem:[%s3531 + $0x134] sm:$0x1]
    %v9461 = vld [vmem:[%s3531 + $0x140] sm:$0xf]
    %v9462 = vld [vmem:[%s3531 + $0x144] sm:$0x1]
    %v9463 = vld [vmem:[%s3531 + $0x150] sm:$0xf]
    %v9464 = vld [vmem:[%s3531 + $0x154] sm:$0x1]
    %v9465 = vld [vmem:[%s3531 + $0x160] sm:$0xf]
    %v9466 = vld [vmem:[%s3531 + $0x164] sm:$0x1]
    %v9467 = vld [vmem:[%s3531 + $0x170] sm:$0xf]
    %v9468 = vld [vmem:[%s3531 + $0x174] sm:$0x1]
    %v9469 = vld [vmem:[%s3531 + $0x180] sm:$0xf]
    %v9470 = vld [vmem:[%s3531 + $0x184] sm:$0x1]
    %v9471 = vld [vmem:[%s3531 + $0x190] sm:$0xf]
    %v9472 = vld [vmem:[%s3531 + $0x194] sm:$0x1]
    %v9474 = vshrl.u32 %v9441, 16
    %v9476 = vrot.slane %v9474, 4
    %v9477 = vshll.u32 %v9441, 16
    %v9479 = vrot.slane %v9477, 5
    %v9480 = vor.u32 %v9476, %v9479
    %v9481 = vrot.slane %v9480, 4
    %v9483 = vshll.u32 %v9442, 16
    %v9485 = vrot.slane %v9483, 5
    %v9486 = vsel %vm404, %v9481, %v9485
    %v9488 = vshrl.u32 %v9443, 16
    %v9490 = vrot.slane %v9488, 4
    %v9491 = vshll.u32 %v9443, 16
    %v9493 = vrot.slane %v9491, 5
    %v9494 = vor.u32 %v9490, %v9493
    %v9495 = vrot.slane %v9494, 4
    %v9497 = vshll.u32 %v9444, 16
    %v9499 = vrot.slane %v9497, 5
    %v9500 = vsel %vm404, %v9495, %v9499
    %v9502 = vshrl.u32 %v9445, 16
    %v9504 = vrot.slane %v9502, 4
    %v9505 = vshll.u32 %v9445, 16
    %v9507 = vrot.slane %v9505, 5
    %v9508 = vor.u32 %v9504, %v9507
    %v9509 = vrot.slane %v9508, 4
    %v9511 = vshll.u32 %v9446, 16
    %v9513 = vrot.slane %v9511, 5
    %v9514 = vsel %vm404, %v9509, %v9513
    %v9516 = vshrl.u32 %v9447, 16
    %v9518 = vrot.slane %v9516, 4
    %v9519 = vshll.u32 %v9447, 16
    %v9521 = vrot.slane %v9519, 5
    %v9522 = vor.u32 %v9518, %v9521
    %v9523 = vrot.slane %v9522, 4
    %v9525 = vshll.u32 %v9448, 16
    %v9527 = vrot.slane %v9525, 5
    %v9528 = vsel %vm404, %v9523, %v9527
    %v9530 = vshrl.u32 %v9449, 16
    %v9532 = vrot.slane %v9530, 4
    %v9533 = vshll.u32 %v9449, 16
    %v9535 = vrot.slane %v9533, 5
    %v9536 = vor.u32 %v9532, %v9535
    %v9537 = vrot.slane %v9536, 4
    %v9539 = vshll.u32 %v9450, 16
    %v9541 = vrot.slane %v9539, 5
    %v9542 = vsel %vm404, %v9537, %v9541
    %v9544 = vshrl.u32 %v9451, 16
    %v9546 = vrot.slane %v9544, 4
    %v9547 = vshll.u32 %v9451, 16
    %v9549 = vrot.slane %v9547, 5
    %v9550 = vor.u32 %v9546, %v9549
    %v9551 = vrot.slane %v9550, 4
    %v9553 = vshll.u32 %v9452, 16
    %v9555 = vrot.slane %v9553, 5
    %v9556 = vsel %vm404, %v9551, %v9555
    %v9558 = vshrl.u32 %v9453, 16
    %v9560 = vrot.slane %v9558, 4
    %v9561 = vshll.u32 %v9453, 16
    %v9563 = vrot.slane %v9561, 5
    %v9564 = vor.u32 %v9560, %v9563
    %v9565 = vrot.slane %v9564, 4
    %v9567 = vshll.u32 %v9454, 16
    %v9569 = vrot.slane %v9567, 5
    %v9570 = vsel %vm404, %v9565, %v9569
    %v9572 = vshrl.u32 %v9455, 16
    %v9574 = vrot.slane %v9572, 4
    %v9575 = vshll.u32 %v9455, 16
    %v9577 = vrot.slane %v9575, 5
    %v9578 = vor.u32 %v9574, %v9577
    %v9579 = vrot.slane %v9578, 4
    %v9581 = vshll.u32 %v9456, 16
    %v9583 = vrot.slane %v9581, 5
    %v9584 = vsel %vm404, %v9579, %v9583
    %v9586 = vshrl.u32 %v9457, 16
    %v9588 = vrot.slane %v9586, 4
    %v9589 = vshll.u32 %v9457, 16
    %v9591 = vrot.slane %v9589, 5
    %v9592 = vor.u32 %v9588, %v9591
    %v9593 = vrot.slane %v9592, 4
    %v9595 = vshll.u32 %v9458, 16
    %v9597 = vrot.slane %v9595, 5
    %v9598 = vsel %vm404, %v9593, %v9597
    %v9600 = vshrl.u32 %v9459, 16
    %v9602 = vrot.slane %v9600, 4
    %v9603 = vshll.u32 %v9459, 16
    %v9605 = vrot.slane %v9603, 5
    %v9606 = vor.u32 %v9602, %v9605
    %v9607 = vrot.slane %v9606, 4
    %v9609 = vshll.u32 %v9460, 16
    %v9611 = vrot.slane %v9609, 5
    %v9612 = vsel %vm404, %v9607, %v9611
    %v9614 = vshrl.u32 %v9461, 16
    %v9616 = vrot.slane %v9614, 4
    %v9617 = vshll.u32 %v9461, 16
    %v9619 = vrot.slane %v9617, 5
    %v9620 = vor.u32 %v9616, %v9619
    %v9621 = vrot.slane %v9620, 4
    %v9623 = vshll.u32 %v9462, 16
    %v9625 = vrot.slane %v9623, 5
    %v9626 = vsel %vm404, %v9621, %v9625
    %v9628 = vshrl.u32 %v9463, 16
    %v9630 = vrot.slane %v9628, 4
    %v9631 = vshll.u32 %v9463, 16
    %v9633 = vrot.slane %v9631, 5
    %v9634 = vor.u32 %v9630, %v9633
    %v9635 = vrot.slane %v9634, 4
    %v9637 = vshll.u32 %v9464, 16
    %v9639 = vrot.slane %v9637, 5
    %v9640 = vsel %vm404, %v9635, %v9639
    %v9642 = vshrl.u32 %v9465, 16
    %v9644 = vrot.slane %v9642, 4
    %v9645 = vshll.u32 %v9465, 16
    %v9647 = vrot.slane %v9645, 5
    %v9648 = vor.u32 %v9644, %v9647
    %v9649 = vrot.slane %v9648, 4
    %v9651 = vshll.u32 %v9466, 16
    %v9653 = vrot.slane %v9651, 5
    %v9654 = vsel %vm404, %v9649, %v9653
    %v9656 = vshrl.u32 %v9467, 16
    %v9658 = vrot.slane %v9656, 4
    %v9659 = vshll.u32 %v9467, 16
    %v9661 = vrot.slane %v9659, 5
    %v9662 = vor.u32 %v9658, %v9661
    %v9663 = vrot.slane %v9662, 4
    %v9665 = vshll.u32 %v9468, 16
    %v9667 = vrot.slane %v9665, 5
    %v9668 = vsel %vm404, %v9663, %v9667
    %v9670 = vshrl.u32 %v9469, 16
    %v9672 = vrot.slane %v9670, 4
    %v9673 = vshll.u32 %v9469, 16
    %v9675 = vrot.slane %v9673, 5
    %v9676 = vor.u32 %v9672, %v9675
    %v9677 = vrot.slane %v9676, 4
    %v9679 = vshll.u32 %v9470, 16
    %v9681 = vrot.slane %v9679, 5
    %v9682 = vsel %vm404, %v9677, %v9681
    %v9684 = vshrl.u32 %v9471, 16
    %v9686 = vrot.slane %v9684, 4
    %v9687 = vshll.u32 %v9471, 16
    %v9689 = vrot.slane %v9687, 5
    %v9690 = vor.u32 %v9686, %v9689
    %v9691 = vrot.slane %v9690, 4
    %v9693 = vshll.u32 %v9472, 16
    %v9695 = vrot.slane %v9693, 5
    %v9696 = vsel %vm404, %v9691, %v9695
    %9697 = vrot.lane.b32.xlu0 %v9486, 64
    %v9698 = vpop.permute.xlu0 %9697
    %9699 = vrot.lane.b32.xlu0 %v9500, 64
    %v9700 = vpop.permute.xlu0 %9699
    %9701 = vrot.lane.b32.xlu0 %v9514, 64
    %v9702 = vpop.permute.xlu0 %9701
    %9703 = vrot.lane.b32.xlu0 %v9528, 64
    %v9704 = vpop.permute.xlu0 %9703
    %9705 = vrot.lane.b32.xlu0 %v9542, 64
    %v9706 = vpop.permute.xlu0 %9705
    %9707 = vrot.lane.b32.xlu0 %v9556, 64
    %v9708 = vpop.permute.xlu0 %9707
    %9709 = vrot.lane.b32.xlu0 %v9570, 64
    %v9710 = vpop.permute.xlu0 %9709
    %9711 = vrot.lane.b32.xlu0 %v9584, 64
    %v9712 = vpop.permute.xlu0 %9711
    %9713 = vrot.lane.b32.xlu0 %v9598, 64
    %v9714 = vpop.permute.xlu0 %9713
    %9715 = vrot.lane.b32.xlu0 %v9612, 64
    %v9716 = vpop.permute.xlu0 %9715
    %9717 = vrot.lane.b32.xlu0 %v9626, 64
    %v9718 = vpop.permute.xlu0 %9717
    %9719 = vrot.lane.b32.xlu0 %v9640, 64
    %v9720 = vpop.permute.xlu0 %9719
    %9721 = vrot.lane.b32.xlu0 %v9654, 64
    %v9722 = vpop.permute.xlu0 %9721
    %9723 = vrot.lane.b32.xlu0 %v9668, 64
    %v9724 = vpop.permute.xlu0 %9723
    %9725 = vrot.lane.b32.xlu0 %v9682, 64
    %v9726 = vpop.permute.xlu0 %9725
    %9727 = vrot.lane.b32.xlu0 %v9696, 64
    %v9728 = vpop.permute.xlu0 %9727
    %9745 = vst.msk [vmem:[#allocation4 + $0x3c8] sm:$0xf] %vm3982, %v9698
    %9746 = vst.msk [vmem:[#allocation4 + $0x3dc] sm:$0xf] %vm3982, %v9700
    %9747 = vst.msk [vmem:[#allocation4 + $0x3f0] sm:$0xf] %vm3982, %v9702
    %9748 = vst.msk [vmem:[#allocation4 + $0x404] sm:$0xf] %vm3982, %v9704
    %9749 = vst.msk [vmem:[#allocation4 + $0x418] sm:$0xf] %vm3982, %v9706
    %9750 = vst.msk [vmem:[#allocation4 + $0x42c] sm:$0xf] %vm3982, %v9708
    %9751 = vst.msk [vmem:[#allocation4 + $0x440] sm:$0xf] %vm3982, %v9710
    %9752 = vst.msk [vmem:[#allocation4 + $0x454] sm:$0xf] %vm3982, %v9712
    %9753 = vst.msk [vmem:[#allocation4 + $0x468] sm:$0xf] %vm3982, %v9714
    %9754 = vst.msk [vmem:[#allocation4 + $0x47c] sm:$0xf] %vm3982, %v9716
    %9755 = vst.msk [vmem:[#allocation4 + $0x490] sm:$0xf] %vm3982, %v9718
    %9756 = vst.msk [vmem:[#allocation4 + $0x4a4] sm:$0xf] %vm3982, %v9720
    %9757 = vst.msk [vmem:[#allocation4 + $0x4b8] sm:$0xf] %vm3982, %v9722
    %9758 = vst.msk [vmem:[#allocation4 + $0x4cc] sm:$0xf] %vm3982, %v9724
    %9759 = vst.msk [vmem:[#allocation4 + $0x4e0] sm:$0xf] %vm3982, %v9726
    %9760 = vst.msk [vmem:[#allocation4 + $0x4f4] sm:$0xf] %vm3982, %v9728
    %v9761 = vld [vmem:[%s8032] sm:$0xf]
    %v9762 = vld [vmem:[%s8032 + $0x10] sm:$0xf]
    %v9763 = vld [vmem:[%s8032 + $0x20] sm:$0xf]
    %v9764 = vld [vmem:[%s8032 + $0x30] sm:$0xf]
    %v9765 = vld [vmem:[%s8032 + $0x40] sm:$0xf]
    %v9766 = vld [vmem:[%s8032 + $0x50] sm:$0xf]
    %v9767 = vld [vmem:[%s8032 + $0x60] sm:$0xf]
    %v9768 = vld [vmem:[%s8032 + $0x70] sm:$0xf]
    %v9769 = vld [vmem:[%s8032 + $0x120] sm:$0xf]
    %v9770 = vld [vmem:[%s8032 + $0x130] sm:$0xf]
    %v9771 = vld [vmem:[%s8032 + $0x140] sm:$0xf]
    %v9772 = vld [vmem:[%s8032 + $0x150] sm:$0xf]
    %v9773 = vld [vmem:[%s8032 + $0x160] sm:$0xf]
    %v9774 = vld [vmem:[%s8032 + $0x170] sm:$0xf]
    %v9775 = vld [vmem:[%s8032 + $0x180] sm:$0xf]
    %v9776 = vld [vmem:[%s8032 + $0x190] sm:$0xf]
    %9777 = vst.msk [vmem:[#allocation4 + $0x3cc] sm:$0xf] %vm49, %v9761
    %9778 = vst.msk [vmem:[#allocation4 + $0x3e0] sm:$0xf] %vm49, %v9762
    %9779 = vst.msk [vmem:[#allocation4 + $0x3f4] sm:$0xf] %vm49, %v9763
    %9780 = vst.msk [vmem:[#allocation4 + $0x408] sm:$0xf] %vm49, %v9764
    %9781 = vst.msk [vmem:[#allocation4 + $0x41c] sm:$0xf] %vm49, %v9765
    %9782 = vst.msk [vmem:[#allocation4 + $0x430] sm:$0xf] %vm49, %v9766
    %9783 = vst.msk [vmem:[#allocation4 + $0x444] sm:$0xf] %vm49, %v9767
    %9784 = vst.msk [vmem:[#allocation4 + $0x458] sm:$0xf] %vm49, %v9768
    %9785 = vst.msk [vmem:[#allocation4 + $0x46c] sm:$0xf] %vm49, %v9769
    %9786 = vst.msk [vmem:[#allocation4 + $0x480] sm:$0xf] %vm49, %v9770
    %9787 = vst.msk [vmem:[#allocation4 + $0x494] sm:$0xf] %vm49, %v9771
    %9788 = vst.msk [vmem:[#allocation4 + $0x4a8] sm:$0xf] %vm49, %v9772
    %9789 = vst.msk [vmem:[#allocation4 + $0x4bc] sm:$0xf] %vm49, %v9773
    %9790 = vst.msk [vmem:[#allocation4 + $0x4d0] sm:$0xf] %vm49, %v9774
    %9791 = vst.msk [vmem:[#allocation4 + $0x4e4] sm:$0xf] %vm49, %v9775
    %9792 = vst.msk [vmem:[#allocation4 + $0x4f8] sm:$0xf] %vm49, %v9776
    %v9793 = vld [vmem:[%s7999] sm:$0xf]
    %v9794 = vld [vmem:[%s7999 + $0x4] sm:$0x1]
    %v9795 = vld [vmem:[%s7999 + $0x10] sm:$0xf]
    %v9796 = vld [vmem:[%s7999 + $0x14] sm:$0x1]
    %v9797 = vld [vmem:[%s7999 + $0x20] sm:$0xf]
    %v9798 = vld [vmem:[%s7999 + $0x24] sm:$0x1]
    %v9799 = vld [vmem:[%s7999 + $0x30] sm:$0xf]
    %v9800 = vld [vmem:[%s7999 + $0x34] sm:$0x1]
    %v9801 = vld [vmem:[%s7999 + $0x40] sm:$0xf]
    %v9802 = vld [vmem:[%s7999 + $0x44] sm:$0x1]
    %v9803 = vld [vmem:[%s7999 + $0x50] sm:$0xf]
    %v9804 = vld [vmem:[%s7999 + $0x54] sm:$0x1]
    %v9805 = vld [vmem:[%s7999 + $0x60] sm:$0xf]
    %v9806 = vld [vmem:[%s7999 + $0x64] sm:$0x1]
    %v9807 = vld [vmem:[%s7999 + $0x70] sm:$0xf]
    %v9808 = vld [vmem:[%s7999 + $0x74] sm:$0x1]
    %v9809 = vld [vmem:[%s7999 + $0x120] sm:$0xf]
    %v9810 = vld [vmem:[%s7999 + $0x124] sm:$0x1]
    %v9811 = vld [vmem:[%s7999 + $0x130] sm:$0xf]
    %v9812 = vld [vmem:[%s7999 + $0x134] sm:$0x1]
    %v9813 = vld [vmem:[%s7999 + $0x140] sm:$0xf]
    %v9814 = vld [vmem:[%s7999 + $0x144] sm:$0x1]
    %v9815 = vld [vmem:[%s7999 + $0x150] sm:$0xf]
    %v9816 = vld [vmem:[%s7999 + $0x154] sm:$0x1]
    %v9817 = vld [vmem:[%s7999 + $0x160] sm:$0xf]
    %v9818 = vld [vmem:[%s7999 + $0x164] sm:$0x1]
    %v9819 = vld [vmem:[%s7999 + $0x170] sm:$0xf]
    %v9820 = vld [vmem:[%s7999 + $0x174] sm:$0x1]
    %v9821 = vld [vmem:[%s7999 + $0x180] sm:$0xf]
    %v9822 = vld [vmem:[%s7999 + $0x184] sm:$0x1]
    %v9823 = vld [vmem:[%s7999 + $0x190] sm:$0xf]
    %v9824 = vld [vmem:[%s7999 + $0x194] sm:$0x1]
    %v9826 = vshrl.u32 %v9793, 16
    %v9828 = vrot.slane %v9826, 4
    %v9829 = vshll.u32 %v9793, 16
    %v9831 = vrot.slane %v9829, 5
    %v9832 = vor.u32 %v9828, %v9831
    %v9833 = vrot.slane %v9832, 4
    %v9835 = vshll.u32 %v9794, 16
    %v9837 = vrot.slane %v9835, 5
    %v9838 = vsel %vm404, %v9833, %v9837
    %v9840 = vshrl.u32 %v9795, 16
    %v9842 = vrot.slane %v9840, 4
    %v9843 = vshll.u32 %v9795, 16
    %v9845 = vrot.slane %v9843, 5
    %v9846 = vor.u32 %v9842, %v9845
    %v9847 = vrot.slane %v9846, 4
    %v9849 = vshll.u32 %v9796, 16
    %v9851 = vrot.slane %v9849, 5
    %v9852 = vsel %vm404, %v9847, %v9851
    %v9854 = vshrl.u32 %v9797, 16
    %v9856 = vrot.slane %v9854, 4
    %v9857 = vshll.u32 %v9797, 16
    %v9859 = vrot.slane %v9857, 5
    %v9860 = vor.u32 %v9856, %v9859
    %v9861 = vrot.slane %v9860, 4
    %v9863 = vshll.u32 %v9798, 16
    %v9865 = vrot.slane %v9863, 5
    %v9866 = vsel %vm404, %v9861, %v9865
    %v9868 = vshrl.u32 %v9799, 16
    %v9870 = vrot.slane %v9868, 4
    %v9871 = vshll.u32 %v9799, 16
    %v9873 = vrot.slane %v9871, 5
    %v9874 = vor.u32 %v9870, %v9873
    %v9875 = vrot.slane %v9874, 4
    %v9877 = vshll.u32 %v9800, 16
    %v9879 = vrot.slane %v9877, 5
    %v9880 = vsel %vm404, %v9875, %v9879
    %v9882 = vshrl.u32 %v9801, 16
    %v9884 = vrot.slane %v9882, 4
    %v9885 = vshll.u32 %v9801, 16
    %v9887 = vrot.slane %v9885, 5
    %v9888 = vor.u32 %v9884, %v9887
    %v9889 = vrot.slane %v9888, 4
    %v9891 = vshll.u32 %v9802, 16
    %v9893 = vrot.slane %v9891, 5
    %v9894 = vsel %vm404, %v9889, %v9893
    %v9896 = vshrl.u32 %v9803, 16
    %v9898 = vrot.slane %v9896, 4
    %v9899 = vshll.u32 %v9803, 16
    %v9901 = vrot.slane %v9899, 5
    %v9902 = vor.u32 %v9898, %v9901
    %v9903 = vrot.slane %v9902, 4
    %v9905 = vshll.u32 %v9804, 16
    %v9907 = vrot.slane %v9905, 5
    %v9908 = vsel %vm404, %v9903, %v9907
    %v9910 = vshrl.u32 %v9805, 16
    %v9912 = vrot.slane %v9910, 4
    %v9913 = vshll.u32 %v9805, 16
    %v9915 = vrot.slane %v9913, 5
    %v9916 = vor.u32 %v9912, %v9915
    %v9917 = vrot.slane %v9916, 4
    %v9919 = vshll.u32 %v9806, 16
    %v9921 = vrot.slane %v9919, 5
    %v9922 = vsel %vm404, %v9917, %v9921
    %v9924 = vshrl.u32 %v9807, 16
    %v9926 = vrot.slane %v9924, 4
    %v9927 = vshll.u32 %v9807, 16
    %v9929 = vrot.slane %v9927, 5
    %v9930 = vor.u32 %v9926, %v9929
    %v9931 = vrot.slane %v9930, 4
    %v9933 = vshll.u32 %v9808, 16
    %v9935 = vrot.slane %v9933, 5
    %v9936 = vsel %vm404, %v9931, %v9935
    %v9938 = vshrl.u32 %v9809, 16
    %v9940 = vrot.slane %v9938, 4
    %v9941 = vshll.u32 %v9809, 16
    %v9943 = vrot.slane %v9941, 5
    %v9944 = vor.u32 %v9940, %v9943
    %v9945 = vrot.slane %v9944, 4
    %v9947 = vshll.u32 %v9810, 16
    %v9949 = vrot.slane %v9947, 5
    %v9950 = vsel %vm404, %v9945, %v9949
    %v9952 = vshrl.u32 %v9811, 16
    %v9954 = vrot.slane %v9952, 4
    %v9955 = vshll.u32 %v9811, 16
    %v9957 = vrot.slane %v9955, 5
    %v9958 = vor.u32 %v9954, %v9957
    %v9959 = vrot.slane %v9958, 4
    %v9961 = vshll.u32 %v9812, 16
    %v9963 = vrot.slane %v9961, 5
    %v9964 = vsel %vm404, %v9959, %v9963
    %v9966 = vshrl.u32 %v9813, 16
    %v9968 = vrot.slane %v9966, 4
    %v9969 = vshll.u32 %v9813, 16
    %v9971 = vrot.slane %v9969, 5
    %v9972 = vor.u32 %v9968, %v9971
    %v9973 = vrot.slane %v9972, 4
    %v9975 = vshll.u32 %v9814, 16
    %v9977 = vrot.slane %v9975, 5
    %v9978 = vsel %vm404, %v9973, %v9977
    %v9980 = vshrl.u32 %v9815, 16
    %v9982 = vrot.slane %v9980, 4
    %v9983 = vshll.u32 %v9815, 16
    %v9985 = vrot.slane %v9983, 5
    %v9986 = vor.u32 %v9982, %v9985
    %v9987 = vrot.slane %v9986, 4
    %v9989 = vshll.u32 %v9816, 16
    %v9991 = vrot.slane %v9989, 5
    %v9992 = vsel %vm404, %v9987, %v9991
    %v9994 = vshrl.u32 %v9817, 16
    %v9996 = vrot.slane %v9994, 4
    %v9997 = vshll.u32 %v9817, 16
    %v9999 = vrot.slane %v9997, 5
    %v10000 = vor.u32 %v9996, %v9999
    %v10001 = vrot.slane %v10000, 4
    %v10003 = vshll.u32 %v9818, 16
    %v10005 = vrot.slane %v10003, 5
    %v10006 = vsel %vm404, %v10001, %v10005
    %v10008 = vshrl.u32 %v9819, 16
    %v10010 = vrot.slane %v10008, 4
    %v10011 = vshll.u32 %v9819, 16
    %v10013 = vrot.slane %v10011, 5
    %v10014 = vor.u32 %v10010, %v10013
    %v10015 = vrot.slane %v10014, 4
    %v10017 = vshll.u32 %v9820, 16
    %v10019 = vrot.slane %v10017, 5
    %v10020 = vsel %vm404, %v10015, %v10019
    %v10022 = vshrl.u32 %v9821, 16
    %v10024 = vrot.slane %v10022, 4
    %v10025 = vshll.u32 %v9821, 16
    %v10027 = vrot.slane %v10025, 5
    %v10028 = vor.u32 %v10024, %v10027
    %v10029 = vrot.slane %v10028, 4
    %v10031 = vshll.u32 %v9822, 16
    %v10033 = vrot.slane %v10031, 5
    %v10034 = vsel %vm404, %v10029, %v10033
    %v10036 = vshrl.u32 %v9823, 16
    %v10038 = vrot.slane %v10036, 4
    %v10039 = vshll.u32 %v9823, 16
    %v10041 = vrot.slane %v10039, 5
    %v10042 = vor.u32 %v10038, %v10041
    %v10043 = vrot.slane %v10042, 4
    %v10045 = vshll.u32 %v9824, 16
    %v10047 = vrot.slane %v10045, 5
    %v10048 = vsel %vm404, %v10043, %v10047
    %10049 = vrot.lane.b32.xlu0 %v9838, 64
    %v10050 = vpop.permute.xlu0 %10049
    %10051 = vrot.lane.b32.xlu0 %v9852, 64
    %v10052 = vpop.permute.xlu0 %10051
    %10053 = vrot.lane.b32.xlu0 %v9866, 64
    %v10054 = vpop.permute.xlu0 %10053
    %10055 = vrot.lane.b32.xlu0 %v9880, 64
    %v10056 = vpop.permute.xlu0 %10055
    %10057 = vrot.lane.b32.xlu0 %v9894, 64
    %v10058 = vpop.permute.xlu0 %10057
    %10059 = vrot.lane.b32.xlu0 %v9908, 64
    %v10060 = vpop.permute.xlu0 %10059
    %10061 = vrot.lane.b32.xlu0 %v9922, 64
    %v10062 = vpop.permute.xlu0 %10061
    %10063 = vrot.lane.b32.xlu0 %v9936, 64
    %v10064 = vpop.permute.xlu0 %10063
    %10065 = vrot.lane.b32.xlu0 %v9950, 64
    %v10066 = vpop.permute.xlu0 %10065
    %10067 = vrot.lane.b32.xlu0 %v9964, 64
    %v10068 = vpop.permute.xlu0 %10067
    %10069 = vrot.lane.b32.xlu0 %v9978, 64
    %v10070 = vpop.permute.xlu0 %10069
    %10071 = vrot.lane.b32.xlu0 %v9992, 64
    %v10072 = vpop.permute.xlu0 %10071
    %10073 = vrot.lane.b32.xlu0 %v10006, 64
    %v10074 = vpop.permute.xlu0 %10073
    %10075 = vrot.lane.b32.xlu0 %v10020, 64
    %v10076 = vpop.permute.xlu0 %10075
    %10077 = vrot.lane.b32.xlu0 %v10034, 64
    %v10078 = vpop.permute.xlu0 %10077
    %10079 = vrot.lane.b32.xlu0 %v10048, 64
    %v10080 = vpop.permute.xlu0 %10079
    %10097 = vst.msk [vmem:[#allocation4 + $0x3cc] sm:$0xf] %vm3982, %v10050
    %10098 = vst.msk [vmem:[#allocation4 + $0x3e0] sm:$0xf] %vm3982, %v10052
    %10099 = vst.msk [vmem:[#allocation4 + $0x3f4] sm:$0xf] %vm3982, %v10054
    %10100 = vst.msk [vmem:[#allocation4 + $0x408] sm:$0xf] %vm3982, %v10056
    %10101 = vst.msk [vmem:[#allocation4 + $0x41c] sm:$0xf] %vm3982, %v10058
    %10102 = vst.msk [vmem:[#allocation4 + $0x430] sm:$0xf] %vm3982, %v10060
    %10103 = vst.msk [vmem:[#allocation4 + $0x444] sm:$0xf] %vm3982, %v10062
    %10104 = vst.msk [vmem:[#allocation4 + $0x458] sm:$0xf] %vm3982, %v10064
    %10105 = vst.msk [vmem:[#allocation4 + $0x46c] sm:$0xf] %vm3982, %v10066
    %10106 = vst.msk [vmem:[#allocation4 + $0x480] sm:$0xf] %vm3982, %v10068
    %10107 = vst.msk [vmem:[#allocation4 + $0x494] sm:$0xf] %vm3982, %v10070
    %10108 = vst.msk [vmem:[#allocation4 + $0x4a8] sm:$0xf] %vm3982, %v10072
    %10109 = vst.msk [vmem:[#allocation4 + $0x4bc] sm:$0xf] %vm3982, %v10074
    %10110 = vst.msk [vmem:[#allocation4 + $0x4d0] sm:$0xf] %vm3982, %v10076
    %10111 = vst.msk [vmem:[#allocation4 + $0x4e4] sm:$0xf] %vm3982, %v10078
    %10112 = vst.msk [vmem:[#allocation4 + $0x4f8] sm:$0xf] %vm3982, %v10080
    %v10113 = vld [vmem:[%s8032] sm:$0xf]
    %v10114 = vld [vmem:[%s8032 + $0x4] sm:$0x1]
    %v10115 = vld [vmem:[%s8032 + $0x10] sm:$0xf]
    %v10116 = vld [vmem:[%s8032 + $0x14] sm:$0x1]
    %v10117 = vld [vmem:[%s8032 + $0x20] sm:$0xf]
    %v10118 = vld [vmem:[%s8032 + $0x24] sm:$0x1]
    %v10119 = vld [vmem:[%s8032 + $0x30] sm:$0xf]
    %v10120 = vld [vmem:[%s8032 + $0x34] sm:$0x1]
    %v10121 = vld [vmem:[%s8032 + $0x40] sm:$0xf]
    %v10122 = vld [vmem:[%s8032 + $0x44] sm:$0x1]
    %v10123 = vld [vmem:[%s8032 + $0x50] sm:$0xf]
    %v10124 = vld [vmem:[%s8032 + $0x54] sm:$0x1]
    %v10125 = vld [vmem:[%s8032 + $0x60] sm:$0xf]
    %v10126 = vld [vmem:[%s8032 + $0x64] sm:$0x1]
    %v10127 = vld [vmem:[%s8032 + $0x70] sm:$0xf]
    %v10128 = vld [vmem:[%s8032 + $0x74] sm:$0x1]
    %v10129 = vld [vmem:[%s8032 + $0x120] sm:$0xf]
    %v10130 = vld [vmem:[%s8032 + $0x124] sm:$0x1]
    %v10131 = vld [vmem:[%s8032 + $0x130] sm:$0xf]
    %v10132 = vld [vmem:[%s8032 + $0x134] sm:$0x1]
    %v10133 = vld [vmem:[%s8032 + $0x140] sm:$0xf]
    %v10134 = vld [vmem:[%s8032 + $0x144] sm:$0x1]
    %v10135 = vld [vmem:[%s8032 + $0x150] sm:$0xf]
    %v10136 = vld [vmem:[%s8032 + $0x154] sm:$0x1]
    %v10137 = vld [vmem:[%s8032 + $0x160] sm:$0xf]
    %v10138 = vld [vmem:[%s8032 + $0x164] sm:$0x1]
    %v10139 = vld [vmem:[%s8032 + $0x170] sm:$0xf]
    %v10140 = vld [vmem:[%s8032 + $0x174] sm:$0x1]
    %v10141 = vld [vmem:[%s8032 + $0x180] sm:$0xf]
    %v10142 = vld [vmem:[%s8032 + $0x184] sm:$0x1]
    %v10143 = vld [vmem:[%s8032 + $0x190] sm:$0xf]
    %v10144 = vld [vmem:[%s8032 + $0x194] sm:$0x1]
    %v10146 = vshrl.u32 %v10113, 16
    %v10148 = vrot.slane %v10146, 4
    %v10149 = vshll.u32 %v10113, 16
    %v10151 = vrot.slane %v10149, 5
    %v10152 = vor.u32 %v10148, %v10151
    %v10153 = vrot.slane %v10152, 4
    %v10155 = vshll.u32 %v10114, 16
    %v10157 = vrot.slane %v10155, 5
    %v10158 = vsel %vm404, %v10153, %v10157
    %v10160 = vshrl.u32 %v10115, 16
    %v10162 = vrot.slane %v10160, 4
    %v10163 = vshll.u32 %v10115, 16
    %v10165 = vrot.slane %v10163, 5
    %v10166 = vor.u32 %v10162, %v10165
    %v10167 = vrot.slane %v10166, 4
    %v10169 = vshll.u32 %v10116, 16
    %v10171 = vrot.slane %v10169, 5
    %v10172 = vsel %vm404, %v10167, %v10171
    %v10174 = vshrl.u32 %v10117, 16
    %v10176 = vrot.slane %v10174, 4
    %v10177 = vshll.u32 %v10117, 16
    %v10179 = vrot.slane %v10177, 5
    %v10180 = vor.u32 %v10176, %v10179
    %v10181 = vrot.slane %v10180, 4
    %v10183 = vshll.u32 %v10118, 16
    %v10185 = vrot.slane %v10183, 5
    %v10186 = vsel %vm404, %v10181, %v10185
    %v10188 = vshrl.u32 %v10119, 16
    %v10190 = vrot.slane %v10188, 4
    %v10191 = vshll.u32 %v10119, 16
    %v10193 = vrot.slane %v10191, 5
    %v10194 = vor.u32 %v10190, %v10193
    %v10195 = vrot.slane %v10194, 4
    %v10197 = vshll.u32 %v10120, 16
    %v10199 = vrot.slane %v10197, 5
    %v10200 = vsel %vm404, %v10195, %v10199
    %v10202 = vshrl.u32 %v10121, 16
    %v10204 = vrot.slane %v10202, 4
    %v10205 = vshll.u32 %v10121, 16
    %v10207 = vrot.slane %v10205, 5
    %v10208 = vor.u32 %v10204, %v10207
    %v10209 = vrot.slane %v10208, 4
    %v10211 = vshll.u32 %v10122, 16
    %v10213 = vrot.slane %v10211, 5
    %v10214 = vsel %vm404, %v10209, %v10213
    %v10216 = vshrl.u32 %v10123, 16
    %v10218 = vrot.slane %v10216, 4
    %v10219 = vshll.u32 %v10123, 16
    %v10221 = vrot.slane %v10219, 5
    %v10222 = vor.u32 %v10218, %v10221
    %v10223 = vrot.slane %v10222, 4
    %v10225 = vshll.u32 %v10124, 16
    %v10227 = vrot.slane %v10225, 5
    %v10228 = vsel %vm404, %v10223, %v10227
    %v10230 = vshrl.u32 %v10125, 16
    %v10232 = vrot.slane %v10230, 4
    %v10233 = vshll.u32 %v10125, 16
    %v10235 = vrot.slane %v10233, 5
    %v10236 = vor.u32 %v10232, %v10235
    %v10237 = vrot.slane %v10236, 4
    %v10239 = vshll.u32 %v10126, 16
    %v10241 = vrot.slane %v10239, 5
    %v10242 = vsel %vm404, %v10237, %v10241
    %v10244 = vshrl.u32 %v10127, 16
    %v10246 = vrot.slane %v10244, 4
    %v10247 = vshll.u32 %v10127, 16
    %v10249 = vrot.slane %v10247, 5
    %v10250 = vor.u32 %v10246, %v10249
    %v10251 = vrot.slane %v10250, 4
    %v10253 = vshll.u32 %v10128, 16
    %v10255 = vrot.slane %v10253, 5
    %v10256 = vsel %vm404, %v10251, %v10255
    %v10258 = vshrl.u32 %v10129, 16
    %v10260 = vrot.slane %v10258, 4
    %v10261 = vshll.u32 %v10129, 16
    %v10263 = vrot.slane %v10261, 5
    %v10264 = vor.u32 %v10260, %v10263
    %v10265 = vrot.slane %v10264, 4
    %v10267 = vshll.u32 %v10130, 16
    %v10269 = vrot.slane %v10267, 5
    %v10270 = vsel %vm404, %v10265, %v10269
    %v10272 = vshrl.u32 %v10131, 16
    %v10274 = vrot.slane %v10272, 4
    %v10275 = vshll.u32 %v10131, 16
    %v10277 = vrot.slane %v10275, 5
    %v10278 = vor.u32 %v10274, %v10277
    %v10279 = vrot.slane %v10278, 4
    %v10281 = vshll.u32 %v10132, 16
    %v10283 = vrot.slane %v10281, 5
    %v10284 = vsel %vm404, %v10279, %v10283
    %v10286 = vshrl.u32 %v10133, 16
    %v10288 = vrot.slane %v10286, 4
    %v10289 = vshll.u32 %v10133, 16
    %v10291 = vrot.slane %v10289, 5
    %v10292 = vor.u32 %v10288, %v10291
    %v10293 = vrot.slane %v10292, 4
    %v10295 = vshll.u32 %v10134, 16
    %v10297 = vrot.slane %v10295, 5
    %v10298 = vsel %vm404, %v10293, %v10297
    %v10300 = vshrl.u32 %v10135, 16
    %v10302 = vrot.slane %v10300, 4
    %v10303 = vshll.u32 %v10135, 16
    %v10305 = vrot.slane %v10303, 5
    %v10306 = vor.u32 %v10302, %v10305
    %v10307 = vrot.slane %v10306, 4
    %v10309 = vshll.u32 %v10136, 16
    %v10311 = vrot.slane %v10309, 5
    %v10312 = vsel %vm404, %v10307, %v10311
    %v10314 = vshrl.u32 %v10137, 16
    %v10316 = vrot.slane %v10314, 4
    %v10317 = vshll.u32 %v10137, 16
    %v10319 = vrot.slane %v10317, 5
    %v10320 = vor.u32 %v10316, %v10319
    %v10321 = vrot.slane %v10320, 4
    %v10323 = vshll.u32 %v10138, 16
    %v10325 = vrot.slane %v10323, 5
    %v10326 = vsel %vm404, %v10321, %v10325
    %v10328 = vshrl.u32 %v10139, 16
    %v10330 = vrot.slane %v10328, 4
    %v10331 = vshll.u32 %v10139, 16
    %v10333 = vrot.slane %v10331, 5
    %v10334 = vor.u32 %v10330, %v10333
    %v10335 = vrot.slane %v10334, 4
    %v10337 = vshll.u32 %v10140, 16
    %v10339 = vrot.slane %v10337, 5
    %v10340 = vsel %vm404, %v10335, %v10339
    %v10342 = vshrl.u32 %v10141, 16
    %v10344 = vrot.slane %v10342, 4
    %v10345 = vshll.u32 %v10141, 16
    %v10347 = vrot.slane %v10345, 5
    %v10348 = vor.u32 %v10344, %v10347
    %v10349 = vrot.slane %v10348, 4
    %v10351 = vshll.u32 %v10142, 16
    %v10353 = vrot.slane %v10351, 5
    %v10354 = vsel %vm404, %v10349, %v10353
    %v10356 = vshrl.u32 %v10143, 16
    %v10358 = vrot.slane %v10356, 4
    %v10359 = vshll.u32 %v10143, 16
    %v10361 = vrot.slane %v10359, 5
    %v10362 = vor.u32 %v10358, %v10361
    %v10363 = vrot.slane %v10362, 4
    %v10365 = vshll.u32 %v10144, 16
    %v10367 = vrot.slane %v10365, 5
    %v10368 = vsel %vm404, %v10363, %v10367
    %10385 = vst.msk [vmem:[#allocation4 + $0x3d0] sm:$0xf] %vm49, %v10158
    %10386 = vst.msk [vmem:[#allocation4 + $0x3e4] sm:$0xf] %vm49, %v10172
    %10387 = vst.msk [vmem:[#allocation4 + $0x3f8] sm:$0xf] %vm49, %v10186
    %10388 = vst.msk [vmem:[#allocation4 + $0x40c] sm:$0xf] %vm49, %v10200
    %10389 = vst.msk [vmem:[#allocation4 + $0x420] sm:$0xf] %vm49, %v10214
    %10390 = vst.msk [vmem:[#allocation4 + $0x434] sm:$0xf] %vm49, %v10228
    %10391 = vst.msk [vmem:[#allocation4 + $0x448] sm:$0xf] %vm49, %v10242
    %10392 = vst.msk [vmem:[#allocation4 + $0x45c] sm:$0xf] %vm49, %v10256
    %10393 = vst.msk [vmem:[#allocation4 + $0x470] sm:$0xf] %vm49, %v10270
    %10394 = vst.msk [vmem:[#allocation4 + $0x484] sm:$0xf] %vm49, %v10284
    %10395 = vst.msk [vmem:[#allocation4 + $0x498] sm:$0xf] %vm49, %v10298
    %10396 = vst.msk [vmem:[#allocation4 + $0x4ac] sm:$0xf] %vm49, %v10312
    %10397 = vst.msk [vmem:[#allocation4 + $0x4c0] sm:$0xf] %vm49, %v10326
    %10398 = vst.msk [vmem:[#allocation4 + $0x4d4] sm:$0xf] %vm49, %v10340
    %10399 = vst.msk [vmem:[#allocation4 + $0x4e8] sm:$0xf] %vm49, %v10354
    %10400 = vst.msk [vmem:[#allocation4 + $0x4fc] sm:$0xf] %vm49, %v10368
    %v10401 = vld [vmem:[#allocation4] sm:$0xff]
    %v10402 = vld [vmem:[#allocation4 + $0x8] sm:$0xff]
    %v10403 = vld [vmem:[#allocation4 + $0x10] sm:$0xf]
    %v10404 = vld [vmem:[#allocation4 + $0x14] sm:$0xff]
    %v10405 = vld [vmem:[#allocation4 + $0x1c] sm:$0xff]
    %v10406 = vld [vmem:[#allocation4 + $0x24] sm:$0xf]
    %v10407 = vld [vmem:[#allocation4 + $0x28] sm:$0xff]
    %v10408 = vld [vmem:[#allocation4 + $0x30] sm:$0xff]
    %v10409 = vld [vmem:[#allocation4 + $0x38] sm:$0xf]
    %v10410 = vld [vmem:[#allocation4 + $0x3c] sm:$0xff]
    %v10411 = vld [vmem:[#allocation4 + $0x44] sm:$0xff]
    %v10412 = vld [vmem:[#allocation4 + $0x4c] sm:$0xf]
    %v10413 = vld [vmem:[#allocation4 + $0x50] sm:$0xff]
    %v10414 = vld [vmem:[#allocation4 + $0x58] sm:$0xff]
    %v10415 = vld [vmem:[#allocation4 + $0x60] sm:$0xf]
    %v10416 = vld [vmem:[#allocation4 + $0x64] sm:$0xff]
    %v10417 = vld [vmem:[#allocation4 + $0x6c] sm:$0xff]
    %v10418 = vld [vmem:[#allocation4 + $0x74] sm:$0xf]
    %v10419 = vld [vmem:[#allocation4 + $0x78] sm:$0xff]
    %v10420 = vld [vmem:[#allocation4 + $0x80] sm:$0xff]
    %v10421 = vld [vmem:[#allocation4 + $0x88] sm:$0xf]
    %v10422 = vld [vmem:[#allocation4 + $0x8c] sm:$0xff]
    %v10423 = vld [vmem:[#allocation4 + $0x94] sm:$0xff]
    %v10424 = vld [vmem:[#allocation4 + $0x9c] sm:$0xf]
    %v10425 = vld [vmem:[#allocation4 + $0xa0] sm:$0xff]
    %v10426 = vld [vmem:[#allocation4 + $0xa8] sm:$0xff]
    %v10427 = vld [vmem:[#allocation4 + $0xb0] sm:$0xf]
    %v10428 = vld [vmem:[#allocation4 + $0xb4] sm:$0xff]
    %v10429 = vld [vmem:[#allocation4 + $0xbc] sm:$0xff]
    %v10430 = vld [vmem:[#allocation4 + $0xc4] sm:$0xf]
    %v10431 = vld [vmem:[#allocation4 + $0xc8] sm:$0xff]
    %v10432 = vld [vmem:[#allocation4 + $0xd0] sm:$0xff]
    %v10433 = vld [vmem:[#allocation4 + $0xd8] sm:$0xf]
    %v10434 = vld [vmem:[#allocation4 + $0xdc] sm:$0xff]
    %v10435 = vld [vmem:[#allocation4 + $0xe4] sm:$0xff]
    %v10436 = vld [vmem:[#allocation4 + $0xec] sm:$0xf]
    %v10437 = vld [vmem:[#allocation4 + $0xf0] sm:$0xff]
    %v10438 = vld [vmem:[#allocation4 + $0xf8] sm:$0xff]
    %v10439 = vld [vmem:[#allocation4 + $0x100] sm:$0xf]
    %v10440 = vld [vmem:[#allocation4 + $0x104] sm:$0xff]
    %v10441 = vld [vmem:[#allocation4 + $0x10c] sm:$0xff]
    %v10442 = vld [vmem:[#allocation4 + $0x114] sm:$0xf]
    %v10443 = vld [vmem:[#allocation4 + $0x118] sm:$0xff]
    %v10444 = vld [vmem:[#allocation4 + $0x120] sm:$0xff]
    %v10445 = vld [vmem:[#allocation4 + $0x128] sm:$0xf]
    %v10446 = vld [vmem:[#allocation4 + $0x12c] sm:$0xff]
    %v10447 = vld [vmem:[#allocation4 + $0x134] sm:$0xff]
    %v10448 = vld [vmem:[#allocation4 + $0x13c] sm:$0xf]
    %v10449 = vld [vmem:[#allocation4 + $0x140] sm:$0xff]
    %v10450 = vld [vmem:[#allocation4 + $0x148] sm:$0xff]
    %v10451 = vld [vmem:[#allocation4 + $0x150] sm:$0xf]
    %v10452 = vld [vmem:[#allocation4 + $0x154] sm:$0xff]
    %v10453 = vld [vmem:[#allocation4 + $0x15c] sm:$0xff]
    %v10454 = vld [vmem:[#allocation4 + $0x164] sm:$0xf]
    %v10455 = vld [vmem:[#allocation4 + $0x168] sm:$0xff]
    %v10456 = vld [vmem:[#allocation4 + $0x170] sm:$0xff]
    %v10457 = vld [vmem:[#allocation4 + $0x178] sm:$0xf]
    %v10458 = vld [vmem:[#allocation4 + $0x17c] sm:$0xff]
    %v10459 = vld [vmem:[#allocation4 + $0x184] sm:$0xff]
    %v10460 = vld [vmem:[#allocation4 + $0x18c] sm:$0xf]
    %v10461 = vld [vmem:[#allocation4 + $0x190] sm:$0xff]
    %v10462 = vld [vmem:[#allocation4 + $0x198] sm:$0xff]
    %v10463 = vld [vmem:[#allocation4 + $0x1a0] sm:$0xf]
    %v10464 = vld [vmem:[#allocation4 + $0x1a4] sm:$0xff]
    %v10465 = vld [vmem:[#allocation4 + $0x1ac] sm:$0xff]
    %v10466 = vld [vmem:[#allocation4 + $0x1b4] sm:$0xf]
    %v10467 = vld [vmem:[#allocation4 + $0x1b8] sm:$0xff]
    %v10468 = vld [vmem:[#allocation4 + $0x1c0] sm:$0xff]
    %v10469 = vld [vmem:[#allocation4 + $0x1c8] sm:$0xf]
    %v10470 = vld [vmem:[#allocation4 + $0x1cc] sm:$0xff]
    %v10471 = vld [vmem:[#allocation4 + $0x1d4] sm:$0xff]
    %v10472 = vld [vmem:[#allocation4 + $0x1dc] sm:$0xf]
    %v10473 = vld [vmem:[#allocation4 + $0x1e0] sm:$0xff]
    %v10474 = vld [vmem:[#allocation4 + $0x1e8] sm:$0xff]
    %v10475 = vld [vmem:[#allocation4 + $0x1f0] sm:$0xf]
    %v10476 = vld [vmem:[#allocation4 + $0x1f4] sm:$0xff]
    %v10477 = vld [vmem:[#allocation4 + $0x1fc] sm:$0xff]
    %v10478 = vld [vmem:[#allocation4 + $0x204] sm:$0xf]
    %v10479 = vld [vmem:[#allocation4 + $0x208] sm:$0xff]
    %v10480 = vld [vmem:[#allocation4 + $0x210] sm:$0xff]
    %v10481 = vld [vmem:[#allocation4 + $0x218] sm:$0xf]
    %v10482 = vld [vmem:[#allocation4 + $0x21c] sm:$0xff]
    %v10483 = vld [vmem:[#allocation4 + $0x224] sm:$0xff]
    %v10484 = vld [vmem:[#allocation4 + $0x22c] sm:$0xf]
    %v10485 = vld [vmem:[#allocation4 + $0x230] sm:$0xff]
    %v10486 = vld [vmem:[#allocation4 + $0x238] sm:$0xff]
    %v10487 = vld [vmem:[#allocation4 + $0x240] sm:$0xf]
    %v10488 = vld [vmem:[#allocation4 + $0x244] sm:$0xff]
    %v10489 = vld [vmem:[#allocation4 + $0x24c] sm:$0xff]
    %v10490 = vld [vmem:[#allocation4 + $0x254] sm:$0xf]
    %v10491 = vld [vmem:[#allocation4 + $0x258] sm:$0xff]
    %v10492 = vld [vmem:[#allocation4 + $0x260] sm:$0xff]
    %v10493 = vld [vmem:[#allocation4 + $0x268] sm:$0xf]
    %v10494 = vld [vmem:[#allocation4 + $0x26c] sm:$0xff]
    %v10495 = vld [vmem:[#allocation4 + $0x274] sm:$0xff]
    %v10496 = vld [vmem:[#allocation4 + $0x27c] sm:$0xf]
    %v10497 = vld [vmem:[#allocation4 + $0x280] sm:$0xff]
    %v10498 = vld [vmem:[#allocation4 + $0x288] sm:$0xff]
    %v10499 = vld [vmem:[#allocation4 + $0x290] sm:$0xf]
    %v10500 = vld [vmem:[#allocation4 + $0x294] sm:$0xff]
    %v10501 = vld [vmem:[#allocation4 + $0x29c] sm:$0xff]
    %v10502 = vld [vmem:[#allocation4 + $0x2a4] sm:$0xf]
    %v10503 = vld [vmem:[#allocation4 + $0x2a8] sm:$0xff]
    %v10504 = vld [vmem:[#allocation4 + $0x2b0] sm:$0xff]
    %v10505 = vld [vmem:[#allocation4 + $0x2b8] sm:$0xf]
    %v10506 = vld [vmem:[#allocation4 + $0x2bc] sm:$0xff]
    %v10507 = vld [vmem:[#allocation4 + $0x2c4] sm:$0xff]
    %v10508 = vld [vmem:[#allocation4 + $0x2cc] sm:$0xf]
    %v10509 = vld [vmem:[#allocation4 + $0x2d0] sm:$0xff]
    %v10510 = vld [vmem:[#allocation4 + $0x2d8] sm:$0xff]
    %v10511 = vld [vmem:[#allocation4 + $0x2e0] sm:$0xf]
    %v10512 = vld [vmem:[#allocation4 + $0x2e4] sm:$0xff]
    %v10513 = vld [vmem:[#allocation4 + $0x2ec] sm:$0xff]
    %v10514 = vld [vmem:[#allocation4 + $0x2f4] sm:$0xf]
    %v10515 = vld [vmem:[#allocation4 + $0x2f8] sm:$0xff]
    %v10516 = vld [vmem:[#allocation4 + $0x300] sm:$0xff]
    %v10517 = vld [vmem:[#allocation4 + $0x308] sm:$0xf]
    %v10518 = vld [vmem:[#allocation4 + $0x30c] sm:$0xff]
    %v10519 = vld [vmem:[#allocation4 + $0x314] sm:$0xff]
    %v10520 = vld [vmem:[#allocation4 + $0x31c] sm:$0xf]
    %v10521 = vld [vmem:[#allocation4 + $0x320] sm:$0xff]
    %v10522 = vld [vmem:[#allocation4 + $0x328] sm:$0xff]
    %v10523 = vld [vmem:[#allocation4 + $0x330] sm:$0xf]
    %v10524 = vld [vmem:[#allocation4 + $0x334] sm:$0xff]
    %v10525 = vld [vmem:[#allocation4 + $0x33c] sm:$0xff]
    %v10526 = vld [vmem:[#allocation4 + $0x344] sm:$0xf]
    %v10527 = vld [vmem:[#allocation4 + $0x348] sm:$0xff]
    %v10528 = vld [vmem:[#allocation4 + $0x350] sm:$0xff]
    %v10529 = vld [vmem:[#allocation4 + $0x358] sm:$0xf]
    %v10530 = vld [vmem:[#allocation4 + $0x35c] sm:$0xff]
    %v10531 = vld [vmem:[#allocation4 + $0x364] sm:$0xff]
    %v10532 = vld [vmem:[#allocation4 + $0x36c] sm:$0xf]
    %v10533 = vld [vmem:[#allocation4 + $0x370] sm:$0xff]
    %v10534 = vld [vmem:[#allocation4 + $0x378] sm:$0xff]
    %v10535 = vld [vmem:[#allocation4 + $0x380] sm:$0xf]
    %v10536 = vld [vmem:[#allocation4 + $0x384] sm:$0xff]
    %v10537 = vld [vmem:[#allocation4 + $0x38c] sm:$0xff]
    %v10538 = vld [vmem:[#allocation4 + $0x394] sm:$0xf]
    %v10539 = vld [vmem:[#allocation4 + $0x398] sm:$0xff]
    %v10540 = vld [vmem:[#allocation4 + $0x3a0] sm:$0xff]
    %v10541 = vld [vmem:[#allocation4 + $0x3a8] sm:$0xf]
    %v10542 = vld [vmem:[#allocation4 + $0x3ac] sm:$0xff]
    %v10543 = vld [vmem:[#allocation4 + $0x3b4] sm:$0xff]
    %v10544 = vld [vmem:[#allocation4 + $0x3bc] sm:$0xf]
    %v10545 = vld [vmem:[#allocation4 + $0x3c0] sm:$0xff]
    %v10546 = vld [vmem:[#allocation4 + $0x3c8] sm:$0xff]
    %v10547 = vld [vmem:[#allocation4 + $0x3d0] sm:$0xf]
    %v10548 = vld [vmem:[#allocation4 + $0x3d4] sm:$0xff]
    %v10549 = vld [vmem:[#allocation4 + $0x3dc] sm:$0xff]
    %v10550 = vld [vmem:[#allocation4 + $0x3e4] sm:$0xf]
    %v10551 = vld [vmem:[#allocation4 + $0x3e8] sm:$0xff]
    %v10552 = vld [vmem:[#allocation4 + $0x3f0] sm:$0xff]
    %v10553 = vld [vmem:[#allocation4 + $0x3f8] sm:$0xf]
    %v10554 = vld [vmem:[#allocation4 + $0x3fc] sm:$0xff]
    %v10555 = vld [vmem:[#allocation4 + $0x404] sm:$0xff]
    %v10556 = vld [vmem:[#allocation4 + $0x40c] sm:$0xf]
    %v10557 = vld [vmem:[#allocation4 + $0x410] sm:$0xff]
    %v10558 = vld [vmem:[#allocation4 + $0x418] sm:$0xff]
    %v10559 = vld [vmem:[#allocation4 + $0x420] sm:$0xf]
    %v10560 = vld [vmem:[#allocation4 + $0x424] sm:$0xff]
    %v10561 = vld [vmem:[#allocation4 + $0x42c] sm:$0xff]
    %v10562 = vld [vmem:[#allocation4 + $0x434] sm:$0xf]
    %v10563 = vld [vmem:[#allocation4 + $0x438] sm:$0xff]
    %v10564 = vld [vmem:[#allocation4 + $0x440] sm:$0xff]
    %v10565 = vld [vmem:[#allocation4 + $0x448] sm:$0xf]
    %v10566 = vld [vmem:[#allocation4 + $0x44c] sm:$0xff]
    %v10567 = vld [vmem:[#allocation4 + $0x454] sm:$0xff]
    %v10568 = vld [vmem:[#allocation4 + $0x45c] sm:$0xf]
    %v10569 = vld [vmem:[#allocation4 + $0x460] sm:$0xff]
    %v10570 = vld [vmem:[#allocation4 + $0x468] sm:$0xff]
    %v10571 = vld [vmem:[#allocation4 + $0x470] sm:$0xf]
    %v10572 = vld [vmem:[#allocation4 + $0x474] sm:$0xff]
    %v10573 = vld [vmem:[#allocation4 + $0x47c] sm:$0xff]
    %v10574 = vld [vmem:[#allocation4 + $0x484] sm:$0xf]
    %v10575 = vld [vmem:[#allocation4 + $0x488] sm:$0xff]
    %v10576 = vld [vmem:[#allocation4 + $0x490] sm:$0xff]
    %v10577 = vld [vmem:[#allocation4 + $0x498] sm:$0xf]
    %v10578 = vld [vmem:[#allocation4 + $0x49c] sm:$0xff]
    %v10579 = vld [vmem:[#allocation4 + $0x4a4] sm:$0xff]
    %v10580 = vld [vmem:[#allocation4 + $0x4ac] sm:$0xf]
    %v10581 = vld [vmem:[#allocation4 + $0x4b0] sm:$0xff]
    %v10582 = vld [vmem:[#allocation4 + $0x4b8] sm:$0xff]
    %v10583 = vld [vmem:[#allocation4 + $0x4c0] sm:$0xf]
    %v10584 = vld [vmem:[#allocation4 + $0x4c4] sm:$0xff]
    %v10585 = vld [vmem:[#allocation4 + $0x4cc] sm:$0xff]
    %v10586 = vld [vmem:[#allocation4 + $0x4d4] sm:$0xf]
    %v10587 = vld [vmem:[#allocation4 + $0x4d8] sm:$0xff]
    %v10588 = vld [vmem:[#allocation4 + $0x4e0] sm:$0xff]
    %v10589 = vld [vmem:[#allocation4 + $0x4e8] sm:$0xf]
    %v10590 = vld [vmem:[#allocation4 + $0x4ec] sm:$0xff]
    %v10591 = vld [vmem:[#allocation4 + $0x4f4] sm:$0xff]
    %v10592 = vld [vmem:[#allocation4 + $0x4fc] sm:$0xf]
    %v10593 = vld [vmem:[#allocation7] sm:$0xf]
    %v10594 = vld [vmem:[#allocation7 + $0x4] sm:$0xf]
    %v10595 = vld [vmem:[#allocation7 + $0x8] sm:$0xf]
    %v10596 = vld [vmem:[#allocation7 + $0xc] sm:$0xf]
    %v10597 = vld [vmem:[#allocation7 + $0x10] sm:$0xf]
    %v10598 = vld [vmem:[#allocation7 + $0x14] sm:$0xf]
    %v10599 = vld [vmem:[#allocation7 + $0x18] sm:$0xf]
    %v10600 = vld [vmem:[#allocation7 + $0x1c] sm:$0xf]
    %v10601 = vld [vmem:[#allocation7 + $0x20] sm:$0xf]
    %v10602 = vld [vmem:[#allocation7 + $0x24] sm:$0xf]
    %v10603 = vld [vmem:[#allocation7 + $0x28] sm:$0xf]
    %v10604 = vld [vmem:[#allocation7 + $0x2c] sm:$0xf]
    %v10605 = vld [vmem:[#allocation7 + $0x30] sm:$0xf]
    %v10606 = vld [vmem:[#allocation7 + $0x34] sm:$0xf]
    %v10607 = vld [vmem:[#allocation7 + $0x38] sm:$0xf]
    %v10608 = vld [vmem:[#allocation7 + $0x3c] sm:$0xf]
    %v10609 = vld [vmem:[#allocation7 + $0x40] sm:$0xf]
    %v10610 = vld [vmem:[#allocation7 + $0x44] sm:$0xf]
    %v10611 = vld [vmem:[#allocation7 + $0x48] sm:$0xf]
    %v10612 = vld [vmem:[#allocation7 + $0x4c] sm:$0xf]
    %v10613 = vld [vmem:[#allocation7 + $0x50] sm:$0xf]
    %v10614 = vld [vmem:[#allocation7 + $0x54] sm:$0xf]
    %v10615 = vld [vmem:[#allocation7 + $0x58] sm:$0xf]
    %v10616 = vld [vmem:[#allocation7 + $0x5c] sm:$0xf]
    %v10617 = vld [vmem:[#allocation7 + $0x60] sm:$0xf]
    %v10618 = vld [vmem:[#allocation7 + $0x64] sm:$0xf]
    %v10619 = vld [vmem:[#allocation7 + $0x68] sm:$0xf]
    %v10620 = vld [vmem:[#allocation7 + $0x6c] sm:$0xf]
    %v10621 = vld [vmem:[#allocation7 + $0x70] sm:$0xf]
    %v10622 = vld [vmem:[#allocation7 + $0x74] sm:$0xf]
    %v10623 = vld [vmem:[#allocation7 + $0x78] sm:$0xf]
    %v10624 = vld [vmem:[#allocation7 + $0x7c] sm:$0xf]
    %v10625 = vld [vmem:[#allocation7 + $0x80] sm:$0xf]
    %v10626 = vld [vmem:[#allocation7 + $0x84] sm:$0xf]
    %v10627 = vld [vmem:[#allocation7 + $0x88] sm:$0xf]
    %v10628 = vld [vmem:[#allocation7 + $0x8c] sm:$0xf]
    %v10629 = vld [vmem:[#allocation7 + $0x90] sm:$0xf]
    %v10630 = vld [vmem:[#allocation7 + $0x94] sm:$0xf]
    %v10631 = vld [vmem:[#allocation7 + $0x98] sm:$0xf]
    %v10632 = vld [vmem:[#allocation7 + $0x9c] sm:$0xf]
    %v10633 = vld [vmem:[#allocation7 + $0xa0] sm:$0xf]
    %v10634 = vld [vmem:[#allocation7 + $0xa4] sm:$0xf]
    %v10635 = vld [vmem:[#allocation7 + $0xa8] sm:$0xf]
    %v10636 = vld [vmem:[#allocation7 + $0xac] sm:$0xf]
    %v10637 = vld [vmem:[#allocation7 + $0xb0] sm:$0xf]
    %v10638 = vld [vmem:[#allocation7 + $0xb4] sm:$0xf]
    %v10639 = vld [vmem:[#allocation7 + $0xb8] sm:$0xf]
    %v10640 = vld [vmem:[#allocation7 + $0xbc] sm:$0xf]
    %v10641 = vld [vmem:[#allocation7 + $0xc0] sm:$0xf]
    %v10642 = vld [vmem:[#allocation7 + $0xc4] sm:$0xf]
    %v10643 = vld [vmem:[#allocation7 + $0xc8] sm:$0xf]
    %v10644 = vld [vmem:[#allocation7 + $0xcc] sm:$0xf]
    %v10645 = vld [vmem:[#allocation7 + $0xd0] sm:$0xf]
    %v10646 = vld [vmem:[#allocation7 + $0xd4] sm:$0xf]
    %v10647 = vld [vmem:[#allocation7 + $0xd8] sm:$0xf]
    %v10648 = vld [vmem:[#allocation7 + $0xdc] sm:$0xf]
    %v10649 = vld [vmem:[#allocation7 + $0xe0] sm:$0xf]
    %v10650 = vld [vmem:[#allocation7 + $0xe4] sm:$0xf]
    %v10651 = vld [vmem:[#allocation7 + $0xe8] sm:$0xf]
    %v10652 = vld [vmem:[#allocation7 + $0xec] sm:$0xf]
    %v10653 = vld [vmem:[#allocation7 + $0xf0] sm:$0xf]
    %v10654 = vld [vmem:[#allocation7 + $0xf4] sm:$0xf]
    %v10655 = vld [vmem:[#allocation7 + $0xf8] sm:$0xf]
    %v10656 = vld [vmem:[#allocation7 + $0xfc] sm:$0xf]
    %v10657 = vld [vmem:[#allocation7 + $0x100] sm:$0xf]
    %v10658 = vld [vmem:[#allocation7 + $0x104] sm:$0xf]
    %v10659 = vld [vmem:[#allocation7 + $0x108] sm:$0xf]
    %v10660 = vld [vmem:[#allocation7 + $0x10c] sm:$0xf]
    %v10661 = vld [vmem:[#allocation7 + $0x110] sm:$0xf]
    %v10662 = vld [vmem:[#allocation7 + $0x114] sm:$0xf]
    %v10663 = vld [vmem:[#allocation7 + $0x118] sm:$0xf]
    %v10664 = vld [vmem:[#allocation7 + $0x11c] sm:$0xf]
    %v10665 = vld [vmem:[%s4] sm:$0x1]
    %v10667 = vlaneseq
    %v10668 = vshrl.u32 %v10667, 7
    %v10669 = vsub.s32 0, %v10668
    %v10670 = vrot.slane %v10665, %v10669
    %v10864 = vunpack.c.l.b16 %v10401
    %v10865 = vunpack.c.h.b16 %v10401
    %v10866 = vunpack.c.l.b16 %v10402
    %v10867 = vunpack.c.h.b16 %v10402
    %v10868 = vunpack.c.l.b16 %v10403
    %v10869 = vunpack.c.l.b16 %v10404
    %v10870 = vunpack.c.h.b16 %v10404
    %v10871 = vunpack.c.l.b16 %v10405
    %v10872 = vunpack.c.h.b16 %v10405
    %v10873 = vunpack.c.l.b16 %v10406
    %v10874 = vunpack.c.l.b16 %v10407
    %v10875 = vunpack.c.h.b16 %v10407
    %v10876 = vunpack.c.l.b16 %v10408
    %v10877 = vunpack.c.h.b16 %v10408
    %v10878 = vunpack.c.l.b16 %v10409
    %v10879 = vunpack.c.l.b16 %v10410
    %v10880 = vunpack.c.h.b16 %v10410
    %v10881 = vunpack.c.l.b16 %v10411
    %v10882 = vunpack.c.h.b16 %v10411
    %v10883 = vunpack.c.l.b16 %v10412
    %v10884 = vunpack.c.l.b16 %v10413
    %v10885 = vunpack.c.h.b16 %v10413
    %v10886 = vunpack.c.l.b16 %v10414
    %v10887 = vunpack.c.h.b16 %v10414
    %v10888 = vunpack.c.l.b16 %v10415
    %v10889 = vunpack.c.l.b16 %v10416
    %v10890 = vunpack.c.h.b16 %v10416
    %v10891 = vunpack.c.l.b16 %v10417
    %v10892 = vunpack.c.h.b16 %v10417
    %v10893 = vunpack.c.l.b16 %v10418
    %v10894 = vunpack.c.l.b16 %v10419
    %v10895 = vunpack.c.h.b16 %v10419
    %v10896 = vunpack.c.l.b16 %v10420
    %v10897 = vunpack.c.h.b16 %v10420
    %v10898 = vunpack.c.l.b16 %v10421
    %v10899 = vunpack.c.l.b16 %v10422
    %v10900 = vunpack.c.h.b16 %v10422
    %v10901 = vunpack.c.l.b16 %v10423
    %v10902 = vunpack.c.h.b16 %v10423
    %v10903 = vunpack.c.l.b16 %v10424
    %v10904 = vunpack.c.l.b16 %v10425
    %v10905 = vunpack.c.h.b16 %v10425
    %v10906 = vunpack.c.l.b16 %v10426
    %v10907 = vunpack.c.h.b16 %v10426
    %v10908 = vunpack.c.l.b16 %v10427
    %v10909 = vunpack.c.l.b16 %v10428
    %v10910 = vunpack.c.h.b16 %v10428
    %v10911 = vunpack.c.l.b16 %v10429
    %v10912 = vunpack.c.h.b16 %v10429
    %v10913 = vunpack.c.l.b16 %v10430
    %v10914 = vunpack.c.l.b16 %v10431
    %v10915 = vunpack.c.h.b16 %v10431
    %v10916 = vunpack.c.l.b16 %v10432
    %v10917 = vunpack.c.h.b16 %v10432
    %v10918 = vunpack.c.l.b16 %v10433
    %v10919 = vunpack.c.l.b16 %v10434
    %v10920 = vunpack.c.h.b16 %v10434
    %v10921 = vunpack.c.l.b16 %v10435
    %v10922 = vunpack.c.h.b16 %v10435
    %v10923 = vunpack.c.l.b16 %v10436
    %v10924 = vunpack.c.l.b16 %v10437
    %v10925 = vunpack.c.h.b16 %v10437
    %v10926 = vunpack.c.l.b16 %v10438
    %v10927 = vunpack.c.h.b16 %v10438
    %v10928 = vunpack.c.l.b16 %v10439
    %v10929 = vunpack.c.l.b16 %v10440
    %v10930 = vunpack.c.h.b16 %v10440
    %v10931 = vunpack.c.l.b16 %v10441
    %v10932 = vunpack.c.h.b16 %v10441
    %v10933 = vunpack.c.l.b16 %v10442
    %v10934 = vunpack.c.l.b16 %v10443
    %v10935 = vunpack.c.h.b16 %v10443
    %v10936 = vunpack.c.l.b16 %v10444
    %v10937 = vunpack.c.h.b16 %v10444
    %v10938 = vunpack.c.l.b16 %v10445
    %v10939 = vunpack.c.l.b16 %v10446
    %v10940 = vunpack.c.h.b16 %v10446
    %v10941 = vunpack.c.l.b16 %v10447
    %v10942 = vunpack.c.h.b16 %v10447
    %v10943 = vunpack.c.l.b16 %v10448
    %v10944 = vunpack.c.l.b16 %v10449
    %v10945 = vunpack.c.h.b16 %v10449
    %v10946 = vunpack.c.l.b16 %v10450
    %v10947 = vunpack.c.h.b16 %v10450
    %v10948 = vunpack.c.l.b16 %v10451
    %v10949 = vunpack.c.l.b16 %v10452
    %v10950 = vunpack.c.h.b16 %v10452
    %v10951 = vunpack.c.l.b16 %v10453
    %v10952 = vunpack.c.h.b16 %v10453
    %v10953 = vunpack.c.l.b16 %v10454
    %v10954 = vunpack.c.l.b16 %v10455
    %v10955 = vunpack.c.h.b16 %v10455
    %v10956 = vunpack.c.l.b16 %v10456
    %v10957 = vunpack.c.h.b16 %v10456
    %v10958 = vunpack.c.l.b16 %v10457
    %v10959 = vunpack.c.l.b16 %v10458
    %v10960 = vunpack.c.h.b16 %v10458
    %v10961 = vunpack.c.l.b16 %v10459
    %v10962 = vunpack.c.h.b16 %v10459
    %v10963 = vunpack.c.l.b16 %v10460
    %v10964 = vunpack.c.l.b16 %v10461
    %v10965 = vunpack.c.h.b16 %v10461
    %v10966 = vunpack.c.l.b16 %v10462
    %v10967 = vunpack.c.h.b16 %v10462
    %v10968 = vunpack.c.l.b16 %v10463
    %v10969 = vunpack.c.l.b16 %v10464
    %v10970 = vunpack.c.h.b16 %v10464
    %v10971 = vunpack.c.l.b16 %v10465
    %v10972 = vunpack.c.h.b16 %v10465
    %v10973 = vunpack.c.l.b16 %v10466
    %v10974 = vunpack.c.l.b16 %v10467
    %v10975 = vunpack.c.h.b16 %v10467
    %v10976 = vunpack.c.l.b16 %v10468
    %v10977 = vunpack.c.h.b16 %v10468
    %v10978 = vunpack.c.l.b16 %v10469
    %v10979 = vunpack.c.l.b16 %v10470
    %v10980 = vunpack.c.h.b16 %v10470
    %v10981 = vunpack.c.l.b16 %v10471
    %v10982 = vunpack.c.h.b16 %v10471
    %v10983 = vunpack.c.l.b16 %v10472
    %v10984 = vunpack.c.l.b16 %v10473
    %v10985 = vunpack.c.h.b16 %v10473
    %v10986 = vunpack.c.l.b16 %v10474
    %v10987 = vunpack.c.h.b16 %v10474
    %v10988 = vunpack.c.l.b16 %v10475
    %v10989 = vunpack.c.l.b16 %v10476
    %v10990 = vunpack.c.h.b16 %v10476
    %v10991 = vunpack.c.l.b16 %v10477
    %v10992 = vunpack.c.h.b16 %v10477
    %v10993 = vunpack.c.l.b16 %v10478
    %v10994 = vunpack.c.l.b16 %v10479
    %v10995 = vunpack.c.h.b16 %v10479
    %v10996 = vunpack.c.l.b16 %v10480
    %v10997 = vunpack.c.h.b16 %v10480
    %v10998 = vunpack.c.l.b16 %v10481
    %v10999 = vunpack.c.l.b16 %v10482
    %v11000 = vunpack.c.h.b16 %v10482
    %v11001 = vunpack.c.l.b16 %v10483
    %v11002 = vunpack.c.h.b16 %v10483
    %v11003 = vunpack.c.l.b16 %v10484
    %v11004 = vunpack.c.l.b16 %v10485
    %v11005 = vunpack.c.h.b16 %v10485
    %v11006 = vunpack.c.l.b16 %v10486
    %v11007 = vunpack.c.h.b16 %v10486
    %v11008 = vunpack.c.l.b16 %v10487
    %v11009 = vunpack.c.l.b16 %v10488
    %v11010 = vunpack.c.h.b16 %v10488
    %v11011 = vunpack.c.l.b16 %v10489
    %v11012 = vunpack.c.h.b16 %v10489
    %v11013 = vunpack.c.l.b16 %v10490
    %v11014 = vunpack.c.l.b16 %v10491
    %v11015 = vunpack.c.h.b16 %v10491
    %v11016 = vunpack.c.l.b16 %v10492
    %v11017 = vunpack.c.h.b16 %v10492
    %v11018 = vunpack.c.l.b16 %v10493
    %v11019 = vunpack.c.l.b16 %v10494
    %v11020 = vunpack.c.h.b16 %v10494
    %v11021 = vunpack.c.l.b16 %v10495
    %v11022 = vunpack.c.h.b16 %v10495
    %v11023 = vunpack.c.l.b16 %v10496
    %v11024 = vunpack.c.l.b16 %v10497
    %v11025 = vunpack.c.h.b16 %v10497
    %v11026 = vunpack.c.l.b16 %v10498
    %v11027 = vunpack.c.h.b16 %v10498
    %v11028 = vunpack.c.l.b16 %v10499
    %v11029 = vunpack.c.l.b16 %v10500
    %v11030 = vunpack.c.h.b16 %v10500
    %v11031 = vunpack.c.l.b16 %v10501
    %v11032 = vunpack.c.h.b16 %v10501
    %v11033 = vunpack.c.l.b16 %v10502
    %v11034 = vunpack.c.l.b16 %v10503
    %v11035 = vunpack.c.h.b16 %v10503
    %v11036 = vunpack.c.l.b16 %v10504
    %v11037 = vunpack.c.h.b16 %v10504
    %v11038 = vunpack.c.l.b16 %v10505
    %v11039 = vunpack.c.l.b16 %v10506
    %v11040 = vunpack.c.h.b16 %v10506
    %v11041 = vunpack.c.l.b16 %v10507
    %v11042 = vunpack.c.h.b16 %v10507
    %v11043 = vunpack.c.l.b16 %v10508
    %v11044 = vunpack.c.l.b16 %v10509
    %v11045 = vunpack.c.h.b16 %v10509
    %v11046 = vunpack.c.l.b16 %v10510
    %v11047 = vunpack.c.h.b16 %v10510
    %v11048 = vunpack.c.l.b16 %v10511
    %v11049 = vunpack.c.l.b16 %v10512
    %v11050 = vunpack.c.h.b16 %v10512
    %v11051 = vunpack.c.l.b16 %v10513
    %v11052 = vunpack.c.h.b16 %v10513
    %v11053 = vunpack.c.l.b16 %v10514
    %v11054 = vunpack.c.l.b16 %v10515
    %v11055 = vunpack.c.h.b16 %v10515
    %v11056 = vunpack.c.l.b16 %v10516
    %v11057 = vunpack.c.h.b16 %v10516
    %v11058 = vunpack.c.l.b16 %v10517
    %v11059 = vunpack.c.l.b16 %v10518
    %v11060 = vunpack.c.h.b16 %v10518
    %v11061 = vunpack.c.l.b16 %v10519
    %v11062 = vunpack.c.h.b16 %v10519
    %v11063 = vunpack.c.l.b16 %v10520
    %v11064 = vunpack.c.l.b16 %v10521
    %v11065 = vunpack.c.h.b16 %v10521
    %v11066 = vunpack.c.l.b16 %v10522
    %v11067 = vunpack.c.h.b16 %v10522
    %v11068 = vunpack.c.l.b16 %v10523
    %v11069 = vunpack.c.l.b16 %v10524
    %v11070 = vunpack.c.h.b16 %v10524
    %v11071 = vunpack.c.l.b16 %v10525
    %v11072 = vunpack.c.h.b16 %v10525
    %v11073 = vunpack.c.l.b16 %v10526
    %v11074 = vunpack.c.l.b16 %v10527
    %v11075 = vunpack.c.h.b16 %v10527
    %v11076 = vunpack.c.l.b16 %v10528
    %v11077 = vunpack.c.h.b16 %v10528
    %v11078 = vunpack.c.l.b16 %v10529
    %v11079 = vunpack.c.l.b16 %v10530
    %v11080 = vunpack.c.h.b16 %v10530
    %v11081 = vunpack.c.l.b16 %v10531
    %v11082 = vunpack.c.h.b16 %v10531
    %v11083 = vunpack.c.l.b16 %v10532
    %v11084 = vunpack.c.l.b16 %v10533
    %v11085 = vunpack.c.h.b16 %v10533
    %v11086 = vunpack.c.l.b16 %v10534
    %v11087 = vunpack.c.h.b16 %v10534
    %v11088 = vunpack.c.l.b16 %v10535
    %v11089 = vunpack.c.l.b16 %v10536
    %v11090 = vunpack.c.h.b16 %v10536
    %v11091 = vunpack.c.l.b16 %v10537
    %v11092 = vunpack.c.h.b16 %v10537
    %v11093 = vunpack.c.l.b16 %v10538
    %v11094 = vunpack.c.l.b16 %v10539
    %v11095 = vunpack.c.h.b16 %v10539
    %v11096 = vunpack.c.l.b16 %v10540
    %v11097 = vunpack.c.h.b16 %v10540
    %v11098 = vunpack.c.l.b16 %v10541
    %v11099 = vunpack.c.l.b16 %v10542
    %v11100 = vunpack.c.h.b16 %v10542
    %v11101 = vunpack.c.l.b16 %v10543
    %v11102 = vunpack.c.h.b16 %v10543
    %v11103 = vunpack.c.l.b16 %v10544
    %v11104 = vunpack.c.l.b16 %v10545
    %v11105 = vunpack.c.h.b16 %v10545
    %v11106 = vunpack.c.l.b16 %v10546
    %v11107 = vunpack.c.h.b16 %v10546
    %v11108 = vunpack.c.l.b16 %v10547
    %v11109 = vunpack.c.l.b16 %v10548
    %v11110 = vunpack.c.h.b16 %v10548
    %v11111 = vunpack.c.l.b16 %v10549
    %v11112 = vunpack.c.h.b16 %v10549
    %v11113 = vunpack.c.l.b16 %v10550
    %v11114 = vunpack.c.l.b16 %v10551
    %v11115 = vunpack.c.h.b16 %v10551
    %v11116 = vunpack.c.l.b16 %v10552
    %v11117 = vunpack.c.h.b16 %v10552
    %v11118 = vunpack.c.l.b16 %v10553
    %v11119 = vunpack.c.l.b16 %v10554
    %v11120 = vunpack.c.h.b16 %v10554
    %v11121 = vunpack.c.l.b16 %v10555
    %v11122 = vunpack.c.h.b16 %v10555
    %v11123 = vunpack.c.l.b16 %v10556
    %v11124 = vunpack.c.l.b16 %v10557
    %v11125 = vunpack.c.h.b16 %v10557
    %v11126 = vunpack.c.l.b16 %v10558
    %v11127 = vunpack.c.h.b16 %v10558
    %v11128 = vunpack.c.l.b16 %v10559
    %v11129 = vunpack.c.l.b16 %v10560
    %v11130 = vunpack.c.h.b16 %v10560
    %v11131 = vunpack.c.l.b16 %v10561
    %v11132 = vunpack.c.h.b16 %v10561
    %v11133 = vunpack.c.l.b16 %v10562
    %v11134 = vunpack.c.l.b16 %v10563
    %v11135 = vunpack.c.h.b16 %v10563
    %v11136 = vunpack.c.l.b16 %v10564
    %v11137 = vunpack.c.h.b16 %v10564
    %v11138 = vunpack.c.l.b16 %v10565
    %v11139 = vunpack.c.l.b16 %v10566
    %v11140 = vunpack.c.h.b16 %v10566
    %v11141 = vunpack.c.l.b16 %v10567
    %v11142 = vunpack.c.h.b16 %v10567
    %v11143 = vunpack.c.l.b16 %v10568
    %v11144 = vunpack.c.l.b16 %v10569
    %v11145 = vunpack.c.h.b16 %v10569
    %v11146 = vunpack.c.l.b16 %v10570
    %v11147 = vunpack.c.h.b16 %v10570
    %v11148 = vunpack.c.l.b16 %v10571
    %v11149 = vunpack.c.l.b16 %v10572
    %v11150 = vunpack.c.h.b16 %v10572
    %v11151 = vunpack.c.l.b16 %v10573
    %v11152 = vunpack.c.h.b16 %v10573
    %v11153 = vunpack.c.l.b16 %v10574
    %v11154 = vunpack.c.l.b16 %v10575
    %v11155 = vunpack.c.h.b16 %v10575
    %v11156 = vunpack.c.l.b16 %v10576
    %v11157 = vunpack.c.h.b16 %v10576
    %v11158 = vunpack.c.l.b16 %v10577
    %v11159 = vunpack.c.l.b16 %v10578
    %v11160 = vunpack.c.h.b16 %v10578
    %v11161 = vunpack.c.l.b16 %v10579
    %v11162 = vunpack.c.h.b16 %v10579
    %v11163 = vunpack.c.l.b16 %v10580
    %v11164 = vunpack.c.l.b16 %v10581
    %v11165 = vunpack.c.h.b16 %v10581
    %v11166 = vunpack.c.l.b16 %v10582
    %v11167 = vunpack.c.h.b16 %v10582
    %v11168 = vunpack.c.l.b16 %v10583
    %v11169 = vunpack.c.l.b16 %v10584
    %v11170 = vunpack.c.h.b16 %v10584
    %v11171 = vunpack.c.l.b16 %v10585
    %v11172 = vunpack.c.h.b16 %v10585
    %v11173 = vunpack.c.l.b16 %v10586
    %v11174 = vunpack.c.l.b16 %v10587
    %v11175 = vunpack.c.h.b16 %v10587
    %v11176 = vunpack.c.l.b16 %v10588
    %v11177 = vunpack.c.h.b16 %v10588
    %v11178 = vunpack.c.l.b16 %v10589
    %v11179 = vunpack.c.l.b16 %v10590
    %v11180 = vunpack.c.h.b16 %v10590
    %v11181 = vunpack.c.l.b16 %v10591
    %v11182 = vunpack.c.h.b16 %v10591
    %v11183 = vunpack.c.l.b16 %v10592
    %v11184 = vpack.c.b16 %v10869, %v10864
    %v11185 = vpack.c.b16 %v10870, %v10865
    %v11186 = vpack.c.b16 %v10871, %v10866
    %v11187 = vpack.c.b16 %v10872, %v10867
    %v11188 = vpack.c.b16 %v10873, %v10868
    %v11189 = vpack.c.b16 %v10879, %v10874
    %v11190 = vpack.c.b16 %v10880, %v10875
    %v11191 = vpack.c.b16 %v10881, %v10876
    %v11192 = vpack.c.b16 %v10882, %v10877
    %v11193 = vpack.c.b16 %v10883, %v10878
    %v11194 = vpack.c.b16 %v10889, %v10884
    %v11195 = vpack.c.b16 %v10890, %v10885
    %v11196 = vpack.c.b16 %v10891, %v10886
    %v11197 = vpack.c.b16 %v10892, %v10887
    %v11198 = vpack.c.b16 %v10893, %v10888
    %v11199 = vpack.c.b16 %v10899, %v10894
    %v11200 = vpack.c.b16 %v10900, %v10895
    %v11201 = vpack.c.b16 %v10901, %v10896
    %v11202 = vpack.c.b16 %v10902, %v10897
    %v11203 = vpack.c.b16 %v10903, %v10898
    %v11204 = vpack.c.b16 %v10909, %v10904
    %v11205 = vpack.c.b16 %v10910, %v10905
    %v11206 = vpack.c.b16 %v10911, %v10906
    %v11207 = vpack.c.b16 %v10912, %v10907
    %v11208 = vpack.c.b16 %v10913, %v10908
    %v11209 = vpack.c.b16 %v10919, %v10914
    %v11210 = vpack.c.b16 %v10920, %v10915
    %v11211 = vpack.c.b16 %v10921, %v10916
    %v11212 = vpack.c.b16 %v10922, %v10917
    %v11213 = vpack.c.b16 %v10923, %v10918
    %v11214 = vpack.c.b16 %v10929, %v10924
    %v11215 = vpack.c.b16 %v10930, %v10925
    %v11216 = vpack.c.b16 %v10931, %v10926
    %v11217 = vpack.c.b16 %v10932, %v10927
    %v11218 = vpack.c.b16 %v10933, %v10928
    %v11219 = vpack.c.b16 %v10939, %v10934
    %v11220 = vpack.c.b16 %v10940, %v10935
    %v11221 = vpack.c.b16 %v10941, %v10936
    %v11222 = vpack.c.b16 %v10942, %v10937
    %v11223 = vpack.c.b16 %v10943, %v10938
    %v11224 = vpack.c.b16 %v10949, %v10944
    %v11225 = vpack.c.b16 %v10950, %v10945
    %v11226 = vpack.c.b16 %v10951, %v10946
    %v11227 = vpack.c.b16 %v10952, %v10947
    %v11228 = vpack.c.b16 %v10953, %v10948
    %v11229 = vpack.c.b16 %v10959, %v10954
    %v11230 = vpack.c.b16 %v10960, %v10955
    %v11231 = vpack.c.b16 %v10961, %v10956
    %v11232 = vpack.c.b16 %v10962, %v10957
    %v11233 = vpack.c.b16 %v10963, %v10958
    %v11234 = vpack.c.b16 %v10969, %v10964
    %v11235 = vpack.c.b16 %v10970, %v10965
    %v11236 = vpack.c.b16 %v10971, %v10966
    %v11237 = vpack.c.b16 %v10972, %v10967
    %v11238 = vpack.c.b16 %v10973, %v10968
    %v11239 = vpack.c.b16 %v10979, %v10974
    %v11240 = vpack.c.b16 %v10980, %v10975
    %v11241 = vpack.c.b16 %v10981, %v10976
    %v11242 = vpack.c.b16 %v10982, %v10977
    %v11243 = vpack.c.b16 %v10983, %v10978
    %v11244 = vpack.c.b16 %v10989, %v10984
    %v11245 = vpack.c.b16 %v10990, %v10985
    %v11246 = vpack.c.b16 %v10991, %v10986
    %v11247 = vpack.c.b16 %v10992, %v10987
    %v11248 = vpack.c.b16 %v10993, %v10988
    %v11249 = vpack.c.b16 %v10999, %v10994
    %v11250 = vpack.c.b16 %v11000, %v10995
    %v11251 = vpack.c.b16 %v11001, %v10996
    %v11252 = vpack.c.b16 %v11002, %v10997
    %v11253 = vpack.c.b16 %v11003, %v10998
    %v11254 = vpack.c.b16 %v11009, %v11004
    %v11255 = vpack.c.b16 %v11010, %v11005
    %v11256 = vpack.c.b16 %v11011, %v11006
    %v11257 = vpack.c.b16 %v11012, %v11007
    %v11258 = vpack.c.b16 %v11013, %v11008
    %v11259 = vpack.c.b16 %v11019, %v11014
    %v11260 = vpack.c.b16 %v11020, %v11015
    %v11261 = vpack.c.b16 %v11021, %v11016
    %v11262 = vpack.c.b16 %v11022, %v11017
    %v11263 = vpack.c.b16 %v11023, %v11018
    %v11264 = vpack.c.b16 %v11029, %v11024
    %v11265 = vpack.c.b16 %v11030, %v11025
    %v11266 = vpack.c.b16 %v11031, %v11026
    %v11267 = vpack.c.b16 %v11032, %v11027
    %v11268 = vpack.c.b16 %v11033, %v11028
    %v11269 = vpack.c.b16 %v11039, %v11034
    %v11270 = vpack.c.b16 %v11040, %v11035
    %v11271 = vpack.c.b16 %v11041, %v11036
    %v11272 = vpack.c.b16 %v11042, %v11037
    %v11273 = vpack.c.b16 %v11043, %v11038
    %v11274 = vpack.c.b16 %v11049, %v11044
    %v11275 = vpack.c.b16 %v11050, %v11045
    %v11276 = vpack.c.b16 %v11051, %v11046
    %v11277 = vpack.c.b16 %v11052, %v11047
    %v11278 = vpack.c.b16 %v11053, %v11048
    %v11279 = vpack.c.b16 %v11059, %v11054
    %v11280 = vpack.c.b16 %v11060, %v11055
    %v11281 = vpack.c.b16 %v11061, %v11056
    %v11282 = vpack.c.b16 %v11062, %v11057
    %v11283 = vpack.c.b16 %v11063, %v11058
    %v11284 = vpack.c.b16 %v11069, %v11064
    %v11285 = vpack.c.b16 %v11070, %v11065
    %v11286 = vpack.c.b16 %v11071, %v11066
    %v11287 = vpack.c.b16 %v11072, %v11067
    %v11288 = vpack.c.b16 %v11073, %v11068
    %v11289 = vpack.c.b16 %v11079, %v11074
    %v11290 = vpack.c.b16 %v11080, %v11075
    %v11291 = vpack.c.b16 %v11081, %v11076
    %v11292 = vpack.c.b16 %v11082, %v11077
    %v11293 = vpack.c.b16 %v11083, %v11078
    %v11294 = vpack.c.b16 %v11089, %v11084
    %v11295 = vpack.c.b16 %v11090, %v11085
    %v11296 = vpack.c.b16 %v11091, %v11086
    %v11297 = vpack.c.b16 %v11092, %v11087
    %v11298 = vpack.c.b16 %v11093, %v11088
    %v11299 = vpack.c.b16 %v11099, %v11094
    %v11300 = vpack.c.b16 %v11100, %v11095
    %v11301 = vpack.c.b16 %v11101, %v11096
    %v11302 = vpack.c.b16 %v11102, %v11097
    %v11303 = vpack.c.b16 %v11103, %v11098
    %v11304 = vpack.c.b16 %v11109, %v11104
    %v11305 = vpack.c.b16 %v11110, %v11105
    %v11306 = vpack.c.b16 %v11111, %v11106
    %v11307 = vpack.c.b16 %v11112, %v11107
    %v11308 = vpack.c.b16 %v11113, %v11108
    %v11309 = vpack.c.b16 %v11119, %v11114
    %v11310 = vpack.c.b16 %v11120, %v11115
    %v11311 = vpack.c.b16 %v11121, %v11116
    %v11312 = vpack.c.b16 %v11122, %v11117
    %v11313 = vpack.c.b16 %v11123, %v11118
    %v11314 = vpack.c.b16 %v11129, %v11124
    %v11315 = vpack.c.b16 %v11130, %v11125
    %v11316 = vpack.c.b16 %v11131, %v11126
    %v11317 = vpack.c.b16 %v11132, %v11127
    %v11318 = vpack.c.b16 %v11133, %v11128
    %v11319 = vpack.c.b16 %v11139, %v11134
    %v11320 = vpack.c.b16 %v11140, %v11135
    %v11321 = vpack.c.b16 %v11141, %v11136
    %v11322 = vpack.c.b16 %v11142, %v11137
    %v11323 = vpack.c.b16 %v11143, %v11138
    %v11324 = vpack.c.b16 %v11149, %v11144
    %v11325 = vpack.c.b16 %v11150, %v11145
    %v11326 = vpack.c.b16 %v11151, %v11146
    %v11327 = vpack.c.b16 %v11152, %v11147
    %v11328 = vpack.c.b16 %v11153, %v11148
    %v11329 = vpack.c.b16 %v11159, %v11154
    %v11330 = vpack.c.b16 %v11160, %v11155
    %v11331 = vpack.c.b16 %v11161, %v11156
    %v11332 = vpack.c.b16 %v11162, %v11157
    %v11333 = vpack.c.b16 %v11163, %v11158
    %v11334 = vpack.c.b16 %v11169, %v11164
    %v11335 = vpack.c.b16 %v11170, %v11165
    %v11336 = vpack.c.b16 %v11171, %v11166
    %v11337 = vpack.c.b16 %v11172, %v11167
    %v11338 = vpack.c.b16 %v11173, %v11168
    %v11339 = vpack.c.b16 %v11179, %v11174
    %v11340 = vpack.c.b16 %v11180, %v11175
    %v11341 = vpack.c.b16 %v11181, %v11176
    %v11342 = vpack.c.b16 %v11182, %v11177
    %v11343 = vpack.c.b16 %v11183, %v11178
    %v11544 = vunpack.c.l.b16 %v10593
    %v11545 = vunpack.c.l.b16 %v10594
    %v11546 = vunpack.c.l.b16 %v10595
    %v11547 = vunpack.c.l.b16 %v10596
    %v11548 = vunpack.c.l.b16 %v10597
    %v11549 = vunpack.c.l.b16 %v10598
    %v11550 = vunpack.c.l.b16 %v10599
    %v11551 = vunpack.c.l.b16 %v10600
    %v11552 = vunpack.c.l.b16 %v10601
    %v11553 = vunpack.c.l.b16 %v10602
    %v11554 = vunpack.c.l.b16 %v10603
    %v11555 = vunpack.c.l.b16 %v10604
    %v11556 = vunpack.c.l.b16 %v10605
    %v11557 = vunpack.c.l.b16 %v10606
    %v11558 = vunpack.c.l.b16 %v10607
    %v11559 = vunpack.c.l.b16 %v10608
    %v11560 = vunpack.c.l.b16 %v10609
    %v11561 = vunpack.c.l.b16 %v10610
    %v11562 = vunpack.c.l.b16 %v10611
    %v11563 = vunpack.c.l.b16 %v10612
    %v11564 = vunpack.c.l.b16 %v10613
    %v11565 = vunpack.c.l.b16 %v10614
    %v11566 = vunpack.c.l.b16 %v10615
    %v11567 = vunpack.c.l.b16 %v10616
    %v11568 = vunpack.c.l.b16 %v10617
    %v11569 = vunpack.c.l.b16 %v10618
    %v11570 = vunpack.c.l.b16 %v10619
    %v11571 = vunpack.c.l.b16 %v10620
    %v11572 = vunpack.c.l.b16 %v10621
    %v11573 = vunpack.c.l.b16 %v10622
    %v11574 = vunpack.c.l.b16 %v10623
    %v11575 = vunpack.c.l.b16 %v10624
    %v11576 = vunpack.c.l.b16 %v10625
    %v11577 = vunpack.c.l.b16 %v10626
    %v11578 = vunpack.c.l.b16 %v10627
    %v11579 = vunpack.c.l.b16 %v10628
    %v11580 = vunpack.c.l.b16 %v10629
    %v11581 = vunpack.c.l.b16 %v10630
    %v11582 = vunpack.c.l.b16 %v10631
    %v11583 = vunpack.c.l.b16 %v10632
    %v11584 = vunpack.c.l.b16 %v10633
    %v11585 = vunpack.c.l.b16 %v10634
    %v11586 = vunpack.c.l.b16 %v10635
    %v11587 = vunpack.c.l.b16 %v10636
    %v11588 = vunpack.c.l.b16 %v10637
    %v11589 = vunpack.c.l.b16 %v10638
    %v11590 = vunpack.c.l.b16 %v10639
    %v11591 = vunpack.c.l.b16 %v10640
    %v11592 = vunpack.c.l.b16 %v10641
    %v11593 = vunpack.c.l.b16 %v10642
    %v11594 = vunpack.c.l.b16 %v10643
    %v11595 = vunpack.c.l.b16 %v10644
    %v11596 = vunpack.c.l.b16 %v10645
    %v11597 = vunpack.c.l.b16 %v10646
    %v11598 = vunpack.c.l.b16 %v10647
    %v11599 = vunpack.c.l.b16 %v10648
    %v11600 = vunpack.c.l.b16 %v10649
    %v11601 = vunpack.c.l.b16 %v10650
    %v11602 = vunpack.c.l.b16 %v10651
    %v11603 = vunpack.c.l.b16 %v10652
    %v11604 = vunpack.c.l.b16 %v10653
    %v11605 = vunpack.c.l.b16 %v10654
    %v11606 = vunpack.c.l.b16 %v10655
    %v11607 = vunpack.c.l.b16 %v10656
    %v11608 = vunpack.c.l.b16 %v10657
    %v11609 = vunpack.c.l.b16 %v10658
    %v11610 = vunpack.c.l.b16 %v10659
    %v11611 = vunpack.c.l.b16 %v10660
    %v11612 = vunpack.c.l.b16 %v10661
    %v11613 = vunpack.c.l.b16 %v10662
    %v11614 = vunpack.c.l.b16 %v10663
    %v11615 = vunpack.c.l.b16 %v10664
    %v11616 = vpack.c.b16 %v11545, %v11544
    %v11617 = vpack.c.b16 %v11547, %v11546
    %v11618 = vpack.c.b16 %v11549, %v11548
    %v11619 = vpack.c.b16 %v11551, %v11550
    %v11620 = vpack.c.b16 %v11553, %v11552
    %v11621 = vpack.c.b16 %v11555, %v11554
    %v11622 = vpack.c.b16 %v11557, %v11556
    %v11623 = vpack.c.b16 %v11559, %v11558
    %v11624 = vpack.c.b16 %v11561, %v11560
    %v11625 = vpack.c.b16 %v11563, %v11562
    %v11626 = vpack.c.b16 %v11565, %v11564
    %v11627 = vpack.c.b16 %v11567, %v11566
    %v11628 = vpack.c.b16 %v11569, %v11568
    %v11629 = vpack.c.b16 %v11571, %v11570
    %v11630 = vpack.c.b16 %v11573, %v11572
    %v11631 = vpack.c.b16 %v11575, %v11574
    %v11632 = vpack.c.b16 %v11577, %v11576
    %v11633 = vpack.c.b16 %v11579, %v11578
    %v11634 = vpack.c.b16 %v11581, %v11580
    %v11635 = vpack.c.b16 %v11583, %v11582
    %v11636 = vpack.c.b16 %v11585, %v11584
    %v11637 = vpack.c.b16 %v11587, %v11586
    %v11638 = vpack.c.b16 %v11589, %v11588
    %v11639 = vpack.c.b16 %v11591, %v11590
    %v11640 = vpack.c.b16 %v11593, %v11592
    %v11641 = vpack.c.b16 %v11595, %v11594
    %v11642 = vpack.c.b16 %v11597, %v11596
    %v11643 = vpack.c.b16 %v11599, %v11598
    %v11644 = vpack.c.b16 %v11601, %v11600
    %v11645 = vpack.c.b16 %v11603, %v11602
    %v11646 = vpack.c.b16 %v11605, %v11604
    %v11647 = vpack.c.b16 %v11607, %v11606
    %v11648 = vpack.c.b16 %v11609, %v11608
    %v11649 = vpack.c.b16 %v11611, %v11610
    %v11650 = vpack.c.b16 %v11613, %v11612
    %v11651 = vpack.c.b16 %v11615, %v11614
    %v11689 = vsel %vm1809, %v11188, 0
    %v11692 = vsel %vm1809, %v11193, 0
    %v11695 = vsel %vm1809, %v11198, 0
    %v11698 = vsel %vm1809, %v11203, 0
    %v11701 = vsel %vm1809, %v11208, 0
    %v11704 = vsel %vm1809, %v11213, 0
    %v11707 = vsel %vm1809, %v11218, 0
    %v11710 = vsel %vm1809, %v11223, 0
    %v11713 = vsel %vm1809, %v11228, 0
    %v11716 = vsel %vm1809, %v11233, 0
    %v11719 = vsel %vm1809, %v11238, 0
    %v11722 = vsel %vm1809, %v11243, 0
    %v11725 = vsel %vm1809, %v11248, 0
    %v11728 = vsel %vm1809, %v11253, 0
    %v11731 = vsel %vm1809, %v11258, 0
    %v11734 = vsel %vm1809, %v11263, 0
    %v11737 = vsel %vm1809, %v11268, 0
    %v11740 = vsel %vm1809, %v11273, 0
    %v11743 = vsel %vm1809, %v11278, 0
    %v11746 = vsel %vm1809, %v11283, 0
    %v11749 = vsel %vm1809, %v11288, 0
    %v11752 = vsel %vm1809, %v11293, 0
    %v11755 = vsel %vm1809, %v11298, 0
    %v11758 = vsel %vm1809, %v11303, 0
    %v11761 = vsel %vm1809, %v11308, 0
    %v11764 = vsel %vm1809, %v11313, 0
    %v11767 = vsel %vm1809, %v11318, 0
    %v11770 = vsel %vm1809, %v11323, 0
    %v11773 = vsel %vm1809, %v11328, 0
    %v11776 = vsel %vm1809, %v11333, 0
    %v11779 = vsel %vm1809, %v11338, 0
    %v11782 = vsel %vm1809, %v11343, 0
    %11784 = vmatprep.subr.bf16.mxu0 0
    %11785 = vmatpush1.bf16.msra.mxu0 %v11623
    %11786 = vmatprep.subr.bf16.mxu0 0
    %11787 = vmatpush1.bf16.msra.mxu0 %v11622
    %11788 = vmatprep.subr.bf16.mxu0 0
    %11789 = vmatpush1.bf16.msra.mxu0 %v11621
    %11790 = vmatprep.subr.bf16.mxu0 0
    %11791 = vmatpush1.bf16.msra.mxu0 %v11620
    %11792 = vmatprep.subr.bf16.mxu0 0
    %11793 = vmatpush1.bf16.msra.mxu0 %v11619
    %11794 = vmatprep.subr.bf16.mxu0 0
    %11795 = vmatpush1.bf16.msra.mxu0 %v11618
    %11796 = vmatprep.subr.bf16.mxu0 0
    %11797 = vmatpush1.bf16.msra.mxu0 %v11617
    %11798 = vmatprep.subr.bf16.mxu0 0
    %11799 = vmatpush1.bf16.msra.mxu0 %v11616
    %11800 = vmatprep.subr.bf16.mxu0 0
    %11801 = vmatpush2.bf16.msra.mxu0 %v11631
    %11802 = vmatprep.subr.bf16.mxu0 0
    %11803 = vmatpush2.bf16.msra.mxu0 %v11630
    %11804 = vmatprep.subr.bf16.mxu0 0
    %11805 = vmatpush2.bf16.msra.mxu0 %v11629
    %11806 = vmatprep.subr.bf16.mxu0 0
    %11807 = vmatpush2.bf16.msra.mxu0 %v11628
    %11808 = vmatprep.subr.bf16.mxu0 0
    %11809 = vmatpush2.bf16.msra.mxu0 %v11627
    %11810 = vmatprep.subr.bf16.mxu0 0
    %11811 = vmatpush2.bf16.msra.mxu0 %v11626
    %11812 = vmatprep.subr.bf16.mxu0 0
    %11813 = vmatpush2.bf16.msra.mxu0 %v11625
    %11814 = vmatprep.subr.bf16.mxu0 0
    %11815 = vmatpush2.bf16.msra.mxu0 %v11624
    %11816 = vmatprep.mubr.bf16.mxu0 %v11185
    %11817 = vmatmul.mubr.bf16.gmra.mxu0 %v11184
    %v11818 = vpop.f32.mrf.mxu0
    %v11819 = vadd.f32 %v10670, %v11818
    %v11820 = vpop.f32.mrf.mxu0
    %v11821 = vpop.f32.mrf.mxu0
    %v11822 = vadd.f32 %v10670, %v11821
    %v11823 = vpop.f32.mrf.mxu0
    %11824 = vmatprep.mubr.bf16.mxu0 %v11190
    %11825 = vmatmul.mubr.bf16.gmra.mxu0 %v11189
    %v11826 = vpop.f32.mrf.mxu0
    %v11827 = vadd.f32 %v10670, %v11826
    %v11828 = vpop.f32.mrf.mxu0
    %v11829 = vpop.f32.mrf.mxu0
    %v11830 = vadd.f32 %v10670, %v11829
    %v11831 = vpop.f32.mrf.mxu0
    %11832 = vmatprep.mubr.bf16.mxu0 %v11195
    %11833 = vmatmul.mubr.bf16.gmra.mxu0 %v11194
    %v11834 = vpop.f32.mrf.mxu0
    %v11835 = vadd.f32 %v10670, %v11834
    %v11836 = vpop.f32.mrf.mxu0
    %v11837 = vpop.f32.mrf.mxu0
    %v11838 = vadd.f32 %v10670, %v11837
    %v11839 = vpop.f32.mrf.mxu0
    %11840 = vmatprep.mubr.bf16.mxu0 %v11200
    %11841 = vmatmul.mubr.bf16.gmra.mxu0 %v11199
    %v11842 = vpop.f32.mrf.mxu0
    %v11843 = vadd.f32 %v10670, %v11842
    %v11844 = vpop.f32.mrf.mxu0
    %v11845 = vpop.f32.mrf.mxu0
    %v11846 = vadd.f32 %v10670, %v11845
    %v11847 = vpop.f32.mrf.mxu0
    %11848 = vmatprep.mubr.bf16.mxu0 %v11205
    %11849 = vmatmul.mubr.bf16.gmra.mxu0 %v11204
    %v11850 = vpop.f32.mrf.mxu0
    %v11851 = vadd.f32 %v10670, %v11850
    %v11852 = vpop.f32.mrf.mxu0
    %v11853 = vpop.f32.mrf.mxu0
    %v11854 = vadd.f32 %v10670, %v11853
    %v11855 = vpop.f32.mrf.mxu0
    %11856 = vmatprep.mubr.bf16.mxu0 %v11210
    %11857 = vmatmul.mubr.bf16.gmra.mxu0 %v11209
    %v11858 = vpop.f32.mrf.mxu0
    %v11859 = vadd.f32 %v10670, %v11858
    %v11860 = vpop.f32.mrf.mxu0
    %v11861 = vpop.f32.mrf.mxu0
    %v11862 = vadd.f32 %v10670, %v11861
    %v11863 = vpop.f32.mrf.mxu0
    %11864 = vmatprep.mubr.bf16.mxu0 %v11215
    %11865 = vmatmul.mubr.bf16.gmra.mxu0 %v11214
    %v11866 = vpop.f32.mrf.mxu0
    %v11867 = vadd.f32 %v10670, %v11866
    %v11868 = vpop.f32.mrf.mxu0
    %v11869 = vpop.f32.mrf.mxu0
    %v11870 = vadd.f32 %v10670, %v11869
    %v11871 = vpop.f32.mrf.mxu0
    %11872 = vmatprep.mubr.bf16.mxu0 %v11220
    %11873 = vmatmul.mubr.bf16.gmra.mxu0 %v11219
    %v11874 = vpop.f32.mrf.mxu0
    %v11875 = vadd.f32 %v10670, %v11874
    %v11876 = vpop.f32.mrf.mxu0
    %v11877 = vpop.f32.mrf.mxu0
    %v11878 = vadd.f32 %v10670, %v11877
    %v11879 = vpop.f32.mrf.mxu0
    %11880 = vmatprep.mubr.bf16.mxu0 %v11225
    %11881 = vmatmul.mubr.bf16.gmra.mxu0 %v11224
    %v11882 = vpop.f32.mrf.mxu0
    %v11883 = vadd.f32 %v10670, %v11882
    %v11884 = vpop.f32.mrf.mxu0
    %v11885 = vpop.f32.mrf.mxu0
    %v11886 = vadd.f32 %v10670, %v11885
    %v11887 = vpop.f32.mrf.mxu0
    %11888 = vmatprep.mubr.bf16.mxu0 %v11230
    %11889 = vmatmul.mubr.bf16.gmra.mxu0 %v11229
    %v11890 = vpop.f32.mrf.mxu0
    %v11891 = vadd.f32 %v10670, %v11890
    %v11892 = vpop.f32.mrf.mxu0
    %v11893 = vpop.f32.mrf.mxu0
    %v11894 = vadd.f32 %v10670, %v11893
    %v11895 = vpop.f32.mrf.mxu0
    %11896 = vmatprep.mubr.bf16.mxu0 %v11235
    %11897 = vmatmul.mubr.bf16.gmra.mxu0 %v11234
    %v11898 = vpop.f32.mrf.mxu0
    %v11899 = vadd.f32 %v10670, %v11898
    %v11900 = vpop.f32.mrf.mxu0
    %v11901 = vpop.f32.mrf.mxu0
    %v11902 = vadd.f32 %v10670, %v11901
    %v11903 = vpop.f32.mrf.mxu0
    %11904 = vmatprep.mubr.bf16.mxu0 %v11240
    %11905 = vmatmul.mubr.bf16.gmra.mxu0 %v11239
    %v11906 = vpop.f32.mrf.mxu0
    %v11907 = vadd.f32 %v10670, %v11906
    %v11908 = vpop.f32.mrf.mxu0
    %v11909 = vpop.f32.mrf.mxu0
    %v11910 = vadd.f32 %v10670, %v11909
    %v11911 = vpop.f32.mrf.mxu0
    %11912 = vmatprep.mubr.bf16.mxu0 %v11245
    %11913 = vmatmul.mubr.bf16.gmra.mxu0 %v11244
    %v11914 = vpop.f32.mrf.mxu0
    %v11915 = vadd.f32 %v10670, %v11914
    %v11916 = vpop.f32.mrf.mxu0
    %v11917 = vpop.f32.mrf.mxu0
    %v11918 = vadd.f32 %v10670, %v11917
    %v11919 = vpop.f32.mrf.mxu0
    %11920 = vmatprep.mubr.bf16.mxu0 %v11250
    %11921 = vmatmul.mubr.bf16.gmra.mxu0 %v11249
    %v11922 = vpop.f32.mrf.mxu0
    %v11923 = vadd.f32 %v10670, %v11922
    %v11924 = vpop.f32.mrf.mxu0
    %v11925 = vpop.f32.mrf.mxu0
    %v11926 = vadd.f32 %v10670, %v11925
    %v11927 = vpop.f32.mrf.mxu0
    %11928 = vmatprep.mubr.bf16.mxu0 %v11255
    %11929 = vmatmul.mubr.bf16.gmra.mxu0 %v11254
    %v11930 = vpop.f32.mrf.mxu0
    %v11931 = vadd.f32 %v10670, %v11930
    %v11932 = vpop.f32.mrf.mxu0
    %v11933 = vpop.f32.mrf.mxu0
    %v11934 = vadd.f32 %v10670, %v11933
    %v11935 = vpop.f32.mrf.mxu0
    %11936 = vmatprep.mubr.bf16.mxu0 %v11260
    %11937 = vmatmul.mubr.bf16.gmra.mxu0 %v11259
    %v11938 = vpop.f32.mrf.mxu0
    %v11939 = vadd.f32 %v10670, %v11938
    %v11940 = vpop.f32.mrf.mxu0
    %v11941 = vpop.f32.mrf.mxu0
    %v11942 = vadd.f32 %v10670, %v11941
    %v11943 = vpop.f32.mrf.mxu0
    %11944 = vmatprep.mubr.bf16.mxu0 %v11265
    %11945 = vmatmul.mubr.bf16.gmra.mxu0 %v11264
    %v11946 = vpop.f32.mrf.mxu0
    %v11947 = vadd.f32 %v10670, %v11946
    %v11948 = vpop.f32.mrf.mxu0
    %v11949 = vpop.f32.mrf.mxu0
    %v11950 = vadd.f32 %v10670, %v11949
    %v11951 = vpop.f32.mrf.mxu0
    %11952 = vmatprep.mubr.bf16.mxu0 %v11270
    %11953 = vmatmul.mubr.bf16.gmra.mxu0 %v11269
    %v11954 = vpop.f32.mrf.mxu0
    %v11955 = vadd.f32 %v10670, %v11954
    %v11956 = vpop.f32.mrf.mxu0
    %v11957 = vpop.f32.mrf.mxu0
    %v11958 = vadd.f32 %v10670, %v11957
    %v11959 = vpop.f32.mrf.mxu0
    %11960 = vmatprep.mubr.bf16.mxu0 %v11275
    %11961 = vmatmul.mubr.bf16.gmra.mxu0 %v11274
    %v11962 = vpop.f32.mrf.mxu0
    %v11963 = vadd.f32 %v10670, %v11962
    %v11964 = vpop.f32.mrf.mxu0
    %v11965 = vpop.f32.mrf.mxu0
    %v11966 = vadd.f32 %v10670, %v11965
    %v11967 = vpop.f32.mrf.mxu0
    %11968 = vmatprep.mubr.bf16.mxu0 %v11280
    %11969 = vmatmul.mubr.bf16.gmra.mxu0 %v11279
    %v11970 = vpop.f32.mrf.mxu0
    %v11971 = vadd.f32 %v10670, %v11970
    %v11972 = vpop.f32.mrf.mxu0
    %v11973 = vpop.f32.mrf.mxu0
    %v11974 = vadd.f32 %v10670, %v11973
    %v11975 = vpop.f32.mrf.mxu0
    %11976 = vmatprep.mubr.bf16.mxu0 %v11285
    %11977 = vmatmul.mubr.bf16.gmra.mxu0 %v11284
    %v11978 = vpop.f32.mrf.mxu0
    %v11979 = vadd.f32 %v10670, %v11978
    %v11980 = vpop.f32.mrf.mxu0
    %v11981 = vpop.f32.mrf.mxu0
    %v11982 = vadd.f32 %v10670, %v11981
    %v11983 = vpop.f32.mrf.mxu0
    %11984 = vmatprep.mubr.bf16.mxu0 %v11290
    %11985 = vmatmul.mubr.bf16.gmra.mxu0 %v11289
    %v11986 = vpop.f32.mrf.mxu0
    %v11987 = vadd.f32 %v10670, %v11986
    %v11988 = vpop.f32.mrf.mxu0
    %v11989 = vpop.f32.mrf.mxu0
    %v11990 = vadd.f32 %v10670, %v11989
    %v11991 = vpop.f32.mrf.mxu0
    %11992 = vmatprep.mubr.bf16.mxu0 %v11295
    %11993 = vmatmul.mubr.bf16.gmra.mxu0 %v11294
    %v11994 = vpop.f32.mrf.mxu0
    %v11995 = vadd.f32 %v10670, %v11994
    %v11996 = vpop.f32.mrf.mxu0
    %v11997 = vpop.f32.mrf.mxu0
    %v11998 = vadd.f32 %v10670, %v11997
    %v11999 = vpop.f32.mrf.mxu0
    %12000 = vmatprep.mubr.bf16.mxu0 %v11300
    %12001 = vmatmul.mubr.bf16.gmra.mxu0 %v11299
    %v12002 = vpop.f32.mrf.mxu0
    %v12003 = vadd.f32 %v10670, %v12002
    %v12004 = vpop.f32.mrf.mxu0
    %v12005 = vpop.f32.mrf.mxu0
    %v12006 = vadd.f32 %v10670, %v12005
    %v12007 = vpop.f32.mrf.mxu0
    %12008 = vmatprep.mubr.bf16.mxu0 %v11305
    %12009 = vmatmul.mubr.bf16.gmra.mxu0 %v11304
    %v12010 = vpop.f32.mrf.mxu0
    %v12011 = vadd.f32 %v10670, %v12010
    %v12012 = vpop.f32.mrf.mxu0
    %v12013 = vpop.f32.mrf.mxu0
    %v12014 = vadd.f32 %v10670, %v12013
    %v12015 = vpop.f32.mrf.mxu0
    %12016 = vmatprep.mubr.bf16.mxu0 %v11310
    %12017 = vmatmul.mubr.bf16.gmra.mxu0 %v11309
    %v12018 = vpop.f32.mrf.mxu0
    %v12019 = vadd.f32 %v10670, %v12018
    %v12020 = vpop.f32.mrf.mxu0
    %v12021 = vpop.f32.mrf.mxu0
    %v12022 = vadd.f32 %v10670, %v12021
    %v12023 = vpop.f32.mrf.mxu0
    %12024 = vmatprep.mubr.bf16.mxu0 %v11315
    %12025 = vmatmul.mubr.bf16.gmra.mxu0 %v11314
    %v12026 = vpop.f32.mrf.mxu0
    %v12027 = vadd.f32 %v10670, %v12026
    %v12028 = vpop.f32.mrf.mxu0
    %v12029 = vpop.f32.mrf.mxu0
    %v12030 = vadd.f32 %v10670, %v12029
    %v12031 = vpop.f32.mrf.mxu0
    %12032 = vmatprep.mubr.bf16.mxu0 %v11320
    %12033 = vmatmul.mubr.bf16.gmra.mxu0 %v11319
    %v12034 = vpop.f32.mrf.mxu0
    %v12035 = vadd.f32 %v10670, %v12034
    %v12036 = vpop.f32.mrf.mxu0
    %v12037 = vpop.f32.mrf.mxu0
    %v12038 = vadd.f32 %v10670, %v12037
    %v12039 = vpop.f32.mrf.mxu0
    %12040 = vmatprep.mubr.bf16.mxu0 %v11325
    %12041 = vmatmul.mubr.bf16.gmra.mxu0 %v11324
    %v12042 = vpop.f32.mrf.mxu0
    %v12043 = vadd.f32 %v10670, %v12042
    %v12044 = vpop.f32.mrf.mxu0
    %v12045 = vpop.f32.mrf.mxu0
    %v12046 = vadd.f32 %v10670, %v12045
    %v12047 = vpop.f32.mrf.mxu0
    %12048 = vmatprep.mubr.bf16.mxu0 %v11330
    %12049 = vmatmul.mubr.bf16.gmra.mxu0 %v11329
    %v12050 = vpop.f32.mrf.mxu0
    %v12051 = vadd.f32 %v10670, %v12050
    %v12052 = vpop.f32.mrf.mxu0
    %v12053 = vpop.f32.mrf.mxu0
    %v12054 = vadd.f32 %v10670, %v12053
    %v12055 = vpop.f32.mrf.mxu0
    %12056 = vmatprep.mubr.bf16.mxu0 %v11335
    %12057 = vmatmul.mubr.bf16.gmra.mxu0 %v11334
    %v12058 = vpop.f32.mrf.mxu0
    %v12059 = vadd.f32 %v10670, %v12058
    %v12060 = vpop.f32.mrf.mxu0
    %v12061 = vpop.f32.mrf.mxu0
    %v12062 = vadd.f32 %v10670, %v12061
    %v12063 = vpop.f32.mrf.mxu0
    %12064 = vmatprep.mubr.bf16.mxu0 %v11340
    %12065 = vmatmul.mubr.bf16.gmra.mxu0 %v11339
    %v12066 = vpop.f32.mrf.mxu0
    %v12067 = vadd.f32 %v10670, %v12066
    %v12068 = vpop.f32.mrf.mxu0
    %v12069 = vpop.f32.mrf.mxu0
    %v12070 = vadd.f32 %v10670, %v12069
    %v12071 = vpop.f32.mrf.mxu0
    %12072 = vdwg.mxu0
    %12073 = vmatprep.subr.bf16.mxu0 0
    %12074 = vmatpush1.bf16.msra.mxu0 %v11639
    %12075 = vmatprep.subr.bf16.mxu0 0
    %12076 = vmatpush1.bf16.msra.mxu0 %v11638
    %12077 = vmatprep.subr.bf16.mxu0 0
    %12078 = vmatpush1.bf16.msra.mxu0 %v11637
    %12079 = vmatprep.subr.bf16.mxu0 0
    %12080 = vmatpush1.bf16.msra.mxu0 %v11636
    %12081 = vmatprep.subr.bf16.mxu0 0
    %12082 = vmatpush1.bf16.msra.mxu0 %v11635
    %12083 = vmatprep.subr.bf16.mxu0 0
    %12084 = vmatpush1.bf16.msra.mxu0 %v11634
    %12085 = vmatprep.subr.bf16.mxu0 0
    %12086 = vmatpush1.bf16.msra.mxu0 %v11633
    %12087 = vmatprep.subr.bf16.mxu0 0
    %12088 = vmatpush1.bf16.msra.mxu0 %v11632
    %12089 = vmatprep.subr.bf16.mxu0 0
    %12090 = vmatpush2.bf16.msra.mxu0 %v11647
    %12091 = vmatprep.subr.bf16.mxu0 0
    %12092 = vmatpush2.bf16.msra.mxu0 %v11646
    %12093 = vmatprep.subr.bf16.mxu0 0
    %12094 = vmatpush2.bf16.msra.mxu0 %v11645
    %12095 = vmatprep.subr.bf16.mxu0 0
    %12096 = vmatpush2.bf16.msra.mxu0 %v11644
    %12097 = vmatprep.subr.bf16.mxu0 0
    %12098 = vmatpush2.bf16.msra.mxu0 %v11643
    %12099 = vmatprep.subr.bf16.mxu0 0
    %12100 = vmatpush2.bf16.msra.mxu0 %v11642
    %12101 = vmatprep.subr.bf16.mxu0 0
    %12102 = vmatpush2.bf16.msra.mxu0 %v11641
    %12103 = vmatprep.subr.bf16.mxu0 0
    %12104 = vmatpush2.bf16.msra.mxu0 %v11640
    %12105 = vmatprep.mubr.bf16.mxu0 %v11187
    %12106 = vmatmul.mubr.bf16.gmra.mxu0 %v11186
    %v12107 = vpop.f32.mrf.mxu0
    %v12108 = vadd.f32 %v11819, %v12107
    %v12109 = vpop.f32.mrf.mxu0
    %v12110 = vpop.f32.mrf.mxu0
    %v12111 = vadd.f32 %v11822, %v12110
    %v12112 = vpop.f32.mrf.mxu0
    %12113 = vmatprep.mubr.bf16.mxu0 %v11192
    %12114 = vmatmul.mubr.bf16.gmra.mxu0 %v11191
    %v12115 = vpop.f32.mrf.mxu0
    %v12116 = vadd.f32 %v11827, %v12115
    %v12117 = vpop.f32.mrf.mxu0
    %v12118 = vpop.f32.mrf.mxu0
    %v12119 = vadd.f32 %v11830, %v12118
    %v12120 = vpop.f32.mrf.mxu0
    %12121 = vmatprep.mubr.bf16.mxu0 %v11197
    %12122 = vmatmul.mubr.bf16.gmra.mxu0 %v11196
    %v12123 = vpop.f32.mrf.mxu0
    %v12124 = vadd.f32 %v11835, %v12123
    %v12125 = vpop.f32.mrf.mxu0
    %v12126 = vpop.f32.mrf.mxu0
    %v12127 = vadd.f32 %v11838, %v12126
    %v12128 = vpop.f32.mrf.mxu0
    %12129 = vmatprep.mubr.bf16.mxu0 %v11202
    %12130 = vmatmul.mubr.bf16.gmra.mxu0 %v11201
    %v12131 = vpop.f32.mrf.mxu0
    %v12132 = vadd.f32 %v11843, %v12131
    %v12133 = vpop.f32.mrf.mxu0
    %v12134 = vpop.f32.mrf.mxu0
    %v12135 = vadd.f32 %v11846, %v12134
    %v12136 = vpop.f32.mrf.mxu0
    %12137 = vmatprep.mubr.bf16.mxu0 %v11207
    %12138 = vmatmul.mubr.bf16.gmra.mxu0 %v11206
    %v12139 = vpop.f32.mrf.mxu0
    %v12140 = vadd.f32 %v11851, %v12139
    %v12141 = vpop.f32.mrf.mxu0
    %v12142 = vpop.f32.mrf.mxu0
    %v12143 = vadd.f32 %v11854, %v12142
    %v12144 = vpop.f32.mrf.mxu0
    %12145 = vmatprep.mubr.bf16.mxu0 %v11212
    %12146 = vmatmul.mubr.bf16.gmra.mxu0 %v11211
    %v12147 = vpop.f32.mrf.mxu0
    %v12148 = vadd.f32 %v11859, %v12147
    %v12149 = vpop.f32.mrf.mxu0
    %v12150 = vpop.f32.mrf.mxu0
    %v12151 = vadd.f32 %v11862, %v12150
    %v12152 = vpop.f32.mrf.mxu0
    %12153 = vmatprep.mubr.bf16.mxu0 %v11217
    %12154 = vmatmul.mubr.bf16.gmra.mxu0 %v11216
    %v12155 = vpop.f32.mrf.mxu0
    %v12156 = vadd.f32 %v11867, %v12155
    %v12157 = vpop.f32.mrf.mxu0
    %v12158 = vpop.f32.mrf.mxu0
    %v12159 = vadd.f32 %v11870, %v12158
    %v12160 = vpop.f32.mrf.mxu0
    %12161 = vmatprep.mubr.bf16.mxu0 %v11222
    %12162 = vmatmul.mubr.bf16.gmra.mxu0 %v11221
    %v12163 = vpop.f32.mrf.mxu0
    %v12164 = vadd.f32 %v11875, %v12163
    %v12165 = vpop.f32.mrf.mxu0
    %v12166 = vpop.f32.mrf.mxu0
    %v12167 = vadd.f32 %v11878, %v12166
    %v12168 = vpop.f32.mrf.mxu0
    %12169 = vmatprep.mubr.bf16.mxu0 %v11227
    %12170 = vmatmul.mubr.bf16.gmra.mxu0 %v11226
    %v12171 = vpop.f32.mrf.mxu0
    %v12172 = vadd.f32 %v11883, %v12171
    %v12173 = vpop.f32.mrf.mxu0
    %v12174 = vpop.f32.mrf.mxu0
    %v12175 = vadd.f32 %v11886, %v12174
    %v12176 = vpop.f32.mrf.mxu0
    %12177 = vmatprep.mubr.bf16.mxu0 %v11232
    %12178 = vmatmul.mubr.bf16.gmra.mxu0 %v11231
    %v12179 = vpop.f32.mrf.mxu0
    %v12180 = vadd.f32 %v11891, %v12179
    %v12181 = vpop.f32.mrf.mxu0
    %v12182 = vpop.f32.mrf.mxu0
    %v12183 = vadd.f32 %v11894, %v12182
    %v12184 = vpop.f32.mrf.mxu0
    %12185 = vmatprep.mubr.bf16.mxu0 %v11237
    %12186 = vmatmul.mubr.bf16.gmra.mxu0 %v11236
    %v12187 = vpop.f32.mrf.mxu0
    %v12188 = vadd.f32 %v11899, %v12187
    %v12189 = vpop.f32.mrf.mxu0
    %v12190 = vpop.f32.mrf.mxu0
    %v12191 = vadd.f32 %v11902, %v12190
    %v12192 = vpop.f32.mrf.mxu0
    %12193 = vmatprep.mubr.bf16.mxu0 %v11242
    %12194 = vmatmul.mubr.bf16.gmra.mxu0 %v11241
    %v12195 = vpop.f32.mrf.mxu0
    %v12196 = vadd.f32 %v11907, %v12195
    %v12197 = vpop.f32.mrf.mxu0
    %v12198 = vpop.f32.mrf.mxu0
    %v12199 = vadd.f32 %v11910, %v12198
    %v12200 = vpop.f32.mrf.mxu0
    %12201 = vmatprep.mubr.bf16.mxu0 %v11247
    %12202 = vmatmul.mubr.bf16.gmra.mxu0 %v11246
    %v12203 = vpop.f32.mrf.mxu0
    %v12204 = vadd.f32 %v11915, %v12203
    %v12205 = vpop.f32.mrf.mxu0
    %v12206 = vpop.f32.mrf.mxu0
    %v12207 = vadd.f32 %v11918, %v12206
    %v12208 = vpop.f32.mrf.mxu0
    %12209 = vmatprep.mubr.bf16.mxu0 %v11252
    %12210 = vmatmul.mubr.bf16.gmra.mxu0 %v11251
    %v12211 = vpop.f32.mrf.mxu0
    %v12212 = vadd.f32 %v11923, %v12211
    %v12213 = vpop.f32.mrf.mxu0
    %v12214 = vpop.f32.mrf.mxu0
    %v12215 = vadd.f32 %v11926, %v12214
    %v12216 = vpop.f32.mrf.mxu0
    %12217 = vmatprep.mubr.bf16.mxu0 %v11257
    %12218 = vmatmul.mubr.bf16.gmra.mxu0 %v11256
    %v12219 = vpop.f32.mrf.mxu0
    %v12220 = vadd.f32 %v11931, %v12219
    %v12221 = vpop.f32.mrf.mxu0
    %v12222 = vpop.f32.mrf.mxu0
    %v12223 = vadd.f32 %v11934, %v12222
    %v12224 = vpop.f32.mrf.mxu0
    %12225 = vmatprep.mubr.bf16.mxu0 %v11262
    %12226 = vmatmul.mubr.bf16.gmra.mxu0 %v11261
    %v12227 = vpop.f32.mrf.mxu0
    %v12228 = vadd.f32 %v11939, %v12227
    %v12229 = vpop.f32.mrf.mxu0
    %v12230 = vpop.f32.mrf.mxu0
    %v12231 = vadd.f32 %v11942, %v12230
    %v12232 = vpop.f32.mrf.mxu0
    %12233 = vmatprep.mubr.bf16.mxu0 %v11267
    %12234 = vmatmul.mubr.bf16.gmra.mxu0 %v11266
    %v12235 = vpop.f32.mrf.mxu0
    %v12236 = vadd.f32 %v11947, %v12235
    %v12237 = vpop.f32.mrf.mxu0
    %v12238 = vpop.f32.mrf.mxu0
    %v12239 = vadd.f32 %v11950, %v12238
    %v12240 = vpop.f32.mrf.mxu0
    %12241 = vmatprep.mubr.bf16.mxu0 %v11272
    %12242 = vmatmul.mubr.bf16.gmra.mxu0 %v11271
    %v12243 = vpop.f32.mrf.mxu0
    %v12244 = vadd.f32 %v11955, %v12243
    %v12245 = vpop.f32.mrf.mxu0
    %v12246 = vpop.f32.mrf.mxu0
    %v12247 = vadd.f32 %v11958, %v12246
    %v12248 = vpop.f32.mrf.mxu0
    %12249 = vmatprep.mubr.bf16.mxu0 %v11277
    %12250 = vmatmul.mubr.bf16.gmra.mxu0 %v11276
    %v12251 = vpop.f32.mrf.mxu0
    %v12252 = vadd.f32 %v11963, %v12251
    %v12253 = vpop.f32.mrf.mxu0
    %v12254 = vpop.f32.mrf.mxu0
    %v12255 = vadd.f32 %v11966, %v12254
    %v12256 = vpop.f32.mrf.mxu0
    %12257 = vmatprep.mubr.bf16.mxu0 %v11282
    %12258 = vmatmul.mubr.bf16.gmra.mxu0 %v11281
    %v12259 = vpop.f32.mrf.mxu0
    %v12260 = vadd.f32 %v11971, %v12259
    %v12261 = vpop.f32.mrf.mxu0
    %v12262 = vpop.f32.mrf.mxu0
    %v12263 = vadd.f32 %v11974, %v12262
    %v12264 = vpop.f32.mrf.mxu0
    %12265 = vmatprep.mubr.bf16.mxu0 %v11287
    %12266 = vmatmul.mubr.bf16.gmra.mxu0 %v11286
    %v12267 = vpop.f32.mrf.mxu0
    %v12268 = vadd.f32 %v11979, %v12267
    %v12269 = vpop.f32.mrf.mxu0
    %v12270 = vpop.f32.mrf.mxu0
    %v12271 = vadd.f32 %v11982, %v12270
    %v12272 = vpop.f32.mrf.mxu0
    %12273 = vmatprep.mubr.bf16.mxu0 %v11292
    %12274 = vmatmul.mubr.bf16.gmra.mxu0 %v11291
    %v12275 = vpop.f32.mrf.mxu0
    %v12276 = vadd.f32 %v11987, %v12275
    %v12277 = vpop.f32.mrf.mxu0
    %v12278 = vpop.f32.mrf.mxu0
    %v12279 = vadd.f32 %v11990, %v12278
    %v12280 = vpop.f32.mrf.mxu0
    %12281 = vmatprep.mubr.bf16.mxu0 %v11297
    %12282 = vmatmul.mubr.bf16.gmra.mxu0 %v11296
    %v12283 = vpop.f32.mrf.mxu0
    %v12284 = vadd.f32 %v11995, %v12283
    %v12285 = vpop.f32.mrf.mxu0
    %v12286 = vpop.f32.mrf.mxu0
    %v12287 = vadd.f32 %v11998, %v12286
    %v12288 = vpop.f32.mrf.mxu0
    %12289 = vmatprep.mubr.bf16.mxu0 %v11302
    %12290 = vmatmul.mubr.bf16.gmra.mxu0 %v11301
    %v12291 = vpop.f32.mrf.mxu0
    %v12292 = vadd.f32 %v12003, %v12291
    %v12293 = vpop.f32.mrf.mxu0
    %v12294 = vpop.f32.mrf.mxu0
    %v12295 = vadd.f32 %v12006, %v12294
    %v12296 = vpop.f32.mrf.mxu0
    %12297 = vmatprep.mubr.bf16.mxu0 %v11307
    %12298 = vmatmul.mubr.bf16.gmra.mxu0 %v11306
    %v12299 = vpop.f32.mrf.mxu0
    %v12300 = vadd.f32 %v12011, %v12299
    %v12301 = vpop.f32.mrf.mxu0
    %v12302 = vpop.f32.mrf.mxu0
    %v12303 = vadd.f32 %v12014, %v12302
    %v12304 = vpop.f32.mrf.mxu0
    %12305 = vmatprep.mubr.bf16.mxu0 %v11312
    %12306 = vmatmul.mubr.bf16.gmra.mxu0 %v11311
    %v12307 = vpop.f32.mrf.mxu0
    %v12308 = vadd.f32 %v12019, %v12307
    %v12309 = vpop.f32.mrf.mxu0
    %v12310 = vpop.f32.mrf.mxu0
    %v12311 = vadd.f32 %v12022, %v12310
    %v12312 = vpop.f32.mrf.mxu0
    %12313 = vmatprep.mubr.bf16.mxu0 %v11317
    %12314 = vmatmul.mubr.bf16.gmra.mxu0 %v11316
    %v12315 = vpop.f32.mrf.mxu0
    %v12316 = vadd.f32 %v12027, %v12315
    %v12317 = vpop.f32.mrf.mxu0
    %v12318 = vpop.f32.mrf.mxu0
    %v12319 = vadd.f32 %v12030, %v12318
    %v12320 = vpop.f32.mrf.mxu0
    %12321 = vmatprep.mubr.bf16.mxu0 %v11322
    %12322 = vmatmul.mubr.bf16.gmra.mxu0 %v11321
    %v12323 = vpop.f32.mrf.mxu0
    %v12324 = vadd.f32 %v12035, %v12323
    %v12325 = vpop.f32.mrf.mxu0
    %v12326 = vpop.f32.mrf.mxu0
    %v12327 = vadd.f32 %v12038, %v12326
    %v12328 = vpop.f32.mrf.mxu0
    %12329 = vmatprep.mubr.bf16.mxu0 %v11327
    %12330 = vmatmul.mubr.bf16.gmra.mxu0 %v11326
    %v12331 = vpop.f32.mrf.mxu0
    %v12332 = vadd.f32 %v12043, %v12331
    %v12333 = vpop.f32.mrf.mxu0
    %v12334 = vpop.f32.mrf.mxu0
    %v12335 = vadd.f32 %v12046, %v12334
    %v12336 = vpop.f32.mrf.mxu0
    %12337 = vmatprep.mubr.bf16.mxu0 %v11332
    %12338 = vmatmul.mubr.bf16.gmra.mxu0 %v11331
    %v12339 = vpop.f32.mrf.mxu0
    %v12340 = vadd.f32 %v12051, %v12339
    %v12341 = vpop.f32.mrf.mxu0
    %v12342 = vpop.f32.mrf.mxu0
    %v12343 = vadd.f32 %v12054, %v12342
    %v12344 = vpop.f32.mrf.mxu0
    %12345 = vmatprep.mubr.bf16.mxu0 %v11337
    %12346 = vmatmul.mubr.bf16.gmra.mxu0 %v11336
    %v12347 = vpop.f32.mrf.mxu0
    %v12348 = vadd.f32 %v12059, %v12347
    %v12349 = vpop.f32.mrf.mxu0
    %v12350 = vpop.f32.mrf.mxu0
    %v12351 = vadd.f32 %v12062, %v12350
    %v12352 = vpop.f32.mrf.mxu0
    %12353 = vmatprep.mubr.bf16.mxu0 %v11342
    %12354 = vmatmul.mubr.bf16.gmra.mxu0 %v11341
    %v12355 = vpop.f32.mrf.mxu0
    %v12356 = vadd.f32 %v12067, %v12355
    %v12357 = vpop.f32.mrf.mxu0
    %v12358 = vpop.f32.mrf.mxu0
    %v12359 = vadd.f32 %v12070, %v12358
    %v12360 = vpop.f32.mrf.mxu0
    %12361 = vdwg.mxu0
    %12362 = vmatprep.subr.bf16.mxu0 0
    %12363 = vmatpush1.bf16.msra.mxu0 0
    %12364 = vmatprep.subr.bf16.mxu0 0
    %12365 = vmatpush1.bf16.msra.mxu0 0
    %12366 = vmatprep.subr.bf16.mxu0 0
    %12367 = vmatpush1.bf16.msra.mxu0 0
    %12368 = vmatprep.subr.bf16.mxu0 0
    %12369 = vmatpush1.bf16.msra.mxu0 0
    %12370 = vmatprep.subr.bf16.mxu0 0
    %12371 = vmatpush1.bf16.msra.mxu0 %v11651
    %12372 = vmatprep.subr.bf16.mxu0 0
    %12373 = vmatpush1.bf16.msra.mxu0 %v11650
    %12374 = vmatprep.subr.bf16.mxu0 0
    %12375 = vmatpush1.bf16.msra.mxu0 %v11649
    %12376 = vmatprep.subr.bf16.mxu0 0
    %12377 = vmatpush1.bf16.msra.mxu0 %v11648
    %12378 = vmatprep.subr.bf16.mxu0 0
    %12379 = vmatpush2.bf16.msra.mxu0 0
    %12380 = vmatprep.subr.bf16.mxu0 0
    %12381 = vmatpush2.bf16.msra.mxu0 0
    %12382 = vmatprep.subr.bf16.mxu0 0
    %12383 = vmatpush2.bf16.msra.mxu0 0
    %12384 = vmatprep.subr.bf16.mxu0 0
    %12385 = vmatpush2.bf16.msra.mxu0 0
    %12386 = vmatprep.subr.bf16.mxu0 0
    %12387 = vmatpush2.bf16.msra.mxu0 0
    %12388 = vmatprep.subr.bf16.mxu0 0
    %12389 = vmatpush2.bf16.msra.mxu0 0
    %12390 = vmatprep.subr.bf16.mxu0 0
    %12391 = vmatpush2.bf16.msra.mxu0 0
    %12392 = vmatprep.subr.bf16.mxu0 0
    %12393 = vmatpush2.bf16.msra.mxu0 0
    %12394 = vmatprep.mubr.bf16.mxu0 0
    %12395 = vmatmul.mubr.bf16.gmra.mxu0 %v11689
    %v12396 = vpop.f32.mrf.mxu0
    %v12397 = vadd.f32 %v12108, %v12396
    %v12398 = vpop.f32.mrf.mxu0
    %v12399 = vpop.f32.mrf.mxu0
    %v12400 = vadd.f32 %v12111, %v12399
    %v12401 = vpop.f32.mrf.mxu0
    %12402 = vmatprep.mubr.bf16.mxu0 0
    %12403 = vmatmul.mubr.bf16.gmra.mxu0 %v11692
    %v12404 = vpop.f32.mrf.mxu0
    %v12405 = vadd.f32 %v12116, %v12404
    %v12406 = vpop.f32.mrf.mxu0
    %v12407 = vpop.f32.mrf.mxu0
    %v12408 = vadd.f32 %v12119, %v12407
    %v12409 = vpop.f32.mrf.mxu0
    %12410 = vmatprep.mubr.bf16.mxu0 0
    %12411 = vmatmul.mubr.bf16.gmra.mxu0 %v11695
    %v12412 = vpop.f32.mrf.mxu0
    %v12413 = vadd.f32 %v12124, %v12412
    %v12414 = vpop.f32.mrf.mxu0
    %v12415 = vpop.f32.mrf.mxu0
    %v12416 = vadd.f32 %v12127, %v12415
    %v12417 = vpop.f32.mrf.mxu0
    %12418 = vmatprep.mubr.bf16.mxu0 0
    %12419 = vmatmul.mubr.bf16.gmra.mxu0 %v11698
    %v12420 = vpop.f32.mrf.mxu0
    %v12421 = vadd.f32 %v12132, %v12420
    %v12422 = vpop.f32.mrf.mxu0
    %v12423 = vpop.f32.mrf.mxu0
    %v12424 = vadd.f32 %v12135, %v12423
    %v12425 = vpop.f32.mrf.mxu0
    %12426 = vmatprep.mubr.bf16.mxu0 0
    %12427 = vmatmul.mubr.bf16.gmra.mxu0 %v11701
    %v12428 = vpop.f32.mrf.mxu0
    %v12429 = vadd.f32 %v12140, %v12428
    %v12430 = vpop.f32.mrf.mxu0
    %v12431 = vpop.f32.mrf.mxu0
    %v12432 = vadd.f32 %v12143, %v12431
    %v12433 = vpop.f32.mrf.mxu0
    %12434 = vmatprep.mubr.bf16.mxu0 0
    %12435 = vmatmul.mubr.bf16.gmra.mxu0 %v11704
    %v12436 = vpop.f32.mrf.mxu0
    %v12437 = vadd.f32 %v12148, %v12436
    %v12438 = vpop.f32.mrf.mxu0
    %v12439 = vpop.f32.mrf.mxu0
    %v12440 = vadd.f32 %v12151, %v12439
    %v12441 = vpop.f32.mrf.mxu0
    %12442 = vmatprep.mubr.bf16.mxu0 0
    %12443 = vmatmul.mubr.bf16.gmra.mxu0 %v11707
    %v12444 = vpop.f32.mrf.mxu0
    %v12445 = vadd.f32 %v12156, %v12444
    %v12446 = vpop.f32.mrf.mxu0
    %v12447 = vpop.f32.mrf.mxu0
    %v12448 = vadd.f32 %v12159, %v12447
    %v12449 = vpop.f32.mrf.mxu0
    %12450 = vmatprep.mubr.bf16.mxu0 0
    %12451 = vmatmul.mubr.bf16.gmra.mxu0 %v11710
    %v12452 = vpop.f32.mrf.mxu0
    %v12453 = vadd.f32 %v12164, %v12452
    %v12454 = vpop.f32.mrf.mxu0
    %v12455 = vpop.f32.mrf.mxu0
    %v12456 = vadd.f32 %v12167, %v12455
    %v12457 = vpop.f32.mrf.mxu0
    %12458 = vmatprep.mubr.bf16.mxu0 0
    %12459 = vmatmul.mubr.bf16.gmra.mxu0 %v11713
    %v12460 = vpop.f32.mrf.mxu0
    %v12461 = vadd.f32 %v12172, %v12460
    %v12462 = vpop.f32.mrf.mxu0
    %v12463 = vpop.f32.mrf.mxu0
    %v12464 = vadd.f32 %v12175, %v12463
    %v12465 = vpop.f32.mrf.mxu0
    %12466 = vmatprep.mubr.bf16.mxu0 0
    %12467 = vmatmul.mubr.bf16.gmra.mxu0 %v11716
    %v12468 = vpop.f32.mrf.mxu0
    %v12469 = vadd.f32 %v12180, %v12468
    %v12470 = vpop.f32.mrf.mxu0
    %v12471 = vpop.f32.mrf.mxu0
    %v12472 = vadd.f32 %v12183, %v12471
    %v12473 = vpop.f32.mrf.mxu0
    %12474 = vmatprep.mubr.bf16.mxu0 0
    %12475 = vmatmul.mubr.bf16.gmra.mxu0 %v11719
    %v12476 = vpop.f32.mrf.mxu0
    %v12477 = vadd.f32 %v12188, %v12476
    %v12478 = vpop.f32.mrf.mxu0
    %v12479 = vpop.f32.mrf.mxu0
    %v12480 = vadd.f32 %v12191, %v12479
    %v12481 = vpop.f32.mrf.mxu0
    %12482 = vmatprep.mubr.bf16.mxu0 0
    %12483 = vmatmul.mubr.bf16.gmra.mxu0 %v11722
    %v12484 = vpop.f32.mrf.mxu0
    %v12485 = vadd.f32 %v12196, %v12484
    %v12486 = vpop.f32.mrf.mxu0
    %v12487 = vpop.f32.mrf.mxu0
    %v12488 = vadd.f32 %v12199, %v12487
    %v12489 = vpop.f32.mrf.mxu0
    %12490 = vmatprep.mubr.bf16.mxu0 0
    %12491 = vmatmul.mubr.bf16.gmra.mxu0 %v11725
    %v12492 = vpop.f32.mrf.mxu0
    %v12493 = vadd.f32 %v12204, %v12492
    %v12494 = vpop.f32.mrf.mxu0
    %v12495 = vpop.f32.mrf.mxu0
    %v12496 = vadd.f32 %v12207, %v12495
    %v12497 = vpop.f32.mrf.mxu0
    %12498 = vmatprep.mubr.bf16.mxu0 0
    %12499 = vmatmul.mubr.bf16.gmra.mxu0 %v11728
    %v12500 = vpop.f32.mrf.mxu0
    %v12501 = vadd.f32 %v12212, %v12500
    %v12502 = vpop.f32.mrf.mxu0
    %v12503 = vpop.f32.mrf.mxu0
    %v12504 = vadd.f32 %v12215, %v12503
    %v12505 = vpop.f32.mrf.mxu0
    %12506 = vmatprep.mubr.bf16.mxu0 0
    %12507 = vmatmul.mubr.bf16.gmra.mxu0 %v11731
    %v12508 = vpop.f32.mrf.mxu0
    %v12509 = vadd.f32 %v12220, %v12508
    %v12510 = vpop.f32.mrf.mxu0
    %v12511 = vpop.f32.mrf.mxu0
    %v12512 = vadd.f32 %v12223, %v12511
    %v12513 = vpop.f32.mrf.mxu0
    %12514 = vmatprep.mubr.bf16.mxu0 0
    %12515 = vmatmul.mubr.bf16.gmra.mxu0 %v11734
    %v12516 = vpop.f32.mrf.mxu0
    %v12517 = vadd.f32 %v12228, %v12516
    %v12518 = vpop.f32.mrf.mxu0
    %v12519 = vpop.f32.mrf.mxu0
    %v12520 = vadd.f32 %v12231, %v12519
    %v12521 = vpop.f32.mrf.mxu0
    %12522 = vmatprep.mubr.bf16.mxu0 0
    %12523 = vmatmul.mubr.bf16.gmra.mxu0 %v11737
    %v12524 = vpop.f32.mrf.mxu0
    %v12525 = vadd.f32 %v12236, %v12524
    %v12526 = vpop.f32.mrf.mxu0
    %v12527 = vpop.f32.mrf.mxu0
    %v12528 = vadd.f32 %v12239, %v12527
    %v12529 = vpop.f32.mrf.mxu0
    %12530 = vmatprep.mubr.bf16.mxu0 0
    %12531 = vmatmul.mubr.bf16.gmra.mxu0 %v11740
    %v12532 = vpop.f32.mrf.mxu0
    %v12533 = vadd.f32 %v12244, %v12532
    %v12534 = vpop.f32.mrf.mxu0
    %v12535 = vpop.f32.mrf.mxu0
    %v12536 = vadd.f32 %v12247, %v12535
    %v12537 = vpop.f32.mrf.mxu0
    %12538 = vmatprep.mubr.bf16.mxu0 0
    %12539 = vmatmul.mubr.bf16.gmra.mxu0 %v11743
    %v12540 = vpop.f32.mrf.mxu0
    %v12541 = vadd.f32 %v12252, %v12540
    %v12542 = vpop.f32.mrf.mxu0
    %v12543 = vpop.f32.mrf.mxu0
    %v12544 = vadd.f32 %v12255, %v12543
    %v12545 = vpop.f32.mrf.mxu0
    %12546 = vmatprep.mubr.bf16.mxu0 0
    %12547 = vmatmul.mubr.bf16.gmra.mxu0 %v11746
    %v12548 = vpop.f32.mrf.mxu0
    %v12549 = vadd.f32 %v12260, %v12548
    %v12550 = vpop.f32.mrf.mxu0
    %v12551 = vpop.f32.mrf.mxu0
    %v12552 = vadd.f32 %v12263, %v12551
    %v12553 = vpop.f32.mrf.mxu0
    %12554 = vmatprep.mubr.bf16.mxu0 0
    %12555 = vmatmul.mubr.bf16.gmra.mxu0 %v11749
    %v12556 = vpop.f32.mrf.mxu0
    %v12557 = vadd.f32 %v12268, %v12556
    %v12558 = vpop.f32.mrf.mxu0
    %v12559 = vpop.f32.mrf.mxu0
    %v12560 = vadd.f32 %v12271, %v12559
    %v12561 = vpop.f32.mrf.mxu0
    %12562 = vmatprep.mubr.bf16.mxu0 0
    %12563 = vmatmul.mubr.bf16.gmra.mxu0 %v11752
    %v12564 = vpop.f32.mrf.mxu0
    %v12565 = vadd.f32 %v12276, %v12564
    %v12566 = vpop.f32.mrf.mxu0
    %v12567 = vpop.f32.mrf.mxu0
    %v12568 = vadd.f32 %v12279, %v12567
    %v12569 = vpop.f32.mrf.mxu0
    %12570 = vmatprep.mubr.bf16.mxu0 0
    %12571 = vmatmul.mubr.bf16.gmra.mxu0 %v11755
    %v12572 = vpop.f32.mrf.mxu0
    %v12573 = vadd.f32 %v12284, %v12572
    %v12574 = vpop.f32.mrf.mxu0
    %v12575 = vpop.f32.mrf.mxu0
    %v12576 = vadd.f32 %v12287, %v12575
    %v12577 = vpop.f32.mrf.mxu0
    %12578 = vmatprep.mubr.bf16.mxu0 0
    %12579 = vmatmul.mubr.bf16.gmra.mxu0 %v11758
    %v12580 = vpop.f32.mrf.mxu0
    %v12581 = vadd.f32 %v12292, %v12580
    %v12582 = vpop.f32.mrf.mxu0
    %v12583 = vpop.f32.mrf.mxu0
    %v12584 = vadd.f32 %v12295, %v12583
    %v12585 = vpop.f32.mrf.mxu0
    %12586 = vmatprep.mubr.bf16.mxu0 0
    %12587 = vmatmul.mubr.bf16.gmra.mxu0 %v11761
    %v12588 = vpop.f32.mrf.mxu0
    %v12589 = vadd.f32 %v12300, %v12588
    %v12590 = vpop.f32.mrf.mxu0
    %v12591 = vpop.f32.mrf.mxu0
    %v12592 = vadd.f32 %v12303, %v12591
    %v12593 = vpop.f32.mrf.mxu0
    %12594 = vmatprep.mubr.bf16.mxu0 0
    %12595 = vmatmul.mubr.bf16.gmra.mxu0 %v11764
    %v12596 = vpop.f32.mrf.mxu0
    %v12597 = vadd.f32 %v12308, %v12596
    %v12598 = vpop.f32.mrf.mxu0
    %v12599 = vpop.f32.mrf.mxu0
    %v12600 = vadd.f32 %v12311, %v12599
    %v12601 = vpop.f32.mrf.mxu0
    %12602 = vmatprep.mubr.bf16.mxu0 0
    %12603 = vmatmul.mubr.bf16.gmra.mxu0 %v11767
    %v12604 = vpop.f32.mrf.mxu0
    %v12605 = vadd.f32 %v12316, %v12604
    %v12606 = vpop.f32.mrf.mxu0
    %v12607 = vpop.f32.mrf.mxu0
    %v12608 = vadd.f32 %v12319, %v12607
    %v12609 = vpop.f32.mrf.mxu0
    %12610 = vmatprep.mubr.bf16.mxu0 0
    %12611 = vmatmul.mubr.bf16.gmra.mxu0 %v11770
    %v12612 = vpop.f32.mrf.mxu0
    %v12613 = vadd.f32 %v12324, %v12612
    %v12614 = vpop.f32.mrf.mxu0
    %v12615 = vpop.f32.mrf.mxu0
    %v12616 = vadd.f32 %v12327, %v12615
    %v12617 = vpop.f32.mrf.mxu0
    %12618 = vmatprep.mubr.bf16.mxu0 0
    %12619 = vmatmul.mubr.bf16.gmra.mxu0 %v11773
    %v12620 = vpop.f32.mrf.mxu0
    %v12621 = vadd.f32 %v12332, %v12620
    %v12622 = vpop.f32.mrf.mxu0
    %v12623 = vpop.f32.mrf.mxu0
    %v12624 = vadd.f32 %v12335, %v12623
    %v12625 = vpop.f32.mrf.mxu0
    %12626 = vmatprep.mubr.bf16.mxu0 0
    %12627 = vmatmul.mubr.bf16.gmra.mxu0 %v11776
    %v12628 = vpop.f32.mrf.mxu0
    %v12629 = vadd.f32 %v12340, %v12628
    %v12630 = vpop.f32.mrf.mxu0
    %v12631 = vpop.f32.mrf.mxu0
    %v12632 = vadd.f32 %v12343, %v12631
    %v12633 = vpop.f32.mrf.mxu0
    %12634 = vmatprep.mubr.bf16.mxu0 0
    %12635 = vmatmul.mubr.bf16.gmra.mxu0 %v11779
    %v12636 = vpop.f32.mrf.mxu0
    %v12637 = vadd.f32 %v12348, %v12636
    %v12638 = vpop.f32.mrf.mxu0
    %v12639 = vpop.f32.mrf.mxu0
    %v12640 = vadd.f32 %v12351, %v12639
    %v12641 = vpop.f32.mrf.mxu0
    %12642 = vmatprep.mubr.bf16.mxu0 0
    %12643 = vmatmul.mubr.bf16.gmra.mxu0 %v11782
    %v12644 = vpop.f32.mrf.mxu0
    %v12645 = vadd.f32 %v12356, %v12644
    %v12646 = vpop.f32.mrf.mxu0
    %v12647 = vpop.f32.mrf.mxu0
    %v12648 = vadd.f32 %v12359, %v12647
    %v12649 = vpop.f32.mrf.mxu0
    %12650 = vdwg.mxu0
    %12651 = vst [vmem:[%s5] sm:$0xff] %v12397
    %12652 = vst [vmem:[%s5 + $0x8] sm:$0xff] %v12400
    %12653 = vst [vmem:[%s5 + $0x10] sm:$0xff] %v12405
    %12654 = vst [vmem:[%s5 + $0x18] sm:$0xff] %v12408
    %12655 = vst [vmem:[%s5 + $0x20] sm:$0xff] %v12413
    %12656 = vst [vmem:[%s5 + $0x28] sm:$0xff] %v12416
    %12657 = vst [vmem:[%s5 + $0x30] sm:$0xff] %v12421
    %12658 = vst [vmem:[%s5 + $0x38] sm:$0xff] %v12424
    %12659 = vst [vmem:[%s5 + $0x40] sm:$0xff] %v12429
    %12660 = vst [vmem:[%s5 + $0x48] sm:$0xff] %v12432
    %12661 = vst [vmem:[%s5 + $0x50] sm:$0xff] %v12437
    %12662 = vst [vmem:[%s5 + $0x58] sm:$0xff] %v12440
    %12663 = vst [vmem:[%s5 + $0x60] sm:$0xff] %v12445
    %12664 = vst [vmem:[%s5 + $0x68] sm:$0xff] %v12448
    %12665 = vst [vmem:[%s5 + $0x70] sm:$0xff] %v12453
    %12666 = vst [vmem:[%s5 + $0x78] sm:$0xff] %v12456
    %12667 = vst [vmem:[%s5 + $0x80] sm:$0xff] %v12461
    %12668 = vst [vmem:[%s5 + $0x88] sm:$0xff] %v12464
    %12669 = vst [vmem:[%s5 + $0x90] sm:$0xff] %v12469
    %12670 = vst [vmem:[%s5 + $0x98] sm:$0xff] %v12472
    %12671 = vst [vmem:[%s5 + $0xa0] sm:$0xff] %v12477
    %12672 = vst [vmem:[%s5 + $0xa8] sm:$0xff] %v12480
    %12673 = vst [vmem:[%s5 + $0xb0] sm:$0xff] %v12485
    %12674 = vst [vmem:[%s5 + $0xb8] sm:$0xff] %v12488
    %12675 = vst [vmem:[%s5 + $0xc0] sm:$0xff] %v12493
    %12676 = vst [vmem:[%s5 + $0xc8] sm:$0xff] %v12496
    %12677 = vst [vmem:[%s5 + $0xd0] sm:$0xff] %v12501
    %12678 = vst [vmem:[%s5 + $0xd8] sm:$0xff] %v12504
    %12679 = vst [vmem:[%s5 + $0xe0] sm:$0xff] %v12509
    %12680 = vst [vmem:[%s5 + $0xe8] sm:$0xff] %v12512
    %12681 = vst [vmem:[%s5 + $0xf0] sm:$0xff] %v12517
    %12682 = vst [vmem:[%s5 + $0xf8] sm:$0xff] %v12520
    %12683 = vst [vmem:[%s5 + $0x100] sm:$0xff] %v12525
    %12684 = vst [vmem:[%s5 + $0x108] sm:$0xff] %v12528
    %12685 = vst [vmem:[%s5 + $0x110] sm:$0xff] %v12533
    %12686 = vst [vmem:[%s5 + $0x118] sm:$0xff] %v12536
    %12687 = vst [vmem:[%s5 + $0x120] sm:$0xff] %v12541
    %12688 = vst [vmem:[%s5 + $0x128] sm:$0xff] %v12544
    %12689 = vst [vmem:[%s5 + $0x130] sm:$0xff] %v12549
    %12690 = vst [vmem:[%s5 + $0x138] sm:$0xff] %v12552
    %12691 = vst [vmem:[%s5 + $0x140] sm:$0xff] %v12557
    %12692 = vst [vmem:[%s5 + $0x148] sm:$0xff] %v12560
    %12693 = vst [vmem:[%s5 + $0x150] sm:$0xff] %v12565
    %12694 = vst [vmem:[%s5 + $0x158] sm:$0xff] %v12568
    %12695 = vst [vmem:[%s5 + $0x160] sm:$0xff] %v12573
    %12696 = vst [vmem:[%s5 + $0x168] sm:$0xff] %v12576
    %12697 = vst [vmem:[%s5 + $0x170] sm:$0xff] %v12581
    %12698 = vst [vmem:[%s5 + $0x178] sm:$0xff] %v12584
    %12699 = vst [vmem:[%s5 + $0x180] sm:$0xff] %v12589
    %12700 = vst [vmem:[%s5 + $0x188] sm:$0xff] %v12592
    %12701 = vst [vmem:[%s5 + $0x190] sm:$0xff] %v12597
    %12702 = vst [vmem:[%s5 + $0x198] sm:$0xff] %v12600
    %12703 = vst [vmem:[%s5 + $0x1a0] sm:$0xff] %v12605
    %12704 = vst [vmem:[%s5 + $0x1a8] sm:$0xff] %v12608
    %12705 = vst [vmem:[%s5 + $0x1b0] sm:$0xff] %v12613
    %12706 = vst [vmem:[%s5 + $0x1b8] sm:$0xff] %v12616
    %12707 = vst [vmem:[%s5 + $0x1c0] sm:$0xff] %v12621
    %12708 = vst [vmem:[%s5 + $0x1c8] sm:$0xff] %v12624
    %12709 = vst [vmem:[%s5 + $0x1d0] sm:$0xff] %v12629
    %12710 = vst [vmem:[%s5 + $0x1d8] sm:$0xff] %v12632
    %12711 = vst [vmem:[%s5 + $0x1e0] sm:$0xff] %v12637
    %12712 = vst [vmem:[%s5 + $0x1e8] sm:$0xff] %v12640
    %12713 = vst [vmem:[%s5 + $0x1f0] sm:$0xff] %v12645
    %12714 = vst [vmem:[%s5 + $0x1f8] sm:$0xff] %v12648
    // Predicated region
    $region30: #{decoder2_forward.1} parent=1 // pred_check
      _
    $region31: #{decoder2_forward.1} parent=1 // pred_check_branch
      %12716 = sbr.rel (0) target = $region33
    $region32: #{decoder2_forward.1} parent=1 // pred_region
      _
    $region33: #{decoder2_forward.1} parent=1 // pred_fallthru
      _
    // Predicated region
    $region34: #{decoder2_forward.1} parent=1 // pred_check
      _
    $region35: #{decoder2_forward.1} parent=1 // pred_check_branch
      %12718 = sbr.rel (0) target = $region37
    $region36: #{decoder2_forward.1} parent=1 // pred_region
      _
    $region37: #{decoder2_forward.1} parent=1 // pred_fallthru
      _
    %12719 = vsyncpa [#allocation6], 1
    %12720 = vsyncpa [#allocation8], 1

</llo_original>
